<compile_context>
chip_gen: v6e
topology: v6e:2x2x1
jax: 0.10.0
libtpu: 0.0.40
codegen_flags: <defaults>
</compile_context>

<pallas_src>
from functools import partial

import jax
import jax.numpy as jnp
from jax.experimental import pallas as pl
from jax.experimental.pallas import tpu as pltpu

_VMEM_LIMIT = 32 * 1024 * 1024
_NUM_CLASSES = 10
_FC3_PAD = 128          # pad fc3 output columns to a full lane tile
_CONV_TILE_M = 2048     # rows of the packed patch matrix per grid step
_MLP_TILE_B = 128       # batch rows per grid step in the MLP head


# ----------------------------------------------------------------------------
# Pallas kernels
# ----------------------------------------------------------------------------
def _conv_block_kernel(g_ref, w_ref, b_ref, o_ref, *, cout):
    """Fused Conv3x3 (BN folded) + ReLU + MaxPool2x2 over a tile of pooled pixels.

    g_ref : (TM, 16*Cin_pad)        bf16  quadrant-packed input patches
    w_ref : (16*Cin_pad, 4*Cout)    bf16  N-fused per-quadrant weights (BN folded)
    b_ref : (1, Cout)               f32   folded conv+BN bias
    o_ref : (TM, Cout)              bf16  pooled, ReLU'd output
    """
    # One wide MXU matmul covering all 4 pooling quadrants along N.
    m = jnp.dot(g_ref[...], w_ref[...], preferred_element_type=jnp.float32)
    # MaxPool over the 4 quadrant lane-groups (f32, before bias/ReLU - exact).
    m01 = jnp.maximum(m[:, 0 * cout:1 * cout], m[:, 1 * cout:2 * cout])
    m23 = jnp.maximum(m[:, 2 * cout:3 * cout], m[:, 3 * cout:4 * cout])
    mm = jnp.maximum(m01, m23)
    # Single final cast (keep all elementwise work in f32).
    o_ref[...] = jnp.maximum(mm + b_ref[...], 0.0).astype(o_ref.dtype)


def _mlp_kernel(x_ref, w1_ref, b1_ref, w2_ref, b2_ref, w3_ref, b3_ref, o_ref):
    """Fused fc1+ReLU+fc2+ReLU+fc3 (Dropout is identity at inference)."""
    h = jnp.dot(x_ref[...], w1_ref[...],
                preferred_element_type=jnp.float32) + b1_ref[...]
    h = jnp.maximum(h, 0.0).astype(jnp.bfloat16)
    h = jnp.dot(h, w2_ref[...],
                preferred_element_type=jnp.float32) + b2_ref[...]
    h = jnp.maximum(h, 0.0).astype(jnp.bfloat16)
    o = jnp.dot(h, w3_ref[...],
                preferred_element_type=jnp.float32) + b3_ref[...]
    o_ref[...] = o.astype(o_ref.dtype)


# ----------------------------------------------------------------------------
# Conv block wrapper (input repack in plain JAX, compute in Pallas)
# ----------------------------------------------------------------------------
def _pack_conv_block_input(x_nhwc, cin_pad):
    """Build (B*P, 16*Cin_pad) quadrant-packed patches, P = H/2 * W/2.

    Row (b, i, j), lane block (t, u) holds padded-input pixel (2i+t, 2j+u),
    t, u in 0..3 - exactly the 4x4 receptive field of pooled output (i, j).
    """
    B, H, W, Cin = x_nhwc.shape
    xp = jnp.pad(x_nhwc.astype(jnp.bfloat16),
                 ((0, 0), (1, 1), (1, 1), (0, cin_pad - Cin)))
    views = [xp[:, t:t + H:2, u:u + W:2, :]
             for t in range(4) for u in range(4)]
    g = jnp.stack(views, axis=3)                 # (B, H/2, W/2, 16, Cin_pad)
    return g.reshape(B * (H // 2) * (W // 2), 16 * cin_pad)


def conv_block(x_nhwc, wqf, bias, *, cin_pad, tile_m=_CONV_TILE_M):
    """Conv2d(3x3, pad=1) + BatchNorm(eval, folded) + ReLU + MaxPool2d(2,2)."""
    B, H, W, _ = x_nhwc.shape
    P = (H // 2) * (W // 2)
    M = B * P
    K = 16 * cin_pad
    cout4 = wqf.shape[-1]
    cout = cout4 // 4
    g = _pack_conv_block_input(x_nhwc, cin_pad)

    tm = min(tile_m, M)                 # M is a multiple of 64 -> sublane-safe
    out = pl.pallas_call(
        partial(_conv_block_kernel, cout=cout),
        out_shape=jax.ShapeDtypeStruct((M, cout), jnp.bfloat16),
        grid=(pl.cdiv(M, tm),),
        in_specs=[
            pl.BlockSpec((tm, K), lambda m: (m, 0)),        # patch rows
            pl.BlockSpec((K, cout4), lambda m: (0, 0)),     # N-fused weights
            pl.BlockSpec((1, cout), lambda m: (0, 0)),      # folded bias
        ],
        out_specs=pl.BlockSpec((tm, cout), lambda m: (m, 0)),
        compiler_params=pltpu.CompilerParams(
            dimension_semantics=("parallel",),
            vmem_limit_bytes=_VMEM_LIMIT,
        ),
    )(g, wqf, bias)
    return out.reshape(B, H // 2, W // 2, cout)


def mlp_head(x, w1, b1, w2, b2, w3, b3, *, tile_b=_MLP_TILE_B):
    """Fused 3-layer classifier head. x: (B, 4096) bf16 (NHWC-flatten order)."""
    B, K1 = x.shape
    N1, N2, N3 = w1.shape[1], w2.shape[1], w3.shape[1]
    tb = min(tile_b, B)
    return pl.pallas_call(
        _mlp_kernel,
        out_shape=jax.ShapeDtypeStruct((B, N3), jnp.float32),
        grid=(pl.cdiv(B, tb),),
        in_specs=[
            pl.BlockSpec((tb, K1), lambda i: (i, 0)),
            pl.BlockSpec((K1, N1), lambda i: (0, 0)),
            pl.BlockSpec((1, N1), lambda i: (0, 0)),
            pl.BlockSpec((N1, N2), lambda i: (0, 0)),
            pl.BlockSpec((1, N2), lambda i: (0, 0)),
            pl.BlockSpec((N2, N3), lambda i: (0, 0)),
            pl.BlockSpec((1, N3), lambda i: (0, 0)),
        ],
        out_specs=pl.BlockSpec((tb, N3), lambda i: (i, 0)),
        compiler_params=pltpu.CompilerParams(
            dimension_semantics=("parallel",),
            vmem_limit_bytes=_VMEM_LIMIT,
        ),
    )(x, w1, b1, w2, b2, w3, b3)


# ----------------------------------------------------------------------------
# Parameter packing (one-time, trace-time): fold BN, fuse quadrants along N,
# permute fc1 rows for NHWC flatten, pad fc3 to 128 lanes, cast to bf16.
# ----------------------------------------------------------------------------
def _pack_conv_block_params(w_torch, b_conv, gamma, beta, mean, var, eps, cin_pad):
    Cout, Cin, KH, KW = w_torch.shape
    assert (KH, KW) == (3, 3)
    s = gamma / jnp.sqrt(var + eps)                        # (Cout,) BN scale
    bias = (b_conv - mean) * s + beta                      # folded bias
    # (KH, KW, Cin_pad, Cout), BN scale folded into output channels.
    w_hw = jnp.transpose(w_torch, (2, 3, 1, 0)) * s[None, None, None, :]
    if cin_pad > Cin:
        w_hw = jnp.pad(w_hw, ((0, 0), (0, 0), (0, cin_pad - Cin), (0, 0)))
    # Quadrant (a, b) weight: tap (t, u) = W[t-a, u-b] if valid else 0.
    wq = jnp.zeros((2, 2, 4, 4, cin_pad, Cout), w_hw.dtype)
    for a in range(2):
        for b in range(2):
            for dh in range(3):
                for dw in range(3):
                    wq = wq.at[a, b, a + dh, b + dw].set(w_hw[dh, dw])
    # N-fused layout: rows (t, u, cin) -> K = 16*cin_pad ; cols q*Cout + co.
    wq = wq.reshape(4, 4, 4, cin_pad, Cout)                # (q, t, u, cin, co)
    wq = jnp.transpose(wq, (1, 2, 3, 0, 4))                # (t, u, cin, q, co)
    wqf = wq.reshape(16 * cin_pad, 4 * Cout).astype(jnp.bfloat16)
    return wqf, bias.reshape(1, Cout).astype(jnp.float32)


def pack_params(p, eps=1e-5):
    packed = {}
    packed["wq1"], packed["cb1"] = _pack_conv_block_params(
        p["conv1_w"], p["conv1_b"], p["bn1_gamma"], p["bn1_beta"],
        p["bn1_mean"], p["bn1_var"], eps, cin_pad=8)
    packed["wq2"], packed["cb2"] = _pack_conv_block_params(
        p["conv2_w"], p["conv2_b"], p["bn2_gamma"], p["bn2_beta"],
        p["bn2_mean"], p["bn2_var"], eps, cin_pad=32)
    # fc1: permute input rows from torch NCHW-flatten (c,h,w) to NHWC-flatten
    # (h,w,c) so no runtime activation transpose is needed.
    w1 = p["fc1_w"].reshape(512, 64, 8, 8).transpose(2, 3, 1, 0).reshape(4096, 512)
    packed["fc1_w"] = w1.astype(jnp.bfloat16)
    packed["fc1_b"] = p["fc1_b"].reshape(1, 512).astype(jnp.float32)
    packed["fc2_w"] = p["fc2_w"].T.astype(jnp.bfloat16)     # (512, 256)
    packed["fc2_b"] = p["fc2_b"].reshape(1, 256).astype(jnp.float32)
    # fc3: zero-pad output columns 10 -> 128 for unmasked full-lane stores.
    w3 = p["fc3_w"].T.astype(jnp.bfloat16)                  # (256, 10)
    packed["fc3_w"] = jnp.pad(w3, ((0, 0), (0, _FC3_PAD - _NUM_CLASSES)))
    b3 = p["fc3_b"].reshape(1, _NUM_CLASSES).astype(jnp.float32)
    packed["fc3_b"] = jnp.pad(b3, ((0, 0), (0, _FC3_PAD - _NUM_CLASSES)))
    return packed


# ----------------------------------------------------------------------------
# Model
# ----------------------------------------------------------------------------
def init_params(key):
    ks = jax.random.split(key, 20)
    p = {}
    p["conv1_w"] = 0.10 * jax.random.normal(ks[0], (32, 3, 3, 3), jnp.float32)
    p["conv1_b"] = 0.10 * jax.random.normal(ks[1], (32,), jnp.float32)
    g1 = 1.0 + 0.10 * jax.random.normal(ks[2], (32,), jnp.float32)
    p["bn1_gamma"] = g1.at[:3].multiply(-1.0)               # exercise gamma < 0
    p["bn1_beta"] = 0.10 * jax.random.normal(ks[3], (32,), jnp.float32)
    p["bn1_mean"] = 0.20 * jax.random.normal(ks[14], (32,), jnp.float32)
    p["bn1_var"] = 0.5 + jax.random.uniform(ks[15], (32,), jnp.float32)
    p["conv2_w"] = 0.05 * jax.random.normal(ks[4], (64, 32, 3, 3), jnp.float32)
    p["conv2_b"] = 0.10 * jax.random.normal(ks[5], (64,), jnp.float32)
    g2 = 1.0 + 0.10 * jax.random.normal(ks[6], (64,), jnp.float32)
    p["bn2_gamma"] = g2.at[:3].multiply(-1.0)
    p["bn2_beta"] = 0.10 * jax.random.normal(ks[7], (64,), jnp.float32)
    p["bn2_mean"] = 0.20 * jax.random.normal(ks[16], (64,), jnp.float32)
    p["bn2_var"] = 0.5 + jax.random.uniform(ks[17], (64,), jnp.float32)
    p["fc1_w"] = 0.02 * jax.random.normal(ks[8], (512, 64 * 8 * 8), jnp.float32)
    p["fc1_b"] = 0.02 * jax.random.normal(ks[9], (512,), jnp.float32)
    p["fc2_w"] = 0.04 * jax.random.normal(ks[10], (256, 512), jnp.float32)
    p["fc2_b"] = 0.04 * jax.random.normal(ks[11], (256,), jnp.float32)
    p["fc3_w"] = 0.06 * jax.random.normal(ks[12], (10, 256), jnp.float32)
    p["fc3_b"] = 0.06 * jax.random.normal(ks[13], (10,), jnp.float32)
    return p


def cnn_forward(packed, x_nchw):
    # External API is NCHW (PyTorch); internal layout is NHWC bf16.
    x = jnp.transpose(x_nchw, (0, 2, 3, 1)).astype(jnp.float32)
    x = conv_block(x, packed["wq1"], packed["cb1"], cin_pad=8)    # (B,16,16,32)
    x = conv_block(x, packed["wq2"], packed["cb2"], cin_pad=32)   # (B, 8, 8,64)
    B = x.shape[0]
    x = x.reshape(B, 8 * 8 * 64)          # NHWC flatten; fc1_w rows pre-permuted
    logits = mlp_head(x, packed["fc1_w"], packed["fc1_b"],
                      packed["fc2_w"], packed["fc2_b"],
                      packed["fc3_w"], packed["fc3_b"])
    return logits[:, :_NUM_CLASSES]


# ----------------------------------------------------------------------------
# Pure-JAX reference of the PyTorch module (eval mode) for validation.
# ----------------------------------------------------------------------------
def _reference_forward(p, x_nchw, eps=1e-5):
    def block(x, w, b, gamma, beta, mean, var):
        y = jax.lax.conv_general_dilated(
            x, w, window_strides=(1, 1), padding=((1, 1), (1, 1)),
            dimension_numbers=("NCHW", "OIHW", "NCHW"))
        y = y + b[None, :, None, None]
        s = gamma / jnp.sqrt(var + eps)
        y = s[None, :, None, None] * (y - mean[None, :, None, None]) \
            + beta[None, :, None, None]
        y = jnp.maximum(y, 0.0)
        return jax.lax.reduce_window(y, -jnp.inf, jax.lax.max,
                                     (1, 1, 2, 2), (1, 1, 2, 2), "VALID")

    x = block(x_nchw, p["conv1_w"], p["conv1_b"], p["bn1_gamma"],
              p["bn1_beta"], p["bn1_mean"], p["bn1_var"])
    x = block(x, p["conv2_w"], p["conv2_b"], p["bn2_gamma"],
              p["bn2_beta"], p["bn2_mean"], p["bn2_var"])
    x = x.reshape(x.shape[0], -1)                 # NCHW flatten (c, h, w)
    x = jnp.maximum(x @ p["fc1_w"].T + p["fc1_b"], 0.0)
    x = jnp.maximum(x @ p["fc2_w"].T + p["fc2_b"], 0.0)
    return x @ p["fc3_w"].T + p["fc3_b"]


if __name__ == "__main__":
    # Spatial size must be 32x32 so features flatten to 64*8*8 (per the module).
    x = jax.random.normal(jax.random.PRNGKey(0), (2, 3, 32, 32), jnp.float32)
    params = init_params(jax.random.PRNGKey(42))
    packed = pack_params(params)            # one-time weight folding / packing

    fwd = jax.jit(cnn_forward)
    out = jax.block_until_ready(fwd(packed, x))
    assert out.shape == (2, _NUM_CLASSES), out.shape
    assert bool(jnp.all(jnp.isfinite(out)))

    # Validate against the f32 reference with a bf16-appropriate tolerance.
    ref = jax.block_until_ready(jax.jit(_reference_forward)(params, x))
    tol = 0.05 + 0.05 * float(jnp.max(jnp.abs(ref)))
    err = float(jnp.max(jnp.abs(out - ref)))
    assert err < tol, f"max abs err {err} vs tol {tol}"

    print("KERNEL_OK")
</pallas_src>

<mosaic_0001>
module attributes {stable_mosaic.version = 11 : i64} {
  func.func @_conv_block_kernel(%arg0: i32, %arg1: memref<512x128xbf16, #tpu.memory_space<vmem>>, %arg2: memref<128x128xbf16, #tpu.memory_space<vmem>>, %arg3: memref<1x32xf32, #tpu.memory_space<vmem>>, %arg4: memref<512x32xbf16, #tpu.memory_space<vmem>>) attributes {dimension_semantics = [#tpu.dimension_semantics<parallel>], iteration_bounds = array<i64: 1>, scalar_prefetch = 0 : i64, scratch_operands = 0 : i64, tpu.core_type = #tpu.core_type<tc>, window_params = [{transform_indices = @transform_0, window_bounds = array<i64: 512, 128>}, {pipeline_mode = #tpu.pipeline_mode<synchronous>, transform_indices = @transform_1, window_bounds = array<i64: 128, 128>}, {pipeline_mode = #tpu.pipeline_mode<synchronous>, transform_indices = @transform_2, window_bounds = array<i64: 1, 32>}, {transform_indices = @transform_3, window_bounds = array<i64: 512, 32>}]} {
    %c0 = arith.constant 0 : index
    %c0_0 = arith.constant 0 : index
    %0 = vector.load %arg1[%c0, %c0_0] : memref<512x128xbf16, #tpu.memory_space<vmem>>, vector<512x128xbf16>
    %c0_1 = arith.constant 0 : index
    %c0_2 = arith.constant 0 : index
    %1 = vector.load %arg2[%c0_1, %c0_2] : memref<128x128xbf16, #tpu.memory_space<vmem>>, vector<128x128xbf16>
    %cst = arith.constant dense<0.000000e+00> : vector<512x128xf32>
    %2 = tpu.matmul %0, %1, %cst {dimension_numbers = #tpu.dot_dimension_numbers<[1], [0], [0], [1], [0, 0, 1, 1], [], []>} : vector<512x128xbf16>, vector<128x128xbf16>, vector<512x128xf32> -> vector<512x128xf32>
    %3 = vector.extract_strided_slice %2 {offsets = [0, 0], sizes = [512, 32], strides = [1, 1]} : vector<512x128xf32> to vector<512x32xf32>
    %4 = vector.extract_strided_slice %2 {offsets = [0, 32], sizes = [512, 32], strides = [1, 1]} : vector<512x128xf32> to vector<512x32xf32>
    %5 = arith.maximumf %3, %4 : vector<512x32xf32>
    %6 = vector.extract_strided_slice %2 {offsets = [0, 64], sizes = [512, 32], strides = [1, 1]} : vector<512x128xf32> to vector<512x32xf32>
    %7 = vector.extract_strided_slice %2 {offsets = [0, 96], sizes = [512, 32], strides = [1, 1]} : vector<512x128xf32> to vector<512x32xf32>
    %8 = arith.maximumf %6, %7 : vector<512x32xf32>
    %9 = arith.maximumf %5, %8 : vector<512x32xf32>
    %c0_3 = arith.constant 0 : index
    %c0_4 = arith.constant 0 : index
    %10 = vector.load %arg3[%c0_3, %c0_4] : memref<1x32xf32, #tpu.memory_space<vmem>>, vector<1x32xf32>
    %11 = vector.broadcast %10 : vector<1x32xf32> to vector<512x32xf32>
    %12 = arith.addf %9, %11 : vector<512x32xf32>
    %cst_5 = arith.constant 0.000000e+00 : f32
    %13 = vector.broadcast %cst_5 : f32 to vector<512x32xf32>
    %14 = arith.maximumf %12, %13 : vector<512x32xf32>
    %15 = arith.truncf %14 : vector<512x32xf32> to vector<512x32xbf16>
    %c0_6 = arith.constant 0 : index
    %c0_7 = arith.constant 0 : index
    %16 = vector.load %arg4[%c0_6, %c0_7] : memref<512x32xbf16, #tpu.memory_space<vmem>>, vector<512x32xbf16>
    tpu.vector_store %arg4[%c0_6, %c0_7], %15 {strides = array<i32>} : memref<512x32xbf16, #tpu.memory_space<vmem>>, vector<512x32xbf16>,
    return
  }
  func.func @transform_0(%arg0: i32) -> (i32, i32) {
    %c0_i32 = arith.constant 0 : i32
    %c0_i32_0 = arith.constant 0 : i32
    return %arg0, %c0_i32 : i32, i32
  }
  func.func @transform_1(%arg0: i32) -> (i32, i32) {
    %c0_i32 = arith.constant 0 : i32
    %c0_i32_0 = arith.constant 0 : i32
    %c0_i32_1 = arith.constant 0 : i32
    return %c0_i32, %c0_i32_0 : i32, i32
  }
  func.func @transform_2(%arg0: i32) -> (i32, i32) {
    %c0_i32 = arith.constant 0 : i32
    %c0_i32_0 = arith.constant 0 : i32
    %c0_i32_1 = arith.constant 0 : i32
    return %c0_i32, %c0_i32_0 : i32, i32
  }
  func.func @transform_3(%arg0: i32) -> (i32, i32) {
    %c0_i32 = arith.constant 0 : i32
    %c0_i32_0 = arith.constant 0 : i32
    return %arg0, %c0_i32 : i32, i32
  }
}

module attributes {stable_mosaic.version = 11 : i64} {
  func.func @_conv_block_kernel(%arg0: i32, %arg1: memref<128x512xbf16, #tpu.memory_space<vmem>>, %arg2: memref<512x256xbf16, #tpu.memory_space<vmem>>, %arg3: memref<1x64xf32, #tpu.memory_space<vmem>>, %arg4: memref<128x64xbf16, #tpu.memory_space<vmem>>) attributes {dimension_semantics = [#tpu.dimension_semantics<parallel>], iteration_bounds = array<i64: 1>, scalar_prefetch = 0 : i64, scratch_operands = 0 : i64, tpu.core_type = #tpu.core_type<tc>, window_params = [{transform_indices = @transform_0, window_bounds = array<i64: 128, 512>}, {pipeline_mode = #tpu.pipeline_mode<synchronous>, transform_indices = @transform_1, window_bounds = array<i64: 512, 256>}, {pipeline_mode = #tpu.pipeline_mode<synchronous>, transform_indices = @transform_2, window_bounds = array<i64: 1, 64>}, {transform_indices = @transform_3, window_bounds = array<i64: 128, 64>}]} {
    %c0 = arith.constant 0 : index
    %c0_0 = arith.constant 0 : index
    %0 = vector.load %arg1[%c0, %c0_0] : memref<128x512xbf16, #tpu.memory_space<vmem>>, vector<128x512xbf16>
    %c0_1 = arith.constant 0 : index
    %c0_2 = arith.constant 0 : index
    %1 = vector.load %arg2[%c0_1, %c0_2] : memref<512x256xbf16, #tpu.memory_space<vmem>>, vector<512x256xbf16>
    %cst = arith.constant dense<0.000000e+00> : vector<128x256xf32>
    %2 = tpu.matmul %0, %1, %cst {dimension_numbers = #tpu.dot_dimension_numbers<[1], [0], [0], [1], [0, 0, 1, 1], [], []>} : vector<128x512xbf16>, vector<512x256xbf16>, vector<128x256xf32> -> vector<128x256xf32>
    %3 = vector.extract_strided_slice %2 {offsets = [0, 0], sizes = [128, 64], strides = [1, 1]} : vector<128x256xf32> to vector<128x64xf32>
    %4 = vector.extract_strided_slice %2 {offsets = [0, 64], sizes = [128, 64], strides = [1, 1]} : vector<128x256xf32> to vector<128x64xf32>
    %5 = arith.maximumf %3, %4 : vector<128x64xf32>
    %6 = vector.extract_strided_slice %2 {offsets = [0, 128], sizes = [128, 64], strides = [1, 1]} : vector<128x256xf32> to vector<128x64xf32>
    %7 = vector.extract_strided_slice %2 {offsets = [0, 192], sizes = [128, 64], strides = [1, 1]} : vector<128x256xf32> to vector<128x64xf32>
    %8 = arith.maximumf %6, %7 : vector<128x64xf32>
    %9 = arith.maximumf %5, %8 : vector<128x64xf32>
    %c0_3 = arith.constant 0 : index
    %c0_4 = arith.constant 0 : index
    %10 = vector.load %arg3[%c0_3, %c0_4] : memref<1x64xf32, #tpu.memory_space<vmem>>, vector<1x64xf32>
    %11 = vector.broadcast %10 : vector<1x64xf32> to vector<128x64xf32>
    %12 = arith.addf %9, %11 : vector<128x64xf32>
    %cst_5 = arith.constant 0.000000e+00 : f32
    %13 = vector.broadcast %cst_5 : f32 to vector<128x64xf32>
    %14 = arith.maximumf %12, %13 : vector<128x64xf32>
    %15 = arith.truncf %14 : vector<128x64xf32> to vector<128x64xbf16>
    %c0_6 = arith.constant 0 : index
    %c0_7 = arith.constant 0 : index
    %16 = vector.load %arg4[%c0_6, %c0_7] : memref<128x64xbf16, #tpu.memory_space<vmem>>, vector<128x64xbf16>
    tpu.vector_store %arg4[%c0_6, %c0_7], %15 {strides = array<i32>} : memref<128x64xbf16, #tpu.memory_space<vmem>>, vector<128x64xbf16>,
    return
  }
  func.func @transform_0(%arg0: i32) -> (i32, i32) {
    %c0_i32 = arith.constant 0 : i32
    %c0_i32_0 = arith.constant 0 : i32
    return %arg0, %c0_i32 : i32, i32
  }
  func.func @transform_1(%arg0: i32) -> (i32, i32) {
    %c0_i32 = arith.constant 0 : i32
    %c0_i32_0 = arith.constant 0 : i32
    %c0_i32_1 = arith.constant 0 : i32
    return %c0_i32, %c0_i32_0 : i32, i32
  }
  func.func @transform_2(%arg0: i32) -> (i32, i32) {
    %c0_i32 = arith.constant 0 : i32
    %c0_i32_0 = arith.constant 0 : i32
    %c0_i32_1 = arith.constant 0 : i32
    return %c0_i32, %c0_i32_0 : i32, i32
  }
  func.func @transform_3(%arg0: i32) -> (i32, i32) {
    %c0_i32 = arith.constant 0 : i32
    %c0_i32_0 = arith.constant 0 : i32
    return %arg0, %c0_i32 : i32, i32
  }
}

module attributes {stable_mosaic.version = 11 : i64} {
  func.func @_mlp_kernel(%arg0: i32, %arg1: memref<2x4096xbf16, #tpu.memory_space<vmem>>, %arg2: memref<4096x512xbf16, #tpu.memory_space<vmem>>, %arg3: memref<1x512xf32, #tpu.memory_space<vmem>>, %arg4: memref<512x256xbf16, #tpu.memory_space<vmem>>, %arg5: memref<1x256xf32, #tpu.memory_space<vmem>>, %arg6: memref<256x128xbf16, #tpu.memory_space<vmem>>, %arg7: memref<1x128xf32, #tpu.memory_space<vmem>>, %arg8: memref<2x128xf32, #tpu.memory_space<vmem>>) attributes {dimension_semantics = [#tpu.dimension_semantics<parallel>], iteration_bounds = array<i64: 1>, scalar_prefetch = 0 : i64, scratch_operands = 0 : i64, tpu.core_type = #tpu.core_type<tc>, window_params = [{transform_indices = @transform_0, window_bounds = array<i64: 2, 4096>}, {pipeline_mode = #tpu.pipeline_mode<synchronous>, transform_indices = @transform_1, window_bounds = array<i64: 4096, 512>}, {pipeline_mode = #tpu.pipeline_mode<synchronous>, transform_indices = @transform_2, window_bounds = array<i64: 1, 512>}, {pipeline_mode = #tpu.pipeline_mode<synchronous>, transform_indices = @transform_3, window_bounds = array<i64: 512, 256>}, {pipeline_mode = #tpu.pipeline_mode<synchronous>, transform_indices = @transform_4, window_bounds = array<i64: 1, 256>}, {pipeline_mode = #tpu.pipeline_mode<synchronous>, transform_indices = @transform_5, window_bounds = array<i64: 256, 128>}, {pipeline_mode = #tpu.pipeline_mode<synchronous>, transform_indices = @transform_6, window_bounds = array<i64: 1, 128>}, {transform_indices = @transform_7, window_bounds = array<i64: 2, 128>}]} {
    %c0 = arith.constant 0 : index
    %c0_0 = arith.constant 0 : index
    %0 = vector.load %arg1[%c0, %c0_0] : memref<2x4096xbf16, #tpu.memory_space<vmem>>, vector<2x4096xbf16>
    %c0_1 = arith.constant 0 : index
    %c0_2 = arith.constant 0 : index
    %1 = vector.load %arg2[%c0_1, %c0_2] : memref<4096x512xbf16, #tpu.memory_space<vmem>>, vector<4096x512xbf16>
    %cst = arith.constant dense<0.000000e+00> : vector<2x512xf32>
    %2 = tpu.matmul %0, %1, %cst {dimension_numbers = #tpu.dot_dimension_numbers<[1], [0], [0], [1], [0, 0, 1, 1], [], []>} : vector<2x4096xbf16>, vector<4096x512xbf16>, vector<2x512xf32> -> vector<2x512xf32>
    %c0_3 = arith.constant 0 : index
    %c0_4 = arith.constant 0 : index
    %3 = vector.load %arg3[%c0_3, %c0_4] : memref<1x512xf32, #tpu.memory_space<vmem>>, vector<1x512xf32>
    %4 = vector.broadcast %3 : vector<1x512xf32> to vector<2x512xf32>
    %5 = arith.addf %2, %4 : vector<2x512xf32>
    %cst_5 = arith.constant 0.000000e+00 : f32
    %6 = vector.broadcast %cst_5 : f32 to vector<2x512xf32>
    %7 = arith.maximumf %5, %6 : vector<2x512xf32>
    %8 = arith.truncf %7 : vector<2x512xf32> to vector<2x512xbf16>
    %c0_6 = arith.constant 0 : index
    %c0_7 = arith.constant 0 : index
    %9 = vector.load %arg4[%c0_6, %c0_7] : memref<512x256xbf16, #tpu.memory_space<vmem>>, vector<512x256xbf16>
    %cst_8 = arith.constant dense<0.000000e+00> : vector<2x256xf32>
    %10 = tpu.matmul %8, %9, %cst_8 {dimension_numbers = #tpu.dot_dimension_numbers<[1], [0], [0], [1], [0, 0, 1, 1], [], []>} : vector<2x512xbf16>, vector<512x256xbf16>, vector<2x256xf32> -> vector<2x256xf32>
    %c0_9 = arith.constant 0 : index
    %c0_10 = arith.constant 0 : index
    %11 = vector.load %arg5[%c0_9, %c0_10] : memref<1x256xf32, #tpu.memory_space<vmem>>, vector<1x256xf32>
    %12 = vector.broadcast %11 : vector<1x256xf32> to vector<2x256xf32>
    %13 = arith.addf %10, %12 : vector<2x256xf32>
    %cst_11 = arith.constant 0.000000e+00 : f32
    %14 = vector.broadcast %cst_11 : f32 to vector<2x256xf32>
    %15 = arith.maximumf %13, %14 : vector<2x256xf32>
    %16 = arith.truncf %15 : vector<2x256xf32> to vector<2x256xbf16>
    %c0_12 = arith.constant 0 : index
    %c0_13 = arith.constant 0 : index
    %17 = vector.load %arg6[%c0_12, %c0_13] : memref<256x128xbf16, #tpu.memory_space<vmem>>, vector<256x128xbf16>
    %cst_14 = arith.constant dense<0.000000e+00> : vector<2x128xf32>
    %18 = tpu.matmul %16, %17, %cst_14 {dimension_numbers = #tpu.dot_dimension_numbers<[1], [0], [0], [1], [0, 0, 1, 1], [], []>} : vector<2x256xbf16>, vector<256x128xbf16>, vector<2x128xf32> -> vector<2x128xf32>
    %c0_15 = arith.constant 0 : index
    %c0_16 = arith.constant 0 : index
    %19 = vector.load %arg7[%c0_15, %c0_16] : memref<1x128xf32, #tpu.memory_space<vmem>>, vector<1x128xf32>
    %20 = vector.broadcast %19 : vector<1x128xf32> to vector<2x128xf32>
    %21 = arith.addf %18, %20 : vector<2x128xf32>
    %c0_17 = arith.constant 0 : index
    %c0_18 = arith.constant 0 : index
    %22 = vector.load %arg8[%c0_17, %c0_18] : memref<2x128xf32, #tpu.memory_space<vmem>>, vector<2x128xf32>
    tpu.vector_store %arg8[%c0_17, %c0_18], %21 {strides = array<i32>} : memref<2x128xf32, #tpu.memory_space<vmem>>, vector<2x128xf32>,
    return
  }
  func.func @transform_0(%arg0: i32) -> (i32, i32) {
    %c0_i32 = arith.constant 0 : i32
    %c0_i32_0 = arith.constant 0 : i32
    return %arg0, %c0_i32 : i32, i32
  }
  func.func @transform_1(%arg0: i32) -> (i32, i32) {
    %c0_i32 = arith.constant 0 : i32
    %c0_i32_0 = arith.constant 0 : i32
    %c0_i32_1 = arith.constant 0 : i32
    return %c0_i32, %c0_i32_0 : i32, i32
  }
  func.func @transform_2(%arg0: i32) -> (i32, i32) {
    %c0_i32 = arith.constant 0 : i32
    %c0_i32_0 = arith.constant 0 : i32
    %c0_i32_1 = arith.constant 0 : i32
    return %c0_i32, %c0_i32_0 : i32, i32
  }
  func.func @transform_3(%arg0: i32) -> (i32, i32) {
    %c0_i32 = arith.constant 0 : i32
    %c0_i32_0 = arith.constant 0 : i32
    %c0_i32_1 = arith.constant 0 : i32
    return %c0_i32, %c0_i32_0 : i32, i32
  }
  func.func @transform_4(%arg0: i32) -> (i32, i32) {
    %c0_i32 = arith.constant 0 : i32
    %c0_i32_0 = arith.constant 0 : i32
    %c0_i32_1 = arith.constant 0 : i32
    return %c0_i32, %c0_i32_0 : i32, i32
  }
  func.func @transform_5(%arg0: i32) -> (i32, i32) {
    %c0_i32 = arith.constant 0 : i32
    %c0_i32_0 = arith.constant 0 : i32
    %c0_i32_1 = arith.constant 0 : i32
    return %c0_i32, %c0_i32_0 : i32, i32
  }
  func.func @transform_6(%arg0: i32) -> (i32, i32) {
    %c0_i32 = arith.constant 0 : i32
    %c0_i32_0 = arith.constant 0 : i32
    %c0_i32_1 = arith.constant 0 : i32
    return %c0_i32, %c0_i32_0 : i32, i32
  }
  func.func @transform_7(%arg0: i32) -> (i32, i32) {
    %c0_i32 = arith.constant 0 : i32
    %c0_i32_0 = arith.constant 0 : i32
    return %arg0, %c0_i32 : i32, i32
  }
}

</mosaic_0001>

<llo_original>
// kernel: cnn_forward.3
$region0: #{cnn_forward.3}
  #allocation0 [shape = 'u32[]', space=smem, size = 0x4, offset = 0x4, fixed_abs, tag = 'smem constant byte address 0x4 - core index']
  #allocation1 [shape = 'u32[144,128]{1,0:T(1,128)}', space=vmem, size = 0x12000, scoped, tag = 'internal scratch']
  %s0 = inlined_call_operand.vmem [shape: bf16[512,128], index: 0, kind: input, shape index: {}]
  %s1 = inlined_call_operand.vmem [shape: bf16[128,128], index: 1, kind: input, shape index: {}]
  %s2 = inlined_call_operand.vmem [shape: f32[1,32], index: 2, kind: input, shape index: {}]
  %s3 = inlined_call_operand.vmem [shape: bf16[512,32], index: 3, kind: output, shape index: {}]
  %s4 = sld [smem:[#allocation0]]
  $region22: #{cnn_forward.3} parent=0
    _
  %s6 = ssub.s32 1, %s4
  %s7 = scalar_select 0, %s6, %s4
  // Predicated region
  $region2: #{cnn_forward.3} parent=0 // pred_check
    _
  $region3: #{cnn_forward.3} parent=0 // pred_check_branch
    %9 = sbr.rel (0) target = $region5
  $region4: #{cnn_forward.3} parent=0 // pred_region
    _
  $region5: #{cnn_forward.3} parent=0 // pred_fallthru
    _
  // Predicated region
  $region6: #{cnn_forward.3} parent=0 // pred_check
    _
  $region7: #{cnn_forward.3} parent=0 // pred_check_branch
    %11 = sbr.rel (0) target = $region9
  $region8: #{cnn_forward.3} parent=0 // pred_region
    _
  $region9: #{cnn_forward.3} parent=0 // pred_fallthru
    _
  // Predicated region
  $region10: #{cnn_forward.3} parent=0 // pred_check
    _
  $region11: #{cnn_forward.3} parent=0 // pred_check_branch
    %13 = sbr.rel (0) target = $region13
  $region12: #{cnn_forward.3} parent=0 // pred_region
    _
  $region13: #{cnn_forward.3} parent=0 // pred_fallthru
    _
  %v15 = vld [vmem:[%s0] sm:$0xf]
  %v16 = vld [vmem:[%s0 + $0x4] sm:$0xf]
  %v17 = vld [vmem:[%s0 + $0x8] sm:$0xf]
  %v18 = vld [vmem:[%s0 + $0xc] sm:$0xf]
  %v19 = vld [vmem:[%s0 + $0x10] sm:$0xf]
  %v20 = vld [vmem:[%s0 + $0x14] sm:$0xf]
  %v21 = vld [vmem:[%s0 + $0x18] sm:$0xf]
  %v22 = vld [vmem:[%s0 + $0x1c] sm:$0xf]
  %v23 = vld [vmem:[%s0 + $0x20] sm:$0xf]
  %v24 = vld [vmem:[%s0 + $0x24] sm:$0xf]
  %v25 = vld [vmem:[%s0 + $0x28] sm:$0xf]
  %v26 = vld [vmem:[%s0 + $0x2c] sm:$0xf]
  %v27 = vld [vmem:[%s0 + $0x30] sm:$0xf]
  %v28 = vld [vmem:[%s0 + $0x34] sm:$0xf]
  %v29 = vld [vmem:[%s0 + $0x38] sm:$0xf]
  %v30 = vld [vmem:[%s0 + $0x3c] sm:$0xf]
  %v31 = vld [vmem:[%s0 + $0x40] sm:$0xf]
  %v32 = vld [vmem:[%s0 + $0x44] sm:$0xf]
  %v33 = vld [vmem:[%s0 + $0x48] sm:$0xf]
  %v34 = vld [vmem:[%s0 + $0x4c] sm:$0xf]
  %v35 = vld [vmem:[%s0 + $0x50] sm:$0xf]
  %v36 = vld [vmem:[%s0 + $0x54] sm:$0xf]
  %v37 = vld [vmem:[%s0 + $0x58] sm:$0xf]
  %v38 = vld [vmem:[%s0 + $0x5c] sm:$0xf]
  %v39 = vld [vmem:[%s0 + $0x60] sm:$0xf]
  %v40 = vld [vmem:[%s0 + $0x64] sm:$0xf]
  %v41 = vld [vmem:[%s0 + $0x68] sm:$0xf]
  %v42 = vld [vmem:[%s0 + $0x6c] sm:$0xf]
  %v43 = vld [vmem:[%s0 + $0x70] sm:$0xf]
  %v44 = vld [vmem:[%s0 + $0x74] sm:$0xf]
  %v45 = vld [vmem:[%s0 + $0x78] sm:$0xf]
  %v46 = vld [vmem:[%s0 + $0x7c] sm:$0xf]
  %v47 = vld [vmem:[%s0 + $0x80] sm:$0xf]
  %v48 = vld [vmem:[%s0 + $0x84] sm:$0xf]
  %v49 = vld [vmem:[%s0 + $0x88] sm:$0xf]
  %v50 = vld [vmem:[%s0 + $0x8c] sm:$0xf]
  %v51 = vld [vmem:[%s0 + $0x90] sm:$0xf]
  %v52 = vld [vmem:[%s0 + $0x94] sm:$0xf]
  %v53 = vld [vmem:[%s0 + $0x98] sm:$0xf]
  %v54 = vld [vmem:[%s0 + $0x9c] sm:$0xf]
  %v55 = vld [vmem:[%s0 + $0xa0] sm:$0xf]
  %v56 = vld [vmem:[%s0 + $0xa4] sm:$0xf]
  %v57 = vld [vmem:[%s0 + $0xa8] sm:$0xf]
  %v58 = vld [vmem:[%s0 + $0xac] sm:$0xf]
  %v59 = vld [vmem:[%s0 + $0xb0] sm:$0xf]
  %v60 = vld [vmem:[%s0 + $0xb4] sm:$0xf]
  %v61 = vld [vmem:[%s0 + $0xb8] sm:$0xf]
  %v62 = vld [vmem:[%s0 + $0xbc] sm:$0xf]
  %v63 = vld [vmem:[%s0 + $0xc0] sm:$0xf]
  %v64 = vld [vmem:[%s0 + $0xc4] sm:$0xf]
  %v65 = vld [vmem:[%s0 + $0xc8] sm:$0xf]
  %v66 = vld [vmem:[%s0 + $0xcc] sm:$0xf]
  %v67 = vld [vmem:[%s0 + $0xd0] sm:$0xf]
  %v68 = vld [vmem:[%s0 + $0xd4] sm:$0xf]
  %v69 = vld [vmem:[%s0 + $0xd8] sm:$0xf]
  %v70 = vld [vmem:[%s0 + $0xdc] sm:$0xf]
  %v71 = vld [vmem:[%s0 + $0xe0] sm:$0xf]
  %v72 = vld [vmem:[%s0 + $0xe4] sm:$0xf]
  %v73 = vld [vmem:[%s0 + $0xe8] sm:$0xf]
  %v74 = vld [vmem:[%s0 + $0xec] sm:$0xf]
  %v75 = vld [vmem:[%s0 + $0xf0] sm:$0xf]
  %v76 = vld [vmem:[%s0 + $0xf4] sm:$0xf]
  %v77 = vld [vmem:[%s0 + $0xf8] sm:$0xf]
  %v78 = vld [vmem:[%s0 + $0xfc] sm:$0xf]
  %v79 = vld [vmem:[%s1] sm:$0xf]
  %v80 = vld [vmem:[%s1 + $0x4] sm:$0xf]
  %v81 = vld [vmem:[%s1 + $0x8] sm:$0xf]
  %v82 = vld [vmem:[%s1 + $0xc] sm:$0xf]
  %v83 = vld [vmem:[%s1 + $0x10] sm:$0xf]
  %v84 = vld [vmem:[%s1 + $0x14] sm:$0xf]
  %v85 = vld [vmem:[%s1 + $0x18] sm:$0xf]
  %v86 = vld [vmem:[%s1 + $0x1c] sm:$0xf]
  %v87 = vld [vmem:[%s1 + $0x20] sm:$0xf]
  %v88 = vld [vmem:[%s1 + $0x24] sm:$0xf]
  %v89 = vld [vmem:[%s1 + $0x28] sm:$0xf]
  %v90 = vld [vmem:[%s1 + $0x2c] sm:$0xf]
  %v91 = vld [vmem:[%s1 + $0x30] sm:$0xf]
  %v92 = vld [vmem:[%s1 + $0x34] sm:$0xf]
  %v93 = vld [vmem:[%s1 + $0x38] sm:$0xf]
  %v94 = vld [vmem:[%s1 + $0x3c] sm:$0xf]
  %v159 = vunpack.c.l.b16 %v15
  %v160 = vunpack.c.l.b16 %v16
  %v161 = vunpack.c.l.b16 %v17
  %v162 = vunpack.c.l.b16 %v18
  %v163 = vunpack.c.l.b16 %v19
  %v164 = vunpack.c.l.b16 %v20
  %v165 = vunpack.c.l.b16 %v21
  %v166 = vunpack.c.l.b16 %v22
  %v167 = vunpack.c.l.b16 %v23
  %v168 = vunpack.c.l.b16 %v24
  %v169 = vunpack.c.l.b16 %v25
  %v170 = vunpack.c.l.b16 %v26
  %v171 = vunpack.c.l.b16 %v27
  %v172 = vunpack.c.l.b16 %v28
  %v173 = vunpack.c.l.b16 %v29
  %v174 = vunpack.c.l.b16 %v30
  %v175 = vunpack.c.l.b16 %v31
  %v176 = vunpack.c.l.b16 %v32
  %v177 = vunpack.c.l.b16 %v33
  %v178 = vunpack.c.l.b16 %v34
  %v179 = vunpack.c.l.b16 %v35
  %v180 = vunpack.c.l.b16 %v36
  %v181 = vunpack.c.l.b16 %v37
  %v182 = vunpack.c.l.b16 %v38
  %v183 = vunpack.c.l.b16 %v39
  %v184 = vunpack.c.l.b16 %v40
  %v185 = vunpack.c.l.b16 %v41
  %v186 = vunpack.c.l.b16 %v42
  %v187 = vunpack.c.l.b16 %v43
  %v188 = vunpack.c.l.b16 %v44
  %v189 = vunpack.c.l.b16 %v45
  %v190 = vunpack.c.l.b16 %v46
  %v191 = vunpack.c.l.b16 %v47
  %v192 = vunpack.c.l.b16 %v48
  %v193 = vunpack.c.l.b16 %v49
  %v194 = vunpack.c.l.b16 %v50
  %v195 = vunpack.c.l.b16 %v51
  %v196 = vunpack.c.l.b16 %v52
  %v197 = vunpack.c.l.b16 %v53
  %v198 = vunpack.c.l.b16 %v54
  %v199 = vunpack.c.l.b16 %v55
  %v200 = vunpack.c.l.b16 %v56
  %v201 = vunpack.c.l.b16 %v57
  %v202 = vunpack.c.l.b16 %v58
  %v203 = vunpack.c.l.b16 %v59
  %v204 = vunpack.c.l.b16 %v60
  %v205 = vunpack.c.l.b16 %v61
  %v206 = vunpack.c.l.b16 %v62
  %v207 = vunpack.c.l.b16 %v63
  %v208 = vunpack.c.l.b16 %v64
  %v209 = vunpack.c.l.b16 %v65
  %v210 = vunpack.c.l.b16 %v66
  %v211 = vunpack.c.l.b16 %v67
  %v212 = vunpack.c.l.b16 %v68
  %v213 = vunpack.c.l.b16 %v69
  %v214 = vunpack.c.l.b16 %v70
  %v215 = vunpack.c.l.b16 %v71
  %v216 = vunpack.c.l.b16 %v72
  %v217 = vunpack.c.l.b16 %v73
  %v218 = vunpack.c.l.b16 %v74
  %v219 = vunpack.c.l.b16 %v75
  %v220 = vunpack.c.l.b16 %v76
  %v221 = vunpack.c.l.b16 %v77
  %v222 = vunpack.c.l.b16 %v78
  %v223 = vpack.c.b16 %v160, %v159
  %v224 = vpack.c.b16 %v162, %v161
  %v225 = vpack.c.b16 %v164, %v163
  %v226 = vpack.c.b16 %v166, %v165
  %v227 = vpack.c.b16 %v168, %v167
  %v228 = vpack.c.b16 %v170, %v169
  %v229 = vpack.c.b16 %v172, %v171
  %v230 = vpack.c.b16 %v174, %v173
  %v231 = vpack.c.b16 %v176, %v175
  %v232 = vpack.c.b16 %v178, %v177
  %v233 = vpack.c.b16 %v180, %v179
  %v234 = vpack.c.b16 %v182, %v181
  %v235 = vpack.c.b16 %v184, %v183
  %v236 = vpack.c.b16 %v186, %v185
  %v237 = vpack.c.b16 %v188, %v187
  %v238 = vpack.c.b16 %v190, %v189
  %v239 = vpack.c.b16 %v192, %v191
  %v240 = vpack.c.b16 %v194, %v193
  %v241 = vpack.c.b16 %v196, %v195
  %v242 = vpack.c.b16 %v198, %v197
  %v243 = vpack.c.b16 %v200, %v199
  %v244 = vpack.c.b16 %v202, %v201
  %v245 = vpack.c.b16 %v204, %v203
  %v246 = vpack.c.b16 %v206, %v205
  %v247 = vpack.c.b16 %v208, %v207
  %v248 = vpack.c.b16 %v210, %v209
  %v249 = vpack.c.b16 %v212, %v211
  %v250 = vpack.c.b16 %v214, %v213
  %v251 = vpack.c.b16 %v216, %v215
  %v252 = vpack.c.b16 %v218, %v217
  %v253 = vpack.c.b16 %v220, %v219
  %v254 = vpack.c.b16 %v222, %v221
  %v303 = vunpack.c.l.b16 %v79
  %v304 = vunpack.c.l.b16 %v80
  %v305 = vunpack.c.l.b16 %v81
  %v306 = vunpack.c.l.b16 %v82
  %v307 = vunpack.c.l.b16 %v83
  %v308 = vunpack.c.l.b16 %v84
  %v309 = vunpack.c.l.b16 %v85
  %v310 = vunpack.c.l.b16 %v86
  %v311 = vunpack.c.l.b16 %v87
  %v312 = vunpack.c.l.b16 %v88
  %v313 = vunpack.c.l.b16 %v89
  %v314 = vunpack.c.l.b16 %v90
  %v315 = vunpack.c.l.b16 %v91
  %v316 = vunpack.c.l.b16 %v92
  %v317 = vunpack.c.l.b16 %v93
  %v318 = vunpack.c.l.b16 %v94
  %v319 = vpack.c.b16 %v304, %v303
  %v320 = vpack.c.b16 %v306, %v305
  %v321 = vpack.c.b16 %v308, %v307
  %v322 = vpack.c.b16 %v310, %v309
  %v323 = vpack.c.b16 %v312, %v311
  %v324 = vpack.c.b16 %v314, %v313
  %v325 = vpack.c.b16 %v316, %v315
  %v326 = vpack.c.b16 %v318, %v317
  %335 = vmatprep.subr.bf16.mxu0 0
  %336 = vmatpush1.bf16.msra.mxu0 %v326
  %337 = vmatprep.subr.bf16.mxu0 0
  %338 = vmatpush1.bf16.msra.mxu0 %v325
  %339 = vmatprep.subr.bf16.mxu0 0
  %340 = vmatpush1.bf16.msra.mxu0 %v324
  %341 = vmatprep.subr.bf16.mxu0 0
  %342 = vmatpush1.bf16.msra.mxu0 %v323
  %343 = vmatprep.subr.bf16.mxu0 0
  %344 = vmatpush1.bf16.msra.mxu0 %v322
  %345 = vmatprep.subr.bf16.mxu0 0
  %346 = vmatpush1.bf16.msra.mxu0 %v321
  %347 = vmatprep.subr.bf16.mxu0 0
  %348 = vmatpush1.bf16.msra.mxu0 %v320
  %349 = vmatprep.subr.bf16.mxu0 0
  %350 = vmatpush1.bf16.msra.mxu0 %v319
  %351 = vmatprep.subr.bf16.mxu0 0
  %352 = vmatpush2.bf16.msra.mxu0 0
  %353 = vmatprep.subr.bf16.mxu0 0
  %354 = vmatpush2.bf16.msra.mxu0 0
  %355 = vmatprep.subr.bf16.mxu0 0
  %356 = vmatpush2.bf16.msra.mxu0 0
  %357 = vmatprep.subr.bf16.mxu0 0
  %358 = vmatpush2.bf16.msra.mxu0 0
  %359 = vmatprep.subr.bf16.mxu0 0
  %360 = vmatpush2.bf16.msra.mxu0 0
  %361 = vmatprep.subr.bf16.mxu0 0
  %362 = vmatpush2.bf16.msra.mxu0 0
  %363 = vmatprep.subr.bf16.mxu0 0
  %364 = vmatpush2.bf16.msra.mxu0 0
  %365 = vmatprep.subr.bf16.mxu0 0
  %366 = vmatpush2.bf16.msra.mxu0 0
  %367 = vmatprep.mubr.bf16.mxu0 0
  %368 = vmatmul.mubr.bf16.gmra.mxu0 %v223
  %v369 = vpop.f32.mrf.mxu0
  %v370 = vadd.f32 0.0, %v369
  %v371 = vpop.f32.mrf.mxu0
  %v372 = vpop.f32.mrf.mxu0
  %v373 = vadd.f32 0.0, %v372
  %v374 = vpop.f32.mrf.mxu0
  %375 = vmatprep.mubr.bf16.mxu0 0
  %376 = vmatmul.mubr.bf16.gmra.mxu0 %v224
  %v377 = vpop.f32.mrf.mxu0
  %v378 = vadd.f32 0.0, %v377
  %v379 = vpop.f32.mrf.mxu0
  %v380 = vpop.f32.mrf.mxu0
  %v381 = vadd.f32 0.0, %v380
  %v382 = vpop.f32.mrf.mxu0
  %383 = vmatprep.mubr.bf16.mxu0 0
  %384 = vmatmul.mubr.bf16.gmra.mxu0 %v225
  %v385 = vpop.f32.mrf.mxu0
  %v386 = vadd.f32 0.0, %v385
  %v387 = vpop.f32.mrf.mxu0
  %v388 = vpop.f32.mrf.mxu0
  %v389 = vadd.f32 0.0, %v388
  %v390 = vpop.f32.mrf.mxu0
  %391 = vmatprep.mubr.bf16.mxu0 0
  %392 = vmatmul.mubr.bf16.gmra.mxu0 %v226
  %v393 = vpop.f32.mrf.mxu0
  %v394 = vadd.f32 0.0, %v393
  %v395 = vpop.f32.mrf.mxu0
  %v396 = vpop.f32.mrf.mxu0
  %v397 = vadd.f32 0.0, %v396
  %v398 = vpop.f32.mrf.mxu0
  %399 = vmatprep.mubr.bf16.mxu0 0
  %400 = vmatmul.mubr.bf16.gmra.mxu0 %v227
  %v401 = vpop.f32.mrf.mxu0
  %v402 = vadd.f32 0.0, %v401
  %v403 = vpop.f32.mrf.mxu0
  %v404 = vpop.f32.mrf.mxu0
  %v405 = vadd.f32 0.0, %v404
  %v406 = vpop.f32.mrf.mxu0
  %407 = vmatprep.mubr.bf16.mxu0 0
  %408 = vmatmul.mubr.bf16.gmra.mxu0 %v228
  %v409 = vpop.f32.mrf.mxu0
  %v410 = vadd.f32 0.0, %v409
  %v411 = vpop.f32.mrf.mxu0
  %v412 = vpop.f32.mrf.mxu0
  %v413 = vadd.f32 0.0, %v412
  %v414 = vpop.f32.mrf.mxu0
  %415 = vmatprep.mubr.bf16.mxu0 0
  %416 = vmatmul.mubr.bf16.gmra.mxu0 %v229
  %v417 = vpop.f32.mrf.mxu0
  %v418 = vadd.f32 0.0, %v417
  %v419 = vpop.f32.mrf.mxu0
  %v420 = vpop.f32.mrf.mxu0
  %v421 = vadd.f32 0.0, %v420
  %v422 = vpop.f32.mrf.mxu0
  %423 = vmatprep.mubr.bf16.mxu0 0
  %424 = vmatmul.mubr.bf16.gmra.mxu0 %v230
  %v425 = vpop.f32.mrf.mxu0
  %v426 = vadd.f32 0.0, %v425
  %v427 = vpop.f32.mrf.mxu0
  %v428 = vpop.f32.mrf.mxu0
  %v429 = vadd.f32 0.0, %v428
  %v430 = vpop.f32.mrf.mxu0
  %431 = vmatprep.mubr.bf16.mxu0 0
  %432 = vmatmul.mubr.bf16.gmra.mxu0 %v231
  %v433 = vpop.f32.mrf.mxu0
  %v434 = vadd.f32 0.0, %v433
  %v435 = vpop.f32.mrf.mxu0
  %v436 = vpop.f32.mrf.mxu0
  %v437 = vadd.f32 0.0, %v436
  %v438 = vpop.f32.mrf.mxu0
  %439 = vmatprep.mubr.bf16.mxu0 0
  %440 = vmatmul.mubr.bf16.gmra.mxu0 %v232
  %v441 = vpop.f32.mrf.mxu0
  %v442 = vadd.f32 0.0, %v441
  %v443 = vpop.f32.mrf.mxu0
  %v444 = vpop.f32.mrf.mxu0
  %v445 = vadd.f32 0.0, %v444
  %v446 = vpop.f32.mrf.mxu0
  %447 = vmatprep.mubr.bf16.mxu0 0
  %448 = vmatmul.mubr.bf16.gmra.mxu0 %v233
  %v449 = vpop.f32.mrf.mxu0
  %v450 = vadd.f32 0.0, %v449
  %v451 = vpop.f32.mrf.mxu0
  %v452 = vpop.f32.mrf.mxu0
  %v453 = vadd.f32 0.0, %v452
  %v454 = vpop.f32.mrf.mxu0
  %455 = vmatprep.mubr.bf16.mxu0 0
  %456 = vmatmul.mubr.bf16.gmra.mxu0 %v234
  %v457 = vpop.f32.mrf.mxu0
  %v458 = vadd.f32 0.0, %v457
  %v459 = vpop.f32.mrf.mxu0
  %v460 = vpop.f32.mrf.mxu0
  %v461 = vadd.f32 0.0, %v460
  %v462 = vpop.f32.mrf.mxu0
  %463 = vmatprep.mubr.bf16.mxu0 0
  %464 = vmatmul.mubr.bf16.gmra.mxu0 %v235
  %v465 = vpop.f32.mrf.mxu0
  %v466 = vadd.f32 0.0, %v465
  %v467 = vpop.f32.mrf.mxu0
  %v468 = vpop.f32.mrf.mxu0
  %v469 = vadd.f32 0.0, %v468
  %v470 = vpop.f32.mrf.mxu0
  %471 = vmatprep.mubr.bf16.mxu0 0
  %472 = vmatmul.mubr.bf16.gmra.mxu0 %v236
  %v473 = vpop.f32.mrf.mxu0
  %v474 = vadd.f32 0.0, %v473
  %v475 = vpop.f32.mrf.mxu0
  %v476 = vpop.f32.mrf.mxu0
  %v477 = vadd.f32 0.0, %v476
  %v478 = vpop.f32.mrf.mxu0
  %479 = vmatprep.mubr.bf16.mxu0 0
  %480 = vmatmul.mubr.bf16.gmra.mxu0 %v237
  %v481 = vpop.f32.mrf.mxu0
  %v482 = vadd.f32 0.0, %v481
  %v483 = vpop.f32.mrf.mxu0
  %v484 = vpop.f32.mrf.mxu0
  %v485 = vadd.f32 0.0, %v484
  %v486 = vpop.f32.mrf.mxu0
  %487 = vmatprep.mubr.bf16.mxu0 0
  %488 = vmatmul.mubr.bf16.gmra.mxu0 %v238
  %v489 = vpop.f32.mrf.mxu0
  %v490 = vadd.f32 0.0, %v489
  %v491 = vpop.f32.mrf.mxu0
  %v492 = vpop.f32.mrf.mxu0
  %v493 = vadd.f32 0.0, %v492
  %v494 = vpop.f32.mrf.mxu0
  %495 = vmatprep.mubr.bf16.mxu0 0
  %496 = vmatmul.mubr.bf16.gmra.mxu0 %v239
  %v497 = vpop.f32.mrf.mxu0
  %v498 = vadd.f32 0.0, %v497
  %v499 = vpop.f32.mrf.mxu0
  %v500 = vpop.f32.mrf.mxu0
  %v501 = vadd.f32 0.0, %v500
  %v502 = vpop.f32.mrf.mxu0
  %503 = vmatprep.mubr.bf16.mxu0 0
  %504 = vmatmul.mubr.bf16.gmra.mxu0 %v240
  %v505 = vpop.f32.mrf.mxu0
  %v506 = vadd.f32 0.0, %v505
  %v507 = vpop.f32.mrf.mxu0
  %v508 = vpop.f32.mrf.mxu0
  %v509 = vadd.f32 0.0, %v508
  %v510 = vpop.f32.mrf.mxu0
  %511 = vmatprep.mubr.bf16.mxu0 0
  %512 = vmatmul.mubr.bf16.gmra.mxu0 %v241
  %v513 = vpop.f32.mrf.mxu0
  %v514 = vadd.f32 0.0, %v513
  %v515 = vpop.f32.mrf.mxu0
  %v516 = vpop.f32.mrf.mxu0
  %v517 = vadd.f32 0.0, %v516
  %v518 = vpop.f32.mrf.mxu0
  %519 = vmatprep.mubr.bf16.mxu0 0
  %520 = vmatmul.mubr.bf16.gmra.mxu0 %v242
  %v521 = vpop.f32.mrf.mxu0
  %v522 = vadd.f32 0.0, %v521
  %v523 = vpop.f32.mrf.mxu0
  %v524 = vpop.f32.mrf.mxu0
  %v525 = vadd.f32 0.0, %v524
  %v526 = vpop.f32.mrf.mxu0
  %527 = vmatprep.mubr.bf16.mxu0 0
  %528 = vmatmul.mubr.bf16.gmra.mxu0 %v243
  %v529 = vpop.f32.mrf.mxu0
  %v530 = vadd.f32 0.0, %v529
  %v531 = vpop.f32.mrf.mxu0
  %v532 = vpop.f32.mrf.mxu0
  %v533 = vadd.f32 0.0, %v532
  %v534 = vpop.f32.mrf.mxu0
  %535 = vmatprep.mubr.bf16.mxu0 0
  %536 = vmatmul.mubr.bf16.gmra.mxu0 %v244
  %v537 = vpop.f32.mrf.mxu0
  %v538 = vadd.f32 0.0, %v537
  %v539 = vpop.f32.mrf.mxu0
  %v540 = vpop.f32.mrf.mxu0
  %v541 = vadd.f32 0.0, %v540
  %v542 = vpop.f32.mrf.mxu0
  %543 = vmatprep.mubr.bf16.mxu0 0
  %544 = vmatmul.mubr.bf16.gmra.mxu0 %v245
  %v545 = vpop.f32.mrf.mxu0
  %v546 = vadd.f32 0.0, %v545
  %v547 = vpop.f32.mrf.mxu0
  %v548 = vpop.f32.mrf.mxu0
  %v549 = vadd.f32 0.0, %v548
  %v550 = vpop.f32.mrf.mxu0
  %551 = vmatprep.mubr.bf16.mxu0 0
  %552 = vmatmul.mubr.bf16.gmra.mxu0 %v246
  %v553 = vpop.f32.mrf.mxu0
  %v554 = vadd.f32 0.0, %v553
  %v555 = vpop.f32.mrf.mxu0
  %v556 = vpop.f32.mrf.mxu0
  %v557 = vadd.f32 0.0, %v556
  %v558 = vpop.f32.mrf.mxu0
  %559 = vmatprep.mubr.bf16.mxu0 0
  %560 = vmatmul.mubr.bf16.gmra.mxu0 %v247
  %v561 = vpop.f32.mrf.mxu0
  %v562 = vadd.f32 0.0, %v561
  %v563 = vpop.f32.mrf.mxu0
  %v564 = vpop.f32.mrf.mxu0
  %v565 = vadd.f32 0.0, %v564
  %v566 = vpop.f32.mrf.mxu0
  %567 = vmatprep.mubr.bf16.mxu0 0
  %568 = vmatmul.mubr.bf16.gmra.mxu0 %v248
  %v569 = vpop.f32.mrf.mxu0
  %v570 = vadd.f32 0.0, %v569
  %v571 = vpop.f32.mrf.mxu0
  %v572 = vpop.f32.mrf.mxu0
  %v573 = vadd.f32 0.0, %v572
  %v574 = vpop.f32.mrf.mxu0
  %575 = vmatprep.mubr.bf16.mxu0 0
  %576 = vmatmul.mubr.bf16.gmra.mxu0 %v249
  %v577 = vpop.f32.mrf.mxu0
  %v578 = vadd.f32 0.0, %v577
  %v579 = vpop.f32.mrf.mxu0
  %v580 = vpop.f32.mrf.mxu0
  %v581 = vadd.f32 0.0, %v580
  %v582 = vpop.f32.mrf.mxu0
  %583 = vmatprep.mubr.bf16.mxu0 0
  %584 = vmatmul.mubr.bf16.gmra.mxu0 %v250
  %v585 = vpop.f32.mrf.mxu0
  %v586 = vadd.f32 0.0, %v585
  %v587 = vpop.f32.mrf.mxu0
  %v588 = vpop.f32.mrf.mxu0
  %v589 = vadd.f32 0.0, %v588
  %v590 = vpop.f32.mrf.mxu0
  %591 = vmatprep.mubr.bf16.mxu0 0
  %592 = vmatmul.mubr.bf16.gmra.mxu0 %v251
  %v593 = vpop.f32.mrf.mxu0
  %v594 = vadd.f32 0.0, %v593
  %v595 = vpop.f32.mrf.mxu0
  %v596 = vpop.f32.mrf.mxu0
  %v597 = vadd.f32 0.0, %v596
  %v598 = vpop.f32.mrf.mxu0
  %599 = vmatprep.mubr.bf16.mxu0 0
  %600 = vmatmul.mubr.bf16.gmra.mxu0 %v252
  %v601 = vpop.f32.mrf.mxu0
  %v602 = vadd.f32 0.0, %v601
  %v603 = vpop.f32.mrf.mxu0
  %v604 = vpop.f32.mrf.mxu0
  %v605 = vadd.f32 0.0, %v604
  %v606 = vpop.f32.mrf.mxu0
  %607 = vmatprep.mubr.bf16.mxu0 0
  %608 = vmatmul.mubr.bf16.gmra.mxu0 %v253
  %v609 = vpop.f32.mrf.mxu0
  %v610 = vadd.f32 0.0, %v609
  %v611 = vpop.f32.mrf.mxu0
  %v612 = vpop.f32.mrf.mxu0
  %v613 = vadd.f32 0.0, %v612
  %v614 = vpop.f32.mrf.mxu0
  %615 = vmatprep.mubr.bf16.mxu0 0
  %616 = vmatmul.mubr.bf16.gmra.mxu0 %v254
  %v617 = vpop.f32.mrf.mxu0
  %v618 = vadd.f32 0.0, %v617
  %v619 = vpop.f32.mrf.mxu0
  %v620 = vpop.f32.mrf.mxu0
  %v621 = vadd.f32 0.0, %v620
  %v622 = vpop.f32.mrf.mxu0
  %623 = vdwg.mxu0
  %688 = vrot.lane.b32.xlu0 %v370, 96
  %v689 = vpop.permute.xlu0 %688
  %690 = vrot.lane.b32.xlu0 %v373, 96
  %v691 = vpop.permute.xlu0 %690
  %692 = vrot.lane.b32.xlu0 %v378, 96
  %v693 = vpop.permute.xlu0 %692
  %694 = vrot.lane.b32.xlu0 %v381, 96
  %v695 = vpop.permute.xlu0 %694
  %696 = vrot.lane.b32.xlu0 %v386, 96
  %v697 = vpop.permute.xlu0 %696
  %698 = vrot.lane.b32.xlu0 %v389, 96
  %v699 = vpop.permute.xlu0 %698
  %700 = vrot.lane.b32.xlu0 %v394, 96
  %v701 = vpop.permute.xlu0 %700
  %702 = vrot.lane.b32.xlu0 %v397, 96
  %v703 = vpop.permute.xlu0 %702
  %704 = vrot.lane.b32.xlu0 %v402, 96
  %v705 = vpop.permute.xlu0 %704
  %706 = vrot.lane.b32.xlu0 %v405, 96
  %v707 = vpop.permute.xlu0 %706
  %708 = vrot.lane.b32.xlu0 %v410, 96
  %v709 = vpop.permute.xlu0 %708
  %710 = vrot.lane.b32.xlu0 %v413, 96
  %v711 = vpop.permute.xlu0 %710
  %712 = vrot.lane.b32.xlu0 %v418, 96
  %v713 = vpop.permute.xlu0 %712
  %714 = vrot.lane.b32.xlu0 %v421, 96
  %v715 = vpop.permute.xlu0 %714
  %716 = vrot.lane.b32.xlu0 %v426, 96
  %v717 = vpop.permute.xlu0 %716
  %718 = vrot.lane.b32.xlu0 %v429, 96
  %v719 = vpop.permute.xlu0 %718
  %720 = vrot.lane.b32.xlu0 %v434, 96
  %v721 = vpop.permute.xlu0 %720
  %722 = vrot.lane.b32.xlu0 %v437, 96
  %v723 = vpop.permute.xlu0 %722
  %724 = vrot.lane.b32.xlu0 %v442, 96
  %v725 = vpop.permute.xlu0 %724
  %726 = vrot.lane.b32.xlu0 %v445, 96
  %v727 = vpop.permute.xlu0 %726
  %728 = vrot.lane.b32.xlu0 %v450, 96
  %v729 = vpop.permute.xlu0 %728
  %730 = vrot.lane.b32.xlu0 %v453, 96
  %v731 = vpop.permute.xlu0 %730
  %732 = vrot.lane.b32.xlu0 %v458, 96
  %v733 = vpop.permute.xlu0 %732
  %734 = vrot.lane.b32.xlu0 %v461, 96
  %v735 = vpop.permute.xlu0 %734
  %736 = vrot.lane.b32.xlu0 %v466, 96
  %v737 = vpop.permute.xlu0 %736
  %738 = vrot.lane.b32.xlu0 %v469, 96
  %v739 = vpop.permute.xlu0 %738
  %740 = vrot.lane.b32.xlu0 %v474, 96
  %v741 = vpop.permute.xlu0 %740
  %742 = vrot.lane.b32.xlu0 %v477, 96
  %v743 = vpop.permute.xlu0 %742
  %744 = vrot.lane.b32.xlu0 %v482, 96
  %v745 = vpop.permute.xlu0 %744
  %746 = vrot.lane.b32.xlu0 %v485, 96
  %v747 = vpop.permute.xlu0 %746
  %748 = vrot.lane.b32.xlu0 %v490, 96
  %v749 = vpop.permute.xlu0 %748
  %750 = vrot.lane.b32.xlu0 %v493, 96
  %v751 = vpop.permute.xlu0 %750
  %752 = vrot.lane.b32.xlu0 %v498, 96
  %v753 = vpop.permute.xlu0 %752
  %754 = vrot.lane.b32.xlu0 %v501, 96
  %v755 = vpop.permute.xlu0 %754
  %756 = vrot.lane.b32.xlu0 %v506, 96
  %v757 = vpop.permute.xlu0 %756
  %758 = vrot.lane.b32.xlu0 %v509, 96
  %v759 = vpop.permute.xlu0 %758
  %760 = vrot.lane.b32.xlu0 %v514, 96
  %v761 = vpop.permute.xlu0 %760
  %762 = vrot.lane.b32.xlu0 %v517, 96
  %v763 = vpop.permute.xlu0 %762
  %764 = vrot.lane.b32.xlu0 %v522, 96
  %v765 = vpop.permute.xlu0 %764
  %766 = vrot.lane.b32.xlu0 %v525, 96
  %v767 = vpop.permute.xlu0 %766
  %768 = vrot.lane.b32.xlu0 %v530, 96
  %v769 = vpop.permute.xlu0 %768
  %770 = vrot.lane.b32.xlu0 %v533, 96
  %v771 = vpop.permute.xlu0 %770
  %772 = vrot.lane.b32.xlu0 %v538, 96
  %v773 = vpop.permute.xlu0 %772
  %774 = vrot.lane.b32.xlu0 %v541, 96
  %v775 = vpop.permute.xlu0 %774
  %776 = vrot.lane.b32.xlu0 %v546, 96
  %v777 = vpop.permute.xlu0 %776
  %778 = vrot.lane.b32.xlu0 %v549, 96
  %v779 = vpop.permute.xlu0 %778
  %780 = vrot.lane.b32.xlu0 %v554, 96
  %v781 = vpop.permute.xlu0 %780
  %782 = vrot.lane.b32.xlu0 %v557, 96
  %v783 = vpop.permute.xlu0 %782
  %784 = vrot.lane.b32.xlu0 %v562, 96
  %v785 = vpop.permute.xlu0 %784
  %786 = vrot.lane.b32.xlu0 %v565, 96
  %v787 = vpop.permute.xlu0 %786
  %788 = vrot.lane.b32.xlu0 %v570, 96
  %v789 = vpop.permute.xlu0 %788
  %790 = vrot.lane.b32.xlu0 %v573, 96
  %v791 = vpop.permute.xlu0 %790
  %792 = vrot.lane.b32.xlu0 %v578, 96
  %v793 = vpop.permute.xlu0 %792
  %794 = vrot.lane.b32.xlu0 %v581, 96
  %v795 = vpop.permute.xlu0 %794
  %796 = vrot.lane.b32.xlu0 %v586, 96
  %v797 = vpop.permute.xlu0 %796
  %798 = vrot.lane.b32.xlu0 %v589, 96
  %v799 = vpop.permute.xlu0 %798
  %800 = vrot.lane.b32.xlu0 %v594, 96
  %v801 = vpop.permute.xlu0 %800
  %802 = vrot.lane.b32.xlu0 %v597, 96
  %v803 = vpop.permute.xlu0 %802
  %804 = vrot.lane.b32.xlu0 %v602, 96
  %v805 = vpop.permute.xlu0 %804
  %806 = vrot.lane.b32.xlu0 %v605, 96
  %v807 = vpop.permute.xlu0 %806
  %808 = vrot.lane.b32.xlu0 %v610, 96
  %v809 = vpop.permute.xlu0 %808
  %810 = vrot.lane.b32.xlu0 %v613, 96
  %v811 = vpop.permute.xlu0 %810
  %812 = vrot.lane.b32.xlu0 %v618, 96
  %v813 = vpop.permute.xlu0 %812
  %814 = vrot.lane.b32.xlu0 %v621, 96
  %v815 = vpop.permute.xlu0 %814
  %v880 = vmax.f32 %v370, %v689
  %v881 = vmax.f32 %v373, %v691
  %v882 = vmax.f32 %v378, %v693
  %v883 = vmax.f32 %v381, %v695
  %v884 = vmax.f32 %v386, %v697
  %v885 = vmax.f32 %v389, %v699
  %v886 = vmax.f32 %v394, %v701
  %v887 = vmax.f32 %v397, %v703
  %v888 = vmax.f32 %v402, %v705
  %v889 = vmax.f32 %v405, %v707
  %v890 = vmax.f32 %v410, %v709
  %v891 = vmax.f32 %v413, %v711
  %v892 = vmax.f32 %v418, %v713
  %v893 = vmax.f32 %v421, %v715
  %v894 = vmax.f32 %v426, %v717
  %v895 = vmax.f32 %v429, %v719
  %v896 = vmax.f32 %v434, %v721
  %v897 = vmax.f32 %v437, %v723
  %v898 = vmax.f32 %v442, %v725
  %v899 = vmax.f32 %v445, %v727
  %v900 = vmax.f32 %v450, %v729
  %v901 = vmax.f32 %v453, %v731
  %v902 = vmax.f32 %v458, %v733
  %v903 = vmax.f32 %v461, %v735
  %v904 = vmax.f32 %v466, %v737
  %v905 = vmax.f32 %v469, %v739
  %v906 = vmax.f32 %v474, %v741
  %v907 = vmax.f32 %v477, %v743
  %v908 = vmax.f32 %v482, %v745
  %v909 = vmax.f32 %v485, %v747
  %v910 = vmax.f32 %v490, %v749
  %v911 = vmax.f32 %v493, %v751
  %v912 = vmax.f32 %v498, %v753
  %v913 = vmax.f32 %v501, %v755
  %v914 = vmax.f32 %v506, %v757
  %v915 = vmax.f32 %v509, %v759
  %v916 = vmax.f32 %v514, %v761
  %v917 = vmax.f32 %v517, %v763
  %v918 = vmax.f32 %v522, %v765
  %v919 = vmax.f32 %v525, %v767
  %v920 = vmax.f32 %v530, %v769
  %v921 = vmax.f32 %v533, %v771
  %v922 = vmax.f32 %v538, %v773
  %v923 = vmax.f32 %v541, %v775
  %v924 = vmax.f32 %v546, %v777
  %v925 = vmax.f32 %v549, %v779
  %v926 = vmax.f32 %v554, %v781
  %v927 = vmax.f32 %v557, %v783
  %v928 = vmax.f32 %v562, %v785
  %v929 = vmax.f32 %v565, %v787
  %v930 = vmax.f32 %v570, %v789
  %v931 = vmax.f32 %v573, %v791
  %v932 = vmax.f32 %v578, %v793
  %v933 = vmax.f32 %v581, %v795
  %v934 = vmax.f32 %v586, %v797
  %v935 = vmax.f32 %v589, %v799
  %v936 = vmax.f32 %v594, %v801
  %v937 = vmax.f32 %v597, %v803
  %v938 = vmax.f32 %v602, %v805
  %v939 = vmax.f32 %v605, %v807
  %v940 = vmax.f32 %v610, %v809
  %v941 = vmax.f32 %v613, %v811
  %v942 = vmax.f32 %v618, %v813
  %v943 = vmax.f32 %v621, %v815
  %1008 = vrot.lane.b32.xlu0 %v880, 64
  %v1009 = vpop.permute.xlu0 %1008
  %1010 = vrot.lane.b32.xlu0 %v881, 64
  %v1011 = vpop.permute.xlu0 %1010
  %1012 = vrot.lane.b32.xlu0 %v882, 64
  %v1013 = vpop.permute.xlu0 %1012
  %1014 = vrot.lane.b32.xlu0 %v883, 64
  %v1015 = vpop.permute.xlu0 %1014
  %1016 = vrot.lane.b32.xlu0 %v884, 64
  %v1017 = vpop.permute.xlu0 %1016
  %1018 = vrot.lane.b32.xlu0 %v885, 64
  %v1019 = vpop.permute.xlu0 %1018
  %1020 = vrot.lane.b32.xlu0 %v886, 64
  %v1021 = vpop.permute.xlu0 %1020
  %1022 = vrot.lane.b32.xlu0 %v887, 64
  %v1023 = vpop.permute.xlu0 %1022
  %1024 = vrot.lane.b32.xlu0 %v888, 64
  %v1025 = vpop.permute.xlu0 %1024
  %1026 = vrot.lane.b32.xlu0 %v889, 64
  %v1027 = vpop.permute.xlu0 %1026
  %1028 = vrot.lane.b32.xlu0 %v890, 64
  %v1029 = vpop.permute.xlu0 %1028
  %1030 = vrot.lane.b32.xlu0 %v891, 64
  %v1031 = vpop.permute.xlu0 %1030
  %1032 = vrot.lane.b32.xlu0 %v892, 64
  %v1033 = vpop.permute.xlu0 %1032
  %1034 = vrot.lane.b32.xlu0 %v893, 64
  %v1035 = vpop.permute.xlu0 %1034
  %1036 = vrot.lane.b32.xlu0 %v894, 64
  %v1037 = vpop.permute.xlu0 %1036
  %1038 = vrot.lane.b32.xlu0 %v895, 64
  %v1039 = vpop.permute.xlu0 %1038
  %1040 = vrot.lane.b32.xlu0 %v896, 64
  %v1041 = vpop.permute.xlu0 %1040
  %1042 = vrot.lane.b32.xlu0 %v897, 64
  %v1043 = vpop.permute.xlu0 %1042
  %1044 = vrot.lane.b32.xlu0 %v898, 64
  %v1045 = vpop.permute.xlu0 %1044
  %1046 = vrot.lane.b32.xlu0 %v899, 64
  %v1047 = vpop.permute.xlu0 %1046
  %1048 = vrot.lane.b32.xlu0 %v900, 64
  %v1049 = vpop.permute.xlu0 %1048
  %1050 = vrot.lane.b32.xlu0 %v901, 64
  %v1051 = vpop.permute.xlu0 %1050
  %1052 = vrot.lane.b32.xlu0 %v902, 64
  %v1053 = vpop.permute.xlu0 %1052
  %1054 = vrot.lane.b32.xlu0 %v903, 64
  %v1055 = vpop.permute.xlu0 %1054
  %1056 = vrot.lane.b32.xlu0 %v904, 64
  %v1057 = vpop.permute.xlu0 %1056
  %1058 = vrot.lane.b32.xlu0 %v905, 64
  %v1059 = vpop.permute.xlu0 %1058
  %1060 = vrot.lane.b32.xlu0 %v906, 64
  %v1061 = vpop.permute.xlu0 %1060
  %1062 = vrot.lane.b32.xlu0 %v907, 64
  %v1063 = vpop.permute.xlu0 %1062
  %1064 = vrot.lane.b32.xlu0 %v908, 64
  %v1065 = vpop.permute.xlu0 %1064
  %1066 = vrot.lane.b32.xlu0 %v909, 64
  %v1067 = vpop.permute.xlu0 %1066
  %1068 = vrot.lane.b32.xlu0 %v910, 64
  %v1069 = vpop.permute.xlu0 %1068
  %1070 = vrot.lane.b32.xlu0 %v911, 64
  %v1071 = vpop.permute.xlu0 %1070
  %1072 = vrot.lane.b32.xlu0 %v912, 64
  %v1073 = vpop.permute.xlu0 %1072
  %1074 = vrot.lane.b32.xlu0 %v913, 64
  %v1075 = vpop.permute.xlu0 %1074
  %1076 = vrot.lane.b32.xlu0 %v914, 64
  %v1077 = vpop.permute.xlu0 %1076
  %1078 = vrot.lane.b32.xlu0 %v915, 64
  %v1079 = vpop.permute.xlu0 %1078
  %1080 = vrot.lane.b32.xlu0 %v916, 64
  %v1081 = vpop.permute.xlu0 %1080
  %1082 = vrot.lane.b32.xlu0 %v917, 64
  %v1083 = vpop.permute.xlu0 %1082
  %1084 = vrot.lane.b32.xlu0 %v918, 64
  %v1085 = vpop.permute.xlu0 %1084
  %1086 = vrot.lane.b32.xlu0 %v919, 64
  %v1087 = vpop.permute.xlu0 %1086
  %1088 = vrot.lane.b32.xlu0 %v920, 64
  %v1089 = vpop.permute.xlu0 %1088
  %1090 = vrot.lane.b32.xlu0 %v921, 64
  %v1091 = vpop.permute.xlu0 %1090
  %1092 = vrot.lane.b32.xlu0 %v922, 64
  %v1093 = vpop.permute.xlu0 %1092
  %1094 = vrot.lane.b32.xlu0 %v923, 64
  %v1095 = vpop.permute.xlu0 %1094
  %1096 = vrot.lane.b32.xlu0 %v924, 64
  %v1097 = vpop.permute.xlu0 %1096
  %1098 = vrot.lane.b32.xlu0 %v925, 64
  %v1099 = vpop.permute.xlu0 %1098
  %1100 = vrot.lane.b32.xlu0 %v926, 64
  %v1101 = vpop.permute.xlu0 %1100
  %1102 = vrot.lane.b32.xlu0 %v927, 64
  %v1103 = vpop.permute.xlu0 %1102
  %1104 = vrot.lane.b32.xlu0 %v928, 64
  %v1105 = vpop.permute.xlu0 %1104
  %1106 = vrot.lane.b32.xlu0 %v929, 64
  %v1107 = vpop.permute.xlu0 %1106
  %1108 = vrot.lane.b32.xlu0 %v930, 64
  %v1109 = vpop.permute.xlu0 %1108
  %1110 = vrot.lane.b32.xlu0 %v931, 64
  %v1111 = vpop.permute.xlu0 %1110
  %1112 = vrot.lane.b32.xlu0 %v932, 64
  %v1113 = vpop.permute.xlu0 %1112
  %1114 = vrot.lane.b32.xlu0 %v933, 64
  %v1115 = vpop.permute.xlu0 %1114
  %1116 = vrot.lane.b32.xlu0 %v934, 64
  %v1117 = vpop.permute.xlu0 %1116
  %1118 = vrot.lane.b32.xlu0 %v935, 64
  %v1119 = vpop.permute.xlu0 %1118
  %1120 = vrot.lane.b32.xlu0 %v936, 64
  %v1121 = vpop.permute.xlu0 %1120
  %1122 = vrot.lane.b32.xlu0 %v937, 64
  %v1123 = vpop.permute.xlu0 %1122
  %1124 = vrot.lane.b32.xlu0 %v938, 64
  %v1125 = vpop.permute.xlu0 %1124
  %1126 = vrot.lane.b32.xlu0 %v939, 64
  %v1127 = vpop.permute.xlu0 %1126
  %1128 = vrot.lane.b32.xlu0 %v940, 64
  %v1129 = vpop.permute.xlu0 %1128
  %1130 = vrot.lane.b32.xlu0 %v941, 64
  %v1131 = vpop.permute.xlu0 %1130
  %1132 = vrot.lane.b32.xlu0 %v942, 64
  %v1133 = vpop.permute.xlu0 %1132
  %1134 = vrot.lane.b32.xlu0 %v943, 64
  %v1135 = vpop.permute.xlu0 %1134
  %v1200 = vmax.f32 %v880, %v1009
  %v1201 = vmax.f32 %v881, %v1011
  %v1202 = vmax.f32 %v882, %v1013
  %v1203 = vmax.f32 %v883, %v1015
  %v1204 = vmax.f32 %v884, %v1017
  %v1205 = vmax.f32 %v885, %v1019
  %v1206 = vmax.f32 %v886, %v1021
  %v1207 = vmax.f32 %v887, %v1023
  %v1208 = vmax.f32 %v888, %v1025
  %v1209 = vmax.f32 %v889, %v1027
  %v1210 = vmax.f32 %v890, %v1029
  %v1211 = vmax.f32 %v891, %v1031
  %v1212 = vmax.f32 %v892, %v1033
  %v1213 = vmax.f32 %v893, %v1035
  %v1214 = vmax.f32 %v894, %v1037
  %v1215 = vmax.f32 %v895, %v1039
  %v1216 = vmax.f32 %v896, %v1041
  %v1217 = vmax.f32 %v897, %v1043
  %v1218 = vmax.f32 %v898, %v1045
  %v1219 = vmax.f32 %v899, %v1047
  %v1220 = vmax.f32 %v900, %v1049
  %v1221 = vmax.f32 %v901, %v1051
  %v1222 = vmax.f32 %v902, %v1053
  %v1223 = vmax.f32 %v903, %v1055
  %v1224 = vmax.f32 %v904, %v1057
  %v1225 = vmax.f32 %v905, %v1059
  %v1226 = vmax.f32 %v906, %v1061
  %v1227 = vmax.f32 %v907, %v1063
  %v1228 = vmax.f32 %v908, %v1065
  %v1229 = vmax.f32 %v909, %v1067
  %v1230 = vmax.f32 %v910, %v1069
  %v1231 = vmax.f32 %v911, %v1071
  %v1232 = vmax.f32 %v912, %v1073
  %v1233 = vmax.f32 %v913, %v1075
  %v1234 = vmax.f32 %v914, %v1077
  %v1235 = vmax.f32 %v915, %v1079
  %v1236 = vmax.f32 %v916, %v1081
  %v1237 = vmax.f32 %v917, %v1083
  %v1238 = vmax.f32 %v918, %v1085
  %v1239 = vmax.f32 %v919, %v1087
  %v1240 = vmax.f32 %v920, %v1089
  %v1241 = vmax.f32 %v921, %v1091
  %v1242 = vmax.f32 %v922, %v1093
  %v1243 = vmax.f32 %v923, %v1095
  %v1244 = vmax.f32 %v924, %v1097
  %v1245 = vmax.f32 %v925, %v1099
  %v1246 = vmax.f32 %v926, %v1101
  %v1247 = vmax.f32 %v927, %v1103
  %v1248 = vmax.f32 %v928, %v1105
  %v1249 = vmax.f32 %v929, %v1107
  %v1250 = vmax.f32 %v930, %v1109
  %v1251 = vmax.f32 %v931, %v1111
  %v1252 = vmax.f32 %v932, %v1113
  %v1253 = vmax.f32 %v933, %v1115
  %v1254 = vmax.f32 %v934, %v1117
  %v1255 = vmax.f32 %v935, %v1119
  %v1256 = vmax.f32 %v936, %v1121
  %v1257 = vmax.f32 %v937, %v1123
  %v1258 = vmax.f32 %v938, %v1125
  %v1259 = vmax.f32 %v939, %v1127
  %v1260 = vmax.f32 %v940, %v1129
  %v1261 = vmax.f32 %v941, %v1131
  %v1262 = vmax.f32 %v942, %v1133
  %v1263 = vmax.f32 %v943, %v1135
  %v1264 = vld [vmem:[%s2] sm:$0x1]
  %v1266 = vlaneseq
  %v1267 = vshrl.u32 %v1266, 7
  %v1268 = vsub.s32 0, %v1267
  %v1269 = vrot.slane %v1264, %v1268
  %v1271 = vadd.f32 %v1200, %v1269
  %v1272 = vadd.f32 %v1201, %v1269
  %v1273 = vadd.f32 %v1202, %v1269
  %v1274 = vadd.f32 %v1203, %v1269
  %v1275 = vadd.f32 %v1204, %v1269
  %v1276 = vadd.f32 %v1205, %v1269
  %v1277 = vadd.f32 %v1206, %v1269
  %v1278 = vadd.f32 %v1207, %v1269
  %v1279 = vadd.f32 %v1208, %v1269
  %v1280 = vadd.f32 %v1209, %v1269
  %v1281 = vadd.f32 %v1210, %v1269
  %v1282 = vadd.f32 %v1211, %v1269
  %v1283 = vadd.f32 %v1212, %v1269
  %v1284 = vadd.f32 %v1213, %v1269
  %v1285 = vadd.f32 %v1214, %v1269
  %v1286 = vadd.f32 %v1215, %v1269
  %v1287 = vadd.f32 %v1216, %v1269
  %v1288 = vadd.f32 %v1217, %v1269
  %v1289 = vadd.f32 %v1218, %v1269
  %v1290 = vadd.f32 %v1219, %v1269
  %v1291 = vadd.f32 %v1220, %v1269
  %v1292 = vadd.f32 %v1221, %v1269
  %v1293 = vadd.f32 %v1222, %v1269
  %v1294 = vadd.f32 %v1223, %v1269
  %v1295 = vadd.f32 %v1224, %v1269
  %v1296 = vadd.f32 %v1225, %v1269
  %v1297 = vadd.f32 %v1226, %v1269
  %v1298 = vadd.f32 %v1227, %v1269
  %v1299 = vadd.f32 %v1228, %v1269
  %v1300 = vadd.f32 %v1229, %v1269
  %v1301 = vadd.f32 %v1230, %v1269
  %v1302 = vadd.f32 %v1231, %v1269
  %v1303 = vadd.f32 %v1232, %v1269
  %v1304 = vadd.f32 %v1233, %v1269
  %v1305 = vadd.f32 %v1234, %v1269
  %v1306 = vadd.f32 %v1235, %v1269
  %v1307 = vadd.f32 %v1236, %v1269
  %v1308 = vadd.f32 %v1237, %v1269
  %v1309 = vadd.f32 %v1238, %v1269
  %v1310 = vadd.f32 %v1239, %v1269
  %v1311 = vadd.f32 %v1240, %v1269
  %v1312 = vadd.f32 %v1241, %v1269
  %v1313 = vadd.f32 %v1242, %v1269
  %v1314 = vadd.f32 %v1243, %v1269
  %v1315 = vadd.f32 %v1244, %v1269
  %v1316 = vadd.f32 %v1245, %v1269
  %v1317 = vadd.f32 %v1246, %v1269
  %v1318 = vadd.f32 %v1247, %v1269
  %v1319 = vadd.f32 %v1248, %v1269
  %v1320 = vadd.f32 %v1249, %v1269
  %v1321 = vadd.f32 %v1250, %v1269
  %v1322 = vadd.f32 %v1251, %v1269
  %v1323 = vadd.f32 %v1252, %v1269
  %v1324 = vadd.f32 %v1253, %v1269
  %v1325 = vadd.f32 %v1254, %v1269
  %v1326 = vadd.f32 %v1255, %v1269
  %v1327 = vadd.f32 %v1256, %v1269
  %v1328 = vadd.f32 %v1257, %v1269
  %v1329 = vadd.f32 %v1258, %v1269
  %v1330 = vadd.f32 %v1259, %v1269
  %v1331 = vadd.f32 %v1260, %v1269
  %v1332 = vadd.f32 %v1261, %v1269
  %v1333 = vadd.f32 %v1262, %v1269
  %v1334 = vadd.f32 %v1263, %v1269
  %v1335 = vmax.f32 %v1271, 0.0
  %v1336 = vmax.f32 %v1272, 0.0
  %v1337 = vmax.f32 %v1273, 0.0
  %v1338 = vmax.f32 %v1274, 0.0
  %v1339 = vmax.f32 %v1275, 0.0
  %v1340 = vmax.f32 %v1276, 0.0
  %v1341 = vmax.f32 %v1277, 0.0
  %v1342 = vmax.f32 %v1278, 0.0
  %v1343 = vmax.f32 %v1279, 0.0
  %v1344 = vmax.f32 %v1280, 0.0
  %v1345 = vmax.f32 %v1281, 0.0
  %v1346 = vmax.f32 %v1282, 0.0
  %v1347 = vmax.f32 %v1283, 0.0
  %v1348 = vmax.f32 %v1284, 0.0
  %v1349 = vmax.f32 %v1285, 0.0
  %v1350 = vmax.f32 %v1286, 0.0
  %v1351 = vmax.f32 %v1287, 0.0
  %v1352 = vmax.f32 %v1288, 0.0
  %v1353 = vmax.f32 %v1289, 0.0
  %v1354 = vmax.f32 %v1290, 0.0
  %v1355 = vmax.f32 %v1291, 0.0
  %v1356 = vmax.f32 %v1292, 0.0
  %v1357 = vmax.f32 %v1293, 0.0
  %v1358 = vmax.f32 %v1294, 0.0
  %v1359 = vmax.f32 %v1295, 0.0
  %v1360 = vmax.f32 %v1296, 0.0
  %v1361 = vmax.f32 %v1297, 0.0
  %v1362 = vmax.f32 %v1298, 0.0
  %v1363 = vmax.f32 %v1299, 0.0
  %v1364 = vmax.f32 %v1300, 0.0
  %v1365 = vmax.f32 %v1301, 0.0
  %v1366 = vmax.f32 %v1302, 0.0
  %v1367 = vmax.f32 %v1303, 0.0
  %v1368 = vmax.f32 %v1304, 0.0
  %v1369 = vmax.f32 %v1305, 0.0
  %v1370 = vmax.f32 %v1306, 0.0
  %v1371 = vmax.f32 %v1307, 0.0
  %v1372 = vmax.f32 %v1308, 0.0
  %v1373 = vmax.f32 %v1309, 0.0
  %v1374 = vmax.f32 %v1310, 0.0
  %v1375 = vmax.f32 %v1311, 0.0
  %v1376 = vmax.f32 %v1312, 0.0
  %v1377 = vmax.f32 %v1313, 0.0
  %v1378 = vmax.f32 %v1314, 0.0
  %v1379 = vmax.f32 %v1315, 0.0
  %v1380 = vmax.f32 %v1316, 0.0
  %v1381 = vmax.f32 %v1317, 0.0
  %v1382 = vmax.f32 %v1318, 0.0
  %v1383 = vmax.f32 %v1319, 0.0
  %v1384 = vmax.f32 %v1320, 0.0
  %v1385 = vmax.f32 %v1321, 0.0
  %v1386 = vmax.f32 %v1322, 0.0
  %v1387 = vmax.f32 %v1323, 0.0
  %v1388 = vmax.f32 %v1324, 0.0
  %v1389 = vmax.f32 %v1325, 0.0
  %v1390 = vmax.f32 %v1326, 0.0
  %v1391 = vmax.f32 %v1327, 0.0
  %v1392 = vmax.f32 %v1328, 0.0
  %v1393 = vmax.f32 %v1329, 0.0
  %v1394 = vmax.f32 %v1330, 0.0
  %v1395 = vmax.f32 %v1331, 0.0
  %v1396 = vmax.f32 %v1332, 0.0
  %v1397 = vmax.f32 %v1333, 0.0
  %v1398 = vmax.f32 %v1334, 0.0
  %v1399 = vpack.c.bf16 %v1336, %v1335
  %v1400 = vpack.c.bf16 %v1338, %v1337
  %v1401 = vpack.c.bf16 %v1340, %v1339
  %v1402 = vpack.c.bf16 %v1342, %v1341
  %v1403 = vpack.c.bf16 %v1344, %v1343
  %v1404 = vpack.c.bf16 %v1346, %v1345
  %v1405 = vpack.c.bf16 %v1348, %v1347
  %v1406 = vpack.c.bf16 %v1350, %v1349
  %v1407 = vpack.c.bf16 %v1352, %v1351
  %v1408 = vpack.c.bf16 %v1354, %v1353
  %v1409 = vpack.c.bf16 %v1356, %v1355
  %v1410 = vpack.c.bf16 %v1358, %v1357
  %v1411 = vpack.c.bf16 %v1360, %v1359
  %v1412 = vpack.c.bf16 %v1362, %v1361
  %v1413 = vpack.c.bf16 %v1364, %v1363
  %v1414 = vpack.c.bf16 %v1366, %v1365
  %v1415 = vpack.c.bf16 %v1368, %v1367
  %v1416 = vpack.c.bf16 %v1370, %v1369
  %v1417 = vpack.c.bf16 %v1372, %v1371
  %v1418 = vpack.c.bf16 %v1374, %v1373
  %v1419 = vpack.c.bf16 %v1376, %v1375
  %v1420 = vpack.c.bf16 %v1378, %v1377
  %v1421 = vpack.c.bf16 %v1380, %v1379
  %v1422 = vpack.c.bf16 %v1382, %v1381
  %v1423 = vpack.c.bf16 %v1384, %v1383
  %v1424 = vpack.c.bf16 %v1386, %v1385
  %v1425 = vpack.c.bf16 %v1388, %v1387
  %v1426 = vpack.c.bf16 %v1390, %v1389
  %v1427 = vpack.c.bf16 %v1392, %v1391
  %v1428 = vpack.c.bf16 %v1394, %v1393
  %v1429 = vpack.c.bf16 %v1396, %v1395
  %v1430 = vpack.c.bf16 %v1398, %v1397
  %v1463 = vunpack.c.l.b16 %v1399
  %v1464 = vunpack.c.h.b16 %v1399
  %v1465 = vunpack.c.l.b16 %v1400
  %v1466 = vunpack.c.h.b16 %v1400
  %v1467 = vunpack.c.l.b16 %v1401
  %v1468 = vunpack.c.h.b16 %v1401
  %v1469 = vunpack.c.l.b16 %v1402
  %v1470 = vunpack.c.h.b16 %v1402
  %v1471 = vunpack.c.l.b16 %v1403
  %v1472 = vunpack.c.h.b16 %v1403
  %v1473 = vunpack.c.l.b16 %v1404
  %v1474 = vunpack.c.h.b16 %v1404
  %v1475 = vunpack.c.l.b16 %v1405
  %v1476 = vunpack.c.h.b16 %v1405
  %v1477 = vunpack.c.l.b16 %v1406
  %v1478 = vunpack.c.h.b16 %v1406
  %v1479 = vunpack.c.l.b16 %v1407
  %v1480 = vunpack.c.h.b16 %v1407
  %v1481 = vunpack.c.l.b16 %v1408
  %v1482 = vunpack.c.h.b16 %v1408
  %v1483 = vunpack.c.l.b16 %v1409
  %v1484 = vunpack.c.h.b16 %v1409
  %v1485 = vunpack.c.l.b16 %v1410
  %v1486 = vunpack.c.h.b16 %v1410
  %v1487 = vunpack.c.l.b16 %v1411
  %v1488 = vunpack.c.h.b16 %v1411
  %v1489 = vunpack.c.l.b16 %v1412
  %v1490 = vunpack.c.h.b16 %v1412
  %v1491 = vunpack.c.l.b16 %v1413
  %v1492 = vunpack.c.h.b16 %v1413
  %v1493 = vunpack.c.l.b16 %v1414
  %v1494 = vunpack.c.h.b16 %v1414
  %v1495 = vunpack.c.l.b16 %v1415
  %v1496 = vunpack.c.h.b16 %v1415
  %v1497 = vunpack.c.l.b16 %v1416
  %v1498 = vunpack.c.h.b16 %v1416
  %v1499 = vunpack.c.l.b16 %v1417
  %v1500 = vunpack.c.h.b16 %v1417
  %v1501 = vunpack.c.l.b16 %v1418
  %v1502 = vunpack.c.h.b16 %v1418
  %v1503 = vunpack.c.l.b16 %v1419
  %v1504 = vunpack.c.h.b16 %v1419
  %v1505 = vunpack.c.l.b16 %v1420
  %v1506 = vunpack.c.h.b16 %v1420
  %v1507 = vunpack.c.l.b16 %v1421
  %v1508 = vunpack.c.h.b16 %v1421
  %v1509 = vunpack.c.l.b16 %v1422
  %v1510 = vunpack.c.h.b16 %v1422
  %v1511 = vunpack.c.l.b16 %v1423
  %v1512 = vunpack.c.h.b16 %v1423
  %v1513 = vunpack.c.l.b16 %v1424
  %v1514 = vunpack.c.h.b16 %v1424
  %v1515 = vunpack.c.l.b16 %v1425
  %v1516 = vunpack.c.h.b16 %v1425
  %v1517 = vunpack.c.l.b16 %v1426
  %v1518 = vunpack.c.h.b16 %v1426
  %v1519 = vunpack.c.l.b16 %v1427
  %v1520 = vunpack.c.h.b16 %v1427
  %v1521 = vunpack.c.l.b16 %v1428
  %v1522 = vunpack.c.h.b16 %v1428
  %v1523 = vunpack.c.l.b16 %v1429
  %v1524 = vunpack.c.h.b16 %v1429
  %v1525 = vunpack.c.l.b16 %v1430
  %v1526 = vunpack.c.h.b16 %v1430
  %v1527 = vpack.c.b16 %v1463, %v1463
  %v1528 = vpack.c.b16 %v1464, %v1464
  %v1529 = vpack.c.b16 %v1465, %v1465
  %v1530 = vpack.c.b16 %v1466, %v1466
  %v1531 = vpack.c.b16 %v1467, %v1467
  %v1532 = vpack.c.b16 %v1468, %v1468
  %v1533 = vpack.c.b16 %v1469, %v1469
  %v1534 = vpack.c.b16 %v1470, %v1470
  %v1535 = vpack.c.b16 %v1471, %v1471
  %v1536 = vpack.c.b16 %v1472, %v1472
  %v1537 = vpack.c.b16 %v1473, %v1473
  %v1538 = vpack.c.b16 %v1474, %v1474
  %v1539 = vpack.c.b16 %v1475, %v1475
  %v1540 = vpack.c.b16 %v1476, %v1476
  %v1541 = vpack.c.b16 %v1477, %v1477
  %v1542 = vpack.c.b16 %v1478, %v1478
  %v1543 = vpack.c.b16 %v1479, %v1479
  %v1544 = vpack.c.b16 %v1480, %v1480
  %v1545 = vpack.c.b16 %v1481, %v1481
  %v1546 = vpack.c.b16 %v1482, %v1482
  %v1547 = vpack.c.b16 %v1483, %v1483
  %v1548 = vpack.c.b16 %v1484, %v1484
  %v1549 = vpack.c.b16 %v1485, %v1485
  %v1550 = vpack.c.b16 %v1486, %v1486
  %v1551 = vpack.c.b16 %v1487, %v1487
  %v1552 = vpack.c.b16 %v1488, %v1488
  %v1553 = vpack.c.b16 %v1489, %v1489
  %v1554 = vpack.c.b16 %v1490, %v1490
  %v1555 = vpack.c.b16 %v1491, %v1491
  %v1556 = vpack.c.b16 %v1492, %v1492
  %v1557 = vpack.c.b16 %v1493, %v1493
  %v1558 = vpack.c.b16 %v1494, %v1494
  %v1559 = vpack.c.b16 %v1495, %v1495
  %v1560 = vpack.c.b16 %v1496, %v1496
  %v1561 = vpack.c.b16 %v1497, %v1497
  %v1562 = vpack.c.b16 %v1498, %v1498
  %v1563 = vpack.c.b16 %v1499, %v1499
  %v1564 = vpack.c.b16 %v1500, %v1500
  %v1565 = vpack.c.b16 %v1501, %v1501
  %v1566 = vpack.c.b16 %v1502, %v1502
  %v1567 = vpack.c.b16 %v1503, %v1503
  %v1568 = vpack.c.b16 %v1504, %v1504
  %v1569 = vpack.c.b16 %v1505, %v1505
  %v1570 = vpack.c.b16 %v1506, %v1506
  %v1571 = vpack.c.b16 %v1507, %v1507
  %v1572 = vpack.c.b16 %v1508, %v1508
  %v1573 = vpack.c.b16 %v1509, %v1509
  %v1574 = vpack.c.b16 %v1510, %v1510
  %v1575 = vpack.c.b16 %v1511, %v1511
  %v1576 = vpack.c.b16 %v1512, %v1512
  %v1577 = vpack.c.b16 %v1513, %v1513
  %v1578 = vpack.c.b16 %v1514, %v1514
  %v1579 = vpack.c.b16 %v1515, %v1515
  %v1580 = vpack.c.b16 %v1516, %v1516
  %v1581 = vpack.c.b16 %v1517, %v1517
  %v1582 = vpack.c.b16 %v1518, %v1518
  %v1583 = vpack.c.b16 %v1519, %v1519
  %v1584 = vpack.c.b16 %v1520, %v1520
  %v1585 = vpack.c.b16 %v1521, %v1521
  %v1586 = vpack.c.b16 %v1522, %v1522
  %v1587 = vpack.c.b16 %v1523, %v1523
  %v1588 = vpack.c.b16 %v1524, %v1524
  %v1589 = vpack.c.b16 %v1525, %v1525
  %v1590 = vpack.c.b16 %v1526, %v1526
  %vm1655 = vcmask 257024
  %1656 = vst.msk [vmem:[%s3] sm:$0xf] %vm1655, %v1527
  %1657 = vst.msk [vmem:[%s3 + $0x4] sm:$0xf] %vm1655, %v1528
  %1658 = vst.msk [vmem:[%s3 + $0x8] sm:$0xf] %vm1655, %v1529
  %1659 = vst.msk [vmem:[%s3 + $0xc] sm:$0xf] %vm1655, %v1530
  %1660 = vst.msk [vmem:[%s3 + $0x10] sm:$0xf] %vm1655, %v1531
  %1661 = vst.msk [vmem:[%s3 + $0x14] sm:$0xf] %vm1655, %v1532
  %1662 = vst.msk [vmem:[%s3 + $0x18] sm:$0xf] %vm1655, %v1533
  %1663 = vst.msk [vmem:[%s3 + $0x1c] sm:$0xf] %vm1655, %v1534
  %1664 = vst.msk [vmem:[%s3 + $0x20] sm:$0xf] %vm1655, %v1535
  %1665 = vst.msk [vmem:[%s3 + $0x24] sm:$0xf] %vm1655, %v1536
  %1666 = vst.msk [vmem:[%s3 + $0x28] sm:$0xf] %vm1655, %v1537
  %1667 = vst.msk [vmem:[%s3 + $0x2c] sm:$0xf] %vm1655, %v1538
  %1668 = vst.msk [vmem:[%s3 + $0x30] sm:$0xf] %vm1655, %v1539
  %1669 = vst.msk [vmem:[%s3 + $0x34] sm:$0xf] %vm1655, %v1540
  %1670 = vst.msk [vmem:[%s3 + $0x38] sm:$0xf] %vm1655, %v1541
  %1671 = vst.msk [vmem:[%s3 + $0x3c] sm:$0xf] %vm1655, %v1542
  %1672 = vst.msk [vmem:[%s3 + $0x40] sm:$0xf] %vm1655, %v1543
  %1673 = vst.msk [vmem:[%s3 + $0x44] sm:$0xf] %vm1655, %v1544
  %1674 = vst.msk [vmem:[%s3 + $0x48] sm:$0xf] %vm1655, %v1545
  %1675 = vst.msk [vmem:[%s3 + $0x4c] sm:$0xf] %vm1655, %v1546
  %1676 = vst.msk [vmem:[%s3 + $0x50] sm:$0xf] %vm1655, %v1547
  %1677 = vst.msk [vmem:[%s3 + $0x54] sm:$0xf] %vm1655, %v1548
  %1678 = vst.msk [vmem:[%s3 + $0x58] sm:$0xf] %vm1655, %v1549
  %1679 = vst.msk [vmem:[%s3 + $0x5c] sm:$0xf] %vm1655, %v1550
  %1680 = vst.msk [vmem:[%s3 + $0x60] sm:$0xf] %vm1655, %v1551
  %1681 = vst.msk [vmem:[%s3 + $0x64] sm:$0xf] %vm1655, %v1552
  %1682 = vst.msk [vmem:[%s3 + $0x68] sm:$0xf] %vm1655, %v1553
  %1683 = vst.msk [vmem:[%s3 + $0x6c] sm:$0xf] %vm1655, %v1554
  %1684 = vst.msk [vmem:[%s3 + $0x70] sm:$0xf] %vm1655, %v1555
  %1685 = vst.msk [vmem:[%s3 + $0x74] sm:$0xf] %vm1655, %v1556
  %1686 = vst.msk [vmem:[%s3 + $0x78] sm:$0xf] %vm1655, %v1557
  %1687 = vst.msk [vmem:[%s3 + $0x7c] sm:$0xf] %vm1655, %v1558
  %1688 = vst.msk [vmem:[%s3 + $0x80] sm:$0xf] %vm1655, %v1559
  %1689 = vst.msk [vmem:[%s3 + $0x84] sm:$0xf] %vm1655, %v1560
  %1690 = vst.msk [vmem:[%s3 + $0x88] sm:$0xf] %vm1655, %v1561
  %1691 = vst.msk [vmem:[%s3 + $0x8c] sm:$0xf] %vm1655, %v1562
  %1692 = vst.msk [vmem:[%s3 + $0x90] sm:$0xf] %vm1655, %v1563
  %1693 = vst.msk [vmem:[%s3 + $0x94] sm:$0xf] %vm1655, %v1564
  %1694 = vst.msk [vmem:[%s3 + $0x98] sm:$0xf] %vm1655, %v1565
  %1695 = vst.msk [vmem:[%s3 + $0x9c] sm:$0xf] %vm1655, %v1566
  %1696 = vst.msk [vmem:[%s3 + $0xa0] sm:$0xf] %vm1655, %v1567
  %1697 = vst.msk [vmem:[%s3 + $0xa4] sm:$0xf] %vm1655, %v1568
  %1698 = vst.msk [vmem:[%s3 + $0xa8] sm:$0xf] %vm1655, %v1569
  %1699 = vst.msk [vmem:[%s3 + $0xac] sm:$0xf] %vm1655, %v1570
  %1700 = vst.msk [vmem:[%s3 + $0xb0] sm:$0xf] %vm1655, %v1571
  %1701 = vst.msk [vmem:[%s3 + $0xb4] sm:$0xf] %vm1655, %v1572
  %1702 = vst.msk [vmem:[%s3 + $0xb8] sm:$0xf] %vm1655, %v1573
  %1703 = vst.msk [vmem:[%s3 + $0xbc] sm:$0xf] %vm1655, %v1574
  %1704 = vst.msk [vmem:[%s3 + $0xc0] sm:$0xf] %vm1655, %v1575
  %1705 = vst.msk [vmem:[%s3 + $0xc4] sm:$0xf] %vm1655, %v1576
  %1706 = vst.msk [vmem:[%s3 + $0xc8] sm:$0xf] %vm1655, %v1577
  %1707 = vst.msk [vmem:[%s3 + $0xcc] sm:$0xf] %vm1655, %v1578
  %1708 = vst.msk [vmem:[%s3 + $0xd0] sm:$0xf] %vm1655, %v1579
  %1709 = vst.msk [vmem:[%s3 + $0xd4] sm:$0xf] %vm1655, %v1580
  %1710 = vst.msk [vmem:[%s3 + $0xd8] sm:$0xf] %vm1655, %v1581
  %1711 = vst.msk [vmem:[%s3 + $0xdc] sm:$0xf] %vm1655, %v1582
  %1712 = vst.msk [vmem:[%s3 + $0xe0] sm:$0xf] %vm1655, %v1583
  %1713 = vst.msk [vmem:[%s3 + $0xe4] sm:$0xf] %vm1655, %v1584
  %1714 = vst.msk [vmem:[%s3 + $0xe8] sm:$0xf] %vm1655, %v1585
  %1715 = vst.msk [vmem:[%s3 + $0xec] sm:$0xf] %vm1655, %v1586
  %1716 = vst.msk [vmem:[%s3 + $0xf0] sm:$0xf] %vm1655, %v1587
  %1717 = vst.msk [vmem:[%s3 + $0xf4] sm:$0xf] %vm1655, %v1588
  %1718 = vst.msk [vmem:[%s3 + $0xf8] sm:$0xf] %vm1655, %v1589
  %1719 = vst.msk [vmem:[%s3 + $0xfc] sm:$0xf] %vm1655, %v1590
  // Predicated region
  $region14: #{cnn_forward.3} parent=0 // pred_check
    _
  $region15: #{cnn_forward.3} parent=0 // pred_check_branch
    %1721 = sbr.rel (0) target = $region17
  $region16: #{cnn_forward.3} parent=0 // pred_region
    _
  $region17: #{cnn_forward.3} parent=0 // pred_fallthru
    _
  // Predicated region
  $region18: #{cnn_forward.3} parent=0 // pred_check
    _
  $region19: #{cnn_forward.3} parent=0 // pred_check_branch
    %1723 = sbr.rel (0) target = $region21
  $region20: #{cnn_forward.3} parent=0 // pred_region
    _
  $region21: #{cnn_forward.3} parent=0 // pred_fallthru
    _

// kernel: cnn_forward.4
$region0: #{cnn_forward.4}
  #allocation0 [shape = 'u32[]', space=smem, size = 0x4, offset = 0x4, fixed_abs, tag = 'smem constant byte address 0x4 - core index']
  #allocation1 [shape = 'u32[144,128]{1,0:T(1,128)}', space=vmem, size = 0x12000, scoped, tag = 'internal scratch']
  %s0 = inlined_call_operand.vmem [shape: bf16[128,512], index: 0, kind: input, shape index: {}]
  %s1 = inlined_call_operand.vmem [shape: bf16[512,256], index: 1, kind: input, shape index: {}]
  %s2 = inlined_call_operand.vmem [shape: f32[1,64], index: 2, kind: input, shape index: {}]
  %s3 = inlined_call_operand.vmem [shape: bf16[128,64], index: 3, kind: output, shape index: {}]
  %s4 = sld [smem:[#allocation0]]
  $region22: #{cnn_forward.4} parent=0
    _
  %s6 = ssub.s32 1, %s4
  %s7 = scalar_select 0, %s6, %s4
  // Predicated region
  $region2: #{cnn_forward.4} parent=0 // pred_check
    _
  $region3: #{cnn_forward.4} parent=0 // pred_check_branch
    %9 = sbr.rel (0) target = $region5
  $region4: #{cnn_forward.4} parent=0 // pred_region
    _
  $region5: #{cnn_forward.4} parent=0 // pred_fallthru
    _
  // Predicated region
  $region6: #{cnn_forward.4} parent=0 // pred_check
    _
  $region7: #{cnn_forward.4} parent=0 // pred_check_branch
    %11 = sbr.rel (0) target = $region9
  $region8: #{cnn_forward.4} parent=0 // pred_region
    _
  $region9: #{cnn_forward.4} parent=0 // pred_fallthru
    _
  // Predicated region
  $region10: #{cnn_forward.4} parent=0 // pred_check
    _
  $region11: #{cnn_forward.4} parent=0 // pred_check_branch
    %13 = sbr.rel (0) target = $region13
  $region12: #{cnn_forward.4} parent=0 // pred_region
    _
  $region13: #{cnn_forward.4} parent=0 // pred_fallthru
    _
  %v14 = vld [vmem:[%s0] sm:$0xff]
  %v15 = vld [vmem:[%s0 + $0x8] sm:$0xff]
  %v16 = vld [vmem:[%s0 + $0x10] sm:$0xff]
  %v17 = vld [vmem:[%s0 + $0x18] sm:$0xff]
  %v18 = vld [vmem:[%s0 + $0x20] sm:$0xff]
  %v19 = vld [vmem:[%s0 + $0x28] sm:$0xff]
  %v20 = vld [vmem:[%s0 + $0x30] sm:$0xff]
  %v21 = vld [vmem:[%s0 + $0x38] sm:$0xff]
  %v22 = vld [vmem:[%s0 + $0x40] sm:$0xff]
  %v23 = vld [vmem:[%s0 + $0x48] sm:$0xff]
  %v24 = vld [vmem:[%s0 + $0x50] sm:$0xff]
  %v25 = vld [vmem:[%s0 + $0x58] sm:$0xff]
  %v26 = vld [vmem:[%s0 + $0x60] sm:$0xff]
  %v27 = vld [vmem:[%s0 + $0x68] sm:$0xff]
  %v28 = vld [vmem:[%s0 + $0x70] sm:$0xff]
  %v29 = vld [vmem:[%s0 + $0x78] sm:$0xff]
  %v30 = vld [vmem:[%s0 + $0x80] sm:$0xff]
  %v31 = vld [vmem:[%s0 + $0x88] sm:$0xff]
  %v32 = vld [vmem:[%s0 + $0x90] sm:$0xff]
  %v33 = vld [vmem:[%s0 + $0x98] sm:$0xff]
  %v34 = vld [vmem:[%s0 + $0xa0] sm:$0xff]
  %v35 = vld [vmem:[%s0 + $0xa8] sm:$0xff]
  %v36 = vld [vmem:[%s0 + $0xb0] sm:$0xff]
  %v37 = vld [vmem:[%s0 + $0xb8] sm:$0xff]
  %v38 = vld [vmem:[%s0 + $0xc0] sm:$0xff]
  %v39 = vld [vmem:[%s0 + $0xc8] sm:$0xff]
  %v40 = vld [vmem:[%s0 + $0xd0] sm:$0xff]
  %v41 = vld [vmem:[%s0 + $0xd8] sm:$0xff]
  %v42 = vld [vmem:[%s0 + $0xe0] sm:$0xff]
  %v43 = vld [vmem:[%s0 + $0xe8] sm:$0xff]
  %v44 = vld [vmem:[%s0 + $0xf0] sm:$0xff]
  %v45 = vld [vmem:[%s0 + $0xf8] sm:$0xff]
  %v46 = vld [vmem:[%s1] sm:$0xff]
  %v47 = vld [vmem:[%s1 + $0x8] sm:$0xff]
  %v48 = vld [vmem:[%s1 + $0x10] sm:$0xff]
  %v49 = vld [vmem:[%s1 + $0x18] sm:$0xff]
  %v50 = vld [vmem:[%s1 + $0x20] sm:$0xff]
  %v51 = vld [vmem:[%s1 + $0x28] sm:$0xff]
  %v52 = vld [vmem:[%s1 + $0x30] sm:$0xff]
  %v53 = vld [vmem:[%s1 + $0x38] sm:$0xff]
  %v54 = vld [vmem:[%s1 + $0x40] sm:$0xff]
  %v55 = vld [vmem:[%s1 + $0x48] sm:$0xff]
  %v56 = vld [vmem:[%s1 + $0x50] sm:$0xff]
  %v57 = vld [vmem:[%s1 + $0x58] sm:$0xff]
  %v58 = vld [vmem:[%s1 + $0x60] sm:$0xff]
  %v59 = vld [vmem:[%s1 + $0x68] sm:$0xff]
  %v60 = vld [vmem:[%s1 + $0x70] sm:$0xff]
  %v61 = vld [vmem:[%s1 + $0x78] sm:$0xff]
  %v62 = vld [vmem:[%s1 + $0x80] sm:$0xff]
  %v63 = vld [vmem:[%s1 + $0x88] sm:$0xff]
  %v64 = vld [vmem:[%s1 + $0x90] sm:$0xff]
  %v65 = vld [vmem:[%s1 + $0x98] sm:$0xff]
  %v66 = vld [vmem:[%s1 + $0xa0] sm:$0xff]
  %v67 = vld [vmem:[%s1 + $0xa8] sm:$0xff]
  %v68 = vld [vmem:[%s1 + $0xb0] sm:$0xff]
  %v69 = vld [vmem:[%s1 + $0xb8] sm:$0xff]
  %v70 = vld [vmem:[%s1 + $0xc0] sm:$0xff]
  %v71 = vld [vmem:[%s1 + $0xc8] sm:$0xff]
  %v72 = vld [vmem:[%s1 + $0xd0] sm:$0xff]
  %v73 = vld [vmem:[%s1 + $0xd8] sm:$0xff]
  %v74 = vld [vmem:[%s1 + $0xe0] sm:$0xff]
  %v75 = vld [vmem:[%s1 + $0xe8] sm:$0xff]
  %v76 = vld [vmem:[%s1 + $0xf0] sm:$0xff]
  %v77 = vld [vmem:[%s1 + $0xf8] sm:$0xff]
  %v78 = vld [vmem:[%s1 + $0x100] sm:$0xff]
  %v79 = vld [vmem:[%s1 + $0x108] sm:$0xff]
  %v80 = vld [vmem:[%s1 + $0x110] sm:$0xff]
  %v81 = vld [vmem:[%s1 + $0x118] sm:$0xff]
  %v82 = vld [vmem:[%s1 + $0x120] sm:$0xff]
  %v83 = vld [vmem:[%s1 + $0x128] sm:$0xff]
  %v84 = vld [vmem:[%s1 + $0x130] sm:$0xff]
  %v85 = vld [vmem:[%s1 + $0x138] sm:$0xff]
  %v86 = vld [vmem:[%s1 + $0x140] sm:$0xff]
  %v87 = vld [vmem:[%s1 + $0x148] sm:$0xff]
  %v88 = vld [vmem:[%s1 + $0x150] sm:$0xff]
  %v89 = vld [vmem:[%s1 + $0x158] sm:$0xff]
  %v90 = vld [vmem:[%s1 + $0x160] sm:$0xff]
  %v91 = vld [vmem:[%s1 + $0x168] sm:$0xff]
  %v92 = vld [vmem:[%s1 + $0x170] sm:$0xff]
  %v93 = vld [vmem:[%s1 + $0x178] sm:$0xff]
  %v94 = vld [vmem:[%s1 + $0x180] sm:$0xff]
  %v95 = vld [vmem:[%s1 + $0x188] sm:$0xff]
  %v96 = vld [vmem:[%s1 + $0x190] sm:$0xff]
  %v97 = vld [vmem:[%s1 + $0x198] sm:$0xff]
  %v98 = vld [vmem:[%s1 + $0x1a0] sm:$0xff]
  %v99 = vld [vmem:[%s1 + $0x1a8] sm:$0xff]
  %v100 = vld [vmem:[%s1 + $0x1b0] sm:$0xff]
  %v101 = vld [vmem:[%s1 + $0x1b8] sm:$0xff]
  %v102 = vld [vmem:[%s1 + $0x1c0] sm:$0xff]
  %v103 = vld [vmem:[%s1 + $0x1c8] sm:$0xff]
  %v104 = vld [vmem:[%s1 + $0x1d0] sm:$0xff]
  %v105 = vld [vmem:[%s1 + $0x1d8] sm:$0xff]
  %v106 = vld [vmem:[%s1 + $0x1e0] sm:$0xff]
  %v107 = vld [vmem:[%s1 + $0x1e8] sm:$0xff]
  %v108 = vld [vmem:[%s1 + $0x1f0] sm:$0xff]
  %v109 = vld [vmem:[%s1 + $0x1f8] sm:$0xff]
  %v142 = vunpack.c.l.b16 %v14
  %v143 = vunpack.c.h.b16 %v14
  %v144 = vunpack.c.l.b16 %v15
  %v145 = vunpack.c.h.b16 %v15
  %v146 = vunpack.c.l.b16 %v16
  %v147 = vunpack.c.h.b16 %v16
  %v148 = vunpack.c.l.b16 %v17
  %v149 = vunpack.c.h.b16 %v17
  %v150 = vunpack.c.l.b16 %v18
  %v151 = vunpack.c.h.b16 %v18
  %v152 = vunpack.c.l.b16 %v19
  %v153 = vunpack.c.h.b16 %v19
  %v154 = vunpack.c.l.b16 %v20
  %v155 = vunpack.c.h.b16 %v20
  %v156 = vunpack.c.l.b16 %v21
  %v157 = vunpack.c.h.b16 %v21
  %v158 = vunpack.c.l.b16 %v22
  %v159 = vunpack.c.h.b16 %v22
  %v160 = vunpack.c.l.b16 %v23
  %v161 = vunpack.c.h.b16 %v23
  %v162 = vunpack.c.l.b16 %v24
  %v163 = vunpack.c.h.b16 %v24
  %v164 = vunpack.c.l.b16 %v25
  %v165 = vunpack.c.h.b16 %v25
  %v166 = vunpack.c.l.b16 %v26
  %v167 = vunpack.c.h.b16 %v26
  %v168 = vunpack.c.l.b16 %v27
  %v169 = vunpack.c.h.b16 %v27
  %v170 = vunpack.c.l.b16 %v28
  %v171 = vunpack.c.h.b16 %v28
  %v172 = vunpack.c.l.b16 %v29
  %v173 = vunpack.c.h.b16 %v29
  %v174 = vunpack.c.l.b16 %v30
  %v175 = vunpack.c.h.b16 %v30
  %v176 = vunpack.c.l.b16 %v31
  %v177 = vunpack.c.h.b16 %v31
  %v178 = vunpack.c.l.b16 %v32
  %v179 = vunpack.c.h.b16 %v32
  %v180 = vunpack.c.l.b16 %v33
  %v181 = vunpack.c.h.b16 %v33
  %v182 = vunpack.c.l.b16 %v34
  %v183 = vunpack.c.h.b16 %v34
  %v184 = vunpack.c.l.b16 %v35
  %v185 = vunpack.c.h.b16 %v35
  %v186 = vunpack.c.l.b16 %v36
  %v187 = vunpack.c.h.b16 %v36
  %v188 = vunpack.c.l.b16 %v37
  %v189 = vunpack.c.h.b16 %v37
  %v190 = vunpack.c.l.b16 %v38
  %v191 = vunpack.c.h.b16 %v38
  %v192 = vunpack.c.l.b16 %v39
  %v193 = vunpack.c.h.b16 %v39
  %v194 = vunpack.c.l.b16 %v40
  %v195 = vunpack.c.h.b16 %v40
  %v196 = vunpack.c.l.b16 %v41
  %v197 = vunpack.c.h.b16 %v41
  %v198 = vunpack.c.l.b16 %v42
  %v199 = vunpack.c.h.b16 %v42
  %v200 = vunpack.c.l.b16 %v43
  %v201 = vunpack.c.h.b16 %v43
  %v202 = vunpack.c.l.b16 %v44
  %v203 = vunpack.c.h.b16 %v44
  %v204 = vunpack.c.l.b16 %v45
  %v205 = vunpack.c.h.b16 %v45
  %v206 = vpack.c.b16 %v146, %v142
  %v207 = vpack.c.b16 %v147, %v143
  %v208 = vpack.c.b16 %v148, %v144
  %v209 = vpack.c.b16 %v149, %v145
  %v210 = vpack.c.b16 %v154, %v150
  %v211 = vpack.c.b16 %v155, %v151
  %v212 = vpack.c.b16 %v156, %v152
  %v213 = vpack.c.b16 %v157, %v153
  %v214 = vpack.c.b16 %v162, %v158
  %v215 = vpack.c.b16 %v163, %v159
  %v216 = vpack.c.b16 %v164, %v160
  %v217 = vpack.c.b16 %v165, %v161
  %v218 = vpack.c.b16 %v170, %v166
  %v219 = vpack.c.b16 %v171, %v167
  %v220 = vpack.c.b16 %v172, %v168
  %v221 = vpack.c.b16 %v173, %v169
  %v222 = vpack.c.b16 %v178, %v174
  %v223 = vpack.c.b16 %v179, %v175
  %v224 = vpack.c.b16 %v180, %v176
  %v225 = vpack.c.b16 %v181, %v177
  %v226 = vpack.c.b16 %v186, %v182
  %v227 = vpack.c.b16 %v187, %v183
  %v228 = vpack.c.b16 %v188, %v184
  %v229 = vpack.c.b16 %v189, %v185
  %v230 = vpack.c.b16 %v194, %v190
  %v231 = vpack.c.b16 %v195, %v191
  %v232 = vpack.c.b16 %v196, %v192
  %v233 = vpack.c.b16 %v197, %v193
  %v234 = vpack.c.b16 %v202, %v198
  %v235 = vpack.c.b16 %v203, %v199
  %v236 = vpack.c.b16 %v204, %v200
  %v237 = vpack.c.b16 %v205, %v201
  %v334 = vunpack.c.l.b16 %v46
  %v335 = vunpack.c.h.b16 %v46
  %v336 = vunpack.c.l.b16 %v47
  %v337 = vunpack.c.h.b16 %v47
  %v338 = vunpack.c.l.b16 %v48
  %v339 = vunpack.c.h.b16 %v48
  %v340 = vunpack.c.l.b16 %v49
  %v341 = vunpack.c.h.b16 %v49
  %v342 = vunpack.c.l.b16 %v50
  %v343 = vunpack.c.h.b16 %v50
  %v344 = vunpack.c.l.b16 %v51
  %v345 = vunpack.c.h.b16 %v51
  %v346 = vunpack.c.l.b16 %v52
  %v347 = vunpack.c.h.b16 %v52
  %v348 = vunpack.c.l.b16 %v53
  %v349 = vunpack.c.h.b16 %v53
  %v350 = vunpack.c.l.b16 %v54
  %v351 = vunpack.c.h.b16 %v54
  %v352 = vunpack.c.l.b16 %v55
  %v353 = vunpack.c.h.b16 %v55
  %v354 = vunpack.c.l.b16 %v56
  %v355 = vunpack.c.h.b16 %v56
  %v356 = vunpack.c.l.b16 %v57
  %v357 = vunpack.c.h.b16 %v57
  %v358 = vunpack.c.l.b16 %v58
  %v359 = vunpack.c.h.b16 %v58
  %v360 = vunpack.c.l.b16 %v59
  %v361 = vunpack.c.h.b16 %v59
  %v362 = vunpack.c.l.b16 %v60
  %v363 = vunpack.c.h.b16 %v60
  %v364 = vunpack.c.l.b16 %v61
  %v365 = vunpack.c.h.b16 %v61
  %v366 = vunpack.c.l.b16 %v62
  %v367 = vunpack.c.h.b16 %v62
  %v368 = vunpack.c.l.b16 %v63
  %v369 = vunpack.c.h.b16 %v63
  %v370 = vunpack.c.l.b16 %v64
  %v371 = vunpack.c.h.b16 %v64
  %v372 = vunpack.c.l.b16 %v65
  %v373 = vunpack.c.h.b16 %v65
  %v374 = vunpack.c.l.b16 %v66
  %v375 = vunpack.c.h.b16 %v66
  %v376 = vunpack.c.l.b16 %v67
  %v377 = vunpack.c.h.b16 %v67
  %v378 = vunpack.c.l.b16 %v68
  %v379 = vunpack.c.h.b16 %v68
  %v380 = vunpack.c.l.b16 %v69
  %v381 = vunpack.c.h.b16 %v69
  %v382 = vunpack.c.l.b16 %v70
  %v383 = vunpack.c.h.b16 %v70
  %v384 = vunpack.c.l.b16 %v71
  %v385 = vunpack.c.h.b16 %v71
  %v386 = vunpack.c.l.b16 %v72
  %v387 = vunpack.c.h.b16 %v72
  %v388 = vunpack.c.l.b16 %v73
  %v389 = vunpack.c.h.b16 %v73
  %v390 = vunpack.c.l.b16 %v74
  %v391 = vunpack.c.h.b16 %v74
  %v392 = vunpack.c.l.b16 %v75
  %v393 = vunpack.c.h.b16 %v75
  %v394 = vunpack.c.l.b16 %v76
  %v395 = vunpack.c.h.b16 %v76
  %v396 = vunpack.c.l.b16 %v77
  %v397 = vunpack.c.h.b16 %v77
  %v398 = vunpack.c.l.b16 %v78
  %v399 = vunpack.c.h.b16 %v78
  %v400 = vunpack.c.l.b16 %v79
  %v401 = vunpack.c.h.b16 %v79
  %v402 = vunpack.c.l.b16 %v80
  %v403 = vunpack.c.h.b16 %v80
  %v404 = vunpack.c.l.b16 %v81
  %v405 = vunpack.c.h.b16 %v81
  %v406 = vunpack.c.l.b16 %v82
  %v407 = vunpack.c.h.b16 %v82
  %v408 = vunpack.c.l.b16 %v83
  %v409 = vunpack.c.h.b16 %v83
  %v410 = vunpack.c.l.b16 %v84
  %v411 = vunpack.c.h.b16 %v84
  %v412 = vunpack.c.l.b16 %v85
  %v413 = vunpack.c.h.b16 %v85
  %v414 = vunpack.c.l.b16 %v86
  %v415 = vunpack.c.h.b16 %v86
  %v416 = vunpack.c.l.b16 %v87
  %v417 = vunpack.c.h.b16 %v87
  %v418 = vunpack.c.l.b16 %v88
  %v419 = vunpack.c.h.b16 %v88
  %v420 = vunpack.c.l.b16 %v89
  %v421 = vunpack.c.h.b16 %v89
  %v422 = vunpack.c.l.b16 %v90
  %v423 = vunpack.c.h.b16 %v90
  %v424 = vunpack.c.l.b16 %v91
  %v425 = vunpack.c.h.b16 %v91
  %v426 = vunpack.c.l.b16 %v92
  %v427 = vunpack.c.h.b16 %v92
  %v428 = vunpack.c.l.b16 %v93
  %v429 = vunpack.c.h.b16 %v93
  %v430 = vunpack.c.l.b16 %v94
  %v431 = vunpack.c.h.b16 %v94
  %v432 = vunpack.c.l.b16 %v95
  %v433 = vunpack.c.h.b16 %v95
  %v434 = vunpack.c.l.b16 %v96
  %v435 = vunpack.c.h.b16 %v96
  %v436 = vunpack.c.l.b16 %v97
  %v437 = vunpack.c.h.b16 %v97
  %v438 = vunpack.c.l.b16 %v98
  %v439 = vunpack.c.h.b16 %v98
  %v440 = vunpack.c.l.b16 %v99
  %v441 = vunpack.c.h.b16 %v99
  %v442 = vunpack.c.l.b16 %v100
  %v443 = vunpack.c.h.b16 %v100
  %v444 = vunpack.c.l.b16 %v101
  %v445 = vunpack.c.h.b16 %v101
  %v446 = vunpack.c.l.b16 %v102
  %v447 = vunpack.c.h.b16 %v102
  %v448 = vunpack.c.l.b16 %v103
  %v449 = vunpack.c.h.b16 %v103
  %v450 = vunpack.c.l.b16 %v104
  %v451 = vunpack.c.h.b16 %v104
  %v452 = vunpack.c.l.b16 %v105
  %v453 = vunpack.c.h.b16 %v105
  %v454 = vunpack.c.l.b16 %v106
  %v455 = vunpack.c.h.b16 %v106
  %v456 = vunpack.c.l.b16 %v107
  %v457 = vunpack.c.h.b16 %v107
  %v458 = vunpack.c.l.b16 %v108
  %v459 = vunpack.c.h.b16 %v108
  %v460 = vunpack.c.l.b16 %v109
  %v461 = vunpack.c.h.b16 %v109
  %v462 = vpack.c.b16 %v336, %v334
  %v463 = vpack.c.b16 %v337, %v335
  %v464 = vpack.c.b16 %v340, %v338
  %v465 = vpack.c.b16 %v341, %v339
  %v466 = vpack.c.b16 %v344, %v342
  %v467 = vpack.c.b16 %v345, %v343
  %v468 = vpack.c.b16 %v348, %v346
  %v469 = vpack.c.b16 %v349, %v347
  %v470 = vpack.c.b16 %v352, %v350
  %v471 = vpack.c.b16 %v353, %v351
  %v472 = vpack.c.b16 %v356, %v354
  %v473 = vpack.c.b16 %v357, %v355
  %v474 = vpack.c.b16 %v360, %v358
  %v475 = vpack.c.b16 %v361, %v359
  %v476 = vpack.c.b16 %v364, %v362
  %v477 = vpack.c.b16 %v365, %v363
  %v478 = vpack.c.b16 %v368, %v366
  %v479 = vpack.c.b16 %v369, %v367
  %v480 = vpack.c.b16 %v372, %v370
  %v481 = vpack.c.b16 %v373, %v371
  %v482 = vpack.c.b16 %v376, %v374
  %v483 = vpack.c.b16 %v377, %v375
  %v484 = vpack.c.b16 %v380, %v378
  %v485 = vpack.c.b16 %v381, %v379
  %v486 = vpack.c.b16 %v384, %v382
  %v487 = vpack.c.b16 %v385, %v383
  %v488 = vpack.c.b16 %v388, %v386
  %v489 = vpack.c.b16 %v389, %v387
  %v490 = vpack.c.b16 %v392, %v390
  %v491 = vpack.c.b16 %v393, %v391
  %v492 = vpack.c.b16 %v396, %v394
  %v493 = vpack.c.b16 %v397, %v395
  %v494 = vpack.c.b16 %v400, %v398
  %v495 = vpack.c.b16 %v401, %v399
  %v496 = vpack.c.b16 %v404, %v402
  %v497 = vpack.c.b16 %v405, %v403
  %v498 = vpack.c.b16 %v408, %v406
  %v499 = vpack.c.b16 %v409, %v407
  %v500 = vpack.c.b16 %v412, %v410
  %v501 = vpack.c.b16 %v413, %v411
  %v502 = vpack.c.b16 %v416, %v414
  %v503 = vpack.c.b16 %v417, %v415
  %v504 = vpack.c.b16 %v420, %v418
  %v505 = vpack.c.b16 %v421, %v419
  %v506 = vpack.c.b16 %v424, %v422
  %v507 = vpack.c.b16 %v425, %v423
  %v508 = vpack.c.b16 %v428, %v426
  %v509 = vpack.c.b16 %v429, %v427
  %v510 = vpack.c.b16 %v432, %v430
  %v511 = vpack.c.b16 %v433, %v431
  %v512 = vpack.c.b16 %v436, %v434
  %v513 = vpack.c.b16 %v437, %v435
  %v514 = vpack.c.b16 %v440, %v438
  %v515 = vpack.c.b16 %v441, %v439
  %v516 = vpack.c.b16 %v444, %v442
  %v517 = vpack.c.b16 %v445, %v443
  %v518 = vpack.c.b16 %v448, %v446
  %v519 = vpack.c.b16 %v449, %v447
  %v520 = vpack.c.b16 %v452, %v450
  %v521 = vpack.c.b16 %v453, %v451
  %v522 = vpack.c.b16 %v456, %v454
  %v523 = vpack.c.b16 %v457, %v455
  %v524 = vpack.c.b16 %v460, %v458
  %v525 = vpack.c.b16 %v461, %v459
  %590 = vmatprep.subr.bf16.mxu0 %v477
  %591 = vmatpush1.bf16.msra.mxu0 %v476
  %592 = vmatprep.subr.bf16.mxu0 %v475
  %593 = vmatpush1.bf16.msra.mxu0 %v474
  %594 = vmatprep.subr.bf16.mxu0 %v473
  %595 = vmatpush1.bf16.msra.mxu0 %v472
  %596 = vmatprep.subr.bf16.mxu0 %v471
  %597 = vmatpush1.bf16.msra.mxu0 %v470
  %598 = vmatprep.subr.bf16.mxu0 %v469
  %599 = vmatpush1.bf16.msra.mxu0 %v468
  %600 = vmatprep.subr.bf16.mxu0 %v467
  %601 = vmatpush1.bf16.msra.mxu0 %v466
  %602 = vmatprep.subr.bf16.mxu0 %v465
  %603 = vmatpush1.bf16.msra.mxu0 %v464
  %604 = vmatprep.subr.bf16.mxu0 %v463
  %605 = vmatpush1.bf16.msra.mxu0 %v462
  %606 = vmatprep.subr.bf16.mxu0 %v493
  %607 = vmatpush2.bf16.msra.mxu0 %v492
  %608 = vmatprep.subr.bf16.mxu0 %v491
  %609 = vmatpush2.bf16.msra.mxu0 %v490
  %610 = vmatprep.subr.bf16.mxu0 %v489
  %611 = vmatpush2.bf16.msra.mxu0 %v488
  %612 = vmatprep.subr.bf16.mxu0 %v487
  %613 = vmatpush2.bf16.msra.mxu0 %v486
  %614 = vmatprep.subr.bf16.mxu0 %v485
  %615 = vmatpush2.bf16.msra.mxu0 %v484
  %616 = vmatprep.subr.bf16.mxu0 %v483
  %617 = vmatpush2.bf16.msra.mxu0 %v482
  %618 = vmatprep.subr.bf16.mxu0 %v481
  %619 = vmatpush2.bf16.msra.mxu0 %v480
  %620 = vmatprep.subr.bf16.mxu0 %v479
  %621 = vmatpush2.bf16.msra.mxu0 %v478
  %622 = vmatprep.mubr.bf16.mxu0 %v207
  %623 = vmatmul.mubr.bf16.gmra.mxu0 %v206
  %v624 = vpop.f32.mrf.mxu0
  %v625 = vadd.f32 0.0, %v624
  %v626 = vpop.f32.mrf.mxu0
  %v627 = vadd.f32 0.0, %v626
  %v628 = vpop.f32.mrf.mxu0
  %v629 = vadd.f32 0.0, %v628
  %v630 = vpop.f32.mrf.mxu0
  %v631 = vadd.f32 0.0, %v630
  %632 = vmatprep.mubr.bf16.mxu0 %v211
  %633 = vmatmul.mubr.bf16.gmra.mxu0 %v210
  %v634 = vpop.f32.mrf.mxu0
  %v635 = vadd.f32 0.0, %v634
  %v636 = vpop.f32.mrf.mxu0
  %v637 = vadd.f32 0.0, %v636
  %v638 = vpop.f32.mrf.mxu0
  %v639 = vadd.f32 0.0, %v638
  %v640 = vpop.f32.mrf.mxu0
  %v641 = vadd.f32 0.0, %v640
  %642 = vmatprep.mubr.bf16.mxu0 %v215
  %643 = vmatmul.mubr.bf16.gmra.mxu0 %v214
  %v644 = vpop.f32.mrf.mxu0
  %v645 = vadd.f32 0.0, %v644
  %v646 = vpop.f32.mrf.mxu0
  %v647 = vadd.f32 0.0, %v646
  %v648 = vpop.f32.mrf.mxu0
  %v649 = vadd.f32 0.0, %v648
  %v650 = vpop.f32.mrf.mxu0
  %v651 = vadd.f32 0.0, %v650
  %652 = vmatprep.mubr.bf16.mxu0 %v219
  %653 = vmatmul.mubr.bf16.gmra.mxu0 %v218
  %v654 = vpop.f32.mrf.mxu0
  %v655 = vadd.f32 0.0, %v654
  %v656 = vpop.f32.mrf.mxu0
  %v657 = vadd.f32 0.0, %v656
  %v658 = vpop.f32.mrf.mxu0
  %v659 = vadd.f32 0.0, %v658
  %v660 = vpop.f32.mrf.mxu0
  %v661 = vadd.f32 0.0, %v660
  %662 = vmatprep.mubr.bf16.mxu0 %v223
  %663 = vmatmul.mubr.bf16.gmra.mxu0 %v222
  %v664 = vpop.f32.mrf.mxu0
  %v665 = vadd.f32 0.0, %v664
  %v666 = vpop.f32.mrf.mxu0
  %v667 = vadd.f32 0.0, %v666
  %v668 = vpop.f32.mrf.mxu0
  %v669 = vadd.f32 0.0, %v668
  %v670 = vpop.f32.mrf.mxu0
  %v671 = vadd.f32 0.0, %v670
  %672 = vmatprep.mubr.bf16.mxu0 %v227
  %673 = vmatmul.mubr.bf16.gmra.mxu0 %v226
  %v674 = vpop.f32.mrf.mxu0
  %v675 = vadd.f32 0.0, %v674
  %v676 = vpop.f32.mrf.mxu0
  %v677 = vadd.f32 0.0, %v676
  %v678 = vpop.f32.mrf.mxu0
  %v679 = vadd.f32 0.0, %v678
  %v680 = vpop.f32.mrf.mxu0
  %v681 = vadd.f32 0.0, %v680
  %682 = vmatprep.mubr.bf16.mxu0 %v231
  %683 = vmatmul.mubr.bf16.gmra.mxu0 %v230
  %v684 = vpop.f32.mrf.mxu0
  %v685 = vadd.f32 0.0, %v684
  %v686 = vpop.f32.mrf.mxu0
  %v687 = vadd.f32 0.0, %v686
  %v688 = vpop.f32.mrf.mxu0
  %v689 = vadd.f32 0.0, %v688
  %v690 = vpop.f32.mrf.mxu0
  %v691 = vadd.f32 0.0, %v690
  %692 = vmatprep.mubr.bf16.mxu0 %v235
  %693 = vmatmul.mubr.bf16.gmra.mxu0 %v234
  %v694 = vpop.f32.mrf.mxu0
  %v695 = vadd.f32 0.0, %v694
  %v696 = vpop.f32.mrf.mxu0
  %v697 = vadd.f32 0.0, %v696
  %v698 = vpop.f32.mrf.mxu0
  %v699 = vadd.f32 0.0, %v698
  %v700 = vpop.f32.mrf.mxu0
  %v701 = vadd.f32 0.0, %v700
  %702 = vdwg.mxu0
  %703 = vmatprep.subr.bf16.mxu0 %v509
  %704 = vmatpush1.bf16.msra.mxu0 %v508
  %705 = vmatprep.subr.bf16.mxu0 %v507
  %706 = vmatpush1.bf16.msra.mxu0 %v506
  %707 = vmatprep.subr.bf16.mxu0 %v505
  %708 = vmatpush1.bf16.msra.mxu0 %v504
  %709 = vmatprep.subr.bf16.mxu0 %v503
  %710 = vmatpush1.bf16.msra.mxu0 %v502
  %711 = vmatprep.subr.bf16.mxu0 %v501
  %712 = vmatpush1.bf16.msra.mxu0 %v500
  %713 = vmatprep.subr.bf16.mxu0 %v499
  %714 = vmatpush1.bf16.msra.mxu0 %v498
  %715 = vmatprep.subr.bf16.mxu0 %v497
  %716 = vmatpush1.bf16.msra.mxu0 %v496
  %717 = vmatprep.subr.bf16.mxu0 %v495
  %718 = vmatpush1.bf16.msra.mxu0 %v494
  %719 = vmatprep.subr.bf16.mxu0 %v525
  %720 = vmatpush2.bf16.msra.mxu0 %v524
  %721 = vmatprep.subr.bf16.mxu0 %v523
  %722 = vmatpush2.bf16.msra.mxu0 %v522
  %723 = vmatprep.subr.bf16.mxu0 %v521
  %724 = vmatpush2.bf16.msra.mxu0 %v520
  %725 = vmatprep.subr.bf16.mxu0 %v519
  %726 = vmatpush2.bf16.msra.mxu0 %v518
  %727 = vmatprep.subr.bf16.mxu0 %v517
  %728 = vmatpush2.bf16.msra.mxu0 %v516
  %729 = vmatprep.subr.bf16.mxu0 %v515
  %730 = vmatpush2.bf16.msra.mxu0 %v514
  %731 = vmatprep.subr.bf16.mxu0 %v513
  %732 = vmatpush2.bf16.msra.mxu0 %v512
  %733 = vmatprep.subr.bf16.mxu0 %v511
  %734 = vmatpush2.bf16.msra.mxu0 %v510
  %735 = vmatprep.mubr.bf16.mxu0 %v209
  %736 = vmatmul.mubr.bf16.gmra.mxu0 %v208
  %v737 = vpop.f32.mrf.mxu0
  %v738 = vadd.f32 %v625, %v737
  %v739 = vpop.f32.mrf.mxu0
  %v740 = vadd.f32 %v627, %v739
  %v741 = vpop.f32.mrf.mxu0
  %v742 = vadd.f32 %v629, %v741
  %v743 = vpop.f32.mrf.mxu0
  %v744 = vadd.f32 %v631, %v743
  %745 = vmatprep.mubr.bf16.mxu0 %v213
  %746 = vmatmul.mubr.bf16.gmra.mxu0 %v212
  %v747 = vpop.f32.mrf.mxu0
  %v748 = vadd.f32 %v635, %v747
  %v749 = vpop.f32.mrf.mxu0
  %v750 = vadd.f32 %v637, %v749
  %v751 = vpop.f32.mrf.mxu0
  %v752 = vadd.f32 %v639, %v751
  %v753 = vpop.f32.mrf.mxu0
  %v754 = vadd.f32 %v641, %v753
  %755 = vmatprep.mubr.bf16.mxu0 %v217
  %756 = vmatmul.mubr.bf16.gmra.mxu0 %v216
  %v757 = vpop.f32.mrf.mxu0
  %v758 = vadd.f32 %v645, %v757
  %v759 = vpop.f32.mrf.mxu0
  %v760 = vadd.f32 %v647, %v759
  %v761 = vpop.f32.mrf.mxu0
  %v762 = vadd.f32 %v649, %v761
  %v763 = vpop.f32.mrf.mxu0
  %v764 = vadd.f32 %v651, %v763
  %765 = vmatprep.mubr.bf16.mxu0 %v221
  %766 = vmatmul.mubr.bf16.gmra.mxu0 %v220
  %v767 = vpop.f32.mrf.mxu0
  %v768 = vadd.f32 %v655, %v767
  %v769 = vpop.f32.mrf.mxu0
  %v770 = vadd.f32 %v657, %v769
  %v771 = vpop.f32.mrf.mxu0
  %v772 = vadd.f32 %v659, %v771
  %v773 = vpop.f32.mrf.mxu0
  %v774 = vadd.f32 %v661, %v773
  %775 = vmatprep.mubr.bf16.mxu0 %v225
  %776 = vmatmul.mubr.bf16.gmra.mxu0 %v224
  %v777 = vpop.f32.mrf.mxu0
  %v778 = vadd.f32 %v665, %v777
  %v779 = vpop.f32.mrf.mxu0
  %v780 = vadd.f32 %v667, %v779
  %v781 = vpop.f32.mrf.mxu0
  %v782 = vadd.f32 %v669, %v781
  %v783 = vpop.f32.mrf.mxu0
  %v784 = vadd.f32 %v671, %v783
  %785 = vmatprep.mubr.bf16.mxu0 %v229
  %786 = vmatmul.mubr.bf16.gmra.mxu0 %v228
  %v787 = vpop.f32.mrf.mxu0
  %v788 = vadd.f32 %v675, %v787
  %v789 = vpop.f32.mrf.mxu0
  %v790 = vadd.f32 %v677, %v789
  %v791 = vpop.f32.mrf.mxu0
  %v792 = vadd.f32 %v679, %v791
  %v793 = vpop.f32.mrf.mxu0
  %v794 = vadd.f32 %v681, %v793
  %795 = vmatprep.mubr.bf16.mxu0 %v233
  %796 = vmatmul.mubr.bf16.gmra.mxu0 %v232
  %v797 = vpop.f32.mrf.mxu0
  %v798 = vadd.f32 %v685, %v797
  %v799 = vpop.f32.mrf.mxu0
  %v800 = vadd.f32 %v687, %v799
  %v801 = vpop.f32.mrf.mxu0
  %v802 = vadd.f32 %v689, %v801
  %v803 = vpop.f32.mrf.mxu0
  %v804 = vadd.f32 %v691, %v803
  %805 = vmatprep.mubr.bf16.mxu0 %v237
  %806 = vmatmul.mubr.bf16.gmra.mxu0 %v236
  %v807 = vpop.f32.mrf.mxu0
  %v808 = vadd.f32 %v695, %v807
  %v809 = vpop.f32.mrf.mxu0
  %v810 = vadd.f32 %v697, %v809
  %v811 = vpop.f32.mrf.mxu0
  %v812 = vadd.f32 %v699, %v811
  %v813 = vpop.f32.mrf.mxu0
  %v814 = vadd.f32 %v701, %v813
  %815 = vdwg.mxu0
  %832 = vrot.lane.b32.xlu0 %v738, 64
  %v833 = vpop.permute.xlu0 %832
  %834 = vrot.lane.b32.xlu0 %v742, 64
  %v835 = vpop.permute.xlu0 %834
  %836 = vrot.lane.b32.xlu0 %v748, 64
  %v837 = vpop.permute.xlu0 %836
  %838 = vrot.lane.b32.xlu0 %v752, 64
  %v839 = vpop.permute.xlu0 %838
  %840 = vrot.lane.b32.xlu0 %v758, 64
  %v841 = vpop.permute.xlu0 %840
  %842 = vrot.lane.b32.xlu0 %v762, 64
  %v843 = vpop.permute.xlu0 %842
  %844 = vrot.lane.b32.xlu0 %v768, 64
  %v845 = vpop.permute.xlu0 %844
  %846 = vrot.lane.b32.xlu0 %v772, 64
  %v847 = vpop.permute.xlu0 %846
  %848 = vrot.lane.b32.xlu0 %v778, 64
  %v849 = vpop.permute.xlu0 %848
  %850 = vrot.lane.b32.xlu0 %v782, 64
  %v851 = vpop.permute.xlu0 %850
  %852 = vrot.lane.b32.xlu0 %v788, 64
  %v853 = vpop.permute.xlu0 %852
  %854 = vrot.lane.b32.xlu0 %v792, 64
  %v855 = vpop.permute.xlu0 %854
  %856 = vrot.lane.b32.xlu0 %v798, 64
  %v857 = vpop.permute.xlu0 %856
  %858 = vrot.lane.b32.xlu0 %v802, 64
  %v859 = vpop.permute.xlu0 %858
  %860 = vrot.lane.b32.xlu0 %v808, 64
  %v861 = vpop.permute.xlu0 %860
  %862 = vrot.lane.b32.xlu0 %v812, 64
  %v863 = vpop.permute.xlu0 %862
  %v880 = vmax.f32 %v738, %v833
  %v881 = vmax.f32 %v742, %v835
  %v882 = vmax.f32 %v748, %v837
  %v883 = vmax.f32 %v752, %v839
  %v884 = vmax.f32 %v758, %v841
  %v885 = vmax.f32 %v762, %v843
  %v886 = vmax.f32 %v768, %v845
  %v887 = vmax.f32 %v772, %v847
  %v888 = vmax.f32 %v778, %v849
  %v889 = vmax.f32 %v782, %v851
  %v890 = vmax.f32 %v788, %v853
  %v891 = vmax.f32 %v792, %v855
  %v892 = vmax.f32 %v798, %v857
  %v893 = vmax.f32 %v802, %v859
  %v894 = vmax.f32 %v808, %v861
  %v895 = vmax.f32 %v812, %v863
  %912 = vrot.lane.b32.xlu0 %v740, 64
  %v913 = vpop.permute.xlu0 %912
  %914 = vrot.lane.b32.xlu0 %v744, 64
  %v915 = vpop.permute.xlu0 %914
  %916 = vrot.lane.b32.xlu0 %v750, 64
  %v917 = vpop.permute.xlu0 %916
  %918 = vrot.lane.b32.xlu0 %v754, 64
  %v919 = vpop.permute.xlu0 %918
  %920 = vrot.lane.b32.xlu0 %v760, 64
  %v921 = vpop.permute.xlu0 %920
  %922 = vrot.lane.b32.xlu0 %v764, 64
  %v923 = vpop.permute.xlu0 %922
  %924 = vrot.lane.b32.xlu0 %v770, 64
  %v925 = vpop.permute.xlu0 %924
  %926 = vrot.lane.b32.xlu0 %v774, 64
  %v927 = vpop.permute.xlu0 %926
  %928 = vrot.lane.b32.xlu0 %v780, 64
  %v929 = vpop.permute.xlu0 %928
  %930 = vrot.lane.b32.xlu0 %v784, 64
  %v931 = vpop.permute.xlu0 %930
  %932 = vrot.lane.b32.xlu0 %v790, 64
  %v933 = vpop.permute.xlu0 %932
  %934 = vrot.lane.b32.xlu0 %v794, 64
  %v935 = vpop.permute.xlu0 %934
  %936 = vrot.lane.b32.xlu0 %v800, 64
  %v937 = vpop.permute.xlu0 %936
  %938 = vrot.lane.b32.xlu0 %v804, 64
  %v939 = vpop.permute.xlu0 %938
  %940 = vrot.lane.b32.xlu0 %v810, 64
  %v941 = vpop.permute.xlu0 %940
  %942 = vrot.lane.b32.xlu0 %v814, 64
  %v943 = vpop.permute.xlu0 %942
  %v960 = vmax.f32 %v740, %v913
  %v961 = vmax.f32 %v744, %v915
  %v962 = vmax.f32 %v750, %v917
  %v963 = vmax.f32 %v754, %v919
  %v964 = vmax.f32 %v760, %v921
  %v965 = vmax.f32 %v764, %v923
  %v966 = vmax.f32 %v770, %v925
  %v967 = vmax.f32 %v774, %v927
  %v968 = vmax.f32 %v780, %v929
  %v969 = vmax.f32 %v784, %v931
  %v970 = vmax.f32 %v790, %v933
  %v971 = vmax.f32 %v794, %v935
  %v972 = vmax.f32 %v800, %v937
  %v973 = vmax.f32 %v804, %v939
  %v974 = vmax.f32 %v810, %v941
  %v975 = vmax.f32 %v814, %v943
  %v976 = vmax.f32 %v880, %v960
  %v977 = vmax.f32 %v881, %v961
  %v978 = vmax.f32 %v882, %v962
  %v979 = vmax.f32 %v883, %v963
  %v980 = vmax.f32 %v884, %v964
  %v981 = vmax.f32 %v885, %v965
  %v982 = vmax.f32 %v886, %v966
  %v983 = vmax.f32 %v887, %v967
  %v984 = vmax.f32 %v888, %v968
  %v985 = vmax.f32 %v889, %v969
  %v986 = vmax.f32 %v890, %v970
  %v987 = vmax.f32 %v891, %v971
  %v988 = vmax.f32 %v892, %v972
  %v989 = vmax.f32 %v893, %v973
  %v990 = vmax.f32 %v894, %v974
  %v991 = vmax.f32 %v895, %v975
  %v992 = vld [vmem:[%s2] sm:$0x1]
  %v994 = vlaneseq
  %v995 = vshrl.u32 %v994, 7
  %v996 = vsub.s32 0, %v995
  %v997 = vrot.slane %v992, %v996
  %v999 = vadd.f32 %v976, %v997
  %v1000 = vadd.f32 %v977, %v997
  %v1001 = vadd.f32 %v978, %v997
  %v1002 = vadd.f32 %v979, %v997
  %v1003 = vadd.f32 %v980, %v997
  %v1004 = vadd.f32 %v981, %v997
  %v1005 = vadd.f32 %v982, %v997
  %v1006 = vadd.f32 %v983, %v997
  %v1007 = vadd.f32 %v984, %v997
  %v1008 = vadd.f32 %v985, %v997
  %v1009 = vadd.f32 %v986, %v997
  %v1010 = vadd.f32 %v987, %v997
  %v1011 = vadd.f32 %v988, %v997
  %v1012 = vadd.f32 %v989, %v997
  %v1013 = vadd.f32 %v990, %v997
  %v1014 = vadd.f32 %v991, %v997
  %v1015 = vmax.f32 %v999, 0.0
  %v1016 = vmax.f32 %v1000, 0.0
  %v1017 = vmax.f32 %v1001, 0.0
  %v1018 = vmax.f32 %v1002, 0.0
  %v1019 = vmax.f32 %v1003, 0.0
  %v1020 = vmax.f32 %v1004, 0.0
  %v1021 = vmax.f32 %v1005, 0.0
  %v1022 = vmax.f32 %v1006, 0.0
  %v1023 = vmax.f32 %v1007, 0.0
  %v1024 = vmax.f32 %v1008, 0.0
  %v1025 = vmax.f32 %v1009, 0.0
  %v1026 = vmax.f32 %v1010, 0.0
  %v1027 = vmax.f32 %v1011, 0.0
  %v1028 = vmax.f32 %v1012, 0.0
  %v1029 = vmax.f32 %v1013, 0.0
  %v1030 = vmax.f32 %v1014, 0.0
  %v1031 = vpack.c.bf16 %v1016, %v1015
  %v1032 = vpack.c.bf16 %v1018, %v1017
  %v1033 = vpack.c.bf16 %v1020, %v1019
  %v1034 = vpack.c.bf16 %v1022, %v1021
  %v1035 = vpack.c.bf16 %v1024, %v1023
  %v1036 = vpack.c.bf16 %v1026, %v1025
  %v1037 = vpack.c.bf16 %v1028, %v1027
  %v1038 = vpack.c.bf16 %v1030, %v1029
  %v1047 = vunpack.c.l.b16 %v1031
  %v1048 = vunpack.c.h.b16 %v1031
  %v1049 = vunpack.c.l.b16 %v1032
  %v1050 = vunpack.c.h.b16 %v1032
  %v1051 = vunpack.c.l.b16 %v1033
  %v1052 = vunpack.c.h.b16 %v1033
  %v1053 = vunpack.c.l.b16 %v1034
  %v1054 = vunpack.c.h.b16 %v1034
  %v1055 = vunpack.c.l.b16 %v1035
  %v1056 = vunpack.c.h.b16 %v1035
  %v1057 = vunpack.c.l.b16 %v1036
  %v1058 = vunpack.c.h.b16 %v1036
  %v1059 = vunpack.c.l.b16 %v1037
  %v1060 = vunpack.c.h.b16 %v1037
  %v1061 = vunpack.c.l.b16 %v1038
  %v1062 = vunpack.c.h.b16 %v1038
  %v1063 = vpack.c.b16 %v1047, %v1047
  %v1064 = vpack.c.b16 %v1048, %v1048
  %v1065 = vpack.c.b16 %v1049, %v1049
  %v1066 = vpack.c.b16 %v1050, %v1050
  %v1067 = vpack.c.b16 %v1051, %v1051
  %v1068 = vpack.c.b16 %v1052, %v1052
  %v1069 = vpack.c.b16 %v1053, %v1053
  %v1070 = vpack.c.b16 %v1054, %v1054
  %v1071 = vpack.c.b16 %v1055, %v1055
  %v1072 = vpack.c.b16 %v1056, %v1056
  %v1073 = vpack.c.b16 %v1057, %v1057
  %v1074 = vpack.c.b16 %v1058, %v1058
  %v1075 = vpack.c.b16 %v1059, %v1059
  %v1076 = vpack.c.b16 %v1060, %v1060
  %v1077 = vpack.c.b16 %v1061, %v1061
  %v1078 = vpack.c.b16 %v1062, %v1062
  %vm1095 = vcmask 519168
  %1096 = vst.msk [vmem:[%s3] sm:$0xf] %vm1095, %v1063
  %1097 = vst.msk [vmem:[%s3 + $0x4] sm:$0xf] %vm1095, %v1064
  %1098 = vst.msk [vmem:[%s3 + $0x8] sm:$0xf] %vm1095, %v1065
  %1099 = vst.msk [vmem:[%s3 + $0xc] sm:$0xf] %vm1095, %v1066
  %1100 = vst.msk [vmem:[%s3 + $0x10] sm:$0xf] %vm1095, %v1067
  %1101 = vst.msk [vmem:[%s3 + $0x14] sm:$0xf] %vm1095, %v1068
  %1102 = vst.msk [vmem:[%s3 + $0x18] sm:$0xf] %vm1095, %v1069
  %1103 = vst.msk [vmem:[%s3 + $0x1c] sm:$0xf] %vm1095, %v1070
  %1104 = vst.msk [vmem:[%s3 + $0x20] sm:$0xf] %vm1095, %v1071
  %1105 = vst.msk [vmem:[%s3 + $0x24] sm:$0xf] %vm1095, %v1072
  %1106 = vst.msk [vmem:[%s3 + $0x28] sm:$0xf] %vm1095, %v1073
  %1107 = vst.msk [vmem:[%s3 + $0x2c] sm:$0xf] %vm1095, %v1074
  %1108 = vst.msk [vmem:[%s3 + $0x30] sm:$0xf] %vm1095, %v1075
  %1109 = vst.msk [vmem:[%s3 + $0x34] sm:$0xf] %vm1095, %v1076
  %1110 = vst.msk [vmem:[%s3 + $0x38] sm:$0xf] %vm1095, %v1077
  %1111 = vst.msk [vmem:[%s3 + $0x3c] sm:$0xf] %vm1095, %v1078
  // Predicated region
  $region14: #{cnn_forward.4} parent=0 // pred_check
    _
  $region15: #{cnn_forward.4} parent=0 // pred_check_branch
    %1113 = sbr.rel (0) target = $region17
  $region16: #{cnn_forward.4} parent=0 // pred_region
    _
  $region17: #{cnn_forward.4} parent=0 // pred_fallthru
    _
  // Predicated region
  $region18: #{cnn_forward.4} parent=0 // pred_check
    _
  $region19: #{cnn_forward.4} parent=0 // pred_check_branch
    %1115 = sbr.rel (0) target = $region21
  $region20: #{cnn_forward.4} parent=0 // pred_region
    _
  $region21: #{cnn_forward.4} parent=0 // pred_fallthru
    _

// kernel: cnn_forward.5
$region0: #{cnn_forward.5}
  #allocation0 [shape = 'u32[]', space=smem, size = 0x4, offset = 0x4, fixed_abs, tag = 'smem constant byte address 0x4 - core index']
  #allocation1 [shape = 'u32[144,128]{1,0:T(1,128)}', space=vmem, size = 0x12000, scoped, tag = 'internal scratch']
  %s0 = inlined_call_operand.vmem [shape: bf16[2,4096], index: 0, kind: input, shape index: {}]
  %s1 = inlined_call_operand.vmem [shape: bf16[4096,512], index: 1, kind: input, shape index: {}]
  %s2 = inlined_call_operand.vmem [shape: f32[1,512], index: 2, kind: input, shape index: {}]
  %s3 = inlined_call_operand.vmem [shape: bf16[512,256], index: 3, kind: input, shape index: {}]
  %s4 = inlined_call_operand.vmem [shape: f32[1,256], index: 4, kind: input, shape index: {}]
  %s5 = inlined_call_operand.vmem [shape: bf16[256,128], index: 5, kind: input, shape index: {}]
  %s6 = inlined_call_operand.vmem [shape: f32[1,128], index: 6, kind: input, shape index: {}]
  %s7 = inlined_call_operand.hbm [shape: f32[2,128], index: 7, kind: output, shape index: {}]
  %s8 = sld [smem:[#allocation0]]
  $region38: #{cnn_forward.5} parent=0
    _
  %s10 = ssub.s32 1, %s8
  %s11 = scalar_select 0, %s10, %s8
  $region1: #{cnn_forward.5} parent=0
    #allocation2 [shape = 'u8[1024]{0}', space=vmem, size = 0x400, scoped, tag = 'output window, operand 0, single buffered']
    #allocation3 [shape = 's32[1]{0}', space=sflag, size = 0x4, scoped, tag = 'scoped memory for cnn_forward.5']
    %12 = vsyncpa [#allocation3], 0
    // Predicated region
    $region2: #{cnn_forward.5} parent=1 // pred_check
      _
    $region3: #{cnn_forward.5} parent=1 // pred_check_branch
      %14 = sbr.rel (0) target = $region5
    $region4: #{cnn_forward.5} parent=1 // pred_region
      _
    $region5: #{cnn_forward.5} parent=1 // pred_fallthru
      _
    // Predicated region
    $region6: #{cnn_forward.5} parent=1 // pred_check
      _
    $region7: #{cnn_forward.5} parent=1 // pred_check_branch
      %16 = sbr.rel (0) target = $region9
    $region8: #{cnn_forward.5} parent=1 // pred_region
      _
    $region9: #{cnn_forward.5} parent=1 // pred_fallthru
      _
    // Predicated region
    $region10: #{cnn_forward.5} parent=1 // pred_check
      _
    $region11: #{cnn_forward.5} parent=1 // pred_check_branch
      %18 = sbr.rel (0) target = $region13
    $region12: #{cnn_forward.5} parent=1 // pred_region
      _
    $region13: #{cnn_forward.5} parent=1 // pred_fallthru
      _
    // Predicated region
    $region14: #{cnn_forward.5} parent=1 // pred_check
      _
    $region15: #{cnn_forward.5} parent=1 // pred_check_branch
      %20 = sbr.rel (0) target = $region17
    $region16: #{cnn_forward.5} parent=1 // pred_region
      _
    $region17: #{cnn_forward.5} parent=1 // pred_fallthru
      _
    // Predicated region
    $region18: #{cnn_forward.5} parent=1 // pred_check
      _
    $region19: #{cnn_forward.5} parent=1 // pred_check_branch
      %22 = sbr.rel (0) target = $region21
    $region20: #{cnn_forward.5} parent=1 // pred_region
      _
    $region21: #{cnn_forward.5} parent=1 // pred_fallthru
      _
    // Predicated region
    $region22: #{cnn_forward.5} parent=1 // pred_check
      _
    $region23: #{cnn_forward.5} parent=1 // pred_check_branch
      %24 = sbr.rel (0) target = $region25
    $region24: #{cnn_forward.5} parent=1 // pred_region
      _
    $region25: #{cnn_forward.5} parent=1 // pred_fallthru
      _
    // Predicated region
    $region26: #{cnn_forward.5} parent=1 // pred_check
      _
    $region27: #{cnn_forward.5} parent=1 // pred_check_branch
      %26 = sbr.rel (0) target = $region29
    $region28: #{cnn_forward.5} parent=1 // pred_region
      _
    $region29: #{cnn_forward.5} parent=1 // pred_fallthru
      _
    %v28 = vld [vmem:[%s0] sm:$0xff]
    %v29 = vld [vmem:[%s0 + $0x8] sm:$0xff]
    %v30 = vld [vmem:[%s0 + $0x10] sm:$0xff]
    %v31 = vld [vmem:[%s0 + $0x18] sm:$0xff]
    %v32 = vld [vmem:[%s1] sm:$0xff]
    %v33 = vld [vmem:[%s1 + $0x8] sm:$0xff]
    %v34 = vld [vmem:[%s1 + $0x10] sm:$0xff]
    %v35 = vld [vmem:[%s1 + $0x18] sm:$0xff]
    %v36 = vld [vmem:[%s1 + $0x20] sm:$0xff]
    %v37 = vld [vmem:[%s1 + $0x28] sm:$0xff]
    %v38 = vld [vmem:[%s1 + $0x30] sm:$0xff]
    %v39 = vld [vmem:[%s1 + $0x38] sm:$0xff]
    %v40 = vld [vmem:[%s1 + $0x40] sm:$0xff]
    %v41 = vld [vmem:[%s1 + $0x48] sm:$0xff]
    %v42 = vld [vmem:[%s1 + $0x50] sm:$0xff]
    %v43 = vld [vmem:[%s1 + $0x58] sm:$0xff]
    %v44 = vld [vmem:[%s1 + $0x60] sm:$0xff]
    %v45 = vld [vmem:[%s1 + $0x68] sm:$0xff]
    %v46 = vld [vmem:[%s1 + $0x70] sm:$0xff]
    %v47 = vld [vmem:[%s1 + $0x78] sm:$0xff]
    %v48 = vld [vmem:[%s1 + $0x80] sm:$0xff]
    %v49 = vld [vmem:[%s1 + $0x88] sm:$0xff]
    %v50 = vld [vmem:[%s1 + $0x90] sm:$0xff]
    %v51 = vld [vmem:[%s1 + $0x98] sm:$0xff]
    %v52 = vld [vmem:[%s1 + $0xa0] sm:$0xff]
    %v53 = vld [vmem:[%s1 + $0xa8] sm:$0xff]
    %v54 = vld [vmem:[%s1 + $0xb0] sm:$0xff]
    %v55 = vld [vmem:[%s1 + $0xb8] sm:$0xff]
    %v56 = vld [vmem:[%s1 + $0xc0] sm:$0xff]
    %v57 = vld [vmem:[%s1 + $0xc8] sm:$0xff]
    %v58 = vld [vmem:[%s1 + $0xd0] sm:$0xff]
    %v59 = vld [vmem:[%s1 + $0xd8] sm:$0xff]
    %v60 = vld [vmem:[%s1 + $0xe0] sm:$0xff]
    %v61 = vld [vmem:[%s1 + $0xe8] sm:$0xff]
    %v62 = vld [vmem:[%s1 + $0xf0] sm:$0xff]
    %v63 = vld [vmem:[%s1 + $0xf8] sm:$0xff]
    %v64 = vld [vmem:[%s1 + $0x100] sm:$0xff]
    %v65 = vld [vmem:[%s1 + $0x108] sm:$0xff]
    %v66 = vld [vmem:[%s1 + $0x110] sm:$0xff]
    %v67 = vld [vmem:[%s1 + $0x118] sm:$0xff]
    %v68 = vld [vmem:[%s1 + $0x120] sm:$0xff]
    %v69 = vld [vmem:[%s1 + $0x128] sm:$0xff]
    %v70 = vld [vmem:[%s1 + $0x130] sm:$0xff]
    %v71 = vld [vmem:[%s1 + $0x138] sm:$0xff]
    %v72 = vld [vmem:[%s1 + $0x140] sm:$0xff]
    %v73 = vld [vmem:[%s1 + $0x148] sm:$0xff]
    %v74 = vld [vmem:[%s1 + $0x150] sm:$0xff]
    %v75 = vld [vmem:[%s1 + $0x158] sm:$0xff]
    %v76 = vld [vmem:[%s1 + $0x160] sm:$0xff]
    %v77 = vld [vmem:[%s1 + $0x168] sm:$0xff]
    %v78 = vld [vmem:[%s1 + $0x170] sm:$0xff]
    %v79 = vld [vmem:[%s1 + $0x178] sm:$0xff]
    %v80 = vld [vmem:[%s1 + $0x180] sm:$0xff]
    %v81 = vld [vmem:[%s1 + $0x188] sm:$0xff]
    %v82 = vld [vmem:[%s1 + $0x190] sm:$0xff]
    %v83 = vld [vmem:[%s1 + $0x198] sm:$0xff]
    %v84 = vld [vmem:[%s1 + $0x1a0] sm:$0xff]
    %v85 = vld [vmem:[%s1 + $0x1a8] sm:$0xff]
    %v86 = vld [vmem:[%s1 + $0x1b0] sm:$0xff]
    %v87 = vld [vmem:[%s1 + $0x1b8] sm:$0xff]
    %v88 = vld [vmem:[%s1 + $0x1c0] sm:$0xff]
    %v89 = vld [vmem:[%s1 + $0x1c8] sm:$0xff]
    %v90 = vld [vmem:[%s1 + $0x1d0] sm:$0xff]
    %v91 = vld [vmem:[%s1 + $0x1d8] sm:$0xff]
    %v92 = vld [vmem:[%s1 + $0x1e0] sm:$0xff]
    %v93 = vld [vmem:[%s1 + $0x1e8] sm:$0xff]
    %v94 = vld [vmem:[%s1 + $0x1f0] sm:$0xff]
    %v95 = vld [vmem:[%s1 + $0x1f8] sm:$0xff]
    %v96 = vld [vmem:[%s1 + $0x200] sm:$0xff]
    %v97 = vld [vmem:[%s1 + $0x208] sm:$0xff]
    %v98 = vld [vmem:[%s1 + $0x210] sm:$0xff]
    %v99 = vld [vmem:[%s1 + $0x218] sm:$0xff]
    %v100 = vld [vmem:[%s1 + $0x220] sm:$0xff]
    %v101 = vld [vmem:[%s1 + $0x228] sm:$0xff]
    %v102 = vld [vmem:[%s1 + $0x230] sm:$0xff]
    %v103 = vld [vmem:[%s1 + $0x238] sm:$0xff]
    %v104 = vld [vmem:[%s1 + $0x240] sm:$0xff]
    %v105 = vld [vmem:[%s1 + $0x248] sm:$0xff]
    %v106 = vld [vmem:[%s1 + $0x250] sm:$0xff]
    %v107 = vld [vmem:[%s1 + $0x258] sm:$0xff]
    %v108 = vld [vmem:[%s1 + $0x260] sm:$0xff]
    %v109 = vld [vmem:[%s1 + $0x268] sm:$0xff]
    %v110 = vld [vmem:[%s1 + $0x270] sm:$0xff]
    %v111 = vld [vmem:[%s1 + $0x278] sm:$0xff]
    %v112 = vld [vmem:[%s1 + $0x280] sm:$0xff]
    %v113 = vld [vmem:[%s1 + $0x288] sm:$0xff]
    %v114 = vld [vmem:[%s1 + $0x290] sm:$0xff]
    %v115 = vld [vmem:[%s1 + $0x298] sm:$0xff]
    %v116 = vld [vmem:[%s1 + $0x2a0] sm:$0xff]
    %v117 = vld [vmem:[%s1 + $0x2a8] sm:$0xff]
    %v118 = vld [vmem:[%s1 + $0x2b0] sm:$0xff]
    %v119 = vld [vmem:[%s1 + $0x2b8] sm:$0xff]
    %v120 = vld [vmem:[%s1 + $0x2c0] sm:$0xff]
    %v121 = vld [vmem:[%s1 + $0x2c8] sm:$0xff]
    %v122 = vld [vmem:[%s1 + $0x2d0] sm:$0xff]
    %v123 = vld [vmem:[%s1 + $0x2d8] sm:$0xff]
    %v124 = vld [vmem:[%s1 + $0x2e0] sm:$0xff]
    %v125 = vld [vmem:[%s1 + $0x2e8] sm:$0xff]
    %v126 = vld [vmem:[%s1 + $0x2f0] sm:$0xff]
    %v127 = vld [vmem:[%s1 + $0x2f8] sm:$0xff]
    %v128 = vld [vmem:[%s1 + $0x300] sm:$0xff]
    %v129 = vld [vmem:[%s1 + $0x308] sm:$0xff]
    %v130 = vld [vmem:[%s1 + $0x310] sm:$0xff]
    %v131 = vld [vmem:[%s1 + $0x318] sm:$0xff]
    %v132 = vld [vmem:[%s1 + $0x320] sm:$0xff]
    %v133 = vld [vmem:[%s1 + $0x328] sm:$0xff]
    %v134 = vld [vmem:[%s1 + $0x330] sm:$0xff]
    %v135 = vld [vmem:[%s1 + $0x338] sm:$0xff]
    %v136 = vld [vmem:[%s1 + $0x340] sm:$0xff]
    %v137 = vld [vmem:[%s1 + $0x348] sm:$0xff]
    %v138 = vld [vmem:[%s1 + $0x350] sm:$0xff]
    %v139 = vld [vmem:[%s1 + $0x358] sm:$0xff]
    %v140 = vld [vmem:[%s1 + $0x360] sm:$0xff]
    %v141 = vld [vmem:[%s1 + $0x368] sm:$0xff]
    %v142 = vld [vmem:[%s1 + $0x370] sm:$0xff]
    %v143 = vld [vmem:[%s1 + $0x378] sm:$0xff]
    %v144 = vld [vmem:[%s1 + $0x380] sm:$0xff]
    %v145 = vld [vmem:[%s1 + $0x388] sm:$0xff]
    %v146 = vld [vmem:[%s1 + $0x390] sm:$0xff]
    %v147 = vld [vmem:[%s1 + $0x398] sm:$0xff]
    %v148 = vld [vmem:[%s1 + $0x3a0] sm:$0xff]
    %v149 = vld [vmem:[%s1 + $0x3a8] sm:$0xff]
    %v150 = vld [vmem:[%s1 + $0x3b0] sm:$0xff]
    %v151 = vld [vmem:[%s1 + $0x3b8] sm:$0xff]
    %v152 = vld [vmem:[%s1 + $0x3c0] sm:$0xff]
    %v153 = vld [vmem:[%s1 + $0x3c8] sm:$0xff]
    %v154 = vld [vmem:[%s1 + $0x3d0] sm:$0xff]
    %v155 = vld [vmem:[%s1 + $0x3d8] sm:$0xff]
    %v156 = vld [vmem:[%s1 + $0x3e0] sm:$0xff]
    %v157 = vld [vmem:[%s1 + $0x3e8] sm:$0xff]
    %v158 = vld [vmem:[%s1 + $0x3f0] sm:$0xff]
    %v159 = vld [vmem:[%s1 + $0x3f8] sm:$0xff]
    %v160 = vld [vmem:[%s1 + $0x400] sm:$0xff]
    %v161 = vld [vmem:[%s1 + $0x408] sm:$0xff]
    %v162 = vld [vmem:[%s1 + $0x410] sm:$0xff]
    %v163 = vld [vmem:[%s1 + $0x418] sm:$0xff]
    %v164 = vld [vmem:[%s1 + $0x420] sm:$0xff]
    %v165 = vld [vmem:[%s1 + $0x428] sm:$0xff]
    %v166 = vld [vmem:[%s1 + $0x430] sm:$0xff]
    %v167 = vld [vmem:[%s1 + $0x438] sm:$0xff]
    %v168 = vld [vmem:[%s1 + $0x440] sm:$0xff]
    %v169 = vld [vmem:[%s1 + $0x448] sm:$0xff]
    %v170 = vld [vmem:[%s1 + $0x450] sm:$0xff]
    %v171 = vld [vmem:[%s1 + $0x458] sm:$0xff]
    %v172 = vld [vmem:[%s1 + $0x460] sm:$0xff]
    %v173 = vld [vmem:[%s1 + $0x468] sm:$0xff]
    %v174 = vld [vmem:[%s1 + $0x470] sm:$0xff]
    %v175 = vld [vmem:[%s1 + $0x478] sm:$0xff]
    %v176 = vld [vmem:[%s1 + $0x480] sm:$0xff]
    %v177 = vld [vmem:[%s1 + $0x488] sm:$0xff]
    %v178 = vld [vmem:[%s1 + $0x490] sm:$0xff]
    %v179 = vld [vmem:[%s1 + $0x498] sm:$0xff]
    %v180 = vld [vmem:[%s1 + $0x4a0] sm:$0xff]
    %v181 = vld [vmem:[%s1 + $0x4a8] sm:$0xff]
    %v182 = vld [vmem:[%s1 + $0x4b0] sm:$0xff]
    %v183 = vld [vmem:[%s1 + $0x4b8] sm:$0xff]
    %v184 = vld [vmem:[%s1 + $0x4c0] sm:$0xff]
    %v185 = vld [vmem:[%s1 + $0x4c8] sm:$0xff]
    %v186 = vld [vmem:[%s1 + $0x4d0] sm:$0xff]
    %v187 = vld [vmem:[%s1 + $0x4d8] sm:$0xff]
    %v188 = vld [vmem:[%s1 + $0x4e0] sm:$0xff]
    %v189 = vld [vmem:[%s1 + $0x4e8] sm:$0xff]
    %v190 = vld [vmem:[%s1 + $0x4f0] sm:$0xff]
    %v191 = vld [vmem:[%s1 + $0x4f8] sm:$0xff]
    %v192 = vld [vmem:[%s1 + $0x500] sm:$0xff]
    %v193 = vld [vmem:[%s1 + $0x508] sm:$0xff]
    %v194 = vld [vmem:[%s1 + $0x510] sm:$0xff]
    %v195 = vld [vmem:[%s1 + $0x518] sm:$0xff]
    %v196 = vld [vmem:[%s1 + $0x520] sm:$0xff]
    %v197 = vld [vmem:[%s1 + $0x528] sm:$0xff]
    %v198 = vld [vmem:[%s1 + $0x530] sm:$0xff]
    %v199 = vld [vmem:[%s1 + $0x538] sm:$0xff]
    %v200 = vld [vmem:[%s1 + $0x540] sm:$0xff]
    %v201 = vld [vmem:[%s1 + $0x548] sm:$0xff]
    %v202 = vld [vmem:[%s1 + $0x550] sm:$0xff]
    %v203 = vld [vmem:[%s1 + $0x558] sm:$0xff]
    %v204 = vld [vmem:[%s1 + $0x560] sm:$0xff]
    %v205 = vld [vmem:[%s1 + $0x568] sm:$0xff]
    %v206 = vld [vmem:[%s1 + $0x570] sm:$0xff]
    %v207 = vld [vmem:[%s1 + $0x578] sm:$0xff]
    %v208 = vld [vmem:[%s1 + $0x580] sm:$0xff]
    %v209 = vld [vmem:[%s1 + $0x588] sm:$0xff]
    %v210 = vld [vmem:[%s1 + $0x590] sm:$0xff]
    %v211 = vld [vmem:[%s1 + $0x598] sm:$0xff]
    %v212 = vld [vmem:[%s1 + $0x5a0] sm:$0xff]
    %v213 = vld [vmem:[%s1 + $0x5a8] sm:$0xff]
    %v214 = vld [vmem:[%s1 + $0x5b0] sm:$0xff]
    %v215 = vld [vmem:[%s1 + $0x5b8] sm:$0xff]
    %v216 = vld [vmem:[%s1 + $0x5c0] sm:$0xff]
    %v217 = vld [vmem:[%s1 + $0x5c8] sm:$0xff]
    %v218 = vld [vmem:[%s1 + $0x5d0] sm:$0xff]
    %v219 = vld [vmem:[%s1 + $0x5d8] sm:$0xff]
    %v220 = vld [vmem:[%s1 + $0x5e0] sm:$0xff]
    %v221 = vld [vmem:[%s1 + $0x5e8] sm:$0xff]
    %v222 = vld [vmem:[%s1 + $0x5f0] sm:$0xff]
    %v223 = vld [vmem:[%s1 + $0x5f8] sm:$0xff]
    %v224 = vld [vmem:[%s1 + $0x600] sm:$0xff]
    %v225 = vld [vmem:[%s1 + $0x608] sm:$0xff]
    %v226 = vld [vmem:[%s1 + $0x610] sm:$0xff]
    %v227 = vld [vmem:[%s1 + $0x618] sm:$0xff]
    %v228 = vld [vmem:[%s1 + $0x620] sm:$0xff]
    %v229 = vld [vmem:[%s1 + $0x628] sm:$0xff]
    %v230 = vld [vmem:[%s1 + $0x630] sm:$0xff]
    %v231 = vld [vmem:[%s1 + $0x638] sm:$0xff]
    %v232 = vld [vmem:[%s1 + $0x640] sm:$0xff]
    %v233 = vld [vmem:[%s1 + $0x648] sm:$0xff]
    %v234 = vld [vmem:[%s1 + $0x650] sm:$0xff]
    %v235 = vld [vmem:[%s1 + $0x658] sm:$0xff]
    %v236 = vld [vmem:[%s1 + $0x660] sm:$0xff]
    %v237 = vld [vmem:[%s1 + $0x668] sm:$0xff]
    %v238 = vld [vmem:[%s1 + $0x670] sm:$0xff]
    %v239 = vld [vmem:[%s1 + $0x678] sm:$0xff]
    %v240 = vld [vmem:[%s1 + $0x680] sm:$0xff]
    %v241 = vld [vmem:[%s1 + $0x688] sm:$0xff]
    %v242 = vld [vmem:[%s1 + $0x690] sm:$0xff]
    %v243 = vld [vmem:[%s1 + $0x698] sm:$0xff]
    %v244 = vld [vmem:[%s1 + $0x6a0] sm:$0xff]
    %v245 = vld [vmem:[%s1 + $0x6a8] sm:$0xff]
    %v246 = vld [vmem:[%s1 + $0x6b0] sm:$0xff]
    %v247 = vld [vmem:[%s1 + $0x6b8] sm:$0xff]
    %v248 = vld [vmem:[%s1 + $0x6c0] sm:$0xff]
    %v249 = vld [vmem:[%s1 + $0x6c8] sm:$0xff]
    %v250 = vld [vmem:[%s1 + $0x6d0] sm:$0xff]
    %v251 = vld [vmem:[%s1 + $0x6d8] sm:$0xff]
    %v252 = vld [vmem:[%s1 + $0x6e0] sm:$0xff]
    %v253 = vld [vmem:[%s1 + $0x6e8] sm:$0xff]
    %v254 = vld [vmem:[%s1 + $0x6f0] sm:$0xff]
    %v255 = vld [vmem:[%s1 + $0x6f8] sm:$0xff]
    %v256 = vld [vmem:[%s1 + $0x700] sm:$0xff]
    %v257 = vld [vmem:[%s1 + $0x708] sm:$0xff]
    %v258 = vld [vmem:[%s1 + $0x710] sm:$0xff]
    %v259 = vld [vmem:[%s1 + $0x718] sm:$0xff]
    %v260 = vld [vmem:[%s1 + $0x720] sm:$0xff]
    %v261 = vld [vmem:[%s1 + $0x728] sm:$0xff]
    %v262 = vld [vmem:[%s1 + $0x730] sm:$0xff]
    %v263 = vld [vmem:[%s1 + $0x738] sm:$0xff]
    %v264 = vld [vmem:[%s1 + $0x740] sm:$0xff]
    %v265 = vld [vmem:[%s1 + $0x748] sm:$0xff]
    %v266 = vld [vmem:[%s1 + $0x750] sm:$0xff]
    %v267 = vld [vmem:[%s1 + $0x758] sm:$0xff]
    %v268 = vld [vmem:[%s1 + $0x760] sm:$0xff]
    %v269 = vld [vmem:[%s1 + $0x768] sm:$0xff]
    %v270 = vld [vmem:[%s1 + $0x770] sm:$0xff]
    %v271 = vld [vmem:[%s1 + $0x778] sm:$0xff]
    %v272 = vld [vmem:[%s1 + $0x780] sm:$0xff]
    %v273 = vld [vmem:[%s1 + $0x788] sm:$0xff]
    %v274 = vld [vmem:[%s1 + $0x790] sm:$0xff]
    %v275 = vld [vmem:[%s1 + $0x798] sm:$0xff]
    %v276 = vld [vmem:[%s1 + $0x7a0] sm:$0xff]
    %v277 = vld [vmem:[%s1 + $0x7a8] sm:$0xff]
    %v278 = vld [vmem:[%s1 + $0x7b0] sm:$0xff]
    %v279 = vld [vmem:[%s1 + $0x7b8] sm:$0xff]
    %v280 = vld [vmem:[%s1 + $0x7c0] sm:$0xff]
    %v281 = vld [vmem:[%s1 + $0x7c8] sm:$0xff]
    %v282 = vld [vmem:[%s1 + $0x7d0] sm:$0xff]
    %v283 = vld [vmem:[%s1 + $0x7d8] sm:$0xff]
    %v284 = vld [vmem:[%s1 + $0x7e0] sm:$0xff]
    %v285 = vld [vmem:[%s1 + $0x7e8] sm:$0xff]
    %v286 = vld [vmem:[%s1 + $0x7f0] sm:$0xff]
    %v287 = vld [vmem:[%s1 + $0x7f8] sm:$0xff]
    %v288 = vld [vmem:[%s1 + $0x800] sm:$0xff]
    %v289 = vld [vmem:[%s1 + $0x808] sm:$0xff]
    %v290 = vld [vmem:[%s1 + $0x810] sm:$0xff]
    %v291 = vld [vmem:[%s1 + $0x818] sm:$0xff]
    %v292 = vld [vmem:[%s1 + $0x820] sm:$0xff]
    %v293 = vld [vmem:[%s1 + $0x828] sm:$0xff]
    %v294 = vld [vmem:[%s1 + $0x830] sm:$0xff]
    %v295 = vld [vmem:[%s1 + $0x838] sm:$0xff]
    %v296 = vld [vmem:[%s1 + $0x840] sm:$0xff]
    %v297 = vld [vmem:[%s1 + $0x848] sm:$0xff]
    %v298 = vld [vmem:[%s1 + $0x850] sm:$0xff]
    %v299 = vld [vmem:[%s1 + $0x858] sm:$0xff]
    %v300 = vld [vmem:[%s1 + $0x860] sm:$0xff]
    %v301 = vld [vmem:[%s1 + $0x868] sm:$0xff]
    %v302 = vld [vmem:[%s1 + $0x870] sm:$0xff]
    %v303 = vld [vmem:[%s1 + $0x878] sm:$0xff]
    %v304 = vld [vmem:[%s1 + $0x880] sm:$0xff]
    %v305 = vld [vmem:[%s1 + $0x888] sm:$0xff]
    %v306 = vld [vmem:[%s1 + $0x890] sm:$0xff]
    %v307 = vld [vmem:[%s1 + $0x898] sm:$0xff]
    %v308 = vld [vmem:[%s1 + $0x8a0] sm:$0xff]
    %v309 = vld [vmem:[%s1 + $0x8a8] sm:$0xff]
    %v310 = vld [vmem:[%s1 + $0x8b0] sm:$0xff]
    %v311 = vld [vmem:[%s1 + $0x8b8] sm:$0xff]
    %v312 = vld [vmem:[%s1 + $0x8c0] sm:$0xff]
    %v313 = vld [vmem:[%s1 + $0x8c8] sm:$0xff]
    %v314 = vld [vmem:[%s1 + $0x8d0] sm:$0xff]
    %v315 = vld [vmem:[%s1 + $0x8d8] sm:$0xff]
    %v316 = vld [vmem:[%s1 + $0x8e0] sm:$0xff]
    %v317 = vld [vmem:[%s1 + $0x8e8] sm:$0xff]
    %v318 = vld [vmem:[%s1 + $0x8f0] sm:$0xff]
    %v319 = vld [vmem:[%s1 + $0x8f8] sm:$0xff]
    %v320 = vld [vmem:[%s1 + $0x900] sm:$0xff]
    %v321 = vld [vmem:[%s1 + $0x908] sm:$0xff]
    %v322 = vld [vmem:[%s1 + $0x910] sm:$0xff]
    %v323 = vld [vmem:[%s1 + $0x918] sm:$0xff]
    %v324 = vld [vmem:[%s1 + $0x920] sm:$0xff]
    %v325 = vld [vmem:[%s1 + $0x928] sm:$0xff]
    %v326 = vld [vmem:[%s1 + $0x930] sm:$0xff]
    %v327 = vld [vmem:[%s1 + $0x938] sm:$0xff]
    %v328 = vld [vmem:[%s1 + $0x940] sm:$0xff]
    %v329 = vld [vmem:[%s1 + $0x948] sm:$0xff]
    %v330 = vld [vmem:[%s1 + $0x950] sm:$0xff]
    %v331 = vld [vmem:[%s1 + $0x958] sm:$0xff]
    %v332 = vld [vmem:[%s1 + $0x960] sm:$0xff]
    %v333 = vld [vmem:[%s1 + $0x968] sm:$0xff]
    %v334 = vld [vmem:[%s1 + $0x970] sm:$0xff]
    %v335 = vld [vmem:[%s1 + $0x978] sm:$0xff]
    %v336 = vld [vmem:[%s1 + $0x980] sm:$0xff]
    %v337 = vld [vmem:[%s1 + $0x988] sm:$0xff]
    %v338 = vld [vmem:[%s1 + $0x990] sm:$0xff]
    %v339 = vld [vmem:[%s1 + $0x998] sm:$0xff]
    %v340 = vld [vmem:[%s1 + $0x9a0] sm:$0xff]
    %v341 = vld [vmem:[%s1 + $0x9a8] sm:$0xff]
    %v342 = vld [vmem:[%s1 + $0x9b0] sm:$0xff]
    %v343 = vld [vmem:[%s1 + $0x9b8] sm:$0xff]
    %v344 = vld [vmem:[%s1 + $0x9c0] sm:$0xff]
    %v345 = vld [vmem:[%s1 + $0x9c8] sm:$0xff]
    %v346 = vld [vmem:[%s1 + $0x9d0] sm:$0xff]
    %v347 = vld [vmem:[%s1 + $0x9d8] sm:$0xff]
    %v348 = vld [vmem:[%s1 + $0x9e0] sm:$0xff]
    %v349 = vld [vmem:[%s1 + $0x9e8] sm:$0xff]
    %v350 = vld [vmem:[%s1 + $0x9f0] sm:$0xff]
    %v351 = vld [vmem:[%s1 + $0x9f8] sm:$0xff]
    %v352 = vld [vmem:[%s1 + $0xa00] sm:$0xff]
    %v353 = vld [vmem:[%s1 + $0xa08] sm:$0xff]
    %v354 = vld [vmem:[%s1 + $0xa10] sm:$0xff]
    %v355 = vld [vmem:[%s1 + $0xa18] sm:$0xff]
    %v356 = vld [vmem:[%s1 + $0xa20] sm:$0xff]
    %v357 = vld [vmem:[%s1 + $0xa28] sm:$0xff]
    %v358 = vld [vmem:[%s1 + $0xa30] sm:$0xff]
    %v359 = vld [vmem:[%s1 + $0xa38] sm:$0xff]
    %v360 = vld [vmem:[%s1 + $0xa40] sm:$0xff]
    %v361 = vld [vmem:[%s1 + $0xa48] sm:$0xff]
    %v362 = vld [vmem:[%s1 + $0xa50] sm:$0xff]
    %v363 = vld [vmem:[%s1 + $0xa58] sm:$0xff]
    %v364 = vld [vmem:[%s1 + $0xa60] sm:$0xff]
    %v365 = vld [vmem:[%s1 + $0xa68] sm:$0xff]
    %v366 = vld [vmem:[%s1 + $0xa70] sm:$0xff]
    %v367 = vld [vmem:[%s1 + $0xa78] sm:$0xff]
    %v368 = vld [vmem:[%s1 + $0xa80] sm:$0xff]
    %v369 = vld [vmem:[%s1 + $0xa88] sm:$0xff]
    %v370 = vld [vmem:[%s1 + $0xa90] sm:$0xff]
    %v371 = vld [vmem:[%s1 + $0xa98] sm:$0xff]
    %v372 = vld [vmem:[%s1 + $0xaa0] sm:$0xff]
    %v373 = vld [vmem:[%s1 + $0xaa8] sm:$0xff]
    %v374 = vld [vmem:[%s1 + $0xab0] sm:$0xff]
    %v375 = vld [vmem:[%s1 + $0xab8] sm:$0xff]
    %v376 = vld [vmem:[%s1 + $0xac0] sm:$0xff]
    %v377 = vld [vmem:[%s1 + $0xac8] sm:$0xff]
    %v378 = vld [vmem:[%s1 + $0xad0] sm:$0xff]
    %v379 = vld [vmem:[%s1 + $0xad8] sm:$0xff]
    %v380 = vld [vmem:[%s1 + $0xae0] sm:$0xff]
    %v381 = vld [vmem:[%s1 + $0xae8] sm:$0xff]
    %v382 = vld [vmem:[%s1 + $0xaf0] sm:$0xff]
    %v383 = vld [vmem:[%s1 + $0xaf8] sm:$0xff]
    %v384 = vld [vmem:[%s1 + $0xb00] sm:$0xff]
    %v385 = vld [vmem:[%s1 + $0xb08] sm:$0xff]
    %v386 = vld [vmem:[%s1 + $0xb10] sm:$0xff]
    %v387 = vld [vmem:[%s1 + $0xb18] sm:$0xff]
    %v388 = vld [vmem:[%s1 + $0xb20] sm:$0xff]
    %v389 = vld [vmem:[%s1 + $0xb28] sm:$0xff]
    %v390 = vld [vmem:[%s1 + $0xb30] sm:$0xff]
    %v391 = vld [vmem:[%s1 + $0xb38] sm:$0xff]
    %v392 = vld [vmem:[%s1 + $0xb40] sm:$0xff]
    %v393 = vld [vmem:[%s1 + $0xb48] sm:$0xff]
    %v394 = vld [vmem:[%s1 + $0xb50] sm:$0xff]
    %v395 = vld [vmem:[%s1 + $0xb58] sm:$0xff]
    %v396 = vld [vmem:[%s1 + $0xb60] sm:$0xff]
    %v397 = vld [vmem:[%s1 + $0xb68] sm:$0xff]
    %v398 = vld [vmem:[%s1 + $0xb70] sm:$0xff]
    %v399 = vld [vmem:[%s1 + $0xb78] sm:$0xff]
    %v400 = vld [vmem:[%s1 + $0xb80] sm:$0xff]
    %v401 = vld [vmem:[%s1 + $0xb88] sm:$0xff]
    %v402 = vld [vmem:[%s1 + $0xb90] sm:$0xff]
    %v403 = vld [vmem:[%s1 + $0xb98] sm:$0xff]
    %v404 = vld [vmem:[%s1 + $0xba0] sm:$0xff]
    %v405 = vld [vmem:[%s1 + $0xba8] sm:$0xff]
    %v406 = vld [vmem:[%s1 + $0xbb0] sm:$0xff]
    %v407 = vld [vmem:[%s1 + $0xbb8] sm:$0xff]
    %v408 = vld [vmem:[%s1 + $0xbc0] sm:$0xff]
    %v409 = vld [vmem:[%s1 + $0xbc8] sm:$0xff]
    %v410 = vld [vmem:[%s1 + $0xbd0] sm:$0xff]
    %v411 = vld [vmem:[%s1 + $0xbd8] sm:$0xff]
    %v412 = vld [vmem:[%s1 + $0xbe0] sm:$0xff]
    %v413 = vld [vmem:[%s1 + $0xbe8] sm:$0xff]
    %v414 = vld [vmem:[%s1 + $0xbf0] sm:$0xff]
    %v415 = vld [vmem:[%s1 + $0xbf8] sm:$0xff]
    %v416 = vld [vmem:[%s1 + $0xc00] sm:$0xff]
    %v417 = vld [vmem:[%s1 + $0xc08] sm:$0xff]
    %v418 = vld [vmem:[%s1 + $0xc10] sm:$0xff]
    %v419 = vld [vmem:[%s1 + $0xc18] sm:$0xff]
    %v420 = vld [vmem:[%s1 + $0xc20] sm:$0xff]
    %v421 = vld [vmem:[%s1 + $0xc28] sm:$0xff]
    %v422 = vld [vmem:[%s1 + $0xc30] sm:$0xff]
    %v423 = vld [vmem:[%s1 + $0xc38] sm:$0xff]
    %v424 = vld [vmem:[%s1 + $0xc40] sm:$0xff]
    %v425 = vld [vmem:[%s1 + $0xc48] sm:$0xff]
    %v426 = vld [vmem:[%s1 + $0xc50] sm:$0xff]
    %v427 = vld [vmem:[%s1 + $0xc58] sm:$0xff]
    %v428 = vld [vmem:[%s1 + $0xc60] sm:$0xff]
    %v429 = vld [vmem:[%s1 + $0xc68] sm:$0xff]
    %v430 = vld [vmem:[%s1 + $0xc70] sm:$0xff]
    %v431 = vld [vmem:[%s1 + $0xc78] sm:$0xff]
    %v432 = vld [vmem:[%s1 + $0xc80] sm:$0xff]
    %v433 = vld [vmem:[%s1 + $0xc88] sm:$0xff]
    %v434 = vld [vmem:[%s1 + $0xc90] sm:$0xff]
    %v435 = vld [vmem:[%s1 + $0xc98] sm:$0xff]
    %v436 = vld [vmem:[%s1 + $0xca0] sm:$0xff]
    %v437 = vld [vmem:[%s1 + $0xca8] sm:$0xff]
    %v438 = vld [vmem:[%s1 + $0xcb0] sm:$0xff]
    %v439 = vld [vmem:[%s1 + $0xcb8] sm:$0xff]
    %v440 = vld [vmem:[%s1 + $0xcc0] sm:$0xff]
    %v441 = vld [vmem:[%s1 + $0xcc8] sm:$0xff]
    %v442 = vld [vmem:[%s1 + $0xcd0] sm:$0xff]
    %v443 = vld [vmem:[%s1 + $0xcd8] sm:$0xff]
    %v444 = vld [vmem:[%s1 + $0xce0] sm:$0xff]
    %v445 = vld [vmem:[%s1 + $0xce8] sm:$0xff]
    %v446 = vld [vmem:[%s1 + $0xcf0] sm:$0xff]
    %v447 = vld [vmem:[%s1 + $0xcf8] sm:$0xff]
    %v448 = vld [vmem:[%s1 + $0xd00] sm:$0xff]
    %v449 = vld [vmem:[%s1 + $0xd08] sm:$0xff]
    %v450 = vld [vmem:[%s1 + $0xd10] sm:$0xff]
    %v451 = vld [vmem:[%s1 + $0xd18] sm:$0xff]
    %v452 = vld [vmem:[%s1 + $0xd20] sm:$0xff]
    %v453 = vld [vmem:[%s1 + $0xd28] sm:$0xff]
    %v454 = vld [vmem:[%s1 + $0xd30] sm:$0xff]
    %v455 = vld [vmem:[%s1 + $0xd38] sm:$0xff]
    %v456 = vld [vmem:[%s1 + $0xd40] sm:$0xff]
    %v457 = vld [vmem:[%s1 + $0xd48] sm:$0xff]
    %v458 = vld [vmem:[%s1 + $0xd50] sm:$0xff]
    %v459 = vld [vmem:[%s1 + $0xd58] sm:$0xff]
    %v460 = vld [vmem:[%s1 + $0xd60] sm:$0xff]
    %v461 = vld [vmem:[%s1 + $0xd68] sm:$0xff]
    %v462 = vld [vmem:[%s1 + $0xd70] sm:$0xff]
    %v463 = vld [vmem:[%s1 + $0xd78] sm:$0xff]
    %v464 = vld [vmem:[%s1 + $0xd80] sm:$0xff]
    %v465 = vld [vmem:[%s1 + $0xd88] sm:$0xff]
    %v466 = vld [vmem:[%s1 + $0xd90] sm:$0xff]
    %v467 = vld [vmem:[%s1 + $0xd98] sm:$0xff]
    %v468 = vld [vmem:[%s1 + $0xda0] sm:$0xff]
    %v469 = vld [vmem:[%s1 + $0xda8] sm:$0xff]
    %v470 = vld [vmem:[%s1 + $0xdb0] sm:$0xff]
    %v471 = vld [vmem:[%s1 + $0xdb8] sm:$0xff]
    %v472 = vld [vmem:[%s1 + $0xdc0] sm:$0xff]
    %v473 = vld [vmem:[%s1 + $0xdc8] sm:$0xff]
    %v474 = vld [vmem:[%s1 + $0xdd0] sm:$0xff]
    %v475 = vld [vmem:[%s1 + $0xdd8] sm:$0xff]
    %v476 = vld [vmem:[%s1 + $0xde0] sm:$0xff]
    %v477 = vld [vmem:[%s1 + $0xde8] sm:$0xff]
    %v478 = vld [vmem:[%s1 + $0xdf0] sm:$0xff]
    %v479 = vld [vmem:[%s1 + $0xdf8] sm:$0xff]
    %v480 = vld [vmem:[%s1 + $0xe00] sm:$0xff]
    %v481 = vld [vmem:[%s1 + $0xe08] sm:$0xff]
    %v482 = vld [vmem:[%s1 + $0xe10] sm:$0xff]
    %v483 = vld [vmem:[%s1 + $0xe18] sm:$0xff]
    %v484 = vld [vmem:[%s1 + $0xe20] sm:$0xff]
    %v485 = vld [vmem:[%s1 + $0xe28] sm:$0xff]
    %v486 = vld [vmem:[%s1 + $0xe30] sm:$0xff]
    %v487 = vld [vmem:[%s1 + $0xe38] sm:$0xff]
    %v488 = vld [vmem:[%s1 + $0xe40] sm:$0xff]
    %v489 = vld [vmem:[%s1 + $0xe48] sm:$0xff]
    %v490 = vld [vmem:[%s1 + $0xe50] sm:$0xff]
    %v491 = vld [vmem:[%s1 + $0xe58] sm:$0xff]
    %v492 = vld [vmem:[%s1 + $0xe60] sm:$0xff]
    %v493 = vld [vmem:[%s1 + $0xe68] sm:$0xff]
    %v494 = vld [vmem:[%s1 + $0xe70] sm:$0xff]
    %v495 = vld [vmem:[%s1 + $0xe78] sm:$0xff]
    %v496 = vld [vmem:[%s1 + $0xe80] sm:$0xff]
    %v497 = vld [vmem:[%s1 + $0xe88] sm:$0xff]
    %v498 = vld [vmem:[%s1 + $0xe90] sm:$0xff]
    %v499 = vld [vmem:[%s1 + $0xe98] sm:$0xff]
    %v500 = vld [vmem:[%s1 + $0xea0] sm:$0xff]
    %v501 = vld [vmem:[%s1 + $0xea8] sm:$0xff]
    %v502 = vld [vmem:[%s1 + $0xeb0] sm:$0xff]
    %v503 = vld [vmem:[%s1 + $0xeb8] sm:$0xff]
    %v504 = vld [vmem:[%s1 + $0xec0] sm:$0xff]
    %v505 = vld [vmem:[%s1 + $0xec8] sm:$0xff]
    %v506 = vld [vmem:[%s1 + $0xed0] sm:$0xff]
    %v507 = vld [vmem:[%s1 + $0xed8] sm:$0xff]
    %v508 = vld [vmem:[%s1 + $0xee0] sm:$0xff]
    %v509 = vld [vmem:[%s1 + $0xee8] sm:$0xff]
    %v510 = vld [vmem:[%s1 + $0xef0] sm:$0xff]
    %v511 = vld [vmem:[%s1 + $0xef8] sm:$0xff]
    %v512 = vld [vmem:[%s1 + $0xf00] sm:$0xff]
    %v513 = vld [vmem:[%s1 + $0xf08] sm:$0xff]
    %v514 = vld [vmem:[%s1 + $0xf10] sm:$0xff]
    %v515 = vld [vmem:[%s1 + $0xf18] sm:$0xff]
    %v516 = vld [vmem:[%s1 + $0xf20] sm:$0xff]
    %v517 = vld [vmem:[%s1 + $0xf28] sm:$0xff]
    %v518 = vld [vmem:[%s1 + $0xf30] sm:$0xff]
    %v519 = vld [vmem:[%s1 + $0xf38] sm:$0xff]
    %v520 = vld [vmem:[%s1 + $0xf40] sm:$0xff]
    %v521 = vld [vmem:[%s1 + $0xf48] sm:$0xff]
    %v522 = vld [vmem:[%s1 + $0xf50] sm:$0xff]
    %v523 = vld [vmem:[%s1 + $0xf58] sm:$0xff]
    %v524 = vld [vmem:[%s1 + $0xf60] sm:$0xff]
    %v525 = vld [vmem:[%s1 + $0xf68] sm:$0xff]
    %v526 = vld [vmem:[%s1 + $0xf70] sm:$0xff]
    %v527 = vld [vmem:[%s1 + $0xf78] sm:$0xff]
    %v528 = vld [vmem:[%s1 + $0xf80] sm:$0xff]
    %v529 = vld [vmem:[%s1 + $0xf88] sm:$0xff]
    %v530 = vld [vmem:[%s1 + $0xf90] sm:$0xff]
    %v531 = vld [vmem:[%s1 + $0xf98] sm:$0xff]
    %v532 = vld [vmem:[%s1 + $0xfa0] sm:$0xff]
    %v533 = vld [vmem:[%s1 + $0xfa8] sm:$0xff]
    %v534 = vld [vmem:[%s1 + $0xfb0] sm:$0xff]
    %v535 = vld [vmem:[%s1 + $0xfb8] sm:$0xff]
    %v536 = vld [vmem:[%s1 + $0xfc0] sm:$0xff]
    %v537 = vld [vmem:[%s1 + $0xfc8] sm:$0xff]
    %v538 = vld [vmem:[%s1 + $0xfd0] sm:$0xff]
    %v539 = vld [vmem:[%s1 + $0xfd8] sm:$0xff]
    %v540 = vld [vmem:[%s1 + $0xfe0] sm:$0xff]
    %v541 = vld [vmem:[%s1 + $0xfe8] sm:$0xff]
    %v542 = vld [vmem:[%s1 + $0xff0] sm:$0xff]
    %v543 = vld [vmem:[%s1 + $0xff8] sm:$0xff]
    %v544 = vld [vmem:[%s1 + $0x1000] sm:$0xff]
    %v545 = vld [vmem:[%s1 + $0x1008] sm:$0xff]
    %v546 = vld [vmem:[%s1 + $0x1010] sm:$0xff]
    %v547 = vld [vmem:[%s1 + $0x1018] sm:$0xff]
    %v548 = vld [vmem:[%s1 + $0x1020] sm:$0xff]
    %v549 = vld [vmem:[%s1 + $0x1028] sm:$0xff]
    %v550 = vld [vmem:[%s1 + $0x1030] sm:$0xff]
    %v551 = vld [vmem:[%s1 + $0x1038] sm:$0xff]
    %v552 = vld [vmem:[%s1 + $0x1040] sm:$0xff]
    %v553 = vld [vmem:[%s1 + $0x1048] sm:$0xff]
    %v554 = vld [vmem:[%s1 + $0x1050] sm:$0xff]
    %v555 = vld [vmem:[%s1 + $0x1058] sm:$0xff]
    %v556 = vld [vmem:[%s1 + $0x1060] sm:$0xff]
    %v557 = vld [vmem:[%s1 + $0x1068] sm:$0xff]
    %v558 = vld [vmem:[%s1 + $0x1070] sm:$0xff]
    %v559 = vld [vmem:[%s1 + $0x1078] sm:$0xff]
    %v560 = vld [vmem:[%s1 + $0x1080] sm:$0xff]
    %v561 = vld [vmem:[%s1 + $0x1088] sm:$0xff]
    %v562 = vld [vmem:[%s1 + $0x1090] sm:$0xff]
    %v563 = vld [vmem:[%s1 + $0x1098] sm:$0xff]
    %v564 = vld [vmem:[%s1 + $0x10a0] sm:$0xff]
    %v565 = vld [vmem:[%s1 + $0x10a8] sm:$0xff]
    %v566 = vld [vmem:[%s1 + $0x10b0] sm:$0xff]
    %v567 = vld [vmem:[%s1 + $0x10b8] sm:$0xff]
    %v568 = vld [vmem:[%s1 + $0x10c0] sm:$0xff]
    %v569 = vld [vmem:[%s1 + $0x10c8] sm:$0xff]
    %v570 = vld [vmem:[%s1 + $0x10d0] sm:$0xff]
    %v571 = vld [vmem:[%s1 + $0x10d8] sm:$0xff]
    %v572 = vld [vmem:[%s1 + $0x10e0] sm:$0xff]
    %v573 = vld [vmem:[%s1 + $0x10e8] sm:$0xff]
    %v574 = vld [vmem:[%s1 + $0x10f0] sm:$0xff]
    %v575 = vld [vmem:[%s1 + $0x10f8] sm:$0xff]
    %v576 = vld [vmem:[%s1 + $0x1100] sm:$0xff]
    %v577 = vld [vmem:[%s1 + $0x1108] sm:$0xff]
    %v578 = vld [vmem:[%s1 + $0x1110] sm:$0xff]
    %v579 = vld [vmem:[%s1 + $0x1118] sm:$0xff]
    %v580 = vld [vmem:[%s1 + $0x1120] sm:$0xff]
    %v581 = vld [vmem:[%s1 + $0x1128] sm:$0xff]
    %v582 = vld [vmem:[%s1 + $0x1130] sm:$0xff]
    %v583 = vld [vmem:[%s1 + $0x1138] sm:$0xff]
    %v584 = vld [vmem:[%s1 + $0x1140] sm:$0xff]
    %v585 = vld [vmem:[%s1 + $0x1148] sm:$0xff]
    %v586 = vld [vmem:[%s1 + $0x1150] sm:$0xff]
    %v587 = vld [vmem:[%s1 + $0x1158] sm:$0xff]
    %v588 = vld [vmem:[%s1 + $0x1160] sm:$0xff]
    %v589 = vld [vmem:[%s1 + $0x1168] sm:$0xff]
    %v590 = vld [vmem:[%s1 + $0x1170] sm:$0xff]
    %v591 = vld [vmem:[%s1 + $0x1178] sm:$0xff]
    %v592 = vld [vmem:[%s1 + $0x1180] sm:$0xff]
    %v593 = vld [vmem:[%s1 + $0x1188] sm:$0xff]
    %v594 = vld [vmem:[%s1 + $0x1190] sm:$0xff]
    %v595 = vld [vmem:[%s1 + $0x1198] sm:$0xff]
    %v596 = vld [vmem:[%s1 + $0x11a0] sm:$0xff]
    %v597 = vld [vmem:[%s1 + $0x11a8] sm:$0xff]
    %v598 = vld [vmem:[%s1 + $0x11b0] sm:$0xff]
    %v599 = vld [vmem:[%s1 + $0x11b8] sm:$0xff]
    %v600 = vld [vmem:[%s1 + $0x11c0] sm:$0xff]
    %v601 = vld [vmem:[%s1 + $0x11c8] sm:$0xff]
    %v602 = vld [vmem:[%s1 + $0x11d0] sm:$0xff]
    %v603 = vld [vmem:[%s1 + $0x11d8] sm:$0xff]
    %v604 = vld [vmem:[%s1 + $0x11e0] sm:$0xff]
    %v605 = vld [vmem:[%s1 + $0x11e8] sm:$0xff]
    %v606 = vld [vmem:[%s1 + $0x11f0] sm:$0xff]
    %v607 = vld [vmem:[%s1 + $0x11f8] sm:$0xff]
    %v608 = vld [vmem:[%s1 + $0x1200] sm:$0xff]
    %v609 = vld [vmem:[%s1 + $0x1208] sm:$0xff]
    %v610 = vld [vmem:[%s1 + $0x1210] sm:$0xff]
    %v611 = vld [vmem:[%s1 + $0x1218] sm:$0xff]
    %v612 = vld [vmem:[%s1 + $0x1220] sm:$0xff]
    %v613 = vld [vmem:[%s1 + $0x1228] sm:$0xff]
    %v614 = vld [vmem:[%s1 + $0x1230] sm:$0xff]
    %v615 = vld [vmem:[%s1 + $0x1238] sm:$0xff]
    %v616 = vld [vmem:[%s1 + $0x1240] sm:$0xff]
    %v617 = vld [vmem:[%s1 + $0x1248] sm:$0xff]
    %v618 = vld [vmem:[%s1 + $0x1250] sm:$0xff]
    %v619 = vld [vmem:[%s1 + $0x1258] sm:$0xff]
    %v620 = vld [vmem:[%s1 + $0x1260] sm:$0xff]
    %v621 = vld [vmem:[%s1 + $0x1268] sm:$0xff]
    %v622 = vld [vmem:[%s1 + $0x1270] sm:$0xff]
    %v623 = vld [vmem:[%s1 + $0x1278] sm:$0xff]
    %v624 = vld [vmem:[%s1 + $0x1280] sm:$0xff]
    %v625 = vld [vmem:[%s1 + $0x1288] sm:$0xff]
    %v626 = vld [vmem:[%s1 + $0x1290] sm:$0xff]
    %v627 = vld [vmem:[%s1 + $0x1298] sm:$0xff]
    %v628 = vld [vmem:[%s1 + $0x12a0] sm:$0xff]
    %v629 = vld [vmem:[%s1 + $0x12a8] sm:$0xff]
    %v630 = vld [vmem:[%s1 + $0x12b0] sm:$0xff]
    %v631 = vld [vmem:[%s1 + $0x12b8] sm:$0xff]
    %v632 = vld [vmem:[%s1 + $0x12c0] sm:$0xff]
    %v633 = vld [vmem:[%s1 + $0x12c8] sm:$0xff]
    %v634 = vld [vmem:[%s1 + $0x12d0] sm:$0xff]
    %v635 = vld [vmem:[%s1 + $0x12d8] sm:$0xff]
    %v636 = vld [vmem:[%s1 + $0x12e0] sm:$0xff]
    %v637 = vld [vmem:[%s1 + $0x12e8] sm:$0xff]
    %v638 = vld [vmem:[%s1 + $0x12f0] sm:$0xff]
    %v639 = vld [vmem:[%s1 + $0x12f8] sm:$0xff]
    %v640 = vld [vmem:[%s1 + $0x1300] sm:$0xff]
    %v641 = vld [vmem:[%s1 + $0x1308] sm:$0xff]
    %v642 = vld [vmem:[%s1 + $0x1310] sm:$0xff]
    %v643 = vld [vmem:[%s1 + $0x1318] sm:$0xff]
    %v644 = vld [vmem:[%s1 + $0x1320] sm:$0xff]
    %v645 = vld [vmem:[%s1 + $0x1328] sm:$0xff]
    %v646 = vld [vmem:[%s1 + $0x1330] sm:$0xff]
    %v647 = vld [vmem:[%s1 + $0x1338] sm:$0xff]
    %v648 = vld [vmem:[%s1 + $0x1340] sm:$0xff]
    %v649 = vld [vmem:[%s1 + $0x1348] sm:$0xff]
    %v650 = vld [vmem:[%s1 + $0x1350] sm:$0xff]
    %v651 = vld [vmem:[%s1 + $0x1358] sm:$0xff]
    %v652 = vld [vmem:[%s1 + $0x1360] sm:$0xff]
    %v653 = vld [vmem:[%s1 + $0x1368] sm:$0xff]
    %v654 = vld [vmem:[%s1 + $0x1370] sm:$0xff]
    %v655 = vld [vmem:[%s1 + $0x1378] sm:$0xff]
    %v656 = vld [vmem:[%s1 + $0x1380] sm:$0xff]
    %v657 = vld [vmem:[%s1 + $0x1388] sm:$0xff]
    %v658 = vld [vmem:[%s1 + $0x1390] sm:$0xff]
    %v659 = vld [vmem:[%s1 + $0x1398] sm:$0xff]
    %v660 = vld [vmem:[%s1 + $0x13a0] sm:$0xff]
    %v661 = vld [vmem:[%s1 + $0x13a8] sm:$0xff]
    %v662 = vld [vmem:[%s1 + $0x13b0] sm:$0xff]
    %v663 = vld [vmem:[%s1 + $0x13b8] sm:$0xff]
    %v664 = vld [vmem:[%s1 + $0x13c0] sm:$0xff]
    %v665 = vld [vmem:[%s1 + $0x13c8] sm:$0xff]
    %v666 = vld [vmem:[%s1 + $0x13d0] sm:$0xff]
    %v667 = vld [vmem:[%s1 + $0x13d8] sm:$0xff]
    %v668 = vld [vmem:[%s1 + $0x13e0] sm:$0xff]
    %v669 = vld [vmem:[%s1 + $0x13e8] sm:$0xff]
    %v670 = vld [vmem:[%s1 + $0x13f0] sm:$0xff]
    %v671 = vld [vmem:[%s1 + $0x13f8] sm:$0xff]
    %v672 = vld [vmem:[%s1 + $0x1400] sm:$0xff]
    %v673 = vld [vmem:[%s1 + $0x1408] sm:$0xff]
    %v674 = vld [vmem:[%s1 + $0x1410] sm:$0xff]
    %v675 = vld [vmem:[%s1 + $0x1418] sm:$0xff]
    %v676 = vld [vmem:[%s1 + $0x1420] sm:$0xff]
    %v677 = vld [vmem:[%s1 + $0x1428] sm:$0xff]
    %v678 = vld [vmem:[%s1 + $0x1430] sm:$0xff]
    %v679 = vld [vmem:[%s1 + $0x1438] sm:$0xff]
    %v680 = vld [vmem:[%s1 + $0x1440] sm:$0xff]
    %v681 = vld [vmem:[%s1 + $0x1448] sm:$0xff]
    %v682 = vld [vmem:[%s1 + $0x1450] sm:$0xff]
    %v683 = vld [vmem:[%s1 + $0x1458] sm:$0xff]
    %v684 = vld [vmem:[%s1 + $0x1460] sm:$0xff]
    %v685 = vld [vmem:[%s1 + $0x1468] sm:$0xff]
    %v686 = vld [vmem:[%s1 + $0x1470] sm:$0xff]
    %v687 = vld [vmem:[%s1 + $0x1478] sm:$0xff]
    %v688 = vld [vmem:[%s1 + $0x1480] sm:$0xff]
    %v689 = vld [vmem:[%s1 + $0x1488] sm:$0xff]
    %v690 = vld [vmem:[%s1 + $0x1490] sm:$0xff]
    %v691 = vld [vmem:[%s1 + $0x1498] sm:$0xff]
    %v692 = vld [vmem:[%s1 + $0x14a0] sm:$0xff]
    %v693 = vld [vmem:[%s1 + $0x14a8] sm:$0xff]
    %v694 = vld [vmem:[%s1 + $0x14b0] sm:$0xff]
    %v695 = vld [vmem:[%s1 + $0x14b8] sm:$0xff]
    %v696 = vld [vmem:[%s1 + $0x14c0] sm:$0xff]
    %v697 = vld [vmem:[%s1 + $0x14c8] sm:$0xff]
    %v698 = vld [vmem:[%s1 + $0x14d0] sm:$0xff]
    %v699 = vld [vmem:[%s1 + $0x14d8] sm:$0xff]
    %v700 = vld [vmem:[%s1 + $0x14e0] sm:$0xff]
    %v701 = vld [vmem:[%s1 + $0x14e8] sm:$0xff]
    %v702 = vld [vmem:[%s1 + $0x14f0] sm:$0xff]
    %v703 = vld [vmem:[%s1 + $0x14f8] sm:$0xff]
    %v704 = vld [vmem:[%s1 + $0x1500] sm:$0xff]
    %v705 = vld [vmem:[%s1 + $0x1508] sm:$0xff]
    %v706 = vld [vmem:[%s1 + $0x1510] sm:$0xff]
    %v707 = vld [vmem:[%s1 + $0x1518] sm:$0xff]
    %v708 = vld [vmem:[%s1 + $0x1520] sm:$0xff]
    %v709 = vld [vmem:[%s1 + $0x1528] sm:$0xff]
    %v710 = vld [vmem:[%s1 + $0x1530] sm:$0xff]
    %v711 = vld [vmem:[%s1 + $0x1538] sm:$0xff]
    %v712 = vld [vmem:[%s1 + $0x1540] sm:$0xff]
    %v713 = vld [vmem:[%s1 + $0x1548] sm:$0xff]
    %v714 = vld [vmem:[%s1 + $0x1550] sm:$0xff]
    %v715 = vld [vmem:[%s1 + $0x1558] sm:$0xff]
    %v716 = vld [vmem:[%s1 + $0x1560] sm:$0xff]
    %v717 = vld [vmem:[%s1 + $0x1568] sm:$0xff]
    %v718 = vld [vmem:[%s1 + $0x1570] sm:$0xff]
    %v719 = vld [vmem:[%s1 + $0x1578] sm:$0xff]
    %v720 = vld [vmem:[%s1 + $0x1580] sm:$0xff]
    %v721 = vld [vmem:[%s1 + $0x1588] sm:$0xff]
    %v722 = vld [vmem:[%s1 + $0x1590] sm:$0xff]
    %v723 = vld [vmem:[%s1 + $0x1598] sm:$0xff]
    %v724 = vld [vmem:[%s1 + $0x15a0] sm:$0xff]
    %v725 = vld [vmem:[%s1 + $0x15a8] sm:$0xff]
    %v726 = vld [vmem:[%s1 + $0x15b0] sm:$0xff]
    %v727 = vld [vmem:[%s1 + $0x15b8] sm:$0xff]
    %v728 = vld [vmem:[%s1 + $0x15c0] sm:$0xff]
    %v729 = vld [vmem:[%s1 + $0x15c8] sm:$0xff]
    %v730 = vld [vmem:[%s1 + $0x15d0] sm:$0xff]
    %v731 = vld [vmem:[%s1 + $0x15d8] sm:$0xff]
    %v732 = vld [vmem:[%s1 + $0x15e0] sm:$0xff]
    %v733 = vld [vmem:[%s1 + $0x15e8] sm:$0xff]
    %v734 = vld [vmem:[%s1 + $0x15f0] sm:$0xff]
    %v735 = vld [vmem:[%s1 + $0x15f8] sm:$0xff]
    %v736 = vld [vmem:[%s1 + $0x1600] sm:$0xff]
    %v737 = vld [vmem:[%s1 + $0x1608] sm:$0xff]
    %v738 = vld [vmem:[%s1 + $0x1610] sm:$0xff]
    %v739 = vld [vmem:[%s1 + $0x1618] sm:$0xff]
    %v740 = vld [vmem:[%s1 + $0x1620] sm:$0xff]
    %v741 = vld [vmem:[%s1 + $0x1628] sm:$0xff]
    %v742 = vld [vmem:[%s1 + $0x1630] sm:$0xff]
    %v743 = vld [vmem:[%s1 + $0x1638] sm:$0xff]
    %v744 = vld [vmem:[%s1 + $0x1640] sm:$0xff]
    %v745 = vld [vmem:[%s1 + $0x1648] sm:$0xff]
    %v746 = vld [vmem:[%s1 + $0x1650] sm:$0xff]
    %v747 = vld [vmem:[%s1 + $0x1658] sm:$0xff]
    %v748 = vld [vmem:[%s1 + $0x1660] sm:$0xff]
    %v749 = vld [vmem:[%s1 + $0x1668] sm:$0xff]
    %v750 = vld [vmem:[%s1 + $0x1670] sm:$0xff]
    %v751 = vld [vmem:[%s1 + $0x1678] sm:$0xff]
    %v752 = vld [vmem:[%s1 + $0x1680] sm:$0xff]
    %v753 = vld [vmem:[%s1 + $0x1688] sm:$0xff]
    %v754 = vld [vmem:[%s1 + $0x1690] sm:$0xff]
    %v755 = vld [vmem:[%s1 + $0x1698] sm:$0xff]
    %v756 = vld [vmem:[%s1 + $0x16a0] sm:$0xff]
    %v757 = vld [vmem:[%s1 + $0x16a8] sm:$0xff]
    %v758 = vld [vmem:[%s1 + $0x16b0] sm:$0xff]
    %v759 = vld [vmem:[%s1 + $0x16b8] sm:$0xff]
    %v760 = vld [vmem:[%s1 + $0x16c0] sm:$0xff]
    %v761 = vld [vmem:[%s1 + $0x16c8] sm:$0xff]
    %v762 = vld [vmem:[%s1 + $0x16d0] sm:$0xff]
    %v763 = vld [vmem:[%s1 + $0x16d8] sm:$0xff]
    %v764 = vld [vmem:[%s1 + $0x16e0] sm:$0xff]
    %v765 = vld [vmem:[%s1 + $0x16e8] sm:$0xff]
    %v766 = vld [vmem:[%s1 + $0x16f0] sm:$0xff]
    %v767 = vld [vmem:[%s1 + $0x16f8] sm:$0xff]
    %v768 = vld [vmem:[%s1 + $0x1700] sm:$0xff]
    %v769 = vld [vmem:[%s1 + $0x1708] sm:$0xff]
    %v770 = vld [vmem:[%s1 + $0x1710] sm:$0xff]
    %v771 = vld [vmem:[%s1 + $0x1718] sm:$0xff]
    %v772 = vld [vmem:[%s1 + $0x1720] sm:$0xff]
    %v773 = vld [vmem:[%s1 + $0x1728] sm:$0xff]
    %v774 = vld [vmem:[%s1 + $0x1730] sm:$0xff]
    %v775 = vld [vmem:[%s1 + $0x1738] sm:$0xff]
    %v776 = vld [vmem:[%s1 + $0x1740] sm:$0xff]
    %v777 = vld [vmem:[%s1 + $0x1748] sm:$0xff]
    %v778 = vld [vmem:[%s1 + $0x1750] sm:$0xff]
    %v779 = vld [vmem:[%s1 + $0x1758] sm:$0xff]
    %v780 = vld [vmem:[%s1 + $0x1760] sm:$0xff]
    %v781 = vld [vmem:[%s1 + $0x1768] sm:$0xff]
    %v782 = vld [vmem:[%s1 + $0x1770] sm:$0xff]
    %v783 = vld [vmem:[%s1 + $0x1778] sm:$0xff]
    %v784 = vld [vmem:[%s1 + $0x1780] sm:$0xff]
    %v785 = vld [vmem:[%s1 + $0x1788] sm:$0xff]
    %v786 = vld [vmem:[%s1 + $0x1790] sm:$0xff]
    %v787 = vld [vmem:[%s1 + $0x1798] sm:$0xff]
    %v788 = vld [vmem:[%s1 + $0x17a0] sm:$0xff]
    %v789 = vld [vmem:[%s1 + $0x17a8] sm:$0xff]
    %v790 = vld [vmem:[%s1 + $0x17b0] sm:$0xff]
    %v791 = vld [vmem:[%s1 + $0x17b8] sm:$0xff]
    %v792 = vld [vmem:[%s1 + $0x17c0] sm:$0xff]
    %v793 = vld [vmem:[%s1 + $0x17c8] sm:$0xff]
    %v794 = vld [vmem:[%s1 + $0x17d0] sm:$0xff]
    %v795 = vld [vmem:[%s1 + $0x17d8] sm:$0xff]
    %v796 = vld [vmem:[%s1 + $0x17e0] sm:$0xff]
    %v797 = vld [vmem:[%s1 + $0x17e8] sm:$0xff]
    %v798 = vld [vmem:[%s1 + $0x17f0] sm:$0xff]
    %v799 = vld [vmem:[%s1 + $0x17f8] sm:$0xff]
    %v800 = vld [vmem:[%s1 + $0x1800] sm:$0xff]
    %v801 = vld [vmem:[%s1 + $0x1808] sm:$0xff]
    %v802 = vld [vmem:[%s1 + $0x1810] sm:$0xff]
    %v803 = vld [vmem:[%s1 + $0x1818] sm:$0xff]
    %v804 = vld [vmem:[%s1 + $0x1820] sm:$0xff]
    %v805 = vld [vmem:[%s1 + $0x1828] sm:$0xff]
    %v806 = vld [vmem:[%s1 + $0x1830] sm:$0xff]
    %v807 = vld [vmem:[%s1 + $0x1838] sm:$0xff]
    %v808 = vld [vmem:[%s1 + $0x1840] sm:$0xff]
    %v809 = vld [vmem:[%s1 + $0x1848] sm:$0xff]
    %v810 = vld [vmem:[%s1 + $0x1850] sm:$0xff]
    %v811 = vld [vmem:[%s1 + $0x1858] sm:$0xff]
    %v812 = vld [vmem:[%s1 + $0x1860] sm:$0xff]
    %v813 = vld [vmem:[%s1 + $0x1868] sm:$0xff]
    %v814 = vld [vmem:[%s1 + $0x1870] sm:$0xff]
    %v815 = vld [vmem:[%s1 + $0x1878] sm:$0xff]
    %v816 = vld [vmem:[%s1 + $0x1880] sm:$0xff]
    %v817 = vld [vmem:[%s1 + $0x1888] sm:$0xff]
    %v818 = vld [vmem:[%s1 + $0x1890] sm:$0xff]
    %v819 = vld [vmem:[%s1 + $0x1898] sm:$0xff]
    %v820 = vld [vmem:[%s1 + $0x18a0] sm:$0xff]
    %v821 = vld [vmem:[%s1 + $0x18a8] sm:$0xff]
    %v822 = vld [vmem:[%s1 + $0x18b0] sm:$0xff]
    %v823 = vld [vmem:[%s1 + $0x18b8] sm:$0xff]
    %v824 = vld [vmem:[%s1 + $0x18c0] sm:$0xff]
    %v825 = vld [vmem:[%s1 + $0x18c8] sm:$0xff]
    %v826 = vld [vmem:[%s1 + $0x18d0] sm:$0xff]
    %v827 = vld [vmem:[%s1 + $0x18d8] sm:$0xff]
    %v828 = vld [vmem:[%s1 + $0x18e0] sm:$0xff]
    %v829 = vld [vmem:[%s1 + $0x18e8] sm:$0xff]
    %v830 = vld [vmem:[%s1 + $0x18f0] sm:$0xff]
    %v831 = vld [vmem:[%s1 + $0x18f8] sm:$0xff]
    %v832 = vld [vmem:[%s1 + $0x1900] sm:$0xff]
    %v833 = vld [vmem:[%s1 + $0x1908] sm:$0xff]
    %v834 = vld [vmem:[%s1 + $0x1910] sm:$0xff]
    %v835 = vld [vmem:[%s1 + $0x1918] sm:$0xff]
    %v836 = vld [vmem:[%s1 + $0x1920] sm:$0xff]
    %v837 = vld [vmem:[%s1 + $0x1928] sm:$0xff]
    %v838 = vld [vmem:[%s1 + $0x1930] sm:$0xff]
    %v839 = vld [vmem:[%s1 + $0x1938] sm:$0xff]
    %v840 = vld [vmem:[%s1 + $0x1940] sm:$0xff]
    %v841 = vld [vmem:[%s1 + $0x1948] sm:$0xff]
    %v842 = vld [vmem:[%s1 + $0x1950] sm:$0xff]
    %v843 = vld [vmem:[%s1 + $0x1958] sm:$0xff]
    %v844 = vld [vmem:[%s1 + $0x1960] sm:$0xff]
    %v845 = vld [vmem:[%s1 + $0x1968] sm:$0xff]
    %v846 = vld [vmem:[%s1 + $0x1970] sm:$0xff]
    %v847 = vld [vmem:[%s1 + $0x1978] sm:$0xff]
    %v848 = vld [vmem:[%s1 + $0x1980] sm:$0xff]
    %v849 = vld [vmem:[%s1 + $0x1988] sm:$0xff]
    %v850 = vld [vmem:[%s1 + $0x1990] sm:$0xff]
    %v851 = vld [vmem:[%s1 + $0x1998] sm:$0xff]
    %v852 = vld [vmem:[%s1 + $0x19a0] sm:$0xff]
    %v853 = vld [vmem:[%s1 + $0x19a8] sm:$0xff]
    %v854 = vld [vmem:[%s1 + $0x19b0] sm:$0xff]
    %v855 = vld [vmem:[%s1 + $0x19b8] sm:$0xff]
    %v856 = vld [vmem:[%s1 + $0x19c0] sm:$0xff]
    %v857 = vld [vmem:[%s1 + $0x19c8] sm:$0xff]
    %v858 = vld [vmem:[%s1 + $0x19d0] sm:$0xff]
    %v859 = vld [vmem:[%s1 + $0x19d8] sm:$0xff]
    %v860 = vld [vmem:[%s1 + $0x19e0] sm:$0xff]
    %v861 = vld [vmem:[%s1 + $0x19e8] sm:$0xff]
    %v862 = vld [vmem:[%s1 + $0x19f0] sm:$0xff]
    %v863 = vld [vmem:[%s1 + $0x19f8] sm:$0xff]
    %v864 = vld [vmem:[%s1 + $0x1a00] sm:$0xff]
    %v865 = vld [vmem:[%s1 + $0x1a08] sm:$0xff]
    %v866 = vld [vmem:[%s1 + $0x1a10] sm:$0xff]
    %v867 = vld [vmem:[%s1 + $0x1a18] sm:$0xff]
    %v868 = vld [vmem:[%s1 + $0x1a20] sm:$0xff]
    %v869 = vld [vmem:[%s1 + $0x1a28] sm:$0xff]
    %v870 = vld [vmem:[%s1 + $0x1a30] sm:$0xff]
    %v871 = vld [vmem:[%s1 + $0x1a38] sm:$0xff]
    %v872 = vld [vmem:[%s1 + $0x1a40] sm:$0xff]
    %v873 = vld [vmem:[%s1 + $0x1a48] sm:$0xff]
    %v874 = vld [vmem:[%s1 + $0x1a50] sm:$0xff]
    %v875 = vld [vmem:[%s1 + $0x1a58] sm:$0xff]
    %v876 = vld [vmem:[%s1 + $0x1a60] sm:$0xff]
    %v877 = vld [vmem:[%s1 + $0x1a68] sm:$0xff]
    %v878 = vld [vmem:[%s1 + $0x1a70] sm:$0xff]
    %v879 = vld [vmem:[%s1 + $0x1a78] sm:$0xff]
    %v880 = vld [vmem:[%s1 + $0x1a80] sm:$0xff]
    %v881 = vld [vmem:[%s1 + $0x1a88] sm:$0xff]
    %v882 = vld [vmem:[%s1 + $0x1a90] sm:$0xff]
    %v883 = vld [vmem:[%s1 + $0x1a98] sm:$0xff]
    %v884 = vld [vmem:[%s1 + $0x1aa0] sm:$0xff]
    %v885 = vld [vmem:[%s1 + $0x1aa8] sm:$0xff]
    %v886 = vld [vmem:[%s1 + $0x1ab0] sm:$0xff]
    %v887 = vld [vmem:[%s1 + $0x1ab8] sm:$0xff]
    %v888 = vld [vmem:[%s1 + $0x1ac0] sm:$0xff]
    %v889 = vld [vmem:[%s1 + $0x1ac8] sm:$0xff]
    %v890 = vld [vmem:[%s1 + $0x1ad0] sm:$0xff]
    %v891 = vld [vmem:[%s1 + $0x1ad8] sm:$0xff]
    %v892 = vld [vmem:[%s1 + $0x1ae0] sm:$0xff]
    %v893 = vld [vmem:[%s1 + $0x1ae8] sm:$0xff]
    %v894 = vld [vmem:[%s1 + $0x1af0] sm:$0xff]
    %v895 = vld [vmem:[%s1 + $0x1af8] sm:$0xff]
    %v896 = vld [vmem:[%s1 + $0x1b00] sm:$0xff]
    %v897 = vld [vmem:[%s1 + $0x1b08] sm:$0xff]
    %v898 = vld [vmem:[%s1 + $0x1b10] sm:$0xff]
    %v899 = vld [vmem:[%s1 + $0x1b18] sm:$0xff]
    %v900 = vld [vmem:[%s1 + $0x1b20] sm:$0xff]
    %v901 = vld [vmem:[%s1 + $0x1b28] sm:$0xff]
    %v902 = vld [vmem:[%s1 + $0x1b30] sm:$0xff]
    %v903 = vld [vmem:[%s1 + $0x1b38] sm:$0xff]
    %v904 = vld [vmem:[%s1 + $0x1b40] sm:$0xff]
    %v905 = vld [vmem:[%s1 + $0x1b48] sm:$0xff]
    %v906 = vld [vmem:[%s1 + $0x1b50] sm:$0xff]
    %v907 = vld [vmem:[%s1 + $0x1b58] sm:$0xff]
    %v908 = vld [vmem:[%s1 + $0x1b60] sm:$0xff]
    %v909 = vld [vmem:[%s1 + $0x1b68] sm:$0xff]
    %v910 = vld [vmem:[%s1 + $0x1b70] sm:$0xff]
    %v911 = vld [vmem:[%s1 + $0x1b78] sm:$0xff]
    %v912 = vld [vmem:[%s1 + $0x1b80] sm:$0xff]
    %v913 = vld [vmem:[%s1 + $0x1b88] sm:$0xff]
    %v914 = vld [vmem:[%s1 + $0x1b90] sm:$0xff]
    %v915 = vld [vmem:[%s1 + $0x1b98] sm:$0xff]
    %v916 = vld [vmem:[%s1 + $0x1ba0] sm:$0xff]
    %v917 = vld [vmem:[%s1 + $0x1ba8] sm:$0xff]
    %v918 = vld [vmem:[%s1 + $0x1bb0] sm:$0xff]
    %v919 = vld [vmem:[%s1 + $0x1bb8] sm:$0xff]
    %v920 = vld [vmem:[%s1 + $0x1bc0] sm:$0xff]
    %v921 = vld [vmem:[%s1 + $0x1bc8] sm:$0xff]
    %v922 = vld [vmem:[%s1 + $0x1bd0] sm:$0xff]
    %v923 = vld [vmem:[%s1 + $0x1bd8] sm:$0xff]
    %v924 = vld [vmem:[%s1 + $0x1be0] sm:$0xff]
    %v925 = vld [vmem:[%s1 + $0x1be8] sm:$0xff]
    %v926 = vld [vmem:[%s1 + $0x1bf0] sm:$0xff]
    %v927 = vld [vmem:[%s1 + $0x1bf8] sm:$0xff]
    %v928 = vld [vmem:[%s1 + $0x1c00] sm:$0xff]
    %v929 = vld [vmem:[%s1 + $0x1c08] sm:$0xff]
    %v930 = vld [vmem:[%s1 + $0x1c10] sm:$0xff]
    %v931 = vld [vmem:[%s1 + $0x1c18] sm:$0xff]
    %v932 = vld [vmem:[%s1 + $0x1c20] sm:$0xff]
    %v933 = vld [vmem:[%s1 + $0x1c28] sm:$0xff]
    %v934 = vld [vmem:[%s1 + $0x1c30] sm:$0xff]
    %v935 = vld [vmem:[%s1 + $0x1c38] sm:$0xff]
    %v936 = vld [vmem:[%s1 + $0x1c40] sm:$0xff]
    %v937 = vld [vmem:[%s1 + $0x1c48] sm:$0xff]
    %v938 = vld [vmem:[%s1 + $0x1c50] sm:$0xff]
    %v939 = vld [vmem:[%s1 + $0x1c58] sm:$0xff]
    %v940 = vld [vmem:[%s1 + $0x1c60] sm:$0xff]
    %v941 = vld [vmem:[%s1 + $0x1c68] sm:$0xff]
    %v942 = vld [vmem:[%s1 + $0x1c70] sm:$0xff]
    %v943 = vld [vmem:[%s1 + $0x1c78] sm:$0xff]
    %v944 = vld [vmem:[%s1 + $0x1c80] sm:$0xff]
    %v945 = vld [vmem:[%s1 + $0x1c88] sm:$0xff]
    %v946 = vld [vmem:[%s1 + $0x1c90] sm:$0xff]
    %v947 = vld [vmem:[%s1 + $0x1c98] sm:$0xff]
    %v948 = vld [vmem:[%s1 + $0x1ca0] sm:$0xff]
    %v949 = vld [vmem:[%s1 + $0x1ca8] sm:$0xff]
    %v950 = vld [vmem:[%s1 + $0x1cb0] sm:$0xff]
    %v951 = vld [vmem:[%s1 + $0x1cb8] sm:$0xff]
    %v952 = vld [vmem:[%s1 + $0x1cc0] sm:$0xff]
    %v953 = vld [vmem:[%s1 + $0x1cc8] sm:$0xff]
    %v954 = vld [vmem:[%s1 + $0x1cd0] sm:$0xff]
    %v955 = vld [vmem:[%s1 + $0x1cd8] sm:$0xff]
    %v956 = vld [vmem:[%s1 + $0x1ce0] sm:$0xff]
    %v957 = vld [vmem:[%s1 + $0x1ce8] sm:$0xff]
    %v958 = vld [vmem:[%s1 + $0x1cf0] sm:$0xff]
    %v959 = vld [vmem:[%s1 + $0x1cf8] sm:$0xff]
    %v960 = vld [vmem:[%s1 + $0x1d00] sm:$0xff]
    %v961 = vld [vmem:[%s1 + $0x1d08] sm:$0xff]
    %v962 = vld [vmem:[%s1 + $0x1d10] sm:$0xff]
    %v963 = vld [vmem:[%s1 + $0x1d18] sm:$0xff]
    %v964 = vld [vmem:[%s1 + $0x1d20] sm:$0xff]
    %v965 = vld [vmem:[%s1 + $0x1d28] sm:$0xff]
    %v966 = vld [vmem:[%s1 + $0x1d30] sm:$0xff]
    %v967 = vld [vmem:[%s1 + $0x1d38] sm:$0xff]
    %v968 = vld [vmem:[%s1 + $0x1d40] sm:$0xff]
    %v969 = vld [vmem:[%s1 + $0x1d48] sm:$0xff]
    %v970 = vld [vmem:[%s1 + $0x1d50] sm:$0xff]
    %v971 = vld [vmem:[%s1 + $0x1d58] sm:$0xff]
    %v972 = vld [vmem:[%s1 + $0x1d60] sm:$0xff]
    %v973 = vld [vmem:[%s1 + $0x1d68] sm:$0xff]
    %v974 = vld [vmem:[%s1 + $0x1d70] sm:$0xff]
    %v975 = vld [vmem:[%s1 + $0x1d78] sm:$0xff]
    %v976 = vld [vmem:[%s1 + $0x1d80] sm:$0xff]
    %v977 = vld [vmem:[%s1 + $0x1d88] sm:$0xff]
    %v978 = vld [vmem:[%s1 + $0x1d90] sm:$0xff]
    %v979 = vld [vmem:[%s1 + $0x1d98] sm:$0xff]
    %v980 = vld [vmem:[%s1 + $0x1da0] sm:$0xff]
    %v981 = vld [vmem:[%s1 + $0x1da8] sm:$0xff]
    %v982 = vld [vmem:[%s1 + $0x1db0] sm:$0xff]
    %v983 = vld [vmem:[%s1 + $0x1db8] sm:$0xff]
    %v984 = vld [vmem:[%s1 + $0x1dc0] sm:$0xff]
    %v985 = vld [vmem:[%s1 + $0x1dc8] sm:$0xff]
    %v986 = vld [vmem:[%s1 + $0x1dd0] sm:$0xff]
    %v987 = vld [vmem:[%s1 + $0x1dd8] sm:$0xff]
    %v988 = vld [vmem:[%s1 + $0x1de0] sm:$0xff]
    %v989 = vld [vmem:[%s1 + $0x1de8] sm:$0xff]
    %v990 = vld [vmem:[%s1 + $0x1df0] sm:$0xff]
    %v991 = vld [vmem:[%s1 + $0x1df8] sm:$0xff]
    %v992 = vld [vmem:[%s1 + $0x1e00] sm:$0xff]
    %v993 = vld [vmem:[%s1 + $0x1e08] sm:$0xff]
    %v994 = vld [vmem:[%s1 + $0x1e10] sm:$0xff]
    %v995 = vld [vmem:[%s1 + $0x1e18] sm:$0xff]
    %v996 = vld [vmem:[%s1 + $0x1e20] sm:$0xff]
    %v997 = vld [vmem:[%s1 + $0x1e28] sm:$0xff]
    %v998 = vld [vmem:[%s1 + $0x1e30] sm:$0xff]
    %v999 = vld [vmem:[%s1 + $0x1e38] sm:$0xff]
    %v1000 = vld [vmem:[%s1 + $0x1e40] sm:$0xff]
    %v1001 = vld [vmem:[%s1 + $0x1e48] sm:$0xff]
    %v1002 = vld [vmem:[%s1 + $0x1e50] sm:$0xff]
    %v1003 = vld [vmem:[%s1 + $0x1e58] sm:$0xff]
    %v1004 = vld [vmem:[%s1 + $0x1e60] sm:$0xff]
    %v1005 = vld [vmem:[%s1 + $0x1e68] sm:$0xff]
    %v1006 = vld [vmem:[%s1 + $0x1e70] sm:$0xff]
    %v1007 = vld [vmem:[%s1 + $0x1e78] sm:$0xff]
    %v1008 = vld [vmem:[%s1 + $0x1e80] sm:$0xff]
    %v1009 = vld [vmem:[%s1 + $0x1e88] sm:$0xff]
    %v1010 = vld [vmem:[%s1 + $0x1e90] sm:$0xff]
    %v1011 = vld [vmem:[%s1 + $0x1e98] sm:$0xff]
    %v1012 = vld [vmem:[%s1 + $0x1ea0] sm:$0xff]
    %v1013 = vld [vmem:[%s1 + $0x1ea8] sm:$0xff]
    %v1014 = vld [vmem:[%s1 + $0x1eb0] sm:$0xff]
    %v1015 = vld [vmem:[%s1 + $0x1eb8] sm:$0xff]
    %v1016 = vld [vmem:[%s1 + $0x1ec0] sm:$0xff]
    %v1017 = vld [vmem:[%s1 + $0x1ec8] sm:$0xff]
    %v1018 = vld [vmem:[%s1 + $0x1ed0] sm:$0xff]
    %v1019 = vld [vmem:[%s1 + $0x1ed8] sm:$0xff]
    %v1020 = vld [vmem:[%s1 + $0x1ee0] sm:$0xff]
    %v1021 = vld [vmem:[%s1 + $0x1ee8] sm:$0xff]
    %v1022 = vld [vmem:[%s1 + $0x1ef0] sm:$0xff]
    %v1023 = vld [vmem:[%s1 + $0x1ef8] sm:$0xff]
    %v1024 = vld [vmem:[%s1 + $0x1f00] sm:$0xff]
    %v1025 = vld [vmem:[%s1 + $0x1f08] sm:$0xff]
    %v1026 = vld [vmem:[%s1 + $0x1f10] sm:$0xff]
    %v1027 = vld [vmem:[%s1 + $0x1f18] sm:$0xff]
    %v1028 = vld [vmem:[%s1 + $0x1f20] sm:$0xff]
    %v1029 = vld [vmem:[%s1 + $0x1f28] sm:$0xff]
    %v1030 = vld [vmem:[%s1 + $0x1f30] sm:$0xff]
    %v1031 = vld [vmem:[%s1 + $0x1f38] sm:$0xff]
    %v1032 = vld [vmem:[%s1 + $0x1f40] sm:$0xff]
    %v1033 = vld [vmem:[%s1 + $0x1f48] sm:$0xff]
    %v1034 = vld [vmem:[%s1 + $0x1f50] sm:$0xff]
    %v1035 = vld [vmem:[%s1 + $0x1f58] sm:$0xff]
    %v1036 = vld [vmem:[%s1 + $0x1f60] sm:$0xff]
    %v1037 = vld [vmem:[%s1 + $0x1f68] sm:$0xff]
    %v1038 = vld [vmem:[%s1 + $0x1f70] sm:$0xff]
    %v1039 = vld [vmem:[%s1 + $0x1f78] sm:$0xff]
    %v1040 = vld [vmem:[%s1 + $0x1f80] sm:$0xff]
    %v1041 = vld [vmem:[%s1 + $0x1f88] sm:$0xff]
    %v1042 = vld [vmem:[%s1 + $0x1f90] sm:$0xff]
    %v1043 = vld [vmem:[%s1 + $0x1f98] sm:$0xff]
    %v1044 = vld [vmem:[%s1 + $0x1fa0] sm:$0xff]
    %v1045 = vld [vmem:[%s1 + $0x1fa8] sm:$0xff]
    %v1046 = vld [vmem:[%s1 + $0x1fb0] sm:$0xff]
    %v1047 = vld [vmem:[%s1 + $0x1fb8] sm:$0xff]
    %v1048 = vld [vmem:[%s1 + $0x1fc0] sm:$0xff]
    %v1049 = vld [vmem:[%s1 + $0x1fc8] sm:$0xff]
    %v1050 = vld [vmem:[%s1 + $0x1fd0] sm:$0xff]
    %v1051 = vld [vmem:[%s1 + $0x1fd8] sm:$0xff]
    %v1052 = vld [vmem:[%s1 + $0x1fe0] sm:$0xff]
    %v1053 = vld [vmem:[%s1 + $0x1fe8] sm:$0xff]
    %v1054 = vld [vmem:[%s1 + $0x1ff0] sm:$0xff]
    %v1055 = vld [vmem:[%s1 + $0x1ff8] sm:$0xff]
    %v1056 = vld [vmem:[%s2] sm:$0xf]
    %v1058 = vlaneseq
    %v1059 = vshrl.u32 %v1058, 7
    %v1060 = vsub.s32 0, %v1059
    %v1061 = vrot.slane %v1056, %v1060
    %v1062 = vlaneseq
    %v1063 = vshrl.u32 %v1062, 7
    %v1064 = vsub.s32 1, %v1063
    %v1065 = vrot.slane %v1056, %v1064
    %v1066 = vlaneseq
    %v1067 = vshrl.u32 %v1066, 7
    %v1068 = vsub.s32 2, %v1067
    %v1069 = vrot.slane %v1056, %v1068
    %v1070 = vlaneseq
    %v1071 = vshrl.u32 %v1070, 7
    %v1072 = vsub.s32 3, %v1071
    %v1073 = vrot.slane %v1056, %v1072
    %v1082 = vcombine.high %v28, %v28
    %v1084 = vunpack.c.l.s4 1966171168
    %v1085 = vunpack.c.0.s8 %v1084
    %v1086 = vlaneseq
    %v1087 = vshrl.u32 %v1086, 7
    %v1088 = vsub.s32 %v1085, %v1087
    %v1089 = vrot.slane %v28, %v1088
    %v1091 = vunpack.c.l.s4 1966171168
    %v1092 = vunpack.c.0.s8 %v1091
    %v1093 = vlaneseq
    %v1094 = vshrl.u32 %v1093, 7
    %v1095 = vsub.s32 %v1092, %v1094
    %v1096 = vrot.slane %v1082, %v1095
    %v1097 = vcombine.high %v1089, %v1089
    %v1098 = vcombine.high %v1096, %v1096
    %v1100 = vunpack.c.l.s4 1966171168
    %v1101 = vunpack.c.0.s8 %v1100
    %v1102 = vlaneseq
    %v1103 = vshrl.u32 %v1102, 7
    %v1104 = vsub.s32 %v1101, %v1103
    %v1105 = vrot.slane %v1089, %v1104
    %v1107 = vunpack.c.l.s4 1966171168
    %v1108 = vunpack.c.0.s8 %v1107
    %v1109 = vlaneseq
    %v1110 = vshrl.u32 %v1109, 7
    %v1111 = vsub.s32 %v1108, %v1110
    %v1112 = vrot.slane %v1096, %v1111
    %v1114 = vunpack.c.l.s4 1966171168
    %v1115 = vunpack.c.0.s8 %v1114
    %v1116 = vlaneseq
    %v1117 = vshrl.u32 %v1116, 7
    %v1118 = vsub.s32 %v1115, %v1117
    %v1119 = vrot.slane %v1097, %v1118
    %v1121 = vunpack.c.l.s4 1966171168
    %v1122 = vunpack.c.0.s8 %v1121
    %v1123 = vlaneseq
    %v1124 = vshrl.u32 %v1123, 7
    %v1125 = vsub.s32 %v1122, %v1124
    %v1126 = vrot.slane %v1098, %v1125
    %v1127 = vcombine.high %v1105, %v1105
    %v1128 = vcombine.high %v1112, %v1112
    %v1129 = vcombine.high %v1119, %v1119
    %v1130 = vcombine.high %v1126, %v1126
    %v1131 = vcombine.high %v29, %v29
    %v1133 = vunpack.c.l.s4 1966171168
    %v1134 = vunpack.c.0.s8 %v1133
    %v1135 = vlaneseq
    %v1136 = vshrl.u32 %v1135, 7
    %v1137 = vsub.s32 %v1134, %v1136
    %v1138 = vrot.slane %v29, %v1137
    %v1140 = vunpack.c.l.s4 1966171168
    %v1141 = vunpack.c.0.s8 %v1140
    %v1142 = vlaneseq
    %v1143 = vshrl.u32 %v1142, 7
    %v1144 = vsub.s32 %v1141, %v1143
    %v1145 = vrot.slane %v1131, %v1144
    %v1146 = vcombine.high %v1138, %v1138
    %v1147 = vcombine.high %v1145, %v1145
    %v1149 = vunpack.c.l.s4 1966171168
    %v1150 = vunpack.c.0.s8 %v1149
    %v1151 = vlaneseq
    %v1152 = vshrl.u32 %v1151, 7
    %v1153 = vsub.s32 %v1150, %v1152
    %v1154 = vrot.slane %v1138, %v1153
    %v1156 = vunpack.c.l.s4 1966171168
    %v1157 = vunpack.c.0.s8 %v1156
    %v1158 = vlaneseq
    %v1159 = vshrl.u32 %v1158, 7
    %v1160 = vsub.s32 %v1157, %v1159
    %v1161 = vrot.slane %v1145, %v1160
    %v1163 = vunpack.c.l.s4 1966171168
    %v1164 = vunpack.c.0.s8 %v1163
    %v1165 = vlaneseq
    %v1166 = vshrl.u32 %v1165, 7
    %v1167 = vsub.s32 %v1164, %v1166
    %v1168 = vrot.slane %v1146, %v1167
    %v1170 = vunpack.c.l.s4 1966171168
    %v1171 = vunpack.c.0.s8 %v1170
    %v1172 = vlaneseq
    %v1173 = vshrl.u32 %v1172, 7
    %v1174 = vsub.s32 %v1171, %v1173
    %v1175 = vrot.slane %v1147, %v1174
    %v1176 = vcombine.high %v1154, %v1154
    %v1177 = vcombine.high %v1161, %v1161
    %v1178 = vcombine.high %v1168, %v1168
    %v1179 = vcombine.high %v1175, %v1175
    %v1180 = vcombine.high %v30, %v30
    %v1182 = vunpack.c.l.s4 1966171168
    %v1183 = vunpack.c.0.s8 %v1182
    %v1184 = vlaneseq
    %v1185 = vshrl.u32 %v1184, 7
    %v1186 = vsub.s32 %v1183, %v1185
    %v1187 = vrot.slane %v30, %v1186
    %v1189 = vunpack.c.l.s4 1966171168
    %v1190 = vunpack.c.0.s8 %v1189
    %v1191 = vlaneseq
    %v1192 = vshrl.u32 %v1191, 7
    %v1193 = vsub.s32 %v1190, %v1192
    %v1194 = vrot.slane %v1180, %v1193
    %v1195 = vcombine.high %v1187, %v1187
    %v1196 = vcombine.high %v1194, %v1194
    %v1198 = vunpack.c.l.s4 1966171168
    %v1199 = vunpack.c.0.s8 %v1198
    %v1200 = vlaneseq
    %v1201 = vshrl.u32 %v1200, 7
    %v1202 = vsub.s32 %v1199, %v1201
    %v1203 = vrot.slane %v1187, %v1202
    %v1205 = vunpack.c.l.s4 1966171168
    %v1206 = vunpack.c.0.s8 %v1205
    %v1207 = vlaneseq
    %v1208 = vshrl.u32 %v1207, 7
    %v1209 = vsub.s32 %v1206, %v1208
    %v1210 = vrot.slane %v1194, %v1209
    %v1212 = vunpack.c.l.s4 1966171168
    %v1213 = vunpack.c.0.s8 %v1212
    %v1214 = vlaneseq
    %v1215 = vshrl.u32 %v1214, 7
    %v1216 = vsub.s32 %v1213, %v1215
    %v1217 = vrot.slane %v1195, %v1216
    %v1219 = vunpack.c.l.s4 1966171168
    %v1220 = vunpack.c.0.s8 %v1219
    %v1221 = vlaneseq
    %v1222 = vshrl.u32 %v1221, 7
    %v1223 = vsub.s32 %v1220, %v1222
    %v1224 = vrot.slane %v1196, %v1223
    %v1225 = vcombine.high %v1203, %v1203
    %v1226 = vcombine.high %v1210, %v1210
    %v1227 = vcombine.high %v1217, %v1217
    %v1228 = vcombine.high %v1224, %v1224
    %v1229 = vcombine.high %v31, %v31
    %v1231 = vunpack.c.l.s4 1966171168
    %v1232 = vunpack.c.0.s8 %v1231
    %v1233 = vlaneseq
    %v1234 = vshrl.u32 %v1233, 7
    %v1235 = vsub.s32 %v1232, %v1234
    %v1236 = vrot.slane %v31, %v1235
    %v1238 = vunpack.c.l.s4 1966171168
    %v1239 = vunpack.c.0.s8 %v1238
    %v1240 = vlaneseq
    %v1241 = vshrl.u32 %v1240, 7
    %v1242 = vsub.s32 %v1239, %v1241
    %v1243 = vrot.slane %v1229, %v1242
    %v1244 = vcombine.high %v1236, %v1236
    %v1245 = vcombine.high %v1243, %v1243
    %v1247 = vunpack.c.l.s4 1966171168
    %v1248 = vunpack.c.0.s8 %v1247
    %v1249 = vlaneseq
    %v1250 = vshrl.u32 %v1249, 7
    %v1251 = vsub.s32 %v1248, %v1250
    %v1252 = vrot.slane %v1236, %v1251
    %v1254 = vunpack.c.l.s4 1966171168
    %v1255 = vunpack.c.0.s8 %v1254
    %v1256 = vlaneseq
    %v1257 = vshrl.u32 %v1256, 7
    %v1258 = vsub.s32 %v1255, %v1257
    %v1259 = vrot.slane %v1243, %v1258
    %v1261 = vunpack.c.l.s4 1966171168
    %v1262 = vunpack.c.0.s8 %v1261
    %v1263 = vlaneseq
    %v1264 = vshrl.u32 %v1263, 7
    %v1265 = vsub.s32 %v1262, %v1264
    %v1266 = vrot.slane %v1244, %v1265
    %v1268 = vunpack.c.l.s4 1966171168
    %v1269 = vunpack.c.0.s8 %v1268
    %v1270 = vlaneseq
    %v1271 = vshrl.u32 %v1270, 7
    %v1272 = vsub.s32 %v1269, %v1271
    %v1273 = vrot.slane %v1245, %v1272
    %v1274 = vcombine.high %v1252, %v1252
    %v1275 = vcombine.high %v1259, %v1259
    %v1276 = vcombine.high %v1266, %v1266
    %v1277 = vcombine.high %v1273, %v1273
    %v2334 = vunpack.c.l.b16 %v32
    %v2335 = vunpack.c.h.b16 %v32
    %v2336 = vunpack.c.l.b16 %v33
    %v2337 = vunpack.c.h.b16 %v33
    %v2338 = vunpack.c.l.b16 %v34
    %v2339 = vunpack.c.h.b16 %v34
    %v2340 = vunpack.c.l.b16 %v35
    %v2341 = vunpack.c.h.b16 %v35
    %v2342 = vunpack.c.l.b16 %v36
    %v2343 = vunpack.c.h.b16 %v36
    %v2344 = vunpack.c.l.b16 %v37
    %v2345 = vunpack.c.h.b16 %v37
    %v2346 = vunpack.c.l.b16 %v38
    %v2347 = vunpack.c.h.b16 %v38
    %v2348 = vunpack.c.l.b16 %v39
    %v2349 = vunpack.c.h.b16 %v39
    %v2350 = vunpack.c.l.b16 %v40
    %v2351 = vunpack.c.h.b16 %v40
    %v2352 = vunpack.c.l.b16 %v41
    %v2353 = vunpack.c.h.b16 %v41
    %v2354 = vunpack.c.l.b16 %v42
    %v2355 = vunpack.c.h.b16 %v42
    %v2356 = vunpack.c.l.b16 %v43
    %v2357 = vunpack.c.h.b16 %v43
    %v2358 = vunpack.c.l.b16 %v44
    %v2359 = vunpack.c.h.b16 %v44
    %v2360 = vunpack.c.l.b16 %v45
    %v2361 = vunpack.c.h.b16 %v45
    %v2362 = vunpack.c.l.b16 %v46
    %v2363 = vunpack.c.h.b16 %v46
    %v2364 = vunpack.c.l.b16 %v47
    %v2365 = vunpack.c.h.b16 %v47
    %v2366 = vunpack.c.l.b16 %v48
    %v2367 = vunpack.c.h.b16 %v48
    %v2368 = vunpack.c.l.b16 %v49
    %v2369 = vunpack.c.h.b16 %v49
    %v2370 = vunpack.c.l.b16 %v50
    %v2371 = vunpack.c.h.b16 %v50
    %v2372 = vunpack.c.l.b16 %v51
    %v2373 = vunpack.c.h.b16 %v51
    %v2374 = vunpack.c.l.b16 %v52
    %v2375 = vunpack.c.h.b16 %v52
    %v2376 = vunpack.c.l.b16 %v53
    %v2377 = vunpack.c.h.b16 %v53
    %v2378 = vunpack.c.l.b16 %v54
    %v2379 = vunpack.c.h.b16 %v54
    %v2380 = vunpack.c.l.b16 %v55
    %v2381 = vunpack.c.h.b16 %v55
    %v2382 = vunpack.c.l.b16 %v56
    %v2383 = vunpack.c.h.b16 %v56
    %v2384 = vunpack.c.l.b16 %v57
    %v2385 = vunpack.c.h.b16 %v57
    %v2386 = vunpack.c.l.b16 %v58
    %v2387 = vunpack.c.h.b16 %v58
    %v2388 = vunpack.c.l.b16 %v59
    %v2389 = vunpack.c.h.b16 %v59
    %v2390 = vunpack.c.l.b16 %v60
    %v2391 = vunpack.c.h.b16 %v60
    %v2392 = vunpack.c.l.b16 %v61
    %v2393 = vunpack.c.h.b16 %v61
    %v2394 = vunpack.c.l.b16 %v62
    %v2395 = vunpack.c.h.b16 %v62
    %v2396 = vunpack.c.l.b16 %v63
    %v2397 = vunpack.c.h.b16 %v63
    %v2398 = vunpack.c.l.b16 %v64
    %v2399 = vunpack.c.h.b16 %v64
    %v2400 = vunpack.c.l.b16 %v65
    %v2401 = vunpack.c.h.b16 %v65
    %v2402 = vunpack.c.l.b16 %v66
    %v2403 = vunpack.c.h.b16 %v66
    %v2404 = vunpack.c.l.b16 %v67
    %v2405 = vunpack.c.h.b16 %v67
    %v2406 = vunpack.c.l.b16 %v68
    %v2407 = vunpack.c.h.b16 %v68
    %v2408 = vunpack.c.l.b16 %v69
    %v2409 = vunpack.c.h.b16 %v69
    %v2410 = vunpack.c.l.b16 %v70
    %v2411 = vunpack.c.h.b16 %v70
    %v2412 = vunpack.c.l.b16 %v71
    %v2413 = vunpack.c.h.b16 %v71
    %v2414 = vunpack.c.l.b16 %v72
    %v2415 = vunpack.c.h.b16 %v72
    %v2416 = vunpack.c.l.b16 %v73
    %v2417 = vunpack.c.h.b16 %v73
    %v2418 = vunpack.c.l.b16 %v74
    %v2419 = vunpack.c.h.b16 %v74
    %v2420 = vunpack.c.l.b16 %v75
    %v2421 = vunpack.c.h.b16 %v75
    %v2422 = vunpack.c.l.b16 %v76
    %v2423 = vunpack.c.h.b16 %v76
    %v2424 = vunpack.c.l.b16 %v77
    %v2425 = vunpack.c.h.b16 %v77
    %v2426 = vunpack.c.l.b16 %v78
    %v2427 = vunpack.c.h.b16 %v78
    %v2428 = vunpack.c.l.b16 %v79
    %v2429 = vunpack.c.h.b16 %v79
    %v2430 = vunpack.c.l.b16 %v80
    %v2431 = vunpack.c.h.b16 %v80
    %v2432 = vunpack.c.l.b16 %v81
    %v2433 = vunpack.c.h.b16 %v81
    %v2434 = vunpack.c.l.b16 %v82
    %v2435 = vunpack.c.h.b16 %v82
    %v2436 = vunpack.c.l.b16 %v83
    %v2437 = vunpack.c.h.b16 %v83
    %v2438 = vunpack.c.l.b16 %v84
    %v2439 = vunpack.c.h.b16 %v84
    %v2440 = vunpack.c.l.b16 %v85
    %v2441 = vunpack.c.h.b16 %v85
    %v2442 = vunpack.c.l.b16 %v86
    %v2443 = vunpack.c.h.b16 %v86
    %v2444 = vunpack.c.l.b16 %v87
    %v2445 = vunpack.c.h.b16 %v87
    %v2446 = vunpack.c.l.b16 %v88
    %v2447 = vunpack.c.h.b16 %v88
    %v2448 = vunpack.c.l.b16 %v89
    %v2449 = vunpack.c.h.b16 %v89
    %v2450 = vunpack.c.l.b16 %v90
    %v2451 = vunpack.c.h.b16 %v90
    %v2452 = vunpack.c.l.b16 %v91
    %v2453 = vunpack.c.h.b16 %v91
    %v2454 = vunpack.c.l.b16 %v92
    %v2455 = vunpack.c.h.b16 %v92
    %v2456 = vunpack.c.l.b16 %v93
    %v2457 = vunpack.c.h.b16 %v93
    %v2458 = vunpack.c.l.b16 %v94
    %v2459 = vunpack.c.h.b16 %v94
    %v2460 = vunpack.c.l.b16 %v95
    %v2461 = vunpack.c.h.b16 %v95
    %v2462 = vunpack.c.l.b16 %v96
    %v2463 = vunpack.c.h.b16 %v96
    %v2464 = vunpack.c.l.b16 %v97
    %v2465 = vunpack.c.h.b16 %v97
    %v2466 = vunpack.c.l.b16 %v98
    %v2467 = vunpack.c.h.b16 %v98
    %v2468 = vunpack.c.l.b16 %v99
    %v2469 = vunpack.c.h.b16 %v99
    %v2470 = vunpack.c.l.b16 %v100
    %v2471 = vunpack.c.h.b16 %v100
    %v2472 = vunpack.c.l.b16 %v101
    %v2473 = vunpack.c.h.b16 %v101
    %v2474 = vunpack.c.l.b16 %v102
    %v2475 = vunpack.c.h.b16 %v102
    %v2476 = vunpack.c.l.b16 %v103
    %v2477 = vunpack.c.h.b16 %v103
    %v2478 = vunpack.c.l.b16 %v104
    %v2479 = vunpack.c.h.b16 %v104
    %v2480 = vunpack.c.l.b16 %v105
    %v2481 = vunpack.c.h.b16 %v105
    %v2482 = vunpack.c.l.b16 %v106
    %v2483 = vunpack.c.h.b16 %v106
    %v2484 = vunpack.c.l.b16 %v107
    %v2485 = vunpack.c.h.b16 %v107
    %v2486 = vunpack.c.l.b16 %v108
    %v2487 = vunpack.c.h.b16 %v108
    %v2488 = vunpack.c.l.b16 %v109
    %v2489 = vunpack.c.h.b16 %v109
    %v2490 = vunpack.c.l.b16 %v110
    %v2491 = vunpack.c.h.b16 %v110
    %v2492 = vunpack.c.l.b16 %v111
    %v2493 = vunpack.c.h.b16 %v111
    %v2494 = vunpack.c.l.b16 %v112
    %v2495 = vunpack.c.h.b16 %v112
    %v2496 = vunpack.c.l.b16 %v113
    %v2497 = vunpack.c.h.b16 %v113
    %v2498 = vunpack.c.l.b16 %v114
    %v2499 = vunpack.c.h.b16 %v114
    %v2500 = vunpack.c.l.b16 %v115
    %v2501 = vunpack.c.h.b16 %v115
    %v2502 = vunpack.c.l.b16 %v116
    %v2503 = vunpack.c.h.b16 %v116
    %v2504 = vunpack.c.l.b16 %v117
    %v2505 = vunpack.c.h.b16 %v117
    %v2506 = vunpack.c.l.b16 %v118
    %v2507 = vunpack.c.h.b16 %v118
    %v2508 = vunpack.c.l.b16 %v119
    %v2509 = vunpack.c.h.b16 %v119
    %v2510 = vunpack.c.l.b16 %v120
    %v2511 = vunpack.c.h.b16 %v120
    %v2512 = vunpack.c.l.b16 %v121
    %v2513 = vunpack.c.h.b16 %v121
    %v2514 = vunpack.c.l.b16 %v122
    %v2515 = vunpack.c.h.b16 %v122
    %v2516 = vunpack.c.l.b16 %v123
    %v2517 = vunpack.c.h.b16 %v123
    %v2518 = vunpack.c.l.b16 %v124
    %v2519 = vunpack.c.h.b16 %v124
    %v2520 = vunpack.c.l.b16 %v125
    %v2521 = vunpack.c.h.b16 %v125
    %v2522 = vunpack.c.l.b16 %v126
    %v2523 = vunpack.c.h.b16 %v126
    %v2524 = vunpack.c.l.b16 %v127
    %v2525 = vunpack.c.h.b16 %v127
    %v2526 = vunpack.c.l.b16 %v128
    %v2527 = vunpack.c.h.b16 %v128
    %v2528 = vunpack.c.l.b16 %v129
    %v2529 = vunpack.c.h.b16 %v129
    %v2530 = vunpack.c.l.b16 %v130
    %v2531 = vunpack.c.h.b16 %v130
    %v2532 = vunpack.c.l.b16 %v131
    %v2533 = vunpack.c.h.b16 %v131
    %v2534 = vunpack.c.l.b16 %v132
    %v2535 = vunpack.c.h.b16 %v132
    %v2536 = vunpack.c.l.b16 %v133
    %v2537 = vunpack.c.h.b16 %v133
    %v2538 = vunpack.c.l.b16 %v134
    %v2539 = vunpack.c.h.b16 %v134
    %v2540 = vunpack.c.l.b16 %v135
    %v2541 = vunpack.c.h.b16 %v135
    %v2542 = vunpack.c.l.b16 %v136
    %v2543 = vunpack.c.h.b16 %v136
    %v2544 = vunpack.c.l.b16 %v137
    %v2545 = vunpack.c.h.b16 %v137
    %v2546 = vunpack.c.l.b16 %v138
    %v2547 = vunpack.c.h.b16 %v138
    %v2548 = vunpack.c.l.b16 %v139
    %v2549 = vunpack.c.h.b16 %v139
    %v2550 = vunpack.c.l.b16 %v140
    %v2551 = vunpack.c.h.b16 %v140
    %v2552 = vunpack.c.l.b16 %v141
    %v2553 = vunpack.c.h.b16 %v141
    %v2554 = vunpack.c.l.b16 %v142
    %v2555 = vunpack.c.h.b16 %v142
    %v2556 = vunpack.c.l.b16 %v143
    %v2557 = vunpack.c.h.b16 %v143
    %v2558 = vunpack.c.l.b16 %v144
    %v2559 = vunpack.c.h.b16 %v144
    %v2560 = vunpack.c.l.b16 %v145
    %v2561 = vunpack.c.h.b16 %v145
    %v2562 = vunpack.c.l.b16 %v146
    %v2563 = vunpack.c.h.b16 %v146
    %v2564 = vunpack.c.l.b16 %v147
    %v2565 = vunpack.c.h.b16 %v147
    %v2566 = vunpack.c.l.b16 %v148
    %v2567 = vunpack.c.h.b16 %v148
    %v2568 = vunpack.c.l.b16 %v149
    %v2569 = vunpack.c.h.b16 %v149
    %v2570 = vunpack.c.l.b16 %v150
    %v2571 = vunpack.c.h.b16 %v150
    %v2572 = vunpack.c.l.b16 %v151
    %v2573 = vunpack.c.h.b16 %v151
    %v2574 = vunpack.c.l.b16 %v152
    %v2575 = vunpack.c.h.b16 %v152
    %v2576 = vunpack.c.l.b16 %v153
    %v2577 = vunpack.c.h.b16 %v153
    %v2578 = vunpack.c.l.b16 %v154
    %v2579 = vunpack.c.h.b16 %v154
    %v2580 = vunpack.c.l.b16 %v155
    %v2581 = vunpack.c.h.b16 %v155
    %v2582 = vunpack.c.l.b16 %v156
    %v2583 = vunpack.c.h.b16 %v156
    %v2584 = vunpack.c.l.b16 %v157
    %v2585 = vunpack.c.h.b16 %v157
    %v2586 = vunpack.c.l.b16 %v158
    %v2587 = vunpack.c.h.b16 %v158
    %v2588 = vunpack.c.l.b16 %v159
    %v2589 = vunpack.c.h.b16 %v159
    %v2590 = vunpack.c.l.b16 %v160
    %v2591 = vunpack.c.h.b16 %v160
    %v2592 = vunpack.c.l.b16 %v161
    %v2593 = vunpack.c.h.b16 %v161
    %v2594 = vunpack.c.l.b16 %v162
    %v2595 = vunpack.c.h.b16 %v162
    %v2596 = vunpack.c.l.b16 %v163
    %v2597 = vunpack.c.h.b16 %v163
    %v2598 = vunpack.c.l.b16 %v164
    %v2599 = vunpack.c.h.b16 %v164
    %v2600 = vunpack.c.l.b16 %v165
    %v2601 = vunpack.c.h.b16 %v165
    %v2602 = vunpack.c.l.b16 %v166
    %v2603 = vunpack.c.h.b16 %v166
    %v2604 = vunpack.c.l.b16 %v167
    %v2605 = vunpack.c.h.b16 %v167
    %v2606 = vunpack.c.l.b16 %v168
    %v2607 = vunpack.c.h.b16 %v168
    %v2608 = vunpack.c.l.b16 %v169
    %v2609 = vunpack.c.h.b16 %v169
    %v2610 = vunpack.c.l.b16 %v170
    %v2611 = vunpack.c.h.b16 %v170
    %v2612 = vunpack.c.l.b16 %v171
    %v2613 = vunpack.c.h.b16 %v171
    %v2614 = vunpack.c.l.b16 %v172
    %v2615 = vunpack.c.h.b16 %v172
    %v2616 = vunpack.c.l.b16 %v173
    %v2617 = vunpack.c.h.b16 %v173
    %v2618 = vunpack.c.l.b16 %v174
    %v2619 = vunpack.c.h.b16 %v174
    %v2620 = vunpack.c.l.b16 %v175
    %v2621 = vunpack.c.h.b16 %v175
    %v2622 = vunpack.c.l.b16 %v176
    %v2623 = vunpack.c.h.b16 %v176
    %v2624 = vunpack.c.l.b16 %v177
    %v2625 = vunpack.c.h.b16 %v177
    %v2626 = vunpack.c.l.b16 %v178
    %v2627 = vunpack.c.h.b16 %v178
    %v2628 = vunpack.c.l.b16 %v179
    %v2629 = vunpack.c.h.b16 %v179
    %v2630 = vunpack.c.l.b16 %v180
    %v2631 = vunpack.c.h.b16 %v180
    %v2632 = vunpack.c.l.b16 %v181
    %v2633 = vunpack.c.h.b16 %v181
    %v2634 = vunpack.c.l.b16 %v182
    %v2635 = vunpack.c.h.b16 %v182
    %v2636 = vunpack.c.l.b16 %v183
    %v2637 = vunpack.c.h.b16 %v183
    %v2638 = vunpack.c.l.b16 %v184
    %v2639 = vunpack.c.h.b16 %v184
    %v2640 = vunpack.c.l.b16 %v185
    %v2641 = vunpack.c.h.b16 %v185
    %v2642 = vunpack.c.l.b16 %v186
    %v2643 = vunpack.c.h.b16 %v186
    %v2644 = vunpack.c.l.b16 %v187
    %v2645 = vunpack.c.h.b16 %v187
    %v2646 = vunpack.c.l.b16 %v188
    %v2647 = vunpack.c.h.b16 %v188
    %v2648 = vunpack.c.l.b16 %v189
    %v2649 = vunpack.c.h.b16 %v189
    %v2650 = vunpack.c.l.b16 %v190
    %v2651 = vunpack.c.h.b16 %v190
    %v2652 = vunpack.c.l.b16 %v191
    %v2653 = vunpack.c.h.b16 %v191
    %v2654 = vunpack.c.l.b16 %v192
    %v2655 = vunpack.c.h.b16 %v192
    %v2656 = vunpack.c.l.b16 %v193
    %v2657 = vunpack.c.h.b16 %v193
    %v2658 = vunpack.c.l.b16 %v194
    %v2659 = vunpack.c.h.b16 %v194
    %v2660 = vunpack.c.l.b16 %v195
    %v2661 = vunpack.c.h.b16 %v195
    %v2662 = vunpack.c.l.b16 %v196
    %v2663 = vunpack.c.h.b16 %v196
    %v2664 = vunpack.c.l.b16 %v197
    %v2665 = vunpack.c.h.b16 %v197
    %v2666 = vunpack.c.l.b16 %v198
    %v2667 = vunpack.c.h.b16 %v198
    %v2668 = vunpack.c.l.b16 %v199
    %v2669 = vunpack.c.h.b16 %v199
    %v2670 = vunpack.c.l.b16 %v200
    %v2671 = vunpack.c.h.b16 %v200
    %v2672 = vunpack.c.l.b16 %v201
    %v2673 = vunpack.c.h.b16 %v201
    %v2674 = vunpack.c.l.b16 %v202
    %v2675 = vunpack.c.h.b16 %v202
    %v2676 = vunpack.c.l.b16 %v203
    %v2677 = vunpack.c.h.b16 %v203
    %v2678 = vunpack.c.l.b16 %v204
    %v2679 = vunpack.c.h.b16 %v204
    %v2680 = vunpack.c.l.b16 %v205
    %v2681 = vunpack.c.h.b16 %v205
    %v2682 = vunpack.c.l.b16 %v206
    %v2683 = vunpack.c.h.b16 %v206
    %v2684 = vunpack.c.l.b16 %v207
    %v2685 = vunpack.c.h.b16 %v207
    %v2686 = vunpack.c.l.b16 %v208
    %v2687 = vunpack.c.h.b16 %v208
    %v2688 = vunpack.c.l.b16 %v209
    %v2689 = vunpack.c.h.b16 %v209
    %v2690 = vunpack.c.l.b16 %v210
    %v2691 = vunpack.c.h.b16 %v210
    %v2692 = vunpack.c.l.b16 %v211
    %v2693 = vunpack.c.h.b16 %v211
    %v2694 = vunpack.c.l.b16 %v212
    %v2695 = vunpack.c.h.b16 %v212
    %v2696 = vunpack.c.l.b16 %v213
    %v2697 = vunpack.c.h.b16 %v213
    %v2698 = vunpack.c.l.b16 %v214
    %v2699 = vunpack.c.h.b16 %v214
    %v2700 = vunpack.c.l.b16 %v215
    %v2701 = vunpack.c.h.b16 %v215
    %v2702 = vunpack.c.l.b16 %v216
    %v2703 = vunpack.c.h.b16 %v216
    %v2704 = vunpack.c.l.b16 %v217
    %v2705 = vunpack.c.h.b16 %v217
    %v2706 = vunpack.c.l.b16 %v218
    %v2707 = vunpack.c.h.b16 %v218
    %v2708 = vunpack.c.l.b16 %v219
    %v2709 = vunpack.c.h.b16 %v219
    %v2710 = vunpack.c.l.b16 %v220
    %v2711 = vunpack.c.h.b16 %v220
    %v2712 = vunpack.c.l.b16 %v221
    %v2713 = vunpack.c.h.b16 %v221
    %v2714 = vunpack.c.l.b16 %v222
    %v2715 = vunpack.c.h.b16 %v222
    %v2716 = vunpack.c.l.b16 %v223
    %v2717 = vunpack.c.h.b16 %v223
    %v2718 = vunpack.c.l.b16 %v224
    %v2719 = vunpack.c.h.b16 %v224
    %v2720 = vunpack.c.l.b16 %v225
    %v2721 = vunpack.c.h.b16 %v225
    %v2722 = vunpack.c.l.b16 %v226
    %v2723 = vunpack.c.h.b16 %v226
    %v2724 = vunpack.c.l.b16 %v227
    %v2725 = vunpack.c.h.b16 %v227
    %v2726 = vunpack.c.l.b16 %v228
    %v2727 = vunpack.c.h.b16 %v228
    %v2728 = vunpack.c.l.b16 %v229
    %v2729 = vunpack.c.h.b16 %v229
    %v2730 = vunpack.c.l.b16 %v230
    %v2731 = vunpack.c.h.b16 %v230
    %v2732 = vunpack.c.l.b16 %v231
    %v2733 = vunpack.c.h.b16 %v231
    %v2734 = vunpack.c.l.b16 %v232
    %v2735 = vunpack.c.h.b16 %v232
    %v2736 = vunpack.c.l.b16 %v233
    %v2737 = vunpack.c.h.b16 %v233
    %v2738 = vunpack.c.l.b16 %v234
    %v2739 = vunpack.c.h.b16 %v234
    %v2740 = vunpack.c.l.b16 %v235
    %v2741 = vunpack.c.h.b16 %v235
    %v2742 = vunpack.c.l.b16 %v236
    %v2743 = vunpack.c.h.b16 %v236
    %v2744 = vunpack.c.l.b16 %v237
    %v2745 = vunpack.c.h.b16 %v237
    %v2746 = vunpack.c.l.b16 %v238
    %v2747 = vunpack.c.h.b16 %v238
    %v2748 = vunpack.c.l.b16 %v239
    %v2749 = vunpack.c.h.b16 %v239
    %v2750 = vunpack.c.l.b16 %v240
    %v2751 = vunpack.c.h.b16 %v240
    %v2752 = vunpack.c.l.b16 %v241
    %v2753 = vunpack.c.h.b16 %v241
    %v2754 = vunpack.c.l.b16 %v242
    %v2755 = vunpack.c.h.b16 %v242
    %v2756 = vunpack.c.l.b16 %v243
    %v2757 = vunpack.c.h.b16 %v243
    %v2758 = vunpack.c.l.b16 %v244
    %v2759 = vunpack.c.h.b16 %v244
    %v2760 = vunpack.c.l.b16 %v245
    %v2761 = vunpack.c.h.b16 %v245
    %v2762 = vunpack.c.l.b16 %v246
    %v2763 = vunpack.c.h.b16 %v246
    %v2764 = vunpack.c.l.b16 %v247
    %v2765 = vunpack.c.h.b16 %v247
    %v2766 = vunpack.c.l.b16 %v248
    %v2767 = vunpack.c.h.b16 %v248
    %v2768 = vunpack.c.l.b16 %v249
    %v2769 = vunpack.c.h.b16 %v249
    %v2770 = vunpack.c.l.b16 %v250
    %v2771 = vunpack.c.h.b16 %v250
    %v2772 = vunpack.c.l.b16 %v251
    %v2773 = vunpack.c.h.b16 %v251
    %v2774 = vunpack.c.l.b16 %v252
    %v2775 = vunpack.c.h.b16 %v252
    %v2776 = vunpack.c.l.b16 %v253
    %v2777 = vunpack.c.h.b16 %v253
    %v2778 = vunpack.c.l.b16 %v254
    %v2779 = vunpack.c.h.b16 %v254
    %v2780 = vunpack.c.l.b16 %v255
    %v2781 = vunpack.c.h.b16 %v255
    %v2782 = vunpack.c.l.b16 %v256
    %v2783 = vunpack.c.h.b16 %v256
    %v2784 = vunpack.c.l.b16 %v257
    %v2785 = vunpack.c.h.b16 %v257
    %v2786 = vunpack.c.l.b16 %v258
    %v2787 = vunpack.c.h.b16 %v258
    %v2788 = vunpack.c.l.b16 %v259
    %v2789 = vunpack.c.h.b16 %v259
    %v2790 = vunpack.c.l.b16 %v260
    %v2791 = vunpack.c.h.b16 %v260
    %v2792 = vunpack.c.l.b16 %v261
    %v2793 = vunpack.c.h.b16 %v261
    %v2794 = vunpack.c.l.b16 %v262
    %v2795 = vunpack.c.h.b16 %v262
    %v2796 = vunpack.c.l.b16 %v263
    %v2797 = vunpack.c.h.b16 %v263
    %v2798 = vunpack.c.l.b16 %v264
    %v2799 = vunpack.c.h.b16 %v264
    %v2800 = vunpack.c.l.b16 %v265
    %v2801 = vunpack.c.h.b16 %v265
    %v2802 = vunpack.c.l.b16 %v266
    %v2803 = vunpack.c.h.b16 %v266
    %v2804 = vunpack.c.l.b16 %v267
    %v2805 = vunpack.c.h.b16 %v267
    %v2806 = vunpack.c.l.b16 %v268
    %v2807 = vunpack.c.h.b16 %v268
    %v2808 = vunpack.c.l.b16 %v269
    %v2809 = vunpack.c.h.b16 %v269
    %v2810 = vunpack.c.l.b16 %v270
    %v2811 = vunpack.c.h.b16 %v270
    %v2812 = vunpack.c.l.b16 %v271
    %v2813 = vunpack.c.h.b16 %v271
    %v2814 = vunpack.c.l.b16 %v272
    %v2815 = vunpack.c.h.b16 %v272
    %v2816 = vunpack.c.l.b16 %v273
    %v2817 = vunpack.c.h.b16 %v273
    %v2818 = vunpack.c.l.b16 %v274
    %v2819 = vunpack.c.h.b16 %v274
    %v2820 = vunpack.c.l.b16 %v275
    %v2821 = vunpack.c.h.b16 %v275
    %v2822 = vunpack.c.l.b16 %v276
    %v2823 = vunpack.c.h.b16 %v276
    %v2824 = vunpack.c.l.b16 %v277
    %v2825 = vunpack.c.h.b16 %v277
    %v2826 = vunpack.c.l.b16 %v278
    %v2827 = vunpack.c.h.b16 %v278
    %v2828 = vunpack.c.l.b16 %v279
    %v2829 = vunpack.c.h.b16 %v279
    %v2830 = vunpack.c.l.b16 %v280
    %v2831 = vunpack.c.h.b16 %v280
    %v2832 = vunpack.c.l.b16 %v281
    %v2833 = vunpack.c.h.b16 %v281
    %v2834 = vunpack.c.l.b16 %v282
    %v2835 = vunpack.c.h.b16 %v282
    %v2836 = vunpack.c.l.b16 %v283
    %v2837 = vunpack.c.h.b16 %v283
    %v2838 = vunpack.c.l.b16 %v284
    %v2839 = vunpack.c.h.b16 %v284
    %v2840 = vunpack.c.l.b16 %v285
    %v2841 = vunpack.c.h.b16 %v285
    %v2842 = vunpack.c.l.b16 %v286
    %v2843 = vunpack.c.h.b16 %v286
    %v2844 = vunpack.c.l.b16 %v287
    %v2845 = vunpack.c.h.b16 %v287
    %v2846 = vunpack.c.l.b16 %v288
    %v2847 = vunpack.c.h.b16 %v288
    %v2848 = vunpack.c.l.b16 %v289
    %v2849 = vunpack.c.h.b16 %v289
    %v2850 = vunpack.c.l.b16 %v290
    %v2851 = vunpack.c.h.b16 %v290
    %v2852 = vunpack.c.l.b16 %v291
    %v2853 = vunpack.c.h.b16 %v291
    %v2854 = vunpack.c.l.b16 %v292
    %v2855 = vunpack.c.h.b16 %v292
    %v2856 = vunpack.c.l.b16 %v293
    %v2857 = vunpack.c.h.b16 %v293
    %v2858 = vunpack.c.l.b16 %v294
    %v2859 = vunpack.c.h.b16 %v294
    %v2860 = vunpack.c.l.b16 %v295
    %v2861 = vunpack.c.h.b16 %v295
    %v2862 = vunpack.c.l.b16 %v296
    %v2863 = vunpack.c.h.b16 %v296
    %v2864 = vunpack.c.l.b16 %v297
    %v2865 = vunpack.c.h.b16 %v297
    %v2866 = vunpack.c.l.b16 %v298
    %v2867 = vunpack.c.h.b16 %v298
    %v2868 = vunpack.c.l.b16 %v299
    %v2869 = vunpack.c.h.b16 %v299
    %v2870 = vunpack.c.l.b16 %v300
    %v2871 = vunpack.c.h.b16 %v300
    %v2872 = vunpack.c.l.b16 %v301
    %v2873 = vunpack.c.h.b16 %v301
    %v2874 = vunpack.c.l.b16 %v302
    %v2875 = vunpack.c.h.b16 %v302
    %v2876 = vunpack.c.l.b16 %v303
    %v2877 = vunpack.c.h.b16 %v303
    %v2878 = vunpack.c.l.b16 %v304
    %v2879 = vunpack.c.h.b16 %v304
    %v2880 = vunpack.c.l.b16 %v305
    %v2881 = vunpack.c.h.b16 %v305
    %v2882 = vunpack.c.l.b16 %v306
    %v2883 = vunpack.c.h.b16 %v306
    %v2884 = vunpack.c.l.b16 %v307
    %v2885 = vunpack.c.h.b16 %v307
    %v2886 = vunpack.c.l.b16 %v308
    %v2887 = vunpack.c.h.b16 %v308
    %v2888 = vunpack.c.l.b16 %v309
    %v2889 = vunpack.c.h.b16 %v309
    %v2890 = vunpack.c.l.b16 %v310
    %v2891 = vunpack.c.h.b16 %v310
    %v2892 = vunpack.c.l.b16 %v311
    %v2893 = vunpack.c.h.b16 %v311
    %v2894 = vunpack.c.l.b16 %v312
    %v2895 = vunpack.c.h.b16 %v312
    %v2896 = vunpack.c.l.b16 %v313
    %v2897 = vunpack.c.h.b16 %v313
    %v2898 = vunpack.c.l.b16 %v314
    %v2899 = vunpack.c.h.b16 %v314
    %v2900 = vunpack.c.l.b16 %v315
    %v2901 = vunpack.c.h.b16 %v315
    %v2902 = vunpack.c.l.b16 %v316
    %v2903 = vunpack.c.h.b16 %v316
    %v2904 = vunpack.c.l.b16 %v317
    %v2905 = vunpack.c.h.b16 %v317
    %v2906 = vunpack.c.l.b16 %v318
    %v2907 = vunpack.c.h.b16 %v318
    %v2908 = vunpack.c.l.b16 %v319
    %v2909 = vunpack.c.h.b16 %v319
    %v2910 = vunpack.c.l.b16 %v320
    %v2911 = vunpack.c.h.b16 %v320
    %v2912 = vunpack.c.l.b16 %v321
    %v2913 = vunpack.c.h.b16 %v321
    %v2914 = vunpack.c.l.b16 %v322
    %v2915 = vunpack.c.h.b16 %v322
    %v2916 = vunpack.c.l.b16 %v323
    %v2917 = vunpack.c.h.b16 %v323
    %v2918 = vunpack.c.l.b16 %v324
    %v2919 = vunpack.c.h.b16 %v324
    %v2920 = vunpack.c.l.b16 %v325
    %v2921 = vunpack.c.h.b16 %v325
    %v2922 = vunpack.c.l.b16 %v326
    %v2923 = vunpack.c.h.b16 %v326
    %v2924 = vunpack.c.l.b16 %v327
    %v2925 = vunpack.c.h.b16 %v327
    %v2926 = vunpack.c.l.b16 %v328
    %v2927 = vunpack.c.h.b16 %v328
    %v2928 = vunpack.c.l.b16 %v329
    %v2929 = vunpack.c.h.b16 %v329
    %v2930 = vunpack.c.l.b16 %v330
    %v2931 = vunpack.c.h.b16 %v330
    %v2932 = vunpack.c.l.b16 %v331
    %v2933 = vunpack.c.h.b16 %v331
    %v2934 = vunpack.c.l.b16 %v332
    %v2935 = vunpack.c.h.b16 %v332
    %v2936 = vunpack.c.l.b16 %v333
    %v2937 = vunpack.c.h.b16 %v333
    %v2938 = vunpack.c.l.b16 %v334
    %v2939 = vunpack.c.h.b16 %v334
    %v2940 = vunpack.c.l.b16 %v335
    %v2941 = vunpack.c.h.b16 %v335
    %v2942 = vunpack.c.l.b16 %v336
    %v2943 = vunpack.c.h.b16 %v336
    %v2944 = vunpack.c.l.b16 %v337
    %v2945 = vunpack.c.h.b16 %v337
    %v2946 = vunpack.c.l.b16 %v338
    %v2947 = vunpack.c.h.b16 %v338
    %v2948 = vunpack.c.l.b16 %v339
    %v2949 = vunpack.c.h.b16 %v339
    %v2950 = vunpack.c.l.b16 %v340
    %v2951 = vunpack.c.h.b16 %v340
    %v2952 = vunpack.c.l.b16 %v341
    %v2953 = vunpack.c.h.b16 %v341
    %v2954 = vunpack.c.l.b16 %v342
    %v2955 = vunpack.c.h.b16 %v342
    %v2956 = vunpack.c.l.b16 %v343
    %v2957 = vunpack.c.h.b16 %v343
    %v2958 = vunpack.c.l.b16 %v344
    %v2959 = vunpack.c.h.b16 %v344
    %v2960 = vunpack.c.l.b16 %v345
    %v2961 = vunpack.c.h.b16 %v345
    %v2962 = vunpack.c.l.b16 %v346
    %v2963 = vunpack.c.h.b16 %v346
    %v2964 = vunpack.c.l.b16 %v347
    %v2965 = vunpack.c.h.b16 %v347
    %v2966 = vunpack.c.l.b16 %v348
    %v2967 = vunpack.c.h.b16 %v348
    %v2968 = vunpack.c.l.b16 %v349
    %v2969 = vunpack.c.h.b16 %v349
    %v2970 = vunpack.c.l.b16 %v350
    %v2971 = vunpack.c.h.b16 %v350
    %v2972 = vunpack.c.l.b16 %v351
    %v2973 = vunpack.c.h.b16 %v351
    %v2974 = vunpack.c.l.b16 %v352
    %v2975 = vunpack.c.h.b16 %v352
    %v2976 = vunpack.c.l.b16 %v353
    %v2977 = vunpack.c.h.b16 %v353
    %v2978 = vunpack.c.l.b16 %v354
    %v2979 = vunpack.c.h.b16 %v354
    %v2980 = vunpack.c.l.b16 %v355
    %v2981 = vunpack.c.h.b16 %v355
    %v2982 = vunpack.c.l.b16 %v356
    %v2983 = vunpack.c.h.b16 %v356
    %v2984 = vunpack.c.l.b16 %v357
    %v2985 = vunpack.c.h.b16 %v357
    %v2986 = vunpack.c.l.b16 %v358
    %v2987 = vunpack.c.h.b16 %v358
    %v2988 = vunpack.c.l.b16 %v359
    %v2989 = vunpack.c.h.b16 %v359
    %v2990 = vunpack.c.l.b16 %v360
    %v2991 = vunpack.c.h.b16 %v360
    %v2992 = vunpack.c.l.b16 %v361
    %v2993 = vunpack.c.h.b16 %v361
    %v2994 = vunpack.c.l.b16 %v362
    %v2995 = vunpack.c.h.b16 %v362
    %v2996 = vunpack.c.l.b16 %v363
    %v2997 = vunpack.c.h.b16 %v363
    %v2998 = vunpack.c.l.b16 %v364
    %v2999 = vunpack.c.h.b16 %v364
    %v3000 = vunpack.c.l.b16 %v365
    %v3001 = vunpack.c.h.b16 %v365
    %v3002 = vunpack.c.l.b16 %v366
    %v3003 = vunpack.c.h.b16 %v366
    %v3004 = vunpack.c.l.b16 %v367
    %v3005 = vunpack.c.h.b16 %v367
    %v3006 = vunpack.c.l.b16 %v368
    %v3007 = vunpack.c.h.b16 %v368
    %v3008 = vunpack.c.l.b16 %v369
    %v3009 = vunpack.c.h.b16 %v369
    %v3010 = vunpack.c.l.b16 %v370
    %v3011 = vunpack.c.h.b16 %v370
    %v3012 = vunpack.c.l.b16 %v371
    %v3013 = vunpack.c.h.b16 %v371
    %v3014 = vunpack.c.l.b16 %v372
    %v3015 = vunpack.c.h.b16 %v372
    %v3016 = vunpack.c.l.b16 %v373
    %v3017 = vunpack.c.h.b16 %v373
    %v3018 = vunpack.c.l.b16 %v374
    %v3019 = vunpack.c.h.b16 %v374
    %v3020 = vunpack.c.l.b16 %v375
    %v3021 = vunpack.c.h.b16 %v375
    %v3022 = vunpack.c.l.b16 %v376
    %v3023 = vunpack.c.h.b16 %v376
    %v3024 = vunpack.c.l.b16 %v377
    %v3025 = vunpack.c.h.b16 %v377
    %v3026 = vunpack.c.l.b16 %v378
    %v3027 = vunpack.c.h.b16 %v378
    %v3028 = vunpack.c.l.b16 %v379
    %v3029 = vunpack.c.h.b16 %v379
    %v3030 = vunpack.c.l.b16 %v380
    %v3031 = vunpack.c.h.b16 %v380
    %v3032 = vunpack.c.l.b16 %v381
    %v3033 = vunpack.c.h.b16 %v381
    %v3034 = vunpack.c.l.b16 %v382
    %v3035 = vunpack.c.h.b16 %v382
    %v3036 = vunpack.c.l.b16 %v383
    %v3037 = vunpack.c.h.b16 %v383
    %v3038 = vunpack.c.l.b16 %v384
    %v3039 = vunpack.c.h.b16 %v384
    %v3040 = vunpack.c.l.b16 %v385
    %v3041 = vunpack.c.h.b16 %v385
    %v3042 = vunpack.c.l.b16 %v386
    %v3043 = vunpack.c.h.b16 %v386
    %v3044 = vunpack.c.l.b16 %v387
    %v3045 = vunpack.c.h.b16 %v387
    %v3046 = vunpack.c.l.b16 %v388
    %v3047 = vunpack.c.h.b16 %v388
    %v3048 = vunpack.c.l.b16 %v389
    %v3049 = vunpack.c.h.b16 %v389
    %v3050 = vunpack.c.l.b16 %v390
    %v3051 = vunpack.c.h.b16 %v390
    %v3052 = vunpack.c.l.b16 %v391
    %v3053 = vunpack.c.h.b16 %v391
    %v3054 = vunpack.c.l.b16 %v392
    %v3055 = vunpack.c.h.b16 %v392
    %v3056 = vunpack.c.l.b16 %v393
    %v3057 = vunpack.c.h.b16 %v393
    %v3058 = vunpack.c.l.b16 %v394
    %v3059 = vunpack.c.h.b16 %v394
    %v3060 = vunpack.c.l.b16 %v395
    %v3061 = vunpack.c.h.b16 %v395
    %v3062 = vunpack.c.l.b16 %v396
    %v3063 = vunpack.c.h.b16 %v396
    %v3064 = vunpack.c.l.b16 %v397
    %v3065 = vunpack.c.h.b16 %v397
    %v3066 = vunpack.c.l.b16 %v398
    %v3067 = vunpack.c.h.b16 %v398
    %v3068 = vunpack.c.l.b16 %v399
    %v3069 = vunpack.c.h.b16 %v399
    %v3070 = vunpack.c.l.b16 %v400
    %v3071 = vunpack.c.h.b16 %v400
    %v3072 = vunpack.c.l.b16 %v401
    %v3073 = vunpack.c.h.b16 %v401
    %v3074 = vunpack.c.l.b16 %v402
    %v3075 = vunpack.c.h.b16 %v402
    %v3076 = vunpack.c.l.b16 %v403
    %v3077 = vunpack.c.h.b16 %v403
    %v3078 = vunpack.c.l.b16 %v404
    %v3079 = vunpack.c.h.b16 %v404
    %v3080 = vunpack.c.l.b16 %v405
    %v3081 = vunpack.c.h.b16 %v405
    %v3082 = vunpack.c.l.b16 %v406
    %v3083 = vunpack.c.h.b16 %v406
    %v3084 = vunpack.c.l.b16 %v407
    %v3085 = vunpack.c.h.b16 %v407
    %v3086 = vunpack.c.l.b16 %v408
    %v3087 = vunpack.c.h.b16 %v408
    %v3088 = vunpack.c.l.b16 %v409
    %v3089 = vunpack.c.h.b16 %v409
    %v3090 = vunpack.c.l.b16 %v410
    %v3091 = vunpack.c.h.b16 %v410
    %v3092 = vunpack.c.l.b16 %v411
    %v3093 = vunpack.c.h.b16 %v411
    %v3094 = vunpack.c.l.b16 %v412
    %v3095 = vunpack.c.h.b16 %v412
    %v3096 = vunpack.c.l.b16 %v413
    %v3097 = vunpack.c.h.b16 %v413
    %v3098 = vunpack.c.l.b16 %v414
    %v3099 = vunpack.c.h.b16 %v414
    %v3100 = vunpack.c.l.b16 %v415
    %v3101 = vunpack.c.h.b16 %v415
    %v3102 = vunpack.c.l.b16 %v416
    %v3103 = vunpack.c.h.b16 %v416
    %v3104 = vunpack.c.l.b16 %v417
    %v3105 = vunpack.c.h.b16 %v417
    %v3106 = vunpack.c.l.b16 %v418
    %v3107 = vunpack.c.h.b16 %v418
    %v3108 = vunpack.c.l.b16 %v419
    %v3109 = vunpack.c.h.b16 %v419
    %v3110 = vunpack.c.l.b16 %v420
    %v3111 = vunpack.c.h.b16 %v420
    %v3112 = vunpack.c.l.b16 %v421
    %v3113 = vunpack.c.h.b16 %v421
    %v3114 = vunpack.c.l.b16 %v422
    %v3115 = vunpack.c.h.b16 %v422
    %v3116 = vunpack.c.l.b16 %v423
    %v3117 = vunpack.c.h.b16 %v423
    %v3118 = vunpack.c.l.b16 %v424
    %v3119 = vunpack.c.h.b16 %v424
    %v3120 = vunpack.c.l.b16 %v425
    %v3121 = vunpack.c.h.b16 %v425
    %v3122 = vunpack.c.l.b16 %v426
    %v3123 = vunpack.c.h.b16 %v426
    %v3124 = vunpack.c.l.b16 %v427
    %v3125 = vunpack.c.h.b16 %v427
    %v3126 = vunpack.c.l.b16 %v428
    %v3127 = vunpack.c.h.b16 %v428
    %v3128 = vunpack.c.l.b16 %v429
    %v3129 = vunpack.c.h.b16 %v429
    %v3130 = vunpack.c.l.b16 %v430
    %v3131 = vunpack.c.h.b16 %v430
    %v3132 = vunpack.c.l.b16 %v431
    %v3133 = vunpack.c.h.b16 %v431
    %v3134 = vunpack.c.l.b16 %v432
    %v3135 = vunpack.c.h.b16 %v432
    %v3136 = vunpack.c.l.b16 %v433
    %v3137 = vunpack.c.h.b16 %v433
    %v3138 = vunpack.c.l.b16 %v434
    %v3139 = vunpack.c.h.b16 %v434
    %v3140 = vunpack.c.l.b16 %v435
    %v3141 = vunpack.c.h.b16 %v435
    %v3142 = vunpack.c.l.b16 %v436
    %v3143 = vunpack.c.h.b16 %v436
    %v3144 = vunpack.c.l.b16 %v437
    %v3145 = vunpack.c.h.b16 %v437
    %v3146 = vunpack.c.l.b16 %v438
    %v3147 = vunpack.c.h.b16 %v438
    %v3148 = vunpack.c.l.b16 %v439
    %v3149 = vunpack.c.h.b16 %v439
    %v3150 = vunpack.c.l.b16 %v440
    %v3151 = vunpack.c.h.b16 %v440
    %v3152 = vunpack.c.l.b16 %v441
    %v3153 = vunpack.c.h.b16 %v441
    %v3154 = vunpack.c.l.b16 %v442
    %v3155 = vunpack.c.h.b16 %v442
    %v3156 = vunpack.c.l.b16 %v443
    %v3157 = vunpack.c.h.b16 %v443
    %v3158 = vunpack.c.l.b16 %v444
    %v3159 = vunpack.c.h.b16 %v444
    %v3160 = vunpack.c.l.b16 %v445
    %v3161 = vunpack.c.h.b16 %v445
    %v3162 = vunpack.c.l.b16 %v446
    %v3163 = vunpack.c.h.b16 %v446
    %v3164 = vunpack.c.l.b16 %v447
    %v3165 = vunpack.c.h.b16 %v447
    %v3166 = vunpack.c.l.b16 %v448
    %v3167 = vunpack.c.h.b16 %v448
    %v3168 = vunpack.c.l.b16 %v449
    %v3169 = vunpack.c.h.b16 %v449
    %v3170 = vunpack.c.l.b16 %v450
    %v3171 = vunpack.c.h.b16 %v450
    %v3172 = vunpack.c.l.b16 %v451
    %v3173 = vunpack.c.h.b16 %v451
    %v3174 = vunpack.c.l.b16 %v452
    %v3175 = vunpack.c.h.b16 %v452
    %v3176 = vunpack.c.l.b16 %v453
    %v3177 = vunpack.c.h.b16 %v453
    %v3178 = vunpack.c.l.b16 %v454
    %v3179 = vunpack.c.h.b16 %v454
    %v3180 = vunpack.c.l.b16 %v455
    %v3181 = vunpack.c.h.b16 %v455
    %v3182 = vunpack.c.l.b16 %v456
    %v3183 = vunpack.c.h.b16 %v456
    %v3184 = vunpack.c.l.b16 %v457
    %v3185 = vunpack.c.h.b16 %v457
    %v3186 = vunpack.c.l.b16 %v458
    %v3187 = vunpack.c.h.b16 %v458
    %v3188 = vunpack.c.l.b16 %v459
    %v3189 = vunpack.c.h.b16 %v459
    %v3190 = vunpack.c.l.b16 %v460
    %v3191 = vunpack.c.h.b16 %v460
    %v3192 = vunpack.c.l.b16 %v461
    %v3193 = vunpack.c.h.b16 %v461
    %v3194 = vunpack.c.l.b16 %v462
    %v3195 = vunpack.c.h.b16 %v462
    %v3196 = vunpack.c.l.b16 %v463
    %v3197 = vunpack.c.h.b16 %v463
    %v3198 = vunpack.c.l.b16 %v464
    %v3199 = vunpack.c.h.b16 %v464
    %v3200 = vunpack.c.l.b16 %v465
    %v3201 = vunpack.c.h.b16 %v465
    %v3202 = vunpack.c.l.b16 %v466
    %v3203 = vunpack.c.h.b16 %v466
    %v3204 = vunpack.c.l.b16 %v467
    %v3205 = vunpack.c.h.b16 %v467
    %v3206 = vunpack.c.l.b16 %v468
    %v3207 = vunpack.c.h.b16 %v468
    %v3208 = vunpack.c.l.b16 %v469
    %v3209 = vunpack.c.h.b16 %v469
    %v3210 = vunpack.c.l.b16 %v470
    %v3211 = vunpack.c.h.b16 %v470
    %v3212 = vunpack.c.l.b16 %v471
    %v3213 = vunpack.c.h.b16 %v471
    %v3214 = vunpack.c.l.b16 %v472
    %v3215 = vunpack.c.h.b16 %v472
    %v3216 = vunpack.c.l.b16 %v473
    %v3217 = vunpack.c.h.b16 %v473
    %v3218 = vunpack.c.l.b16 %v474
    %v3219 = vunpack.c.h.b16 %v474
    %v3220 = vunpack.c.l.b16 %v475
    %v3221 = vunpack.c.h.b16 %v475
    %v3222 = vunpack.c.l.b16 %v476
    %v3223 = vunpack.c.h.b16 %v476
    %v3224 = vunpack.c.l.b16 %v477
    %v3225 = vunpack.c.h.b16 %v477
    %v3226 = vunpack.c.l.b16 %v478
    %v3227 = vunpack.c.h.b16 %v478
    %v3228 = vunpack.c.l.b16 %v479
    %v3229 = vunpack.c.h.b16 %v479
    %v3230 = vunpack.c.l.b16 %v480
    %v3231 = vunpack.c.h.b16 %v480
    %v3232 = vunpack.c.l.b16 %v481
    %v3233 = vunpack.c.h.b16 %v481
    %v3234 = vunpack.c.l.b16 %v482
    %v3235 = vunpack.c.h.b16 %v482
    %v3236 = vunpack.c.l.b16 %v483
    %v3237 = vunpack.c.h.b16 %v483
    %v3238 = vunpack.c.l.b16 %v484
    %v3239 = vunpack.c.h.b16 %v484
    %v3240 = vunpack.c.l.b16 %v485
    %v3241 = vunpack.c.h.b16 %v485
    %v3242 = vunpack.c.l.b16 %v486
    %v3243 = vunpack.c.h.b16 %v486
    %v3244 = vunpack.c.l.b16 %v487
    %v3245 = vunpack.c.h.b16 %v487
    %v3246 = vunpack.c.l.b16 %v488
    %v3247 = vunpack.c.h.b16 %v488
    %v3248 = vunpack.c.l.b16 %v489
    %v3249 = vunpack.c.h.b16 %v489
    %v3250 = vunpack.c.l.b16 %v490
    %v3251 = vunpack.c.h.b16 %v490
    %v3252 = vunpack.c.l.b16 %v491
    %v3253 = vunpack.c.h.b16 %v491
    %v3254 = vunpack.c.l.b16 %v492
    %v3255 = vunpack.c.h.b16 %v492
    %v3256 = vunpack.c.l.b16 %v493
    %v3257 = vunpack.c.h.b16 %v493
    %v3258 = vunpack.c.l.b16 %v494
    %v3259 = vunpack.c.h.b16 %v494
    %v3260 = vunpack.c.l.b16 %v495
    %v3261 = vunpack.c.h.b16 %v495
    %v3262 = vunpack.c.l.b16 %v496
    %v3263 = vunpack.c.h.b16 %v496
    %v3264 = vunpack.c.l.b16 %v497
    %v3265 = vunpack.c.h.b16 %v497
    %v3266 = vunpack.c.l.b16 %v498
    %v3267 = vunpack.c.h.b16 %v498
    %v3268 = vunpack.c.l.b16 %v499
    %v3269 = vunpack.c.h.b16 %v499
    %v3270 = vunpack.c.l.b16 %v500
    %v3271 = vunpack.c.h.b16 %v500
    %v3272 = vunpack.c.l.b16 %v501
    %v3273 = vunpack.c.h.b16 %v501
    %v3274 = vunpack.c.l.b16 %v502
    %v3275 = vunpack.c.h.b16 %v502
    %v3276 = vunpack.c.l.b16 %v503
    %v3277 = vunpack.c.h.b16 %v503
    %v3278 = vunpack.c.l.b16 %v504
    %v3279 = vunpack.c.h.b16 %v504
    %v3280 = vunpack.c.l.b16 %v505
    %v3281 = vunpack.c.h.b16 %v505
    %v3282 = vunpack.c.l.b16 %v506
    %v3283 = vunpack.c.h.b16 %v506
    %v3284 = vunpack.c.l.b16 %v507
    %v3285 = vunpack.c.h.b16 %v507
    %v3286 = vunpack.c.l.b16 %v508
    %v3287 = vunpack.c.h.b16 %v508
    %v3288 = vunpack.c.l.b16 %v509
    %v3289 = vunpack.c.h.b16 %v509
    %v3290 = vunpack.c.l.b16 %v510
    %v3291 = vunpack.c.h.b16 %v510
    %v3292 = vunpack.c.l.b16 %v511
    %v3293 = vunpack.c.h.b16 %v511
    %v3294 = vunpack.c.l.b16 %v512
    %v3295 = vunpack.c.h.b16 %v512
    %v3296 = vunpack.c.l.b16 %v513
    %v3297 = vunpack.c.h.b16 %v513
    %v3298 = vunpack.c.l.b16 %v514
    %v3299 = vunpack.c.h.b16 %v514
    %v3300 = vunpack.c.l.b16 %v515
    %v3301 = vunpack.c.h.b16 %v515
    %v3302 = vunpack.c.l.b16 %v516
    %v3303 = vunpack.c.h.b16 %v516
    %v3304 = vunpack.c.l.b16 %v517
    %v3305 = vunpack.c.h.b16 %v517
    %v3306 = vunpack.c.l.b16 %v518
    %v3307 = vunpack.c.h.b16 %v518
    %v3308 = vunpack.c.l.b16 %v519
    %v3309 = vunpack.c.h.b16 %v519
    %v3310 = vunpack.c.l.b16 %v520
    %v3311 = vunpack.c.h.b16 %v520
    %v3312 = vunpack.c.l.b16 %v521
    %v3313 = vunpack.c.h.b16 %v521
    %v3314 = vunpack.c.l.b16 %v522
    %v3315 = vunpack.c.h.b16 %v522
    %v3316 = vunpack.c.l.b16 %v523
    %v3317 = vunpack.c.h.b16 %v523
    %v3318 = vunpack.c.l.b16 %v524
    %v3319 = vunpack.c.h.b16 %v524
    %v3320 = vunpack.c.l.b16 %v525
    %v3321 = vunpack.c.h.b16 %v525
    %v3322 = vunpack.c.l.b16 %v526
    %v3323 = vunpack.c.h.b16 %v526
    %v3324 = vunpack.c.l.b16 %v527
    %v3325 = vunpack.c.h.b16 %v527
    %v3326 = vunpack.c.l.b16 %v528
    %v3327 = vunpack.c.h.b16 %v528
    %v3328 = vunpack.c.l.b16 %v529
    %v3329 = vunpack.c.h.b16 %v529
    %v3330 = vunpack.c.l.b16 %v530
    %v3331 = vunpack.c.h.b16 %v530
    %v3332 = vunpack.c.l.b16 %v531
    %v3333 = vunpack.c.h.b16 %v531
    %v3334 = vunpack.c.l.b16 %v532
    %v3335 = vunpack.c.h.b16 %v532
    %v3336 = vunpack.c.l.b16 %v533
    %v3337 = vunpack.c.h.b16 %v533
    %v3338 = vunpack.c.l.b16 %v534
    %v3339 = vunpack.c.h.b16 %v534
    %v3340 = vunpack.c.l.b16 %v535
    %v3341 = vunpack.c.h.b16 %v535
    %v3342 = vunpack.c.l.b16 %v536
    %v3343 = vunpack.c.h.b16 %v536
    %v3344 = vunpack.c.l.b16 %v537
    %v3345 = vunpack.c.h.b16 %v537
    %v3346 = vunpack.c.l.b16 %v538
    %v3347 = vunpack.c.h.b16 %v538
    %v3348 = vunpack.c.l.b16 %v539
    %v3349 = vunpack.c.h.b16 %v539
    %v3350 = vunpack.c.l.b16 %v540
    %v3351 = vunpack.c.h.b16 %v540
    %v3352 = vunpack.c.l.b16 %v541
    %v3353 = vunpack.c.h.b16 %v541
    %v3354 = vunpack.c.l.b16 %v542
    %v3355 = vunpack.c.h.b16 %v542
    %v3356 = vunpack.c.l.b16 %v543
    %v3357 = vunpack.c.h.b16 %v543
    %v3358 = vunpack.c.l.b16 %v544
    %v3359 = vunpack.c.h.b16 %v544
    %v3360 = vunpack.c.l.b16 %v545
    %v3361 = vunpack.c.h.b16 %v545
    %v3362 = vunpack.c.l.b16 %v546
    %v3363 = vunpack.c.h.b16 %v546
    %v3364 = vunpack.c.l.b16 %v547
    %v3365 = vunpack.c.h.b16 %v547
    %v3366 = vunpack.c.l.b16 %v548
    %v3367 = vunpack.c.h.b16 %v548
    %v3368 = vunpack.c.l.b16 %v549
    %v3369 = vunpack.c.h.b16 %v549
    %v3370 = vunpack.c.l.b16 %v550
    %v3371 = vunpack.c.h.b16 %v550
    %v3372 = vunpack.c.l.b16 %v551
    %v3373 = vunpack.c.h.b16 %v551
    %v3374 = vunpack.c.l.b16 %v552
    %v3375 = vunpack.c.h.b16 %v552
    %v3376 = vunpack.c.l.b16 %v553
    %v3377 = vunpack.c.h.b16 %v553
    %v3378 = vunpack.c.l.b16 %v554
    %v3379 = vunpack.c.h.b16 %v554
    %v3380 = vunpack.c.l.b16 %v555
    %v3381 = vunpack.c.h.b16 %v555
    %v3382 = vunpack.c.l.b16 %v556
    %v3383 = vunpack.c.h.b16 %v556
    %v3384 = vunpack.c.l.b16 %v557
    %v3385 = vunpack.c.h.b16 %v557
    %v3386 = vunpack.c.l.b16 %v558
    %v3387 = vunpack.c.h.b16 %v558
    %v3388 = vunpack.c.l.b16 %v559
    %v3389 = vunpack.c.h.b16 %v559
    %v3390 = vunpack.c.l.b16 %v560
    %v3391 = vunpack.c.h.b16 %v560
    %v3392 = vunpack.c.l.b16 %v561
    %v3393 = vunpack.c.h.b16 %v561
    %v3394 = vunpack.c.l.b16 %v562
    %v3395 = vunpack.c.h.b16 %v562
    %v3396 = vunpack.c.l.b16 %v563
    %v3397 = vunpack.c.h.b16 %v563
    %v3398 = vunpack.c.l.b16 %v564
    %v3399 = vunpack.c.h.b16 %v564
    %v3400 = vunpack.c.l.b16 %v565
    %v3401 = vunpack.c.h.b16 %v565
    %v3402 = vunpack.c.l.b16 %v566
    %v3403 = vunpack.c.h.b16 %v566
    %v3404 = vunpack.c.l.b16 %v567
    %v3405 = vunpack.c.h.b16 %v567
    %v3406 = vunpack.c.l.b16 %v568
    %v3407 = vunpack.c.h.b16 %v568
    %v3408 = vunpack.c.l.b16 %v569
    %v3409 = vunpack.c.h.b16 %v569
    %v3410 = vunpack.c.l.b16 %v570
    %v3411 = vunpack.c.h.b16 %v570
    %v3412 = vunpack.c.l.b16 %v571
    %v3413 = vunpack.c.h.b16 %v571
    %v3414 = vunpack.c.l.b16 %v572
    %v3415 = vunpack.c.h.b16 %v572
    %v3416 = vunpack.c.l.b16 %v573
    %v3417 = vunpack.c.h.b16 %v573
    %v3418 = vunpack.c.l.b16 %v574
    %v3419 = vunpack.c.h.b16 %v574
    %v3420 = vunpack.c.l.b16 %v575
    %v3421 = vunpack.c.h.b16 %v575
    %v3422 = vunpack.c.l.b16 %v576
    %v3423 = vunpack.c.h.b16 %v576
    %v3424 = vunpack.c.l.b16 %v577
    %v3425 = vunpack.c.h.b16 %v577
    %v3426 = vunpack.c.l.b16 %v578
    %v3427 = vunpack.c.h.b16 %v578
    %v3428 = vunpack.c.l.b16 %v579
    %v3429 = vunpack.c.h.b16 %v579
    %v3430 = vunpack.c.l.b16 %v580
    %v3431 = vunpack.c.h.b16 %v580
    %v3432 = vunpack.c.l.b16 %v581
    %v3433 = vunpack.c.h.b16 %v581
    %v3434 = vunpack.c.l.b16 %v582
    %v3435 = vunpack.c.h.b16 %v582
    %v3436 = vunpack.c.l.b16 %v583
    %v3437 = vunpack.c.h.b16 %v583
    %v3438 = vunpack.c.l.b16 %v584
    %v3439 = vunpack.c.h.b16 %v584
    %v3440 = vunpack.c.l.b16 %v585
    %v3441 = vunpack.c.h.b16 %v585
    %v3442 = vunpack.c.l.b16 %v586
    %v3443 = vunpack.c.h.b16 %v586
    %v3444 = vunpack.c.l.b16 %v587
    %v3445 = vunpack.c.h.b16 %v587
    %v3446 = vunpack.c.l.b16 %v588
    %v3447 = vunpack.c.h.b16 %v588
    %v3448 = vunpack.c.l.b16 %v589
    %v3449 = vunpack.c.h.b16 %v589
    %v3450 = vunpack.c.l.b16 %v590
    %v3451 = vunpack.c.h.b16 %v590
    %v3452 = vunpack.c.l.b16 %v591
    %v3453 = vunpack.c.h.b16 %v591
    %v3454 = vunpack.c.l.b16 %v592
    %v3455 = vunpack.c.h.b16 %v592
    %v3456 = vunpack.c.l.b16 %v593
    %v3457 = vunpack.c.h.b16 %v593
    %v3458 = vunpack.c.l.b16 %v594
    %v3459 = vunpack.c.h.b16 %v594
    %v3460 = vunpack.c.l.b16 %v595
    %v3461 = vunpack.c.h.b16 %v595
    %v3462 = vunpack.c.l.b16 %v596
    %v3463 = vunpack.c.h.b16 %v596
    %v3464 = vunpack.c.l.b16 %v597
    %v3465 = vunpack.c.h.b16 %v597
    %v3466 = vunpack.c.l.b16 %v598
    %v3467 = vunpack.c.h.b16 %v598
    %v3468 = vunpack.c.l.b16 %v599
    %v3469 = vunpack.c.h.b16 %v599
    %v3470 = vunpack.c.l.b16 %v600
    %v3471 = vunpack.c.h.b16 %v600
    %v3472 = vunpack.c.l.b16 %v601
    %v3473 = vunpack.c.h.b16 %v601
    %v3474 = vunpack.c.l.b16 %v602
    %v3475 = vunpack.c.h.b16 %v602
    %v3476 = vunpack.c.l.b16 %v603
    %v3477 = vunpack.c.h.b16 %v603
    %v3478 = vunpack.c.l.b16 %v604
    %v3479 = vunpack.c.h.b16 %v604
    %v3480 = vunpack.c.l.b16 %v605
    %v3481 = vunpack.c.h.b16 %v605
    %v3482 = vunpack.c.l.b16 %v606
    %v3483 = vunpack.c.h.b16 %v606
    %v3484 = vunpack.c.l.b16 %v607
    %v3485 = vunpack.c.h.b16 %v607
    %v3486 = vunpack.c.l.b16 %v608
    %v3487 = vunpack.c.h.b16 %v608
    %v3488 = vunpack.c.l.b16 %v609
    %v3489 = vunpack.c.h.b16 %v609
    %v3490 = vunpack.c.l.b16 %v610
    %v3491 = vunpack.c.h.b16 %v610
    %v3492 = vunpack.c.l.b16 %v611
    %v3493 = vunpack.c.h.b16 %v611
    %v3494 = vunpack.c.l.b16 %v612
    %v3495 = vunpack.c.h.b16 %v612
    %v3496 = vunpack.c.l.b16 %v613
    %v3497 = vunpack.c.h.b16 %v613
    %v3498 = vunpack.c.l.b16 %v614
    %v3499 = vunpack.c.h.b16 %v614
    %v3500 = vunpack.c.l.b16 %v615
    %v3501 = vunpack.c.h.b16 %v615
    %v3502 = vunpack.c.l.b16 %v616
    %v3503 = vunpack.c.h.b16 %v616
    %v3504 = vunpack.c.l.b16 %v617
    %v3505 = vunpack.c.h.b16 %v617
    %v3506 = vunpack.c.l.b16 %v618
    %v3507 = vunpack.c.h.b16 %v618
    %v3508 = vunpack.c.l.b16 %v619
    %v3509 = vunpack.c.h.b16 %v619
    %v3510 = vunpack.c.l.b16 %v620
    %v3511 = vunpack.c.h.b16 %v620
    %v3512 = vunpack.c.l.b16 %v621
    %v3513 = vunpack.c.h.b16 %v621
    %v3514 = vunpack.c.l.b16 %v622
    %v3515 = vunpack.c.h.b16 %v622
    %v3516 = vunpack.c.l.b16 %v623
    %v3517 = vunpack.c.h.b16 %v623
    %v3518 = vunpack.c.l.b16 %v624
    %v3519 = vunpack.c.h.b16 %v624
    %v3520 = vunpack.c.l.b16 %v625
    %v3521 = vunpack.c.h.b16 %v625
    %v3522 = vunpack.c.l.b16 %v626
    %v3523 = vunpack.c.h.b16 %v626
    %v3524 = vunpack.c.l.b16 %v627
    %v3525 = vunpack.c.h.b16 %v627
    %v3526 = vunpack.c.l.b16 %v628
    %v3527 = vunpack.c.h.b16 %v628
    %v3528 = vunpack.c.l.b16 %v629
    %v3529 = vunpack.c.h.b16 %v629
    %v3530 = vunpack.c.l.b16 %v630
    %v3531 = vunpack.c.h.b16 %v630
    %v3532 = vunpack.c.l.b16 %v631
    %v3533 = vunpack.c.h.b16 %v631
    %v3534 = vunpack.c.l.b16 %v632
    %v3535 = vunpack.c.h.b16 %v632
    %v3536 = vunpack.c.l.b16 %v633
    %v3537 = vunpack.c.h.b16 %v633
    %v3538 = vunpack.c.l.b16 %v634
    %v3539 = vunpack.c.h.b16 %v634
    %v3540 = vunpack.c.l.b16 %v635
    %v3541 = vunpack.c.h.b16 %v635
    %v3542 = vunpack.c.l.b16 %v636
    %v3543 = vunpack.c.h.b16 %v636
    %v3544 = vunpack.c.l.b16 %v637
    %v3545 = vunpack.c.h.b16 %v637
    %v3546 = vunpack.c.l.b16 %v638
    %v3547 = vunpack.c.h.b16 %v638
    %v3548 = vunpack.c.l.b16 %v639
    %v3549 = vunpack.c.h.b16 %v639
    %v3550 = vunpack.c.l.b16 %v640
    %v3551 = vunpack.c.h.b16 %v640
    %v3552 = vunpack.c.l.b16 %v641
    %v3553 = vunpack.c.h.b16 %v641
    %v3554 = vunpack.c.l.b16 %v642
    %v3555 = vunpack.c.h.b16 %v642
    %v3556 = vunpack.c.l.b16 %v643
    %v3557 = vunpack.c.h.b16 %v643
    %v3558 = vunpack.c.l.b16 %v644
    %v3559 = vunpack.c.h.b16 %v644
    %v3560 = vunpack.c.l.b16 %v645
    %v3561 = vunpack.c.h.b16 %v645
    %v3562 = vunpack.c.l.b16 %v646
    %v3563 = vunpack.c.h.b16 %v646
    %v3564 = vunpack.c.l.b16 %v647
    %v3565 = vunpack.c.h.b16 %v647
    %v3566 = vunpack.c.l.b16 %v648
    %v3567 = vunpack.c.h.b16 %v648
    %v3568 = vunpack.c.l.b16 %v649
    %v3569 = vunpack.c.h.b16 %v649
    %v3570 = vunpack.c.l.b16 %v650
    %v3571 = vunpack.c.h.b16 %v650
    %v3572 = vunpack.c.l.b16 %v651
    %v3573 = vunpack.c.h.b16 %v651
    %v3574 = vunpack.c.l.b16 %v652
    %v3575 = vunpack.c.h.b16 %v652
    %v3576 = vunpack.c.l.b16 %v653
    %v3577 = vunpack.c.h.b16 %v653
    %v3578 = vunpack.c.l.b16 %v654
    %v3579 = vunpack.c.h.b16 %v654
    %v3580 = vunpack.c.l.b16 %v655
    %v3581 = vunpack.c.h.b16 %v655
    %v3582 = vunpack.c.l.b16 %v656
    %v3583 = vunpack.c.h.b16 %v656
    %v3584 = vunpack.c.l.b16 %v657
    %v3585 = vunpack.c.h.b16 %v657
    %v3586 = vunpack.c.l.b16 %v658
    %v3587 = vunpack.c.h.b16 %v658
    %v3588 = vunpack.c.l.b16 %v659
    %v3589 = vunpack.c.h.b16 %v659
    %v3590 = vunpack.c.l.b16 %v660
    %v3591 = vunpack.c.h.b16 %v660
    %v3592 = vunpack.c.l.b16 %v661
    %v3593 = vunpack.c.h.b16 %v661
    %v3594 = vunpack.c.l.b16 %v662
    %v3595 = vunpack.c.h.b16 %v662
    %v3596 = vunpack.c.l.b16 %v663
    %v3597 = vunpack.c.h.b16 %v663
    %v3598 = vunpack.c.l.b16 %v664
    %v3599 = vunpack.c.h.b16 %v664
    %v3600 = vunpack.c.l.b16 %v665
    %v3601 = vunpack.c.h.b16 %v665
    %v3602 = vunpack.c.l.b16 %v666
    %v3603 = vunpack.c.h.b16 %v666
    %v3604 = vunpack.c.l.b16 %v667
    %v3605 = vunpack.c.h.b16 %v667
    %v3606 = vunpack.c.l.b16 %v668
    %v3607 = vunpack.c.h.b16 %v668
    %v3608 = vunpack.c.l.b16 %v669
    %v3609 = vunpack.c.h.b16 %v669
    %v3610 = vunpack.c.l.b16 %v670
    %v3611 = vunpack.c.h.b16 %v670
    %v3612 = vunpack.c.l.b16 %v671
    %v3613 = vunpack.c.h.b16 %v671
    %v3614 = vunpack.c.l.b16 %v672
    %v3615 = vunpack.c.h.b16 %v672
    %v3616 = vunpack.c.l.b16 %v673
    %v3617 = vunpack.c.h.b16 %v673
    %v3618 = vunpack.c.l.b16 %v674
    %v3619 = vunpack.c.h.b16 %v674
    %v3620 = vunpack.c.l.b16 %v675
    %v3621 = vunpack.c.h.b16 %v675
    %v3622 = vunpack.c.l.b16 %v676
    %v3623 = vunpack.c.h.b16 %v676
    %v3624 = vunpack.c.l.b16 %v677
    %v3625 = vunpack.c.h.b16 %v677
    %v3626 = vunpack.c.l.b16 %v678
    %v3627 = vunpack.c.h.b16 %v678
    %v3628 = vunpack.c.l.b16 %v679
    %v3629 = vunpack.c.h.b16 %v679
    %v3630 = vunpack.c.l.b16 %v680
    %v3631 = vunpack.c.h.b16 %v680
    %v3632 = vunpack.c.l.b16 %v681
    %v3633 = vunpack.c.h.b16 %v681
    %v3634 = vunpack.c.l.b16 %v682
    %v3635 = vunpack.c.h.b16 %v682
    %v3636 = vunpack.c.l.b16 %v683
    %v3637 = vunpack.c.h.b16 %v683
    %v3638 = vunpack.c.l.b16 %v684
    %v3639 = vunpack.c.h.b16 %v684
    %v3640 = vunpack.c.l.b16 %v685
    %v3641 = vunpack.c.h.b16 %v685
    %v3642 = vunpack.c.l.b16 %v686
    %v3643 = vunpack.c.h.b16 %v686
    %v3644 = vunpack.c.l.b16 %v687
    %v3645 = vunpack.c.h.b16 %v687
    %v3646 = vunpack.c.l.b16 %v688
    %v3647 = vunpack.c.h.b16 %v688
    %v3648 = vunpack.c.l.b16 %v689
    %v3649 = vunpack.c.h.b16 %v689
    %v3650 = vunpack.c.l.b16 %v690
    %v3651 = vunpack.c.h.b16 %v690
    %v3652 = vunpack.c.l.b16 %v691
    %v3653 = vunpack.c.h.b16 %v691
    %v3654 = vunpack.c.l.b16 %v692
    %v3655 = vunpack.c.h.b16 %v692
    %v3656 = vunpack.c.l.b16 %v693
    %v3657 = vunpack.c.h.b16 %v693
    %v3658 = vunpack.c.l.b16 %v694
    %v3659 = vunpack.c.h.b16 %v694
    %v3660 = vunpack.c.l.b16 %v695
    %v3661 = vunpack.c.h.b16 %v695
    %v3662 = vunpack.c.l.b16 %v696
    %v3663 = vunpack.c.h.b16 %v696
    %v3664 = vunpack.c.l.b16 %v697
    %v3665 = vunpack.c.h.b16 %v697
    %v3666 = vunpack.c.l.b16 %v698
    %v3667 = vunpack.c.h.b16 %v698
    %v3668 = vunpack.c.l.b16 %v699
    %v3669 = vunpack.c.h.b16 %v699
    %v3670 = vunpack.c.l.b16 %v700
    %v3671 = vunpack.c.h.b16 %v700
    %v3672 = vunpack.c.l.b16 %v701
    %v3673 = vunpack.c.h.b16 %v701
    %v3674 = vunpack.c.l.b16 %v702
    %v3675 = vunpack.c.h.b16 %v702
    %v3676 = vunpack.c.l.b16 %v703
    %v3677 = vunpack.c.h.b16 %v703
    %v3678 = vunpack.c.l.b16 %v704
    %v3679 = vunpack.c.h.b16 %v704
    %v3680 = vunpack.c.l.b16 %v705
    %v3681 = vunpack.c.h.b16 %v705
    %v3682 = vunpack.c.l.b16 %v706
    %v3683 = vunpack.c.h.b16 %v706
    %v3684 = vunpack.c.l.b16 %v707
    %v3685 = vunpack.c.h.b16 %v707
    %v3686 = vunpack.c.l.b16 %v708
    %v3687 = vunpack.c.h.b16 %v708
    %v3688 = vunpack.c.l.b16 %v709
    %v3689 = vunpack.c.h.b16 %v709
    %v3690 = vunpack.c.l.b16 %v710
    %v3691 = vunpack.c.h.b16 %v710
    %v3692 = vunpack.c.l.b16 %v711
    %v3693 = vunpack.c.h.b16 %v711
    %v3694 = vunpack.c.l.b16 %v712
    %v3695 = vunpack.c.h.b16 %v712
    %v3696 = vunpack.c.l.b16 %v713
    %v3697 = vunpack.c.h.b16 %v713
    %v3698 = vunpack.c.l.b16 %v714
    %v3699 = vunpack.c.h.b16 %v714
    %v3700 = vunpack.c.l.b16 %v715
    %v3701 = vunpack.c.h.b16 %v715
    %v3702 = vunpack.c.l.b16 %v716
    %v3703 = vunpack.c.h.b16 %v716
    %v3704 = vunpack.c.l.b16 %v717
    %v3705 = vunpack.c.h.b16 %v717
    %v3706 = vunpack.c.l.b16 %v718
    %v3707 = vunpack.c.h.b16 %v718
    %v3708 = vunpack.c.l.b16 %v719
    %v3709 = vunpack.c.h.b16 %v719
    %v3710 = vunpack.c.l.b16 %v720
    %v3711 = vunpack.c.h.b16 %v720
    %v3712 = vunpack.c.l.b16 %v721
    %v3713 = vunpack.c.h.b16 %v721
    %v3714 = vunpack.c.l.b16 %v722
    %v3715 = vunpack.c.h.b16 %v722
    %v3716 = vunpack.c.l.b16 %v723
    %v3717 = vunpack.c.h.b16 %v723
    %v3718 = vunpack.c.l.b16 %v724
    %v3719 = vunpack.c.h.b16 %v724
    %v3720 = vunpack.c.l.b16 %v725
    %v3721 = vunpack.c.h.b16 %v725
    %v3722 = vunpack.c.l.b16 %v726
    %v3723 = vunpack.c.h.b16 %v726
    %v3724 = vunpack.c.l.b16 %v727
    %v3725 = vunpack.c.h.b16 %v727
    %v3726 = vunpack.c.l.b16 %v728
    %v3727 = vunpack.c.h.b16 %v728
    %v3728 = vunpack.c.l.b16 %v729
    %v3729 = vunpack.c.h.b16 %v729
    %v3730 = vunpack.c.l.b16 %v730
    %v3731 = vunpack.c.h.b16 %v730
    %v3732 = vunpack.c.l.b16 %v731
    %v3733 = vunpack.c.h.b16 %v731
    %v3734 = vunpack.c.l.b16 %v732
    %v3735 = vunpack.c.h.b16 %v732
    %v3736 = vunpack.c.l.b16 %v733
    %v3737 = vunpack.c.h.b16 %v733
    %v3738 = vunpack.c.l.b16 %v734
    %v3739 = vunpack.c.h.b16 %v734
    %v3740 = vunpack.c.l.b16 %v735
    %v3741 = vunpack.c.h.b16 %v735
    %v3742 = vunpack.c.l.b16 %v736
    %v3743 = vunpack.c.h.b16 %v736
    %v3744 = vunpack.c.l.b16 %v737
    %v3745 = vunpack.c.h.b16 %v737
    %v3746 = vunpack.c.l.b16 %v738
    %v3747 = vunpack.c.h.b16 %v738
    %v3748 = vunpack.c.l.b16 %v739
    %v3749 = vunpack.c.h.b16 %v739
    %v3750 = vunpack.c.l.b16 %v740
    %v3751 = vunpack.c.h.b16 %v740
    %v3752 = vunpack.c.l.b16 %v741
    %v3753 = vunpack.c.h.b16 %v741
    %v3754 = vunpack.c.l.b16 %v742
    %v3755 = vunpack.c.h.b16 %v742
    %v3756 = vunpack.c.l.b16 %v743
    %v3757 = vunpack.c.h.b16 %v743
    %v3758 = vunpack.c.l.b16 %v744
    %v3759 = vunpack.c.h.b16 %v744
    %v3760 = vunpack.c.l.b16 %v745
    %v3761 = vunpack.c.h.b16 %v745
    %v3762 = vunpack.c.l.b16 %v746
    %v3763 = vunpack.c.h.b16 %v746
    %v3764 = vunpack.c.l.b16 %v747
    %v3765 = vunpack.c.h.b16 %v747
    %v3766 = vunpack.c.l.b16 %v748
    %v3767 = vunpack.c.h.b16 %v748
    %v3768 = vunpack.c.l.b16 %v749
    %v3769 = vunpack.c.h.b16 %v749
    %v3770 = vunpack.c.l.b16 %v750
    %v3771 = vunpack.c.h.b16 %v750
    %v3772 = vunpack.c.l.b16 %v751
    %v3773 = vunpack.c.h.b16 %v751
    %v3774 = vunpack.c.l.b16 %v752
    %v3775 = vunpack.c.h.b16 %v752
    %v3776 = vunpack.c.l.b16 %v753
    %v3777 = vunpack.c.h.b16 %v753
    %v3778 = vunpack.c.l.b16 %v754
    %v3779 = vunpack.c.h.b16 %v754
    %v3780 = vunpack.c.l.b16 %v755
    %v3781 = vunpack.c.h.b16 %v755
    %v3782 = vunpack.c.l.b16 %v756
    %v3783 = vunpack.c.h.b16 %v756
    %v3784 = vunpack.c.l.b16 %v757
    %v3785 = vunpack.c.h.b16 %v757
    %v3786 = vunpack.c.l.b16 %v758
    %v3787 = vunpack.c.h.b16 %v758
    %v3788 = vunpack.c.l.b16 %v759
    %v3789 = vunpack.c.h.b16 %v759
    %v3790 = vunpack.c.l.b16 %v760
    %v3791 = vunpack.c.h.b16 %v760
    %v3792 = vunpack.c.l.b16 %v761
    %v3793 = vunpack.c.h.b16 %v761
    %v3794 = vunpack.c.l.b16 %v762
    %v3795 = vunpack.c.h.b16 %v762
    %v3796 = vunpack.c.l.b16 %v763
    %v3797 = vunpack.c.h.b16 %v763
    %v3798 = vunpack.c.l.b16 %v764
    %v3799 = vunpack.c.h.b16 %v764
    %v3800 = vunpack.c.l.b16 %v765
    %v3801 = vunpack.c.h.b16 %v765
    %v3802 = vunpack.c.l.b16 %v766
    %v3803 = vunpack.c.h.b16 %v766
    %v3804 = vunpack.c.l.b16 %v767
    %v3805 = vunpack.c.h.b16 %v767
    %v3806 = vunpack.c.l.b16 %v768
    %v3807 = vunpack.c.h.b16 %v768
    %v3808 = vunpack.c.l.b16 %v769
    %v3809 = vunpack.c.h.b16 %v769
    %v3810 = vunpack.c.l.b16 %v770
    %v3811 = vunpack.c.h.b16 %v770
    %v3812 = vunpack.c.l.b16 %v771
    %v3813 = vunpack.c.h.b16 %v771
    %v3814 = vunpack.c.l.b16 %v772
    %v3815 = vunpack.c.h.b16 %v772
    %v3816 = vunpack.c.l.b16 %v773
    %v3817 = vunpack.c.h.b16 %v773
    %v3818 = vunpack.c.l.b16 %v774
    %v3819 = vunpack.c.h.b16 %v774
    %v3820 = vunpack.c.l.b16 %v775
    %v3821 = vunpack.c.h.b16 %v775
    %v3822 = vunpack.c.l.b16 %v776
    %v3823 = vunpack.c.h.b16 %v776
    %v3824 = vunpack.c.l.b16 %v777
    %v3825 = vunpack.c.h.b16 %v777
    %v3826 = vunpack.c.l.b16 %v778
    %v3827 = vunpack.c.h.b16 %v778
    %v3828 = vunpack.c.l.b16 %v779
    %v3829 = vunpack.c.h.b16 %v779
    %v3830 = vunpack.c.l.b16 %v780
    %v3831 = vunpack.c.h.b16 %v780
    %v3832 = vunpack.c.l.b16 %v781
    %v3833 = vunpack.c.h.b16 %v781
    %v3834 = vunpack.c.l.b16 %v782
    %v3835 = vunpack.c.h.b16 %v782
    %v3836 = vunpack.c.l.b16 %v783
    %v3837 = vunpack.c.h.b16 %v783
    %v3838 = vunpack.c.l.b16 %v784
    %v3839 = vunpack.c.h.b16 %v784
    %v3840 = vunpack.c.l.b16 %v785
    %v3841 = vunpack.c.h.b16 %v785
    %v3842 = vunpack.c.l.b16 %v786
    %v3843 = vunpack.c.h.b16 %v786
    %v3844 = vunpack.c.l.b16 %v787
    %v3845 = vunpack.c.h.b16 %v787
    %v3846 = vunpack.c.l.b16 %v788
    %v3847 = vunpack.c.h.b16 %v788
    %v3848 = vunpack.c.l.b16 %v789
    %v3849 = vunpack.c.h.b16 %v789
    %v3850 = vunpack.c.l.b16 %v790
    %v3851 = vunpack.c.h.b16 %v790
    %v3852 = vunpack.c.l.b16 %v791
    %v3853 = vunpack.c.h.b16 %v791
    %v3854 = vunpack.c.l.b16 %v792
    %v3855 = vunpack.c.h.b16 %v792
    %v3856 = vunpack.c.l.b16 %v793
    %v3857 = vunpack.c.h.b16 %v793
    %v3858 = vunpack.c.l.b16 %v794
    %v3859 = vunpack.c.h.b16 %v794
    %v3860 = vunpack.c.l.b16 %v795
    %v3861 = vunpack.c.h.b16 %v795
    %v3862 = vunpack.c.l.b16 %v796
    %v3863 = vunpack.c.h.b16 %v796
    %v3864 = vunpack.c.l.b16 %v797
    %v3865 = vunpack.c.h.b16 %v797
    %v3866 = vunpack.c.l.b16 %v798
    %v3867 = vunpack.c.h.b16 %v798
    %v3868 = vunpack.c.l.b16 %v799
    %v3869 = vunpack.c.h.b16 %v799
    %v3870 = vunpack.c.l.b16 %v800
    %v3871 = vunpack.c.h.b16 %v800
    %v3872 = vunpack.c.l.b16 %v801
    %v3873 = vunpack.c.h.b16 %v801
    %v3874 = vunpack.c.l.b16 %v802
    %v3875 = vunpack.c.h.b16 %v802
    %v3876 = vunpack.c.l.b16 %v803
    %v3877 = vunpack.c.h.b16 %v803
    %v3878 = vunpack.c.l.b16 %v804
    %v3879 = vunpack.c.h.b16 %v804
    %v3880 = vunpack.c.l.b16 %v805
    %v3881 = vunpack.c.h.b16 %v805
    %v3882 = vunpack.c.l.b16 %v806
    %v3883 = vunpack.c.h.b16 %v806
    %v3884 = vunpack.c.l.b16 %v807
    %v3885 = vunpack.c.h.b16 %v807
    %v3886 = vunpack.c.l.b16 %v808
    %v3887 = vunpack.c.h.b16 %v808
    %v3888 = vunpack.c.l.b16 %v809
    %v3889 = vunpack.c.h.b16 %v809
    %v3890 = vunpack.c.l.b16 %v810
    %v3891 = vunpack.c.h.b16 %v810
    %v3892 = vunpack.c.l.b16 %v811
    %v3893 = vunpack.c.h.b16 %v811
    %v3894 = vunpack.c.l.b16 %v812
    %v3895 = vunpack.c.h.b16 %v812
    %v3896 = vunpack.c.l.b16 %v813
    %v3897 = vunpack.c.h.b16 %v813
    %v3898 = vunpack.c.l.b16 %v814
    %v3899 = vunpack.c.h.b16 %v814
    %v3900 = vunpack.c.l.b16 %v815
    %v3901 = vunpack.c.h.b16 %v815
    %v3902 = vunpack.c.l.b16 %v816
    %v3903 = vunpack.c.h.b16 %v816
    %v3904 = vunpack.c.l.b16 %v817
    %v3905 = vunpack.c.h.b16 %v817
    %v3906 = vunpack.c.l.b16 %v818
    %v3907 = vunpack.c.h.b16 %v818
    %v3908 = vunpack.c.l.b16 %v819
    %v3909 = vunpack.c.h.b16 %v819
    %v3910 = vunpack.c.l.b16 %v820
    %v3911 = vunpack.c.h.b16 %v820
    %v3912 = vunpack.c.l.b16 %v821
    %v3913 = vunpack.c.h.b16 %v821
    %v3914 = vunpack.c.l.b16 %v822
    %v3915 = vunpack.c.h.b16 %v822
    %v3916 = vunpack.c.l.b16 %v823
    %v3917 = vunpack.c.h.b16 %v823
    %v3918 = vunpack.c.l.b16 %v824
    %v3919 = vunpack.c.h.b16 %v824
    %v3920 = vunpack.c.l.b16 %v825
    %v3921 = vunpack.c.h.b16 %v825
    %v3922 = vunpack.c.l.b16 %v826
    %v3923 = vunpack.c.h.b16 %v826
    %v3924 = vunpack.c.l.b16 %v827
    %v3925 = vunpack.c.h.b16 %v827
    %v3926 = vunpack.c.l.b16 %v828
    %v3927 = vunpack.c.h.b16 %v828
    %v3928 = vunpack.c.l.b16 %v829
    %v3929 = vunpack.c.h.b16 %v829
    %v3930 = vunpack.c.l.b16 %v830
    %v3931 = vunpack.c.h.b16 %v830
    %v3932 = vunpack.c.l.b16 %v831
    %v3933 = vunpack.c.h.b16 %v831
    %v3934 = vunpack.c.l.b16 %v832
    %v3935 = vunpack.c.h.b16 %v832
    %v3936 = vunpack.c.l.b16 %v833
    %v3937 = vunpack.c.h.b16 %v833
    %v3938 = vunpack.c.l.b16 %v834
    %v3939 = vunpack.c.h.b16 %v834
    %v3940 = vunpack.c.l.b16 %v835
    %v3941 = vunpack.c.h.b16 %v835
    %v3942 = vunpack.c.l.b16 %v836
    %v3943 = vunpack.c.h.b16 %v836
    %v3944 = vunpack.c.l.b16 %v837
    %v3945 = vunpack.c.h.b16 %v837
    %v3946 = vunpack.c.l.b16 %v838
    %v3947 = vunpack.c.h.b16 %v838
    %v3948 = vunpack.c.l.b16 %v839
    %v3949 = vunpack.c.h.b16 %v839
    %v3950 = vunpack.c.l.b16 %v840
    %v3951 = vunpack.c.h.b16 %v840
    %v3952 = vunpack.c.l.b16 %v841
    %v3953 = vunpack.c.h.b16 %v841
    %v3954 = vunpack.c.l.b16 %v842
    %v3955 = vunpack.c.h.b16 %v842
    %v3956 = vunpack.c.l.b16 %v843
    %v3957 = vunpack.c.h.b16 %v843
    %v3958 = vunpack.c.l.b16 %v844
    %v3959 = vunpack.c.h.b16 %v844
    %v3960 = vunpack.c.l.b16 %v845
    %v3961 = vunpack.c.h.b16 %v845
    %v3962 = vunpack.c.l.b16 %v846
    %v3963 = vunpack.c.h.b16 %v846
    %v3964 = vunpack.c.l.b16 %v847
    %v3965 = vunpack.c.h.b16 %v847
    %v3966 = vunpack.c.l.b16 %v848
    %v3967 = vunpack.c.h.b16 %v848
    %v3968 = vunpack.c.l.b16 %v849
    %v3969 = vunpack.c.h.b16 %v849
    %v3970 = vunpack.c.l.b16 %v850
    %v3971 = vunpack.c.h.b16 %v850
    %v3972 = vunpack.c.l.b16 %v851
    %v3973 = vunpack.c.h.b16 %v851
    %v3974 = vunpack.c.l.b16 %v852
    %v3975 = vunpack.c.h.b16 %v852
    %v3976 = vunpack.c.l.b16 %v853
    %v3977 = vunpack.c.h.b16 %v853
    %v3978 = vunpack.c.l.b16 %v854
    %v3979 = vunpack.c.h.b16 %v854
    %v3980 = vunpack.c.l.b16 %v855
    %v3981 = vunpack.c.h.b16 %v855
    %v3982 = vunpack.c.l.b16 %v856
    %v3983 = vunpack.c.h.b16 %v856
    %v3984 = vunpack.c.l.b16 %v857
    %v3985 = vunpack.c.h.b16 %v857
    %v3986 = vunpack.c.l.b16 %v858
    %v3987 = vunpack.c.h.b16 %v858
    %v3988 = vunpack.c.l.b16 %v859
    %v3989 = vunpack.c.h.b16 %v859
    %v3990 = vunpack.c.l.b16 %v860
    %v3991 = vunpack.c.h.b16 %v860
    %v3992 = vunpack.c.l.b16 %v861
    %v3993 = vunpack.c.h.b16 %v861
    %v3994 = vunpack.c.l.b16 %v862
    %v3995 = vunpack.c.h.b16 %v862
    %v3996 = vunpack.c.l.b16 %v863
    %v3997 = vunpack.c.h.b16 %v863
    %v3998 = vunpack.c.l.b16 %v864
    %v3999 = vunpack.c.h.b16 %v864
    %v4000 = vunpack.c.l.b16 %v865
    %v4001 = vunpack.c.h.b16 %v865
    %v4002 = vunpack.c.l.b16 %v866
    %v4003 = vunpack.c.h.b16 %v866
    %v4004 = vunpack.c.l.b16 %v867
    %v4005 = vunpack.c.h.b16 %v867
    %v4006 = vunpack.c.l.b16 %v868
    %v4007 = vunpack.c.h.b16 %v868
    %v4008 = vunpack.c.l.b16 %v869
    %v4009 = vunpack.c.h.b16 %v869
    %v4010 = vunpack.c.l.b16 %v870
    %v4011 = vunpack.c.h.b16 %v870
    %v4012 = vunpack.c.l.b16 %v871
    %v4013 = vunpack.c.h.b16 %v871
    %v4014 = vunpack.c.l.b16 %v872
    %v4015 = vunpack.c.h.b16 %v872
    %v4016 = vunpack.c.l.b16 %v873
    %v4017 = vunpack.c.h.b16 %v873
    %v4018 = vunpack.c.l.b16 %v874
    %v4019 = vunpack.c.h.b16 %v874
    %v4020 = vunpack.c.l.b16 %v875
    %v4021 = vunpack.c.h.b16 %v875
    %v4022 = vunpack.c.l.b16 %v876
    %v4023 = vunpack.c.h.b16 %v876
    %v4024 = vunpack.c.l.b16 %v877
    %v4025 = vunpack.c.h.b16 %v877
    %v4026 = vunpack.c.l.b16 %v878
    %v4027 = vunpack.c.h.b16 %v878
    %v4028 = vunpack.c.l.b16 %v879
    %v4029 = vunpack.c.h.b16 %v879
    %v4030 = vunpack.c.l.b16 %v880
    %v4031 = vunpack.c.h.b16 %v880
    %v4032 = vunpack.c.l.b16 %v881
    %v4033 = vunpack.c.h.b16 %v881
    %v4034 = vunpack.c.l.b16 %v882
    %v4035 = vunpack.c.h.b16 %v882
    %v4036 = vunpack.c.l.b16 %v883
    %v4037 = vunpack.c.h.b16 %v883
    %v4038 = vunpack.c.l.b16 %v884
    %v4039 = vunpack.c.h.b16 %v884
    %v4040 = vunpack.c.l.b16 %v885
    %v4041 = vunpack.c.h.b16 %v885
    %v4042 = vunpack.c.l.b16 %v886
    %v4043 = vunpack.c.h.b16 %v886
    %v4044 = vunpack.c.l.b16 %v887
    %v4045 = vunpack.c.h.b16 %v887
    %v4046 = vunpack.c.l.b16 %v888
    %v4047 = vunpack.c.h.b16 %v888
    %v4048 = vunpack.c.l.b16 %v889
    %v4049 = vunpack.c.h.b16 %v889
    %v4050 = vunpack.c.l.b16 %v890
    %v4051 = vunpack.c.h.b16 %v890
    %v4052 = vunpack.c.l.b16 %v891
    %v4053 = vunpack.c.h.b16 %v891
    %v4054 = vunpack.c.l.b16 %v892
    %v4055 = vunpack.c.h.b16 %v892
    %v4056 = vunpack.c.l.b16 %v893
    %v4057 = vunpack.c.h.b16 %v893
    %v4058 = vunpack.c.l.b16 %v894
    %v4059 = vunpack.c.h.b16 %v894
    %v4060 = vunpack.c.l.b16 %v895
    %v4061 = vunpack.c.h.b16 %v895
    %v4062 = vunpack.c.l.b16 %v896
    %v4063 = vunpack.c.h.b16 %v896
    %v4064 = vunpack.c.l.b16 %v897
    %v4065 = vunpack.c.h.b16 %v897
    %v4066 = vunpack.c.l.b16 %v898
    %v4067 = vunpack.c.h.b16 %v898
    %v4068 = vunpack.c.l.b16 %v899
    %v4069 = vunpack.c.h.b16 %v899
    %v4070 = vunpack.c.l.b16 %v900
    %v4071 = vunpack.c.h.b16 %v900
    %v4072 = vunpack.c.l.b16 %v901
    %v4073 = vunpack.c.h.b16 %v901
    %v4074 = vunpack.c.l.b16 %v902
    %v4075 = vunpack.c.h.b16 %v902
    %v4076 = vunpack.c.l.b16 %v903
    %v4077 = vunpack.c.h.b16 %v903
    %v4078 = vunpack.c.l.b16 %v904
    %v4079 = vunpack.c.h.b16 %v904
    %v4080 = vunpack.c.l.b16 %v905
    %v4081 = vunpack.c.h.b16 %v905
    %v4082 = vunpack.c.l.b16 %v906
    %v4083 = vunpack.c.h.b16 %v906
    %v4084 = vunpack.c.l.b16 %v907
    %v4085 = vunpack.c.h.b16 %v907
    %v4086 = vunpack.c.l.b16 %v908
    %v4087 = vunpack.c.h.b16 %v908
    %v4088 = vunpack.c.l.b16 %v909
    %v4089 = vunpack.c.h.b16 %v909
    %v4090 = vunpack.c.l.b16 %v910
    %v4091 = vunpack.c.h.b16 %v910
    %v4092 = vunpack.c.l.b16 %v911
    %v4093 = vunpack.c.h.b16 %v911
    %v4094 = vunpack.c.l.b16 %v912
    %v4095 = vunpack.c.h.b16 %v912
    %v4096 = vunpack.c.l.b16 %v913
    %v4097 = vunpack.c.h.b16 %v913
    %v4098 = vunpack.c.l.b16 %v914
    %v4099 = vunpack.c.h.b16 %v914
    %v4100 = vunpack.c.l.b16 %v915
    %v4101 = vunpack.c.h.b16 %v915
    %v4102 = vunpack.c.l.b16 %v916
    %v4103 = vunpack.c.h.b16 %v916
    %v4104 = vunpack.c.l.b16 %v917
    %v4105 = vunpack.c.h.b16 %v917
    %v4106 = vunpack.c.l.b16 %v918
    %v4107 = vunpack.c.h.b16 %v918
    %v4108 = vunpack.c.l.b16 %v919
    %v4109 = vunpack.c.h.b16 %v919
    %v4110 = vunpack.c.l.b16 %v920
    %v4111 = vunpack.c.h.b16 %v920
    %v4112 = vunpack.c.l.b16 %v921
    %v4113 = vunpack.c.h.b16 %v921
    %v4114 = vunpack.c.l.b16 %v922
    %v4115 = vunpack.c.h.b16 %v922
    %v4116 = vunpack.c.l.b16 %v923
    %v4117 = vunpack.c.h.b16 %v923
    %v4118 = vunpack.c.l.b16 %v924
    %v4119 = vunpack.c.h.b16 %v924
    %v4120 = vunpack.c.l.b16 %v925
    %v4121 = vunpack.c.h.b16 %v925
    %v4122 = vunpack.c.l.b16 %v926
    %v4123 = vunpack.c.h.b16 %v926
    %v4124 = vunpack.c.l.b16 %v927
    %v4125 = vunpack.c.h.b16 %v927
    %v4126 = vunpack.c.l.b16 %v928
    %v4127 = vunpack.c.h.b16 %v928
    %v4128 = vunpack.c.l.b16 %v929
    %v4129 = vunpack.c.h.b16 %v929
    %v4130 = vunpack.c.l.b16 %v930
    %v4131 = vunpack.c.h.b16 %v930
    %v4132 = vunpack.c.l.b16 %v931
    %v4133 = vunpack.c.h.b16 %v931
    %v4134 = vunpack.c.l.b16 %v932
    %v4135 = vunpack.c.h.b16 %v932
    %v4136 = vunpack.c.l.b16 %v933
    %v4137 = vunpack.c.h.b16 %v933
    %v4138 = vunpack.c.l.b16 %v934
    %v4139 = vunpack.c.h.b16 %v934
    %v4140 = vunpack.c.l.b16 %v935
    %v4141 = vunpack.c.h.b16 %v935
    %v4142 = vunpack.c.l.b16 %v936
    %v4143 = vunpack.c.h.b16 %v936
    %v4144 = vunpack.c.l.b16 %v937
    %v4145 = vunpack.c.h.b16 %v937
    %v4146 = vunpack.c.l.b16 %v938
    %v4147 = vunpack.c.h.b16 %v938
    %v4148 = vunpack.c.l.b16 %v939
    %v4149 = vunpack.c.h.b16 %v939
    %v4150 = vunpack.c.l.b16 %v940
    %v4151 = vunpack.c.h.b16 %v940
    %v4152 = vunpack.c.l.b16 %v941
    %v4153 = vunpack.c.h.b16 %v941
    %v4154 = vunpack.c.l.b16 %v942
    %v4155 = vunpack.c.h.b16 %v942
    %v4156 = vunpack.c.l.b16 %v943
    %v4157 = vunpack.c.h.b16 %v943
    %v4158 = vunpack.c.l.b16 %v944
    %v4159 = vunpack.c.h.b16 %v944
    %v4160 = vunpack.c.l.b16 %v945
    %v4161 = vunpack.c.h.b16 %v945
    %v4162 = vunpack.c.l.b16 %v946
    %v4163 = vunpack.c.h.b16 %v946
    %v4164 = vunpack.c.l.b16 %v947
    %v4165 = vunpack.c.h.b16 %v947
    %v4166 = vunpack.c.l.b16 %v948
    %v4167 = vunpack.c.h.b16 %v948
    %v4168 = vunpack.c.l.b16 %v949
    %v4169 = vunpack.c.h.b16 %v949
    %v4170 = vunpack.c.l.b16 %v950
    %v4171 = vunpack.c.h.b16 %v950
    %v4172 = vunpack.c.l.b16 %v951
    %v4173 = vunpack.c.h.b16 %v951
    %v4174 = vunpack.c.l.b16 %v952
    %v4175 = vunpack.c.h.b16 %v952
    %v4176 = vunpack.c.l.b16 %v953
    %v4177 = vunpack.c.h.b16 %v953
    %v4178 = vunpack.c.l.b16 %v954
    %v4179 = vunpack.c.h.b16 %v954
    %v4180 = vunpack.c.l.b16 %v955
    %v4181 = vunpack.c.h.b16 %v955
    %v4182 = vunpack.c.l.b16 %v956
    %v4183 = vunpack.c.h.b16 %v956
    %v4184 = vunpack.c.l.b16 %v957
    %v4185 = vunpack.c.h.b16 %v957
    %v4186 = vunpack.c.l.b16 %v958
    %v4187 = vunpack.c.h.b16 %v958
    %v4188 = vunpack.c.l.b16 %v959
    %v4189 = vunpack.c.h.b16 %v959
    %v4190 = vunpack.c.l.b16 %v960
    %v4191 = vunpack.c.h.b16 %v960
    %v4192 = vunpack.c.l.b16 %v961
    %v4193 = vunpack.c.h.b16 %v961
    %v4194 = vunpack.c.l.b16 %v962
    %v4195 = vunpack.c.h.b16 %v962
    %v4196 = vunpack.c.l.b16 %v963
    %v4197 = vunpack.c.h.b16 %v963
    %v4198 = vunpack.c.l.b16 %v964
    %v4199 = vunpack.c.h.b16 %v964
    %v4200 = vunpack.c.l.b16 %v965
    %v4201 = vunpack.c.h.b16 %v965
    %v4202 = vunpack.c.l.b16 %v966
    %v4203 = vunpack.c.h.b16 %v966
    %v4204 = vunpack.c.l.b16 %v967
    %v4205 = vunpack.c.h.b16 %v967
    %v4206 = vunpack.c.l.b16 %v968
    %v4207 = vunpack.c.h.b16 %v968
    %v4208 = vunpack.c.l.b16 %v969
    %v4209 = vunpack.c.h.b16 %v969
    %v4210 = vunpack.c.l.b16 %v970
    %v4211 = vunpack.c.h.b16 %v970
    %v4212 = vunpack.c.l.b16 %v971
    %v4213 = vunpack.c.h.b16 %v971
    %v4214 = vunpack.c.l.b16 %v972
    %v4215 = vunpack.c.h.b16 %v972
    %v4216 = vunpack.c.l.b16 %v973
    %v4217 = vunpack.c.h.b16 %v973
    %v4218 = vunpack.c.l.b16 %v974
    %v4219 = vunpack.c.h.b16 %v974
    %v4220 = vunpack.c.l.b16 %v975
    %v4221 = vunpack.c.h.b16 %v975
    %v4222 = vunpack.c.l.b16 %v976
    %v4223 = vunpack.c.h.b16 %v976
    %v4224 = vunpack.c.l.b16 %v977
    %v4225 = vunpack.c.h.b16 %v977
    %v4226 = vunpack.c.l.b16 %v978
    %v4227 = vunpack.c.h.b16 %v978
    %v4228 = vunpack.c.l.b16 %v979
    %v4229 = vunpack.c.h.b16 %v979
    %v4230 = vunpack.c.l.b16 %v980
    %v4231 = vunpack.c.h.b16 %v980
    %v4232 = vunpack.c.l.b16 %v981
    %v4233 = vunpack.c.h.b16 %v981
    %v4234 = vunpack.c.l.b16 %v982
    %v4235 = vunpack.c.h.b16 %v982
    %v4236 = vunpack.c.l.b16 %v983
    %v4237 = vunpack.c.h.b16 %v983
    %v4238 = vunpack.c.l.b16 %v984
    %v4239 = vunpack.c.h.b16 %v984
    %v4240 = vunpack.c.l.b16 %v985
    %v4241 = vunpack.c.h.b16 %v985
    %v4242 = vunpack.c.l.b16 %v986
    %v4243 = vunpack.c.h.b16 %v986
    %v4244 = vunpack.c.l.b16 %v987
    %v4245 = vunpack.c.h.b16 %v987
    %v4246 = vunpack.c.l.b16 %v988
    %v4247 = vunpack.c.h.b16 %v988
    %v4248 = vunpack.c.l.b16 %v989
    %v4249 = vunpack.c.h.b16 %v989
    %v4250 = vunpack.c.l.b16 %v990
    %v4251 = vunpack.c.h.b16 %v990
    %v4252 = vunpack.c.l.b16 %v991
    %v4253 = vunpack.c.h.b16 %v991
    %v4254 = vunpack.c.l.b16 %v992
    %v4255 = vunpack.c.h.b16 %v992
    %v4256 = vunpack.c.l.b16 %v993
    %v4257 = vunpack.c.h.b16 %v993
    %v4258 = vunpack.c.l.b16 %v994
    %v4259 = vunpack.c.h.b16 %v994
    %v4260 = vunpack.c.l.b16 %v995
    %v4261 = vunpack.c.h.b16 %v995
    %v4262 = vunpack.c.l.b16 %v996
    %v4263 = vunpack.c.h.b16 %v996
    %v4264 = vunpack.c.l.b16 %v997
    %v4265 = vunpack.c.h.b16 %v997
    %v4266 = vunpack.c.l.b16 %v998
    %v4267 = vunpack.c.h.b16 %v998
    %v4268 = vunpack.c.l.b16 %v999
    %v4269 = vunpack.c.h.b16 %v999
    %v4270 = vunpack.c.l.b16 %v1000
    %v4271 = vunpack.c.h.b16 %v1000
    %v4272 = vunpack.c.l.b16 %v1001
    %v4273 = vunpack.c.h.b16 %v1001
    %v4274 = vunpack.c.l.b16 %v1002
    %v4275 = vunpack.c.h.b16 %v1002
    %v4276 = vunpack.c.l.b16 %v1003
    %v4277 = vunpack.c.h.b16 %v1003
    %v4278 = vunpack.c.l.b16 %v1004
    %v4279 = vunpack.c.h.b16 %v1004
    %v4280 = vunpack.c.l.b16 %v1005
    %v4281 = vunpack.c.h.b16 %v1005
    %v4282 = vunpack.c.l.b16 %v1006
    %v4283 = vunpack.c.h.b16 %v1006
    %v4284 = vunpack.c.l.b16 %v1007
    %v4285 = vunpack.c.h.b16 %v1007
    %v4286 = vunpack.c.l.b16 %v1008
    %v4287 = vunpack.c.h.b16 %v1008
    %v4288 = vunpack.c.l.b16 %v1009
    %v4289 = vunpack.c.h.b16 %v1009
    %v4290 = vunpack.c.l.b16 %v1010
    %v4291 = vunpack.c.h.b16 %v1010
    %v4292 = vunpack.c.l.b16 %v1011
    %v4293 = vunpack.c.h.b16 %v1011
    %v4294 = vunpack.c.l.b16 %v1012
    %v4295 = vunpack.c.h.b16 %v1012
    %v4296 = vunpack.c.l.b16 %v1013
    %v4297 = vunpack.c.h.b16 %v1013
    %v4298 = vunpack.c.l.b16 %v1014
    %v4299 = vunpack.c.h.b16 %v1014
    %v4300 = vunpack.c.l.b16 %v1015
    %v4301 = vunpack.c.h.b16 %v1015
    %v4302 = vunpack.c.l.b16 %v1016
    %v4303 = vunpack.c.h.b16 %v1016
    %v4304 = vunpack.c.l.b16 %v1017
    %v4305 = vunpack.c.h.b16 %v1017
    %v4306 = vunpack.c.l.b16 %v1018
    %v4307 = vunpack.c.h.b16 %v1018
    %v4308 = vunpack.c.l.b16 %v1019
    %v4309 = vunpack.c.h.b16 %v1019
    %v4310 = vunpack.c.l.b16 %v1020
    %v4311 = vunpack.c.h.b16 %v1020
    %v4312 = vunpack.c.l.b16 %v1021
    %v4313 = vunpack.c.h.b16 %v1021
    %v4314 = vunpack.c.l.b16 %v1022
    %v4315 = vunpack.c.h.b16 %v1022
    %v4316 = vunpack.c.l.b16 %v1023
    %v4317 = vunpack.c.h.b16 %v1023
    %v4318 = vunpack.c.l.b16 %v1024
    %v4319 = vunpack.c.h.b16 %v1024
    %v4320 = vunpack.c.l.b16 %v1025
    %v4321 = vunpack.c.h.b16 %v1025
    %v4322 = vunpack.c.l.b16 %v1026
    %v4323 = vunpack.c.h.b16 %v1026
    %v4324 = vunpack.c.l.b16 %v1027
    %v4325 = vunpack.c.h.b16 %v1027
    %v4326 = vunpack.c.l.b16 %v1028
    %v4327 = vunpack.c.h.b16 %v1028
    %v4328 = vunpack.c.l.b16 %v1029
    %v4329 = vunpack.c.h.b16 %v1029
    %v4330 = vunpack.c.l.b16 %v1030
    %v4331 = vunpack.c.h.b16 %v1030
    %v4332 = vunpack.c.l.b16 %v1031
    %v4333 = vunpack.c.h.b16 %v1031
    %v4334 = vunpack.c.l.b16 %v1032
    %v4335 = vunpack.c.h.b16 %v1032
    %v4336 = vunpack.c.l.b16 %v1033
    %v4337 = vunpack.c.h.b16 %v1033
    %v4338 = vunpack.c.l.b16 %v1034
    %v4339 = vunpack.c.h.b16 %v1034
    %v4340 = vunpack.c.l.b16 %v1035
    %v4341 = vunpack.c.h.b16 %v1035
    %v4342 = vunpack.c.l.b16 %v1036
    %v4343 = vunpack.c.h.b16 %v1036
    %v4344 = vunpack.c.l.b16 %v1037
    %v4345 = vunpack.c.h.b16 %v1037
    %v4346 = vunpack.c.l.b16 %v1038
    %v4347 = vunpack.c.h.b16 %v1038
    %v4348 = vunpack.c.l.b16 %v1039
    %v4349 = vunpack.c.h.b16 %v1039
    %v4350 = vunpack.c.l.b16 %v1040
    %v4351 = vunpack.c.h.b16 %v1040
    %v4352 = vunpack.c.l.b16 %v1041
    %v4353 = vunpack.c.h.b16 %v1041
    %v4354 = vunpack.c.l.b16 %v1042
    %v4355 = vunpack.c.h.b16 %v1042
    %v4356 = vunpack.c.l.b16 %v1043
    %v4357 = vunpack.c.h.b16 %v1043
    %v4358 = vunpack.c.l.b16 %v1044
    %v4359 = vunpack.c.h.b16 %v1044
    %v4360 = vunpack.c.l.b16 %v1045
    %v4361 = vunpack.c.h.b16 %v1045
    %v4362 = vunpack.c.l.b16 %v1046
    %v4363 = vunpack.c.h.b16 %v1046
    %v4364 = vunpack.c.l.b16 %v1047
    %v4365 = vunpack.c.h.b16 %v1047
    %v4366 = vunpack.c.l.b16 %v1048
    %v4367 = vunpack.c.h.b16 %v1048
    %v4368 = vunpack.c.l.b16 %v1049
    %v4369 = vunpack.c.h.b16 %v1049
    %v4370 = vunpack.c.l.b16 %v1050
    %v4371 = vunpack.c.h.b16 %v1050
    %v4372 = vunpack.c.l.b16 %v1051
    %v4373 = vunpack.c.h.b16 %v1051
    %v4374 = vunpack.c.l.b16 %v1052
    %v4375 = vunpack.c.h.b16 %v1052
    %v4376 = vunpack.c.l.b16 %v1053
    %v4377 = vunpack.c.h.b16 %v1053
    %v4378 = vunpack.c.l.b16 %v1054
    %v4379 = vunpack.c.h.b16 %v1054
    %v4380 = vunpack.c.l.b16 %v1055
    %v4381 = vunpack.c.h.b16 %v1055
    %v4382 = vpack.c.b16 %v2338, %v2334
    %v4383 = vpack.c.b16 %v2339, %v2335
    %v4384 = vpack.c.b16 %v2340, %v2336
    %v4385 = vpack.c.b16 %v2341, %v2337
    %v4386 = vpack.c.b16 %v2346, %v2342
    %v4387 = vpack.c.b16 %v2347, %v2343
    %v4388 = vpack.c.b16 %v2348, %v2344
    %v4389 = vpack.c.b16 %v2349, %v2345
    %v4390 = vpack.c.b16 %v2354, %v2350
    %v4391 = vpack.c.b16 %v2355, %v2351
    %v4392 = vpack.c.b16 %v2356, %v2352
    %v4393 = vpack.c.b16 %v2357, %v2353
    %v4394 = vpack.c.b16 %v2362, %v2358
    %v4395 = vpack.c.b16 %v2363, %v2359
    %v4396 = vpack.c.b16 %v2364, %v2360
    %v4397 = vpack.c.b16 %v2365, %v2361
    %v4398 = vpack.c.b16 %v2370, %v2366
    %v4399 = vpack.c.b16 %v2371, %v2367
    %v4400 = vpack.c.b16 %v2372, %v2368
    %v4401 = vpack.c.b16 %v2373, %v2369
    %v4402 = vpack.c.b16 %v2378, %v2374
    %v4403 = vpack.c.b16 %v2379, %v2375
    %v4404 = vpack.c.b16 %v2380, %v2376
    %v4405 = vpack.c.b16 %v2381, %v2377
    %v4406 = vpack.c.b16 %v2386, %v2382
    %v4407 = vpack.c.b16 %v2387, %v2383
    %v4408 = vpack.c.b16 %v2388, %v2384
    %v4409 = vpack.c.b16 %v2389, %v2385
    %v4410 = vpack.c.b16 %v2394, %v2390
    %v4411 = vpack.c.b16 %v2395, %v2391
    %v4412 = vpack.c.b16 %v2396, %v2392
    %v4413 = vpack.c.b16 %v2397, %v2393
    %v4414 = vpack.c.b16 %v2402, %v2398
    %v4415 = vpack.c.b16 %v2403, %v2399
    %v4416 = vpack.c.b16 %v2404, %v2400
    %v4417 = vpack.c.b16 %v2405, %v2401
    %v4418 = vpack.c.b16 %v2410, %v2406
    %v4419 = vpack.c.b16 %v2411, %v2407
    %v4420 = vpack.c.b16 %v2412, %v2408
    %v4421 = vpack.c.b16 %v2413, %v2409
    %v4422 = vpack.c.b16 %v2418, %v2414
    %v4423 = vpack.c.b16 %v2419, %v2415
    %v4424 = vpack.c.b16 %v2420, %v2416
    %v4425 = vpack.c.b16 %v2421, %v2417
    %v4426 = vpack.c.b16 %v2426, %v2422
    %v4427 = vpack.c.b16 %v2427, %v2423
    %v4428 = vpack.c.b16 %v2428, %v2424
    %v4429 = vpack.c.b16 %v2429, %v2425
    %v4430 = vpack.c.b16 %v2434, %v2430
    %v4431 = vpack.c.b16 %v2435, %v2431
    %v4432 = vpack.c.b16 %v2436, %v2432
    %v4433 = vpack.c.b16 %v2437, %v2433
    %v4434 = vpack.c.b16 %v2442, %v2438
    %v4435 = vpack.c.b16 %v2443, %v2439
    %v4436 = vpack.c.b16 %v2444, %v2440
    %v4437 = vpack.c.b16 %v2445, %v2441
    %v4438 = vpack.c.b16 %v2450, %v2446
    %v4439 = vpack.c.b16 %v2451, %v2447
    %v4440 = vpack.c.b16 %v2452, %v2448
    %v4441 = vpack.c.b16 %v2453, %v2449
    %v4442 = vpack.c.b16 %v2458, %v2454
    %v4443 = vpack.c.b16 %v2459, %v2455
    %v4444 = vpack.c.b16 %v2460, %v2456
    %v4445 = vpack.c.b16 %v2461, %v2457
    %v4446 = vpack.c.b16 %v2466, %v2462
    %v4447 = vpack.c.b16 %v2467, %v2463
    %v4448 = vpack.c.b16 %v2468, %v2464
    %v4449 = vpack.c.b16 %v2469, %v2465
    %v4450 = vpack.c.b16 %v2474, %v2470
    %v4451 = vpack.c.b16 %v2475, %v2471
    %v4452 = vpack.c.b16 %v2476, %v2472
    %v4453 = vpack.c.b16 %v2477, %v2473
    %v4454 = vpack.c.b16 %v2482, %v2478
    %v4455 = vpack.c.b16 %v2483, %v2479
    %v4456 = vpack.c.b16 %v2484, %v2480
    %v4457 = vpack.c.b16 %v2485, %v2481
    %v4458 = vpack.c.b16 %v2490, %v2486
    %v4459 = vpack.c.b16 %v2491, %v2487
    %v4460 = vpack.c.b16 %v2492, %v2488
    %v4461 = vpack.c.b16 %v2493, %v2489
    %v4462 = vpack.c.b16 %v2498, %v2494
    %v4463 = vpack.c.b16 %v2499, %v2495
    %v4464 = vpack.c.b16 %v2500, %v2496
    %v4465 = vpack.c.b16 %v2501, %v2497
    %v4466 = vpack.c.b16 %v2506, %v2502
    %v4467 = vpack.c.b16 %v2507, %v2503
    %v4468 = vpack.c.b16 %v2508, %v2504
    %v4469 = vpack.c.b16 %v2509, %v2505
    %v4470 = vpack.c.b16 %v2514, %v2510
    %v4471 = vpack.c.b16 %v2515, %v2511
    %v4472 = vpack.c.b16 %v2516, %v2512
    %v4473 = vpack.c.b16 %v2517, %v2513
    %v4474 = vpack.c.b16 %v2522, %v2518
    %v4475 = vpack.c.b16 %v2523, %v2519
    %v4476 = vpack.c.b16 %v2524, %v2520
    %v4477 = vpack.c.b16 %v2525, %v2521
    %v4478 = vpack.c.b16 %v2530, %v2526
    %v4479 = vpack.c.b16 %v2531, %v2527
    %v4480 = vpack.c.b16 %v2532, %v2528
    %v4481 = vpack.c.b16 %v2533, %v2529
    %v4482 = vpack.c.b16 %v2538, %v2534
    %v4483 = vpack.c.b16 %v2539, %v2535
    %v4484 = vpack.c.b16 %v2540, %v2536
    %v4485 = vpack.c.b16 %v2541, %v2537
    %v4486 = vpack.c.b16 %v2546, %v2542
    %v4487 = vpack.c.b16 %v2547, %v2543
    %v4488 = vpack.c.b16 %v2548, %v2544
    %v4489 = vpack.c.b16 %v2549, %v2545
    %v4490 = vpack.c.b16 %v2554, %v2550
    %v4491 = vpack.c.b16 %v2555, %v2551
    %v4492 = vpack.c.b16 %v2556, %v2552
    %v4493 = vpack.c.b16 %v2557, %v2553
    %v4494 = vpack.c.b16 %v2562, %v2558
    %v4495 = vpack.c.b16 %v2563, %v2559
    %v4496 = vpack.c.b16 %v2564, %v2560
    %v4497 = vpack.c.b16 %v2565, %v2561
    %v4498 = vpack.c.b16 %v2570, %v2566
    %v4499 = vpack.c.b16 %v2571, %v2567
    %v4500 = vpack.c.b16 %v2572, %v2568
    %v4501 = vpack.c.b16 %v2573, %v2569
    %v4502 = vpack.c.b16 %v2578, %v2574
    %v4503 = vpack.c.b16 %v2579, %v2575
    %v4504 = vpack.c.b16 %v2580, %v2576
    %v4505 = vpack.c.b16 %v2581, %v2577
    %v4506 = vpack.c.b16 %v2586, %v2582
    %v4507 = vpack.c.b16 %v2587, %v2583
    %v4508 = vpack.c.b16 %v2588, %v2584
    %v4509 = vpack.c.b16 %v2589, %v2585
    %v4510 = vpack.c.b16 %v2594, %v2590
    %v4511 = vpack.c.b16 %v2595, %v2591
    %v4512 = vpack.c.b16 %v2596, %v2592
    %v4513 = vpack.c.b16 %v2597, %v2593
    %v4514 = vpack.c.b16 %v2602, %v2598
    %v4515 = vpack.c.b16 %v2603, %v2599
    %v4516 = vpack.c.b16 %v2604, %v2600
    %v4517 = vpack.c.b16 %v2605, %v2601
    %v4518 = vpack.c.b16 %v2610, %v2606
    %v4519 = vpack.c.b16 %v2611, %v2607
    %v4520 = vpack.c.b16 %v2612, %v2608
    %v4521 = vpack.c.b16 %v2613, %v2609
    %v4522 = vpack.c.b16 %v2618, %v2614
    %v4523 = vpack.c.b16 %v2619, %v2615
    %v4524 = vpack.c.b16 %v2620, %v2616
    %v4525 = vpack.c.b16 %v2621, %v2617
    %v4526 = vpack.c.b16 %v2626, %v2622
    %v4527 = vpack.c.b16 %v2627, %v2623
    %v4528 = vpack.c.b16 %v2628, %v2624
    %v4529 = vpack.c.b16 %v2629, %v2625
    %v4530 = vpack.c.b16 %v2634, %v2630
    %v4531 = vpack.c.b16 %v2635, %v2631
    %v4532 = vpack.c.b16 %v2636, %v2632
    %v4533 = vpack.c.b16 %v2637, %v2633
    %v4534 = vpack.c.b16 %v2642, %v2638
    %v4535 = vpack.c.b16 %v2643, %v2639
    %v4536 = vpack.c.b16 %v2644, %v2640
    %v4537 = vpack.c.b16 %v2645, %v2641
    %v4538 = vpack.c.b16 %v2650, %v2646
    %v4539 = vpack.c.b16 %v2651, %v2647
    %v4540 = vpack.c.b16 %v2652, %v2648
    %v4541 = vpack.c.b16 %v2653, %v2649
    %v4542 = vpack.c.b16 %v2658, %v2654
    %v4543 = vpack.c.b16 %v2659, %v2655
    %v4544 = vpack.c.b16 %v2660, %v2656
    %v4545 = vpack.c.b16 %v2661, %v2657
    %v4546 = vpack.c.b16 %v2666, %v2662
    %v4547 = vpack.c.b16 %v2667, %v2663
    %v4548 = vpack.c.b16 %v2668, %v2664
    %v4549 = vpack.c.b16 %v2669, %v2665
    %v4550 = vpack.c.b16 %v2674, %v2670
    %v4551 = vpack.c.b16 %v2675, %v2671
    %v4552 = vpack.c.b16 %v2676, %v2672
    %v4553 = vpack.c.b16 %v2677, %v2673
    %v4554 = vpack.c.b16 %v2682, %v2678
    %v4555 = vpack.c.b16 %v2683, %v2679
    %v4556 = vpack.c.b16 %v2684, %v2680
    %v4557 = vpack.c.b16 %v2685, %v2681
    %v4558 = vpack.c.b16 %v2690, %v2686
    %v4559 = vpack.c.b16 %v2691, %v2687
    %v4560 = vpack.c.b16 %v2692, %v2688
    %v4561 = vpack.c.b16 %v2693, %v2689
    %v4562 = vpack.c.b16 %v2698, %v2694
    %v4563 = vpack.c.b16 %v2699, %v2695
    %v4564 = vpack.c.b16 %v2700, %v2696
    %v4565 = vpack.c.b16 %v2701, %v2697
    %v4566 = vpack.c.b16 %v2706, %v2702
    %v4567 = vpack.c.b16 %v2707, %v2703
    %v4568 = vpack.c.b16 %v2708, %v2704
    %v4569 = vpack.c.b16 %v2709, %v2705
    %v4570 = vpack.c.b16 %v2714, %v2710
    %v4571 = vpack.c.b16 %v2715, %v2711
    %v4572 = vpack.c.b16 %v2716, %v2712
    %v4573 = vpack.c.b16 %v2717, %v2713
    %v4574 = vpack.c.b16 %v2722, %v2718
    %v4575 = vpack.c.b16 %v2723, %v2719
    %v4576 = vpack.c.b16 %v2724, %v2720
    %v4577 = vpack.c.b16 %v2725, %v2721
    %v4578 = vpack.c.b16 %v2730, %v2726
    %v4579 = vpack.c.b16 %v2731, %v2727
    %v4580 = vpack.c.b16 %v2732, %v2728
    %v4581 = vpack.c.b16 %v2733, %v2729
    %v4582 = vpack.c.b16 %v2738, %v2734
    %v4583 = vpack.c.b16 %v2739, %v2735
    %v4584 = vpack.c.b16 %v2740, %v2736
    %v4585 = vpack.c.b16 %v2741, %v2737
    %v4586 = vpack.c.b16 %v2746, %v2742
    %v4587 = vpack.c.b16 %v2747, %v2743
    %v4588 = vpack.c.b16 %v2748, %v2744
    %v4589 = vpack.c.b16 %v2749, %v2745
    %v4590 = vpack.c.b16 %v2754, %v2750
    %v4591 = vpack.c.b16 %v2755, %v2751
    %v4592 = vpack.c.b16 %v2756, %v2752
    %v4593 = vpack.c.b16 %v2757, %v2753
    %v4594 = vpack.c.b16 %v2762, %v2758
    %v4595 = vpack.c.b16 %v2763, %v2759
    %v4596 = vpack.c.b16 %v2764, %v2760
    %v4597 = vpack.c.b16 %v2765, %v2761
    %v4598 = vpack.c.b16 %v2770, %v2766
    %v4599 = vpack.c.b16 %v2771, %v2767
    %v4600 = vpack.c.b16 %v2772, %v2768
    %v4601 = vpack.c.b16 %v2773, %v2769
    %v4602 = vpack.c.b16 %v2778, %v2774
    %v4603 = vpack.c.b16 %v2779, %v2775
    %v4604 = vpack.c.b16 %v2780, %v2776
    %v4605 = vpack.c.b16 %v2781, %v2777
    %v4606 = vpack.c.b16 %v2786, %v2782
    %v4607 = vpack.c.b16 %v2787, %v2783
    %v4608 = vpack.c.b16 %v2788, %v2784
    %v4609 = vpack.c.b16 %v2789, %v2785
    %v4610 = vpack.c.b16 %v2794, %v2790
    %v4611 = vpack.c.b16 %v2795, %v2791
    %v4612 = vpack.c.b16 %v2796, %v2792
    %v4613 = vpack.c.b16 %v2797, %v2793
    %v4614 = vpack.c.b16 %v2802, %v2798
    %v4615 = vpack.c.b16 %v2803, %v2799
    %v4616 = vpack.c.b16 %v2804, %v2800
    %v4617 = vpack.c.b16 %v2805, %v2801
    %v4618 = vpack.c.b16 %v2810, %v2806
    %v4619 = vpack.c.b16 %v2811, %v2807
    %v4620 = vpack.c.b16 %v2812, %v2808
    %v4621 = vpack.c.b16 %v2813, %v2809
    %v4622 = vpack.c.b16 %v2818, %v2814
    %v4623 = vpack.c.b16 %v2819, %v2815
    %v4624 = vpack.c.b16 %v2820, %v2816
    %v4625 = vpack.c.b16 %v2821, %v2817
    %v4626 = vpack.c.b16 %v2826, %v2822
    %v4627 = vpack.c.b16 %v2827, %v2823
    %v4628 = vpack.c.b16 %v2828, %v2824
    %v4629 = vpack.c.b16 %v2829, %v2825
    %v4630 = vpack.c.b16 %v2834, %v2830
    %v4631 = vpack.c.b16 %v2835, %v2831
    %v4632 = vpack.c.b16 %v2836, %v2832
    %v4633 = vpack.c.b16 %v2837, %v2833
    %v4634 = vpack.c.b16 %v2842, %v2838
    %v4635 = vpack.c.b16 %v2843, %v2839
    %v4636 = vpack.c.b16 %v2844, %v2840
    %v4637 = vpack.c.b16 %v2845, %v2841
    %v4638 = vpack.c.b16 %v2850, %v2846
    %v4639 = vpack.c.b16 %v2851, %v2847
    %v4640 = vpack.c.b16 %v2852, %v2848
    %v4641 = vpack.c.b16 %v2853, %v2849
    %v4642 = vpack.c.b16 %v2858, %v2854
    %v4643 = vpack.c.b16 %v2859, %v2855
    %v4644 = vpack.c.b16 %v2860, %v2856
    %v4645 = vpack.c.b16 %v2861, %v2857
    %v4646 = vpack.c.b16 %v2866, %v2862
    %v4647 = vpack.c.b16 %v2867, %v2863
    %v4648 = vpack.c.b16 %v2868, %v2864
    %v4649 = vpack.c.b16 %v2869, %v2865
    %v4650 = vpack.c.b16 %v2874, %v2870
    %v4651 = vpack.c.b16 %v2875, %v2871
    %v4652 = vpack.c.b16 %v2876, %v2872
    %v4653 = vpack.c.b16 %v2877, %v2873
    %v4654 = vpack.c.b16 %v2882, %v2878
    %v4655 = vpack.c.b16 %v2883, %v2879
    %v4656 = vpack.c.b16 %v2884, %v2880
    %v4657 = vpack.c.b16 %v2885, %v2881
    %v4658 = vpack.c.b16 %v2890, %v2886
    %v4659 = vpack.c.b16 %v2891, %v2887
    %v4660 = vpack.c.b16 %v2892, %v2888
    %v4661 = vpack.c.b16 %v2893, %v2889
    %v4662 = vpack.c.b16 %v2898, %v2894
    %v4663 = vpack.c.b16 %v2899, %v2895
    %v4664 = vpack.c.b16 %v2900, %v2896
    %v4665 = vpack.c.b16 %v2901, %v2897
    %v4666 = vpack.c.b16 %v2906, %v2902
    %v4667 = vpack.c.b16 %v2907, %v2903
    %v4668 = vpack.c.b16 %v2908, %v2904
    %v4669 = vpack.c.b16 %v2909, %v2905
    %v4670 = vpack.c.b16 %v2914, %v2910
    %v4671 = vpack.c.b16 %v2915, %v2911
    %v4672 = vpack.c.b16 %v2916, %v2912
    %v4673 = vpack.c.b16 %v2917, %v2913
    %v4674 = vpack.c.b16 %v2922, %v2918
    %v4675 = vpack.c.b16 %v2923, %v2919
    %v4676 = vpack.c.b16 %v2924, %v2920
    %v4677 = vpack.c.b16 %v2925, %v2921
    %v4678 = vpack.c.b16 %v2930, %v2926
    %v4679 = vpack.c.b16 %v2931, %v2927
    %v4680 = vpack.c.b16 %v2932, %v2928
    %v4681 = vpack.c.b16 %v2933, %v2929
    %v4682 = vpack.c.b16 %v2938, %v2934
    %v4683 = vpack.c.b16 %v2939, %v2935
    %v4684 = vpack.c.b16 %v2940, %v2936
    %v4685 = vpack.c.b16 %v2941, %v2937
    %v4686 = vpack.c.b16 %v2946, %v2942
    %v4687 = vpack.c.b16 %v2947, %v2943
    %v4688 = vpack.c.b16 %v2948, %v2944
    %v4689 = vpack.c.b16 %v2949, %v2945
    %v4690 = vpack.c.b16 %v2954, %v2950
    %v4691 = vpack.c.b16 %v2955, %v2951
    %v4692 = vpack.c.b16 %v2956, %v2952
    %v4693 = vpack.c.b16 %v2957, %v2953
    %v4694 = vpack.c.b16 %v2962, %v2958
    %v4695 = vpack.c.b16 %v2963, %v2959
    %v4696 = vpack.c.b16 %v2964, %v2960
    %v4697 = vpack.c.b16 %v2965, %v2961
    %v4698 = vpack.c.b16 %v2970, %v2966
    %v4699 = vpack.c.b16 %v2971, %v2967
    %v4700 = vpack.c.b16 %v2972, %v2968
    %v4701 = vpack.c.b16 %v2973, %v2969
    %v4702 = vpack.c.b16 %v2978, %v2974
    %v4703 = vpack.c.b16 %v2979, %v2975
    %v4704 = vpack.c.b16 %v2980, %v2976
    %v4705 = vpack.c.b16 %v2981, %v2977
    %v4706 = vpack.c.b16 %v2986, %v2982
    %v4707 = vpack.c.b16 %v2987, %v2983
    %v4708 = vpack.c.b16 %v2988, %v2984
    %v4709 = vpack.c.b16 %v2989, %v2985
    %v4710 = vpack.c.b16 %v2994, %v2990
    %v4711 = vpack.c.b16 %v2995, %v2991
    %v4712 = vpack.c.b16 %v2996, %v2992
    %v4713 = vpack.c.b16 %v2997, %v2993
    %v4714 = vpack.c.b16 %v3002, %v2998
    %v4715 = vpack.c.b16 %v3003, %v2999
    %v4716 = vpack.c.b16 %v3004, %v3000
    %v4717 = vpack.c.b16 %v3005, %v3001
    %v4718 = vpack.c.b16 %v3010, %v3006
    %v4719 = vpack.c.b16 %v3011, %v3007
    %v4720 = vpack.c.b16 %v3012, %v3008
    %v4721 = vpack.c.b16 %v3013, %v3009
    %v4722 = vpack.c.b16 %v3018, %v3014
    %v4723 = vpack.c.b16 %v3019, %v3015
    %v4724 = vpack.c.b16 %v3020, %v3016
    %v4725 = vpack.c.b16 %v3021, %v3017
    %v4726 = vpack.c.b16 %v3026, %v3022
    %v4727 = vpack.c.b16 %v3027, %v3023
    %v4728 = vpack.c.b16 %v3028, %v3024
    %v4729 = vpack.c.b16 %v3029, %v3025
    %v4730 = vpack.c.b16 %v3034, %v3030
    %v4731 = vpack.c.b16 %v3035, %v3031
    %v4732 = vpack.c.b16 %v3036, %v3032
    %v4733 = vpack.c.b16 %v3037, %v3033
    %v4734 = vpack.c.b16 %v3042, %v3038
    %v4735 = vpack.c.b16 %v3043, %v3039
    %v4736 = vpack.c.b16 %v3044, %v3040
    %v4737 = vpack.c.b16 %v3045, %v3041
    %v4738 = vpack.c.b16 %v3050, %v3046
    %v4739 = vpack.c.b16 %v3051, %v3047
    %v4740 = vpack.c.b16 %v3052, %v3048
    %v4741 = vpack.c.b16 %v3053, %v3049
    %v4742 = vpack.c.b16 %v3058, %v3054
    %v4743 = vpack.c.b16 %v3059, %v3055
    %v4744 = vpack.c.b16 %v3060, %v3056
    %v4745 = vpack.c.b16 %v3061, %v3057
    %v4746 = vpack.c.b16 %v3066, %v3062
    %v4747 = vpack.c.b16 %v3067, %v3063
    %v4748 = vpack.c.b16 %v3068, %v3064
    %v4749 = vpack.c.b16 %v3069, %v3065
    %v4750 = vpack.c.b16 %v3074, %v3070
    %v4751 = vpack.c.b16 %v3075, %v3071
    %v4752 = vpack.c.b16 %v3076, %v3072
    %v4753 = vpack.c.b16 %v3077, %v3073
    %v4754 = vpack.c.b16 %v3082, %v3078
    %v4755 = vpack.c.b16 %v3083, %v3079
    %v4756 = vpack.c.b16 %v3084, %v3080
    %v4757 = vpack.c.b16 %v3085, %v3081
    %v4758 = vpack.c.b16 %v3090, %v3086
    %v4759 = vpack.c.b16 %v3091, %v3087
    %v4760 = vpack.c.b16 %v3092, %v3088
    %v4761 = vpack.c.b16 %v3093, %v3089
    %v4762 = vpack.c.b16 %v3098, %v3094
    %v4763 = vpack.c.b16 %v3099, %v3095
    %v4764 = vpack.c.b16 %v3100, %v3096
    %v4765 = vpack.c.b16 %v3101, %v3097
    %v4766 = vpack.c.b16 %v3106, %v3102
    %v4767 = vpack.c.b16 %v3107, %v3103
    %v4768 = vpack.c.b16 %v3108, %v3104
    %v4769 = vpack.c.b16 %v3109, %v3105
    %v4770 = vpack.c.b16 %v3114, %v3110
    %v4771 = vpack.c.b16 %v3115, %v3111
    %v4772 = vpack.c.b16 %v3116, %v3112
    %v4773 = vpack.c.b16 %v3117, %v3113
    %v4774 = vpack.c.b16 %v3122, %v3118
    %v4775 = vpack.c.b16 %v3123, %v3119
    %v4776 = vpack.c.b16 %v3124, %v3120
    %v4777 = vpack.c.b16 %v3125, %v3121
    %v4778 = vpack.c.b16 %v3130, %v3126
    %v4779 = vpack.c.b16 %v3131, %v3127
    %v4780 = vpack.c.b16 %v3132, %v3128
    %v4781 = vpack.c.b16 %v3133, %v3129
    %v4782 = vpack.c.b16 %v3138, %v3134
    %v4783 = vpack.c.b16 %v3139, %v3135
    %v4784 = vpack.c.b16 %v3140, %v3136
    %v4785 = vpack.c.b16 %v3141, %v3137
    %v4786 = vpack.c.b16 %v3146, %v3142
    %v4787 = vpack.c.b16 %v3147, %v3143
    %v4788 = vpack.c.b16 %v3148, %v3144
    %v4789 = vpack.c.b16 %v3149, %v3145
    %v4790 = vpack.c.b16 %v3154, %v3150
    %v4791 = vpack.c.b16 %v3155, %v3151
    %v4792 = vpack.c.b16 %v3156, %v3152
    %v4793 = vpack.c.b16 %v3157, %v3153
    %v4794 = vpack.c.b16 %v3162, %v3158
    %v4795 = vpack.c.b16 %v3163, %v3159
    %v4796 = vpack.c.b16 %v3164, %v3160
    %v4797 = vpack.c.b16 %v3165, %v3161
    %v4798 = vpack.c.b16 %v3170, %v3166
    %v4799 = vpack.c.b16 %v3171, %v3167
    %v4800 = vpack.c.b16 %v3172, %v3168
    %v4801 = vpack.c.b16 %v3173, %v3169
    %v4802 = vpack.c.b16 %v3178, %v3174
    %v4803 = vpack.c.b16 %v3179, %v3175
    %v4804 = vpack.c.b16 %v3180, %v3176
    %v4805 = vpack.c.b16 %v3181, %v3177
    %v4806 = vpack.c.b16 %v3186, %v3182
    %v4807 = vpack.c.b16 %v3187, %v3183
    %v4808 = vpack.c.b16 %v3188, %v3184
    %v4809 = vpack.c.b16 %v3189, %v3185
    %v4810 = vpack.c.b16 %v3194, %v3190
    %v4811 = vpack.c.b16 %v3195, %v3191
    %v4812 = vpack.c.b16 %v3196, %v3192
    %v4813 = vpack.c.b16 %v3197, %v3193
    %v4814 = vpack.c.b16 %v3202, %v3198
    %v4815 = vpack.c.b16 %v3203, %v3199
    %v4816 = vpack.c.b16 %v3204, %v3200
    %v4817 = vpack.c.b16 %v3205, %v3201
    %v4818 = vpack.c.b16 %v3210, %v3206
    %v4819 = vpack.c.b16 %v3211, %v3207
    %v4820 = vpack.c.b16 %v3212, %v3208
    %v4821 = vpack.c.b16 %v3213, %v3209
    %v4822 = vpack.c.b16 %v3218, %v3214
    %v4823 = vpack.c.b16 %v3219, %v3215
    %v4824 = vpack.c.b16 %v3220, %v3216
    %v4825 = vpack.c.b16 %v3221, %v3217
    %v4826 = vpack.c.b16 %v3226, %v3222
    %v4827 = vpack.c.b16 %v3227, %v3223
    %v4828 = vpack.c.b16 %v3228, %v3224
    %v4829 = vpack.c.b16 %v3229, %v3225
    %v4830 = vpack.c.b16 %v3234, %v3230
    %v4831 = vpack.c.b16 %v3235, %v3231
    %v4832 = vpack.c.b16 %v3236, %v3232
    %v4833 = vpack.c.b16 %v3237, %v3233
    %v4834 = vpack.c.b16 %v3242, %v3238
    %v4835 = vpack.c.b16 %v3243, %v3239
    %v4836 = vpack.c.b16 %v3244, %v3240
    %v4837 = vpack.c.b16 %v3245, %v3241
    %v4838 = vpack.c.b16 %v3250, %v3246
    %v4839 = vpack.c.b16 %v3251, %v3247
    %v4840 = vpack.c.b16 %v3252, %v3248
    %v4841 = vpack.c.b16 %v3253, %v3249
    %v4842 = vpack.c.b16 %v3258, %v3254
    %v4843 = vpack.c.b16 %v3259, %v3255
    %v4844 = vpack.c.b16 %v3260, %v3256
    %v4845 = vpack.c.b16 %v3261, %v3257
    %v4846 = vpack.c.b16 %v3266, %v3262
    %v4847 = vpack.c.b16 %v3267, %v3263
    %v4848 = vpack.c.b16 %v3268, %v3264
    %v4849 = vpack.c.b16 %v3269, %v3265
    %v4850 = vpack.c.b16 %v3274, %v3270
    %v4851 = vpack.c.b16 %v3275, %v3271
    %v4852 = vpack.c.b16 %v3276, %v3272
    %v4853 = vpack.c.b16 %v3277, %v3273
    %v4854 = vpack.c.b16 %v3282, %v3278
    %v4855 = vpack.c.b16 %v3283, %v3279
    %v4856 = vpack.c.b16 %v3284, %v3280
    %v4857 = vpack.c.b16 %v3285, %v3281
    %v4858 = vpack.c.b16 %v3290, %v3286
    %v4859 = vpack.c.b16 %v3291, %v3287
    %v4860 = vpack.c.b16 %v3292, %v3288
    %v4861 = vpack.c.b16 %v3293, %v3289
    %v4862 = vpack.c.b16 %v3298, %v3294
    %v4863 = vpack.c.b16 %v3299, %v3295
    %v4864 = vpack.c.b16 %v3300, %v3296
    %v4865 = vpack.c.b16 %v3301, %v3297
    %v4866 = vpack.c.b16 %v3306, %v3302
    %v4867 = vpack.c.b16 %v3307, %v3303
    %v4868 = vpack.c.b16 %v3308, %v3304
    %v4869 = vpack.c.b16 %v3309, %v3305
    %v4870 = vpack.c.b16 %v3314, %v3310
    %v4871 = vpack.c.b16 %v3315, %v3311
    %v4872 = vpack.c.b16 %v3316, %v3312
    %v4873 = vpack.c.b16 %v3317, %v3313
    %v4874 = vpack.c.b16 %v3322, %v3318
    %v4875 = vpack.c.b16 %v3323, %v3319
    %v4876 = vpack.c.b16 %v3324, %v3320
    %v4877 = vpack.c.b16 %v3325, %v3321
    %v4878 = vpack.c.b16 %v3330, %v3326
    %v4879 = vpack.c.b16 %v3331, %v3327
    %v4880 = vpack.c.b16 %v3332, %v3328
    %v4881 = vpack.c.b16 %v3333, %v3329
    %v4882 = vpack.c.b16 %v3338, %v3334
    %v4883 = vpack.c.b16 %v3339, %v3335
    %v4884 = vpack.c.b16 %v3340, %v3336
    %v4885 = vpack.c.b16 %v3341, %v3337
    %v4886 = vpack.c.b16 %v3346, %v3342
    %v4887 = vpack.c.b16 %v3347, %v3343
    %v4888 = vpack.c.b16 %v3348, %v3344
    %v4889 = vpack.c.b16 %v3349, %v3345
    %v4890 = vpack.c.b16 %v3354, %v3350
    %v4891 = vpack.c.b16 %v3355, %v3351
    %v4892 = vpack.c.b16 %v3356, %v3352
    %v4893 = vpack.c.b16 %v3357, %v3353
    %v4894 = vpack.c.b16 %v3362, %v3358
    %v4895 = vpack.c.b16 %v3363, %v3359
    %v4896 = vpack.c.b16 %v3364, %v3360
    %v4897 = vpack.c.b16 %v3365, %v3361
    %v4898 = vpack.c.b16 %v3370, %v3366
    %v4899 = vpack.c.b16 %v3371, %v3367
    %v4900 = vpack.c.b16 %v3372, %v3368
    %v4901 = vpack.c.b16 %v3373, %v3369
    %v4902 = vpack.c.b16 %v3378, %v3374
    %v4903 = vpack.c.b16 %v3379, %v3375
    %v4904 = vpack.c.b16 %v3380, %v3376
    %v4905 = vpack.c.b16 %v3381, %v3377
    %v4906 = vpack.c.b16 %v3386, %v3382
    %v4907 = vpack.c.b16 %v3387, %v3383
    %v4908 = vpack.c.b16 %v3388, %v3384
    %v4909 = vpack.c.b16 %v3389, %v3385
    %v4910 = vpack.c.b16 %v3394, %v3390
    %v4911 = vpack.c.b16 %v3395, %v3391
    %v4912 = vpack.c.b16 %v3396, %v3392
    %v4913 = vpack.c.b16 %v3397, %v3393
    %v4914 = vpack.c.b16 %v3402, %v3398
    %v4915 = vpack.c.b16 %v3403, %v3399
    %v4916 = vpack.c.b16 %v3404, %v3400
    %v4917 = vpack.c.b16 %v3405, %v3401
    %v4918 = vpack.c.b16 %v3410, %v3406
    %v4919 = vpack.c.b16 %v3411, %v3407
    %v4920 = vpack.c.b16 %v3412, %v3408
    %v4921 = vpack.c.b16 %v3413, %v3409
    %v4922 = vpack.c.b16 %v3418, %v3414
    %v4923 = vpack.c.b16 %v3419, %v3415
    %v4924 = vpack.c.b16 %v3420, %v3416
    %v4925 = vpack.c.b16 %v3421, %v3417
    %v4926 = vpack.c.b16 %v3426, %v3422
    %v4927 = vpack.c.b16 %v3427, %v3423
    %v4928 = vpack.c.b16 %v3428, %v3424
    %v4929 = vpack.c.b16 %v3429, %v3425
    %v4930 = vpack.c.b16 %v3434, %v3430
    %v4931 = vpack.c.b16 %v3435, %v3431
    %v4932 = vpack.c.b16 %v3436, %v3432
    %v4933 = vpack.c.b16 %v3437, %v3433
    %v4934 = vpack.c.b16 %v3442, %v3438
    %v4935 = vpack.c.b16 %v3443, %v3439
    %v4936 = vpack.c.b16 %v3444, %v3440
    %v4937 = vpack.c.b16 %v3445, %v3441
    %v4938 = vpack.c.b16 %v3450, %v3446
    %v4939 = vpack.c.b16 %v3451, %v3447
    %v4940 = vpack.c.b16 %v3452, %v3448
    %v4941 = vpack.c.b16 %v3453, %v3449
    %v4942 = vpack.c.b16 %v3458, %v3454
    %v4943 = vpack.c.b16 %v3459, %v3455
    %v4944 = vpack.c.b16 %v3460, %v3456
    %v4945 = vpack.c.b16 %v3461, %v3457
    %v4946 = vpack.c.b16 %v3466, %v3462
    %v4947 = vpack.c.b16 %v3467, %v3463
    %v4948 = vpack.c.b16 %v3468, %v3464
    %v4949 = vpack.c.b16 %v3469, %v3465
    %v4950 = vpack.c.b16 %v3474, %v3470
    %v4951 = vpack.c.b16 %v3475, %v3471
    %v4952 = vpack.c.b16 %v3476, %v3472
    %v4953 = vpack.c.b16 %v3477, %v3473
    %v4954 = vpack.c.b16 %v3482, %v3478
    %v4955 = vpack.c.b16 %v3483, %v3479
    %v4956 = vpack.c.b16 %v3484, %v3480
    %v4957 = vpack.c.b16 %v3485, %v3481
    %v4958 = vpack.c.b16 %v3490, %v3486
    %v4959 = vpack.c.b16 %v3491, %v3487
    %v4960 = vpack.c.b16 %v3492, %v3488
    %v4961 = vpack.c.b16 %v3493, %v3489
    %v4962 = vpack.c.b16 %v3498, %v3494
    %v4963 = vpack.c.b16 %v3499, %v3495
    %v4964 = vpack.c.b16 %v3500, %v3496
    %v4965 = vpack.c.b16 %v3501, %v3497
    %v4966 = vpack.c.b16 %v3506, %v3502
    %v4967 = vpack.c.b16 %v3507, %v3503
    %v4968 = vpack.c.b16 %v3508, %v3504
    %v4969 = vpack.c.b16 %v3509, %v3505
    %v4970 = vpack.c.b16 %v3514, %v3510
    %v4971 = vpack.c.b16 %v3515, %v3511
    %v4972 = vpack.c.b16 %v3516, %v3512
    %v4973 = vpack.c.b16 %v3517, %v3513
    %v4974 = vpack.c.b16 %v3522, %v3518
    %v4975 = vpack.c.b16 %v3523, %v3519
    %v4976 = vpack.c.b16 %v3524, %v3520
    %v4977 = vpack.c.b16 %v3525, %v3521
    %v4978 = vpack.c.b16 %v3530, %v3526
    %v4979 = vpack.c.b16 %v3531, %v3527
    %v4980 = vpack.c.b16 %v3532, %v3528
    %v4981 = vpack.c.b16 %v3533, %v3529
    %v4982 = vpack.c.b16 %v3538, %v3534
    %v4983 = vpack.c.b16 %v3539, %v3535
    %v4984 = vpack.c.b16 %v3540, %v3536
    %v4985 = vpack.c.b16 %v3541, %v3537
    %v4986 = vpack.c.b16 %v3546, %v3542
    %v4987 = vpack.c.b16 %v3547, %v3543
    %v4988 = vpack.c.b16 %v3548, %v3544
    %v4989 = vpack.c.b16 %v3549, %v3545
    %v4990 = vpack.c.b16 %v3554, %v3550
    %v4991 = vpack.c.b16 %v3555, %v3551
    %v4992 = vpack.c.b16 %v3556, %v3552
    %v4993 = vpack.c.b16 %v3557, %v3553
    %v4994 = vpack.c.b16 %v3562, %v3558
    %v4995 = vpack.c.b16 %v3563, %v3559
    %v4996 = vpack.c.b16 %v3564, %v3560
    %v4997 = vpack.c.b16 %v3565, %v3561
    %v4998 = vpack.c.b16 %v3570, %v3566
    %v4999 = vpack.c.b16 %v3571, %v3567
    %v5000 = vpack.c.b16 %v3572, %v3568
    %v5001 = vpack.c.b16 %v3573, %v3569
    %v5002 = vpack.c.b16 %v3578, %v3574
    %v5003 = vpack.c.b16 %v3579, %v3575
    %v5004 = vpack.c.b16 %v3580, %v3576
    %v5005 = vpack.c.b16 %v3581, %v3577
    %v5006 = vpack.c.b16 %v3586, %v3582
    %v5007 = vpack.c.b16 %v3587, %v3583
    %v5008 = vpack.c.b16 %v3588, %v3584
    %v5009 = vpack.c.b16 %v3589, %v3585
    %v5010 = vpack.c.b16 %v3594, %v3590
    %v5011 = vpack.c.b16 %v3595, %v3591
    %v5012 = vpack.c.b16 %v3596, %v3592
    %v5013 = vpack.c.b16 %v3597, %v3593
    %v5014 = vpack.c.b16 %v3602, %v3598
    %v5015 = vpack.c.b16 %v3603, %v3599
    %v5016 = vpack.c.b16 %v3604, %v3600
    %v5017 = vpack.c.b16 %v3605, %v3601
    %v5018 = vpack.c.b16 %v3610, %v3606
    %v5019 = vpack.c.b16 %v3611, %v3607
    %v5020 = vpack.c.b16 %v3612, %v3608
    %v5021 = vpack.c.b16 %v3613, %v3609
    %v5022 = vpack.c.b16 %v3618, %v3614
    %v5023 = vpack.c.b16 %v3619, %v3615
    %v5024 = vpack.c.b16 %v3620, %v3616
    %v5025 = vpack.c.b16 %v3621, %v3617
    %v5026 = vpack.c.b16 %v3626, %v3622
    %v5027 = vpack.c.b16 %v3627, %v3623
    %v5028 = vpack.c.b16 %v3628, %v3624
    %v5029 = vpack.c.b16 %v3629, %v3625
    %v5030 = vpack.c.b16 %v3634, %v3630
    %v5031 = vpack.c.b16 %v3635, %v3631
    %v5032 = vpack.c.b16 %v3636, %v3632
    %v5033 = vpack.c.b16 %v3637, %v3633
    %v5034 = vpack.c.b16 %v3642, %v3638
    %v5035 = vpack.c.b16 %v3643, %v3639
    %v5036 = vpack.c.b16 %v3644, %v3640
    %v5037 = vpack.c.b16 %v3645, %v3641
    %v5038 = vpack.c.b16 %v3650, %v3646
    %v5039 = vpack.c.b16 %v3651, %v3647
    %v5040 = vpack.c.b16 %v3652, %v3648
    %v5041 = vpack.c.b16 %v3653, %v3649
    %v5042 = vpack.c.b16 %v3658, %v3654
    %v5043 = vpack.c.b16 %v3659, %v3655
    %v5044 = vpack.c.b16 %v3660, %v3656
    %v5045 = vpack.c.b16 %v3661, %v3657
    %v5046 = vpack.c.b16 %v3666, %v3662
    %v5047 = vpack.c.b16 %v3667, %v3663
    %v5048 = vpack.c.b16 %v3668, %v3664
    %v5049 = vpack.c.b16 %v3669, %v3665
    %v5050 = vpack.c.b16 %v3674, %v3670
    %v5051 = vpack.c.b16 %v3675, %v3671
    %v5052 = vpack.c.b16 %v3676, %v3672
    %v5053 = vpack.c.b16 %v3677, %v3673
    %v5054 = vpack.c.b16 %v3682, %v3678
    %v5055 = vpack.c.b16 %v3683, %v3679
    %v5056 = vpack.c.b16 %v3684, %v3680
    %v5057 = vpack.c.b16 %v3685, %v3681
    %v5058 = vpack.c.b16 %v3690, %v3686
    %v5059 = vpack.c.b16 %v3691, %v3687
    %v5060 = vpack.c.b16 %v3692, %v3688
    %v5061 = vpack.c.b16 %v3693, %v3689
    %v5062 = vpack.c.b16 %v3698, %v3694
    %v5063 = vpack.c.b16 %v3699, %v3695
    %v5064 = vpack.c.b16 %v3700, %v3696
    %v5065 = vpack.c.b16 %v3701, %v3697
    %v5066 = vpack.c.b16 %v3706, %v3702
    %v5067 = vpack.c.b16 %v3707, %v3703
    %v5068 = vpack.c.b16 %v3708, %v3704
    %v5069 = vpack.c.b16 %v3709, %v3705
    %v5070 = vpack.c.b16 %v3714, %v3710
    %v5071 = vpack.c.b16 %v3715, %v3711
    %v5072 = vpack.c.b16 %v3716, %v3712
    %v5073 = vpack.c.b16 %v3717, %v3713
    %v5074 = vpack.c.b16 %v3722, %v3718
    %v5075 = vpack.c.b16 %v3723, %v3719
    %v5076 = vpack.c.b16 %v3724, %v3720
    %v5077 = vpack.c.b16 %v3725, %v3721
    %v5078 = vpack.c.b16 %v3730, %v3726
    %v5079 = vpack.c.b16 %v3731, %v3727
    %v5080 = vpack.c.b16 %v3732, %v3728
    %v5081 = vpack.c.b16 %v3733, %v3729
    %v5082 = vpack.c.b16 %v3738, %v3734
    %v5083 = vpack.c.b16 %v3739, %v3735
    %v5084 = vpack.c.b16 %v3740, %v3736
    %v5085 = vpack.c.b16 %v3741, %v3737
    %v5086 = vpack.c.b16 %v3746, %v3742
    %v5087 = vpack.c.b16 %v3747, %v3743
    %v5088 = vpack.c.b16 %v3748, %v3744
    %v5089 = vpack.c.b16 %v3749, %v3745
    %v5090 = vpack.c.b16 %v3754, %v3750
    %v5091 = vpack.c.b16 %v3755, %v3751
    %v5092 = vpack.c.b16 %v3756, %v3752
    %v5093 = vpack.c.b16 %v3757, %v3753
    %v5094 = vpack.c.b16 %v3762, %v3758
    %v5095 = vpack.c.b16 %v3763, %v3759
    %v5096 = vpack.c.b16 %v3764, %v3760
    %v5097 = vpack.c.b16 %v3765, %v3761
    %v5098 = vpack.c.b16 %v3770, %v3766
    %v5099 = vpack.c.b16 %v3771, %v3767
    %v5100 = vpack.c.b16 %v3772, %v3768
    %v5101 = vpack.c.b16 %v3773, %v3769
    %v5102 = vpack.c.b16 %v3778, %v3774
    %v5103 = vpack.c.b16 %v3779, %v3775
    %v5104 = vpack.c.b16 %v3780, %v3776
    %v5105 = vpack.c.b16 %v3781, %v3777
    %v5106 = vpack.c.b16 %v3786, %v3782
    %v5107 = vpack.c.b16 %v3787, %v3783
    %v5108 = vpack.c.b16 %v3788, %v3784
    %v5109 = vpack.c.b16 %v3789, %v3785
    %v5110 = vpack.c.b16 %v3794, %v3790
    %v5111 = vpack.c.b16 %v3795, %v3791
    %v5112 = vpack.c.b16 %v3796, %v3792
    %v5113 = vpack.c.b16 %v3797, %v3793
    %v5114 = vpack.c.b16 %v3802, %v3798
    %v5115 = vpack.c.b16 %v3803, %v3799
    %v5116 = vpack.c.b16 %v3804, %v3800
    %v5117 = vpack.c.b16 %v3805, %v3801
    %v5118 = vpack.c.b16 %v3810, %v3806
    %v5119 = vpack.c.b16 %v3811, %v3807
    %v5120 = vpack.c.b16 %v3812, %v3808
    %v5121 = vpack.c.b16 %v3813, %v3809
    %v5122 = vpack.c.b16 %v3818, %v3814
    %v5123 = vpack.c.b16 %v3819, %v3815
    %v5124 = vpack.c.b16 %v3820, %v3816
    %v5125 = vpack.c.b16 %v3821, %v3817
    %v5126 = vpack.c.b16 %v3826, %v3822
    %v5127 = vpack.c.b16 %v3827, %v3823
    %v5128 = vpack.c.b16 %v3828, %v3824
    %v5129 = vpack.c.b16 %v3829, %v3825
    %v5130 = vpack.c.b16 %v3834, %v3830
    %v5131 = vpack.c.b16 %v3835, %v3831
    %v5132 = vpack.c.b16 %v3836, %v3832
    %v5133 = vpack.c.b16 %v3837, %v3833
    %v5134 = vpack.c.b16 %v3842, %v3838
    %v5135 = vpack.c.b16 %v3843, %v3839
    %v5136 = vpack.c.b16 %v3844, %v3840
    %v5137 = vpack.c.b16 %v3845, %v3841
    %v5138 = vpack.c.b16 %v3850, %v3846
    %v5139 = vpack.c.b16 %v3851, %v3847
    %v5140 = vpack.c.b16 %v3852, %v3848
    %v5141 = vpack.c.b16 %v3853, %v3849
    %v5142 = vpack.c.b16 %v3858, %v3854
    %v5143 = vpack.c.b16 %v3859, %v3855
    %v5144 = vpack.c.b16 %v3860, %v3856
    %v5145 = vpack.c.b16 %v3861, %v3857
    %v5146 = vpack.c.b16 %v3866, %v3862
    %v5147 = vpack.c.b16 %v3867, %v3863
    %v5148 = vpack.c.b16 %v3868, %v3864
    %v5149 = vpack.c.b16 %v3869, %v3865
    %v5150 = vpack.c.b16 %v3874, %v3870
    %v5151 = vpack.c.b16 %v3875, %v3871
    %v5152 = vpack.c.b16 %v3876, %v3872
    %v5153 = vpack.c.b16 %v3877, %v3873
    %v5154 = vpack.c.b16 %v3882, %v3878
    %v5155 = vpack.c.b16 %v3883, %v3879
    %v5156 = vpack.c.b16 %v3884, %v3880
    %v5157 = vpack.c.b16 %v3885, %v3881
    %v5158 = vpack.c.b16 %v3890, %v3886
    %v5159 = vpack.c.b16 %v3891, %v3887
    %v5160 = vpack.c.b16 %v3892, %v3888
    %v5161 = vpack.c.b16 %v3893, %v3889
    %v5162 = vpack.c.b16 %v3898, %v3894
    %v5163 = vpack.c.b16 %v3899, %v3895
    %v5164 = vpack.c.b16 %v3900, %v3896
    %v5165 = vpack.c.b16 %v3901, %v3897
    %v5166 = vpack.c.b16 %v3906, %v3902
    %v5167 = vpack.c.b16 %v3907, %v3903
    %v5168 = vpack.c.b16 %v3908, %v3904
    %v5169 = vpack.c.b16 %v3909, %v3905
    %v5170 = vpack.c.b16 %v3914, %v3910
    %v5171 = vpack.c.b16 %v3915, %v3911
    %v5172 = vpack.c.b16 %v3916, %v3912
    %v5173 = vpack.c.b16 %v3917, %v3913
    %v5174 = vpack.c.b16 %v3922, %v3918
    %v5175 = vpack.c.b16 %v3923, %v3919
    %v5176 = vpack.c.b16 %v3924, %v3920
    %v5177 = vpack.c.b16 %v3925, %v3921
    %v5178 = vpack.c.b16 %v3930, %v3926
    %v5179 = vpack.c.b16 %v3931, %v3927
    %v5180 = vpack.c.b16 %v3932, %v3928
    %v5181 = vpack.c.b16 %v3933, %v3929
    %v5182 = vpack.c.b16 %v3938, %v3934
    %v5183 = vpack.c.b16 %v3939, %v3935
    %v5184 = vpack.c.b16 %v3940, %v3936
    %v5185 = vpack.c.b16 %v3941, %v3937
    %v5186 = vpack.c.b16 %v3946, %v3942
    %v5187 = vpack.c.b16 %v3947, %v3943
    %v5188 = vpack.c.b16 %v3948, %v3944
    %v5189 = vpack.c.b16 %v3949, %v3945
    %v5190 = vpack.c.b16 %v3954, %v3950
    %v5191 = vpack.c.b16 %v3955, %v3951
    %v5192 = vpack.c.b16 %v3956, %v3952
    %v5193 = vpack.c.b16 %v3957, %v3953
    %v5194 = vpack.c.b16 %v3962, %v3958
    %v5195 = vpack.c.b16 %v3963, %v3959
    %v5196 = vpack.c.b16 %v3964, %v3960
    %v5197 = vpack.c.b16 %v3965, %v3961
    %v5198 = vpack.c.b16 %v3970, %v3966
    %v5199 = vpack.c.b16 %v3971, %v3967
    %v5200 = vpack.c.b16 %v3972, %v3968
    %v5201 = vpack.c.b16 %v3973, %v3969
    %v5202 = vpack.c.b16 %v3978, %v3974
    %v5203 = vpack.c.b16 %v3979, %v3975
    %v5204 = vpack.c.b16 %v3980, %v3976
    %v5205 = vpack.c.b16 %v3981, %v3977
    %v5206 = vpack.c.b16 %v3986, %v3982
    %v5207 = vpack.c.b16 %v3987, %v3983
    %v5208 = vpack.c.b16 %v3988, %v3984
    %v5209 = vpack.c.b16 %v3989, %v3985
    %v5210 = vpack.c.b16 %v3994, %v3990
    %v5211 = vpack.c.b16 %v3995, %v3991
    %v5212 = vpack.c.b16 %v3996, %v3992
    %v5213 = vpack.c.b16 %v3997, %v3993
    %v5214 = vpack.c.b16 %v4002, %v3998
    %v5215 = vpack.c.b16 %v4003, %v3999
    %v5216 = vpack.c.b16 %v4004, %v4000
    %v5217 = vpack.c.b16 %v4005, %v4001
    %v5218 = vpack.c.b16 %v4010, %v4006
    %v5219 = vpack.c.b16 %v4011, %v4007
    %v5220 = vpack.c.b16 %v4012, %v4008
    %v5221 = vpack.c.b16 %v4013, %v4009
    %v5222 = vpack.c.b16 %v4018, %v4014
    %v5223 = vpack.c.b16 %v4019, %v4015
    %v5224 = vpack.c.b16 %v4020, %v4016
    %v5225 = vpack.c.b16 %v4021, %v4017
    %v5226 = vpack.c.b16 %v4026, %v4022
    %v5227 = vpack.c.b16 %v4027, %v4023
    %v5228 = vpack.c.b16 %v4028, %v4024
    %v5229 = vpack.c.b16 %v4029, %v4025
    %v5230 = vpack.c.b16 %v4034, %v4030
    %v5231 = vpack.c.b16 %v4035, %v4031
    %v5232 = vpack.c.b16 %v4036, %v4032
    %v5233 = vpack.c.b16 %v4037, %v4033
    %v5234 = vpack.c.b16 %v4042, %v4038
    %v5235 = vpack.c.b16 %v4043, %v4039
    %v5236 = vpack.c.b16 %v4044, %v4040
    %v5237 = vpack.c.b16 %v4045, %v4041
    %v5238 = vpack.c.b16 %v4050, %v4046
    %v5239 = vpack.c.b16 %v4051, %v4047
    %v5240 = vpack.c.b16 %v4052, %v4048
    %v5241 = vpack.c.b16 %v4053, %v4049
    %v5242 = vpack.c.b16 %v4058, %v4054
    %v5243 = vpack.c.b16 %v4059, %v4055
    %v5244 = vpack.c.b16 %v4060, %v4056
    %v5245 = vpack.c.b16 %v4061, %v4057
    %v5246 = vpack.c.b16 %v4066, %v4062
    %v5247 = vpack.c.b16 %v4067, %v4063
    %v5248 = vpack.c.b16 %v4068, %v4064
    %v5249 = vpack.c.b16 %v4069, %v4065
    %v5250 = vpack.c.b16 %v4074, %v4070
    %v5251 = vpack.c.b16 %v4075, %v4071
    %v5252 = vpack.c.b16 %v4076, %v4072
    %v5253 = vpack.c.b16 %v4077, %v4073
    %v5254 = vpack.c.b16 %v4082, %v4078
    %v5255 = vpack.c.b16 %v4083, %v4079
    %v5256 = vpack.c.b16 %v4084, %v4080
    %v5257 = vpack.c.b16 %v4085, %v4081
    %v5258 = vpack.c.b16 %v4090, %v4086
    %v5259 = vpack.c.b16 %v4091, %v4087
    %v5260 = vpack.c.b16 %v4092, %v4088
    %v5261 = vpack.c.b16 %v4093, %v4089
    %v5262 = vpack.c.b16 %v4098, %v4094
    %v5263 = vpack.c.b16 %v4099, %v4095
    %v5264 = vpack.c.b16 %v4100, %v4096
    %v5265 = vpack.c.b16 %v4101, %v4097
    %v5266 = vpack.c.b16 %v4106, %v4102
    %v5267 = vpack.c.b16 %v4107, %v4103
    %v5268 = vpack.c.b16 %v4108, %v4104
    %v5269 = vpack.c.b16 %v4109, %v4105
    %v5270 = vpack.c.b16 %v4114, %v4110
    %v5271 = vpack.c.b16 %v4115, %v4111
    %v5272 = vpack.c.b16 %v4116, %v4112
    %v5273 = vpack.c.b16 %v4117, %v4113
    %v5274 = vpack.c.b16 %v4122, %v4118
    %v5275 = vpack.c.b16 %v4123, %v4119
    %v5276 = vpack.c.b16 %v4124, %v4120
    %v5277 = vpack.c.b16 %v4125, %v4121
    %v5278 = vpack.c.b16 %v4130, %v4126
    %v5279 = vpack.c.b16 %v4131, %v4127
    %v5280 = vpack.c.b16 %v4132, %v4128
    %v5281 = vpack.c.b16 %v4133, %v4129
    %v5282 = vpack.c.b16 %v4138, %v4134
    %v5283 = vpack.c.b16 %v4139, %v4135
    %v5284 = vpack.c.b16 %v4140, %v4136
    %v5285 = vpack.c.b16 %v4141, %v4137
    %v5286 = vpack.c.b16 %v4146, %v4142
    %v5287 = vpack.c.b16 %v4147, %v4143
    %v5288 = vpack.c.b16 %v4148, %v4144
    %v5289 = vpack.c.b16 %v4149, %v4145
    %v5290 = vpack.c.b16 %v4154, %v4150
    %v5291 = vpack.c.b16 %v4155, %v4151
    %v5292 = vpack.c.b16 %v4156, %v4152
    %v5293 = vpack.c.b16 %v4157, %v4153
    %v5294 = vpack.c.b16 %v4162, %v4158
    %v5295 = vpack.c.b16 %v4163, %v4159
    %v5296 = vpack.c.b16 %v4164, %v4160
    %v5297 = vpack.c.b16 %v4165, %v4161
    %v5298 = vpack.c.b16 %v4170, %v4166
    %v5299 = vpack.c.b16 %v4171, %v4167
    %v5300 = vpack.c.b16 %v4172, %v4168
    %v5301 = vpack.c.b16 %v4173, %v4169
    %v5302 = vpack.c.b16 %v4178, %v4174
    %v5303 = vpack.c.b16 %v4179, %v4175
    %v5304 = vpack.c.b16 %v4180, %v4176
    %v5305 = vpack.c.b16 %v4181, %v4177
    %v5306 = vpack.c.b16 %v4186, %v4182
    %v5307 = vpack.c.b16 %v4187, %v4183
    %v5308 = vpack.c.b16 %v4188, %v4184
    %v5309 = vpack.c.b16 %v4189, %v4185
    %v5310 = vpack.c.b16 %v4194, %v4190
    %v5311 = vpack.c.b16 %v4195, %v4191
    %v5312 = vpack.c.b16 %v4196, %v4192
    %v5313 = vpack.c.b16 %v4197, %v4193
    %v5314 = vpack.c.b16 %v4202, %v4198
    %v5315 = vpack.c.b16 %v4203, %v4199
    %v5316 = vpack.c.b16 %v4204, %v4200
    %v5317 = vpack.c.b16 %v4205, %v4201
    %v5318 = vpack.c.b16 %v4210, %v4206
    %v5319 = vpack.c.b16 %v4211, %v4207
    %v5320 = vpack.c.b16 %v4212, %v4208
    %v5321 = vpack.c.b16 %v4213, %v4209
    %v5322 = vpack.c.b16 %v4218, %v4214
    %v5323 = vpack.c.b16 %v4219, %v4215
    %v5324 = vpack.c.b16 %v4220, %v4216
    %v5325 = vpack.c.b16 %v4221, %v4217
    %v5326 = vpack.c.b16 %v4226, %v4222
    %v5327 = vpack.c.b16 %v4227, %v4223
    %v5328 = vpack.c.b16 %v4228, %v4224
    %v5329 = vpack.c.b16 %v4229, %v4225
    %v5330 = vpack.c.b16 %v4234, %v4230
    %v5331 = vpack.c.b16 %v4235, %v4231
    %v5332 = vpack.c.b16 %v4236, %v4232
    %v5333 = vpack.c.b16 %v4237, %v4233
    %v5334 = vpack.c.b16 %v4242, %v4238
    %v5335 = vpack.c.b16 %v4243, %v4239
    %v5336 = vpack.c.b16 %v4244, %v4240
    %v5337 = vpack.c.b16 %v4245, %v4241
    %v5338 = vpack.c.b16 %v4250, %v4246
    %v5339 = vpack.c.b16 %v4251, %v4247
    %v5340 = vpack.c.b16 %v4252, %v4248
    %v5341 = vpack.c.b16 %v4253, %v4249
    %v5342 = vpack.c.b16 %v4258, %v4254
    %v5343 = vpack.c.b16 %v4259, %v4255
    %v5344 = vpack.c.b16 %v4260, %v4256
    %v5345 = vpack.c.b16 %v4261, %v4257
    %v5346 = vpack.c.b16 %v4266, %v4262
    %v5347 = vpack.c.b16 %v4267, %v4263
    %v5348 = vpack.c.b16 %v4268, %v4264
    %v5349 = vpack.c.b16 %v4269, %v4265
    %v5350 = vpack.c.b16 %v4274, %v4270
    %v5351 = vpack.c.b16 %v4275, %v4271
    %v5352 = vpack.c.b16 %v4276, %v4272
    %v5353 = vpack.c.b16 %v4277, %v4273
    %v5354 = vpack.c.b16 %v4282, %v4278
    %v5355 = vpack.c.b16 %v4283, %v4279
    %v5356 = vpack.c.b16 %v4284, %v4280
    %v5357 = vpack.c.b16 %v4285, %v4281
    %v5358 = vpack.c.b16 %v4290, %v4286
    %v5359 = vpack.c.b16 %v4291, %v4287
    %v5360 = vpack.c.b16 %v4292, %v4288
    %v5361 = vpack.c.b16 %v4293, %v4289
    %v5362 = vpack.c.b16 %v4298, %v4294
    %v5363 = vpack.c.b16 %v4299, %v4295
    %v5364 = vpack.c.b16 %v4300, %v4296
    %v5365 = vpack.c.b16 %v4301, %v4297
    %v5366 = vpack.c.b16 %v4306, %v4302
    %v5367 = vpack.c.b16 %v4307, %v4303
    %v5368 = vpack.c.b16 %v4308, %v4304
    %v5369 = vpack.c.b16 %v4309, %v4305
    %v5370 = vpack.c.b16 %v4314, %v4310
    %v5371 = vpack.c.b16 %v4315, %v4311
    %v5372 = vpack.c.b16 %v4316, %v4312
    %v5373 = vpack.c.b16 %v4317, %v4313
    %v5374 = vpack.c.b16 %v4322, %v4318
    %v5375 = vpack.c.b16 %v4323, %v4319
    %v5376 = vpack.c.b16 %v4324, %v4320
    %v5377 = vpack.c.b16 %v4325, %v4321
    %v5378 = vpack.c.b16 %v4330, %v4326
    %v5379 = vpack.c.b16 %v4331, %v4327
    %v5380 = vpack.c.b16 %v4332, %v4328
    %v5381 = vpack.c.b16 %v4333, %v4329
    %v5382 = vpack.c.b16 %v4338, %v4334
    %v5383 = vpack.c.b16 %v4339, %v4335
    %v5384 = vpack.c.b16 %v4340, %v4336
    %v5385 = vpack.c.b16 %v4341, %v4337
    %v5386 = vpack.c.b16 %v4346, %v4342
    %v5387 = vpack.c.b16 %v4347, %v4343
    %v5388 = vpack.c.b16 %v4348, %v4344
    %v5389 = vpack.c.b16 %v4349, %v4345
    %v5390 = vpack.c.b16 %v4354, %v4350
    %v5391 = vpack.c.b16 %v4355, %v4351
    %v5392 = vpack.c.b16 %v4356, %v4352
    %v5393 = vpack.c.b16 %v4357, %v4353
    %v5394 = vpack.c.b16 %v4362, %v4358
    %v5395 = vpack.c.b16 %v4363, %v4359
    %v5396 = vpack.c.b16 %v4364, %v4360
    %v5397 = vpack.c.b16 %v4365, %v4361
    %v5398 = vpack.c.b16 %v4370, %v4366
    %v5399 = vpack.c.b16 %v4371, %v4367
    %v5400 = vpack.c.b16 %v4372, %v4368
    %v5401 = vpack.c.b16 %v4373, %v4369
    %v5402 = vpack.c.b16 %v4378, %v4374
    %v5403 = vpack.c.b16 %v4379, %v4375
    %v5404 = vpack.c.b16 %v4380, %v4376
    %v5405 = vpack.c.b16 %v4381, %v4377
    %6430 = vmatprep.subr.bf16.mxu0 %v4411
    %6431 = vmatpush1.bf16.msra.mxu0 %v4410
    %6432 = vmatprep.subr.bf16.mxu0 %v4407
    %6433 = vmatpush1.bf16.msra.mxu0 %v4406
    %6434 = vmatprep.subr.bf16.mxu0 %v4403
    %6435 = vmatpush1.bf16.msra.mxu0 %v4402
    %6436 = vmatprep.subr.bf16.mxu0 %v4399
    %6437 = vmatpush1.bf16.msra.mxu0 %v4398
    %6438 = vmatprep.subr.bf16.mxu0 %v4395
    %6439 = vmatpush1.bf16.msra.mxu0 %v4394
    %6440 = vmatprep.subr.bf16.mxu0 %v4391
    %6441 = vmatpush1.bf16.msra.mxu0 %v4390
    %6442 = vmatprep.subr.bf16.mxu0 %v4387
    %6443 = vmatpush1.bf16.msra.mxu0 %v4386
    %6444 = vmatprep.subr.bf16.mxu0 %v4383
    %6445 = vmatpush1.bf16.msra.mxu0 %v4382
    %6446 = vmatprep.subr.bf16.mxu0 %v4443
    %6447 = vmatpush2.bf16.msra.mxu0 %v4442
    %6448 = vmatprep.subr.bf16.mxu0 %v4439
    %6449 = vmatpush2.bf16.msra.mxu0 %v4438
    %6450 = vmatprep.subr.bf16.mxu0 %v4435
    %6451 = vmatpush2.bf16.msra.mxu0 %v4434
    %6452 = vmatprep.subr.bf16.mxu0 %v4431
    %6453 = vmatpush2.bf16.msra.mxu0 %v4430
    %6454 = vmatprep.subr.bf16.mxu0 %v4427
    %6455 = vmatpush2.bf16.msra.mxu0 %v4426
    %6456 = vmatprep.subr.bf16.mxu0 %v4423
    %6457 = vmatpush2.bf16.msra.mxu0 %v4422
    %6458 = vmatprep.subr.bf16.mxu0 %v4419
    %6459 = vmatpush2.bf16.msra.mxu0 %v4418
    %6460 = vmatprep.subr.bf16.mxu0 %v4415
    %6461 = vmatpush2.bf16.msra.mxu0 %v4414
    %6462 = vmatprep.mubr.bf16.mxu0 %v1119
    %6463 = vmatmul.mubr.bf16.gmra.mxu0 %v1105
    %v6464 = vpop.f32.mrf.mxu0
    %v6465 = vadd.f32 %v1061, %v6464
    %v6466 = vpop.f32.mrf.mxu0
    %v6467 = vadd.f32 %v1065, %v6466
    %v6468 = vpop.f32.mrf.mxu0
    %v6469 = vpop.f32.mrf.mxu0
    %6470 = vdwg.mxu0
    %6471 = vmatprep.subr.bf16.mxu0 %v4475
    %6472 = vmatpush1.bf16.msra.mxu0 %v4474
    %6473 = vmatprep.subr.bf16.mxu0 %v4471
    %6474 = vmatpush1.bf16.msra.mxu0 %v4470
    %6475 = vmatprep.subr.bf16.mxu0 %v4467
    %6476 = vmatpush1.bf16.msra.mxu0 %v4466
    %6477 = vmatprep.subr.bf16.mxu0 %v4463
    %6478 = vmatpush1.bf16.msra.mxu0 %v4462
    %6479 = vmatprep.subr.bf16.mxu0 %v4459
    %6480 = vmatpush1.bf16.msra.mxu0 %v4458
    %6481 = vmatprep.subr.bf16.mxu0 %v4455
    %6482 = vmatpush1.bf16.msra.mxu0 %v4454
    %6483 = vmatprep.subr.bf16.mxu0 %v4451
    %6484 = vmatpush1.bf16.msra.mxu0 %v4450
    %6485 = vmatprep.subr.bf16.mxu0 %v4447
    %6486 = vmatpush1.bf16.msra.mxu0 %v4446
    %6487 = vmatprep.subr.bf16.mxu0 %v4507
    %6488 = vmatpush2.bf16.msra.mxu0 %v4506
    %6489 = vmatprep.subr.bf16.mxu0 %v4503
    %6490 = vmatpush2.bf16.msra.mxu0 %v4502
    %6491 = vmatprep.subr.bf16.mxu0 %v4499
    %6492 = vmatpush2.bf16.msra.mxu0 %v4498
    %6493 = vmatprep.subr.bf16.mxu0 %v4495
    %6494 = vmatpush2.bf16.msra.mxu0 %v4494
    %6495 = vmatprep.subr.bf16.mxu0 %v4491
    %6496 = vmatpush2.bf16.msra.mxu0 %v4490
    %6497 = vmatprep.subr.bf16.mxu0 %v4487
    %6498 = vmatpush2.bf16.msra.mxu0 %v4486
    %6499 = vmatprep.subr.bf16.mxu0 %v4483
    %6500 = vmatpush2.bf16.msra.mxu0 %v4482
    %6501 = vmatprep.subr.bf16.mxu0 %v4479
    %6502 = vmatpush2.bf16.msra.mxu0 %v4478
    %6503 = vmatprep.mubr.bf16.mxu0 %v1129
    %6504 = vmatmul.mubr.bf16.gmra.mxu0 %v1127
    %v6505 = vpop.f32.mrf.mxu0
    %v6506 = vadd.f32 %v6465, %v6505
    %v6507 = vpop.f32.mrf.mxu0
    %v6508 = vadd.f32 %v6467, %v6507
    %v6509 = vpop.f32.mrf.mxu0
    %v6510 = vpop.f32.mrf.mxu0
    %6511 = vdwg.mxu0
    %6512 = vmatprep.subr.bf16.mxu0 %v4539
    %6513 = vmatpush1.bf16.msra.mxu0 %v4538
    %6514 = vmatprep.subr.bf16.mxu0 %v4535
    %6515 = vmatpush1.bf16.msra.mxu0 %v4534
    %6516 = vmatprep.subr.bf16.mxu0 %v4531
    %6517 = vmatpush1.bf16.msra.mxu0 %v4530
    %6518 = vmatprep.subr.bf16.mxu0 %v4527
    %6519 = vmatpush1.bf16.msra.mxu0 %v4526
    %6520 = vmatprep.subr.bf16.mxu0 %v4523
    %6521 = vmatpush1.bf16.msra.mxu0 %v4522
    %6522 = vmatprep.subr.bf16.mxu0 %v4519
    %6523 = vmatpush1.bf16.msra.mxu0 %v4518
    %6524 = vmatprep.subr.bf16.mxu0 %v4515
    %6525 = vmatpush1.bf16.msra.mxu0 %v4514
    %6526 = vmatprep.subr.bf16.mxu0 %v4511
    %6527 = vmatpush1.bf16.msra.mxu0 %v4510
    %6528 = vmatprep.subr.bf16.mxu0 %v4571
    %6529 = vmatpush2.bf16.msra.mxu0 %v4570
    %6530 = vmatprep.subr.bf16.mxu0 %v4567
    %6531 = vmatpush2.bf16.msra.mxu0 %v4566
    %6532 = vmatprep.subr.bf16.mxu0 %v4563
    %6533 = vmatpush2.bf16.msra.mxu0 %v4562
    %6534 = vmatprep.subr.bf16.mxu0 %v4559
    %6535 = vmatpush2.bf16.msra.mxu0 %v4558
    %6536 = vmatprep.subr.bf16.mxu0 %v4555
    %6537 = vmatpush2.bf16.msra.mxu0 %v4554
    %6538 = vmatprep.subr.bf16.mxu0 %v4551
    %6539 = vmatpush2.bf16.msra.mxu0 %v4550
    %6540 = vmatprep.subr.bf16.mxu0 %v4547
    %6541 = vmatpush2.bf16.msra.mxu0 %v4546
    %6542 = vmatprep.subr.bf16.mxu0 %v4543
    %6543 = vmatpush2.bf16.msra.mxu0 %v4542
    %6544 = vmatprep.mubr.bf16.mxu0 %v1126
    %6545 = vmatmul.mubr.bf16.gmra.mxu0 %v1112
    %v6546 = vpop.f32.mrf.mxu0
    %v6547 = vadd.f32 %v6506, %v6546
    %v6548 = vpop.f32.mrf.mxu0
    %v6549 = vadd.f32 %v6508, %v6548
    %v6550 = vpop.f32.mrf.mxu0
    %v6551 = vpop.f32.mrf.mxu0
    %6552 = vdwg.mxu0
    %6553 = vmatprep.subr.bf16.mxu0 %v4603
    %6554 = vmatpush1.bf16.msra.mxu0 %v4602
    %6555 = vmatprep.subr.bf16.mxu0 %v4599
    %6556 = vmatpush1.bf16.msra.mxu0 %v4598
    %6557 = vmatprep.subr.bf16.mxu0 %v4595
    %6558 = vmatpush1.bf16.msra.mxu0 %v4594
    %6559 = vmatprep.subr.bf16.mxu0 %v4591
    %6560 = vmatpush1.bf16.msra.mxu0 %v4590
    %6561 = vmatprep.subr.bf16.mxu0 %v4587
    %6562 = vmatpush1.bf16.msra.mxu0 %v4586
    %6563 = vmatprep.subr.bf16.mxu0 %v4583
    %6564 = vmatpush1.bf16.msra.mxu0 %v4582
    %6565 = vmatprep.subr.bf16.mxu0 %v4579
    %6566 = vmatpush1.bf16.msra.mxu0 %v4578
    %6567 = vmatprep.subr.bf16.mxu0 %v4575
    %6568 = vmatpush1.bf16.msra.mxu0 %v4574
    %6569 = vmatprep.subr.bf16.mxu0 %v4635
    %6570 = vmatpush2.bf16.msra.mxu0 %v4634
    %6571 = vmatprep.subr.bf16.mxu0 %v4631
    %6572 = vmatpush2.bf16.msra.mxu0 %v4630
    %6573 = vmatprep.subr.bf16.mxu0 %v4627
    %6574 = vmatpush2.bf16.msra.mxu0 %v4626
    %6575 = vmatprep.subr.bf16.mxu0 %v4623
    %6576 = vmatpush2.bf16.msra.mxu0 %v4622
    %6577 = vmatprep.subr.bf16.mxu0 %v4619
    %6578 = vmatpush2.bf16.msra.mxu0 %v4618
    %6579 = vmatprep.subr.bf16.mxu0 %v4615
    %6580 = vmatpush2.bf16.msra.mxu0 %v4614
    %6581 = vmatprep.subr.bf16.mxu0 %v4611
    %6582 = vmatpush2.bf16.msra.mxu0 %v4610
    %6583 = vmatprep.subr.bf16.mxu0 %v4607
    %6584 = vmatpush2.bf16.msra.mxu0 %v4606
    %6585 = vmatprep.mubr.bf16.mxu0 %v1130
    %6586 = vmatmul.mubr.bf16.gmra.mxu0 %v1128
    %v6587 = vpop.f32.mrf.mxu0
    %v6588 = vadd.f32 %v6547, %v6587
    %v6589 = vpop.f32.mrf.mxu0
    %v6590 = vadd.f32 %v6549, %v6589
    %v6591 = vpop.f32.mrf.mxu0
    %v6592 = vpop.f32.mrf.mxu0
    %6593 = vdwg.mxu0
    %6594 = vmatprep.subr.bf16.mxu0 %v4667
    %6595 = vmatpush1.bf16.msra.mxu0 %v4666
    %6596 = vmatprep.subr.bf16.mxu0 %v4663
    %6597 = vmatpush1.bf16.msra.mxu0 %v4662
    %6598 = vmatprep.subr.bf16.mxu0 %v4659
    %6599 = vmatpush1.bf16.msra.mxu0 %v4658
    %6600 = vmatprep.subr.bf16.mxu0 %v4655
    %6601 = vmatpush1.bf16.msra.mxu0 %v4654
    %6602 = vmatprep.subr.bf16.mxu0 %v4651
    %6603 = vmatpush1.bf16.msra.mxu0 %v4650
    %6604 = vmatprep.subr.bf16.mxu0 %v4647
    %6605 = vmatpush1.bf16.msra.mxu0 %v4646
    %6606 = vmatprep.subr.bf16.mxu0 %v4643
    %6607 = vmatpush1.bf16.msra.mxu0 %v4642
    %6608 = vmatprep.subr.bf16.mxu0 %v4639
    %6609 = vmatpush1.bf16.msra.mxu0 %v4638
    %6610 = vmatprep.subr.bf16.mxu0 %v4699
    %6611 = vmatpush2.bf16.msra.mxu0 %v4698
    %6612 = vmatprep.subr.bf16.mxu0 %v4695
    %6613 = vmatpush2.bf16.msra.mxu0 %v4694
    %6614 = vmatprep.subr.bf16.mxu0 %v4691
    %6615 = vmatpush2.bf16.msra.mxu0 %v4690
    %6616 = vmatprep.subr.bf16.mxu0 %v4687
    %6617 = vmatpush2.bf16.msra.mxu0 %v4686
    %6618 = vmatprep.subr.bf16.mxu0 %v4683
    %6619 = vmatpush2.bf16.msra.mxu0 %v4682
    %6620 = vmatprep.subr.bf16.mxu0 %v4679
    %6621 = vmatpush2.bf16.msra.mxu0 %v4678
    %6622 = vmatprep.subr.bf16.mxu0 %v4675
    %6623 = vmatpush2.bf16.msra.mxu0 %v4674
    %6624 = vmatprep.subr.bf16.mxu0 %v4671
    %6625 = vmatpush2.bf16.msra.mxu0 %v4670
    %6626 = vmatprep.mubr.bf16.mxu0 %v1168
    %6627 = vmatmul.mubr.bf16.gmra.mxu0 %v1154
    %v6628 = vpop.f32.mrf.mxu0
    %v6629 = vadd.f32 %v6588, %v6628
    %v6630 = vpop.f32.mrf.mxu0
    %v6631 = vadd.f32 %v6590, %v6630
    %v6632 = vpop.f32.mrf.mxu0
    %v6633 = vpop.f32.mrf.mxu0
    %6634 = vdwg.mxu0
    %6635 = vmatprep.subr.bf16.mxu0 %v4731
    %6636 = vmatpush1.bf16.msra.mxu0 %v4730
    %6637 = vmatprep.subr.bf16.mxu0 %v4727
    %6638 = vmatpush1.bf16.msra.mxu0 %v4726
    %6639 = vmatprep.subr.bf16.mxu0 %v4723
    %6640 = vmatpush1.bf16.msra.mxu0 %v4722
    %6641 = vmatprep.subr.bf16.mxu0 %v4719
    %6642 = vmatpush1.bf16.msra.mxu0 %v4718
    %6643 = vmatprep.subr.bf16.mxu0 %v4715
    %6644 = vmatpush1.bf16.msra.mxu0 %v4714
    %6645 = vmatprep.subr.bf16.mxu0 %v4711
    %6646 = vmatpush1.bf16.msra.mxu0 %v4710
    %6647 = vmatprep.subr.bf16.mxu0 %v4707
    %6648 = vmatpush1.bf16.msra.mxu0 %v4706
    %6649 = vmatprep.subr.bf16.mxu0 %v4703
    %6650 = vmatpush1.bf16.msra.mxu0 %v4702
    %6651 = vmatprep.subr.bf16.mxu0 %v4763
    %6652 = vmatpush2.bf16.msra.mxu0 %v4762
    %6653 = vmatprep.subr.bf16.mxu0 %v4759
    %6654 = vmatpush2.bf16.msra.mxu0 %v4758
    %6655 = vmatprep.subr.bf16.mxu0 %v4755
    %6656 = vmatpush2.bf16.msra.mxu0 %v4754
    %6657 = vmatprep.subr.bf16.mxu0 %v4751
    %6658 = vmatpush2.bf16.msra.mxu0 %v4750
    %6659 = vmatprep.subr.bf16.mxu0 %v4747
    %6660 = vmatpush2.bf16.msra.mxu0 %v4746
    %6661 = vmatprep.subr.bf16.mxu0 %v4743
    %6662 = vmatpush2.bf16.msra.mxu0 %v4742
    %6663 = vmatprep.subr.bf16.mxu0 %v4739
    %6664 = vmatpush2.bf16.msra.mxu0 %v4738
    %6665 = vmatprep.subr.bf16.mxu0 %v4735
    %6666 = vmatpush2.bf16.msra.mxu0 %v4734
    %6667 = vmatprep.mubr.bf16.mxu0 %v1178
    %6668 = vmatmul.mubr.bf16.gmra.mxu0 %v1176
    %v6669 = vpop.f32.mrf.mxu0
    %v6670 = vadd.f32 %v6629, %v6669
    %v6671 = vpop.f32.mrf.mxu0
    %v6672 = vadd.f32 %v6631, %v6671
    %v6673 = vpop.f32.mrf.mxu0
    %v6674 = vpop.f32.mrf.mxu0
    %6675 = vdwg.mxu0
    %6676 = vmatprep.subr.bf16.mxu0 %v4795
    %6677 = vmatpush1.bf16.msra.mxu0 %v4794
    %6678 = vmatprep.subr.bf16.mxu0 %v4791
    %6679 = vmatpush1.bf16.msra.mxu0 %v4790
    %6680 = vmatprep.subr.bf16.mxu0 %v4787
    %6681 = vmatpush1.bf16.msra.mxu0 %v4786
    %6682 = vmatprep.subr.bf16.mxu0 %v4783
    %6683 = vmatpush1.bf16.msra.mxu0 %v4782
    %6684 = vmatprep.subr.bf16.mxu0 %v4779
    %6685 = vmatpush1.bf16.msra.mxu0 %v4778
    %6686 = vmatprep.subr.bf16.mxu0 %v4775
    %6687 = vmatpush1.bf16.msra.mxu0 %v4774
    %6688 = vmatprep.subr.bf16.mxu0 %v4771
    %6689 = vmatpush1.bf16.msra.mxu0 %v4770
    %6690 = vmatprep.subr.bf16.mxu0 %v4767
    %6691 = vmatpush1.bf16.msra.mxu0 %v4766
    %6692 = vmatprep.subr.bf16.mxu0 %v4827
    %6693 = vmatpush2.bf16.msra.mxu0 %v4826
    %6694 = vmatprep.subr.bf16.mxu0 %v4823
    %6695 = vmatpush2.bf16.msra.mxu0 %v4822
    %6696 = vmatprep.subr.bf16.mxu0 %v4819
    %6697 = vmatpush2.bf16.msra.mxu0 %v4818
    %6698 = vmatprep.subr.bf16.mxu0 %v4815
    %6699 = vmatpush2.bf16.msra.mxu0 %v4814
    %6700 = vmatprep.subr.bf16.mxu0 %v4811
    %6701 = vmatpush2.bf16.msra.mxu0 %v4810
    %6702 = vmatprep.subr.bf16.mxu0 %v4807
    %6703 = vmatpush2.bf16.msra.mxu0 %v4806
    %6704 = vmatprep.subr.bf16.mxu0 %v4803
    %6705 = vmatpush2.bf16.msra.mxu0 %v4802
    %6706 = vmatprep.subr.bf16.mxu0 %v4799
    %6707 = vmatpush2.bf16.msra.mxu0 %v4798
    %6708 = vmatprep.mubr.bf16.mxu0 %v1175
    %6709 = vmatmul.mubr.bf16.gmra.mxu0 %v1161
    %v6710 = vpop.f32.mrf.mxu0
    %v6711 = vadd.f32 %v6670, %v6710
    %v6712 = vpop.f32.mrf.mxu0
    %v6713 = vadd.f32 %v6672, %v6712
    %v6714 = vpop.f32.mrf.mxu0
    %v6715 = vpop.f32.mrf.mxu0
    %6716 = vdwg.mxu0
    %6717 = vmatprep.subr.bf16.mxu0 %v4859
    %6718 = vmatpush1.bf16.msra.mxu0 %v4858
    %6719 = vmatprep.subr.bf16.mxu0 %v4855
    %6720 = vmatpush1.bf16.msra.mxu0 %v4854
    %6721 = vmatprep.subr.bf16.mxu0 %v4851
    %6722 = vmatpush1.bf16.msra.mxu0 %v4850
    %6723 = vmatprep.subr.bf16.mxu0 %v4847
    %6724 = vmatpush1.bf16.msra.mxu0 %v4846
    %6725 = vmatprep.subr.bf16.mxu0 %v4843
    %6726 = vmatpush1.bf16.msra.mxu0 %v4842
    %6727 = vmatprep.subr.bf16.mxu0 %v4839
    %6728 = vmatpush1.bf16.msra.mxu0 %v4838
    %6729 = vmatprep.subr.bf16.mxu0 %v4835
    %6730 = vmatpush1.bf16.msra.mxu0 %v4834
    %6731 = vmatprep.subr.bf16.mxu0 %v4831
    %6732 = vmatpush1.bf16.msra.mxu0 %v4830
    %6733 = vmatprep.subr.bf16.mxu0 %v4891
    %6734 = vmatpush2.bf16.msra.mxu0 %v4890
    %6735 = vmatprep.subr.bf16.mxu0 %v4887
    %6736 = vmatpush2.bf16.msra.mxu0 %v4886
    %6737 = vmatprep.subr.bf16.mxu0 %v4883
    %6738 = vmatpush2.bf16.msra.mxu0 %v4882
    %6739 = vmatprep.subr.bf16.mxu0 %v4879
    %6740 = vmatpush2.bf16.msra.mxu0 %v4878
    %6741 = vmatprep.subr.bf16.mxu0 %v4875
    %6742 = vmatpush2.bf16.msra.mxu0 %v4874
    %6743 = vmatprep.subr.bf16.mxu0 %v4871
    %6744 = vmatpush2.bf16.msra.mxu0 %v4870
    %6745 = vmatprep.subr.bf16.mxu0 %v4867
    %6746 = vmatpush2.bf16.msra.mxu0 %v4866
    %6747 = vmatprep.subr.bf16.mxu0 %v4863
    %6748 = vmatpush2.bf16.msra.mxu0 %v4862
    %6749 = vmatprep.mubr.bf16.mxu0 %v1179
    %6750 = vmatmul.mubr.bf16.gmra.mxu0 %v1177
    %v6751 = vpop.f32.mrf.mxu0
    %v6752 = vadd.f32 %v6711, %v6751
    %v6753 = vpop.f32.mrf.mxu0
    %v6754 = vadd.f32 %v6713, %v6753
    %v6755 = vpop.f32.mrf.mxu0
    %v6756 = vpop.f32.mrf.mxu0
    %6757 = vdwg.mxu0
    %6758 = vmatprep.subr.bf16.mxu0 %v4923
    %6759 = vmatpush1.bf16.msra.mxu0 %v4922
    %6760 = vmatprep.subr.bf16.mxu0 %v4919
    %6761 = vmatpush1.bf16.msra.mxu0 %v4918
    %6762 = vmatprep.subr.bf16.mxu0 %v4915
    %6763 = vmatpush1.bf16.msra.mxu0 %v4914
    %6764 = vmatprep.subr.bf16.mxu0 %v4911
    %6765 = vmatpush1.bf16.msra.mxu0 %v4910
    %6766 = vmatprep.subr.bf16.mxu0 %v4907
    %6767 = vmatpush1.bf16.msra.mxu0 %v4906
    %6768 = vmatprep.subr.bf16.mxu0 %v4903
    %6769 = vmatpush1.bf16.msra.mxu0 %v4902
    %6770 = vmatprep.subr.bf16.mxu0 %v4899
    %6771 = vmatpush1.bf16.msra.mxu0 %v4898
    %6772 = vmatprep.subr.bf16.mxu0 %v4895
    %6773 = vmatpush1.bf16.msra.mxu0 %v4894
    %6774 = vmatprep.subr.bf16.mxu0 %v4955
    %6775 = vmatpush2.bf16.msra.mxu0 %v4954
    %6776 = vmatprep.subr.bf16.mxu0 %v4951
    %6777 = vmatpush2.bf16.msra.mxu0 %v4950
    %6778 = vmatprep.subr.bf16.mxu0 %v4947
    %6779 = vmatpush2.bf16.msra.mxu0 %v4946
    %6780 = vmatprep.subr.bf16.mxu0 %v4943
    %6781 = vmatpush2.bf16.msra.mxu0 %v4942
    %6782 = vmatprep.subr.bf16.mxu0 %v4939
    %6783 = vmatpush2.bf16.msra.mxu0 %v4938
    %6784 = vmatprep.subr.bf16.mxu0 %v4935
    %6785 = vmatpush2.bf16.msra.mxu0 %v4934
    %6786 = vmatprep.subr.bf16.mxu0 %v4931
    %6787 = vmatpush2.bf16.msra.mxu0 %v4930
    %6788 = vmatprep.subr.bf16.mxu0 %v4927
    %6789 = vmatpush2.bf16.msra.mxu0 %v4926
    %6790 = vmatprep.mubr.bf16.mxu0 %v1217
    %6791 = vmatmul.mubr.bf16.gmra.mxu0 %v1203
    %v6792 = vpop.f32.mrf.mxu0
    %v6793 = vadd.f32 %v6752, %v6792
    %v6794 = vpop.f32.mrf.mxu0
    %v6795 = vadd.f32 %v6754, %v6794
    %v6796 = vpop.f32.mrf.mxu0
    %v6797 = vpop.f32.mrf.mxu0
    %6798 = vdwg.mxu0
    %6799 = vmatprep.subr.bf16.mxu0 %v4987
    %6800 = vmatpush1.bf16.msra.mxu0 %v4986
    %6801 = vmatprep.subr.bf16.mxu0 %v4983
    %6802 = vmatpush1.bf16.msra.mxu0 %v4982
    %6803 = vmatprep.subr.bf16.mxu0 %v4979
    %6804 = vmatpush1.bf16.msra.mxu0 %v4978
    %6805 = vmatprep.subr.bf16.mxu0 %v4975
    %6806 = vmatpush1.bf16.msra.mxu0 %v4974
    %6807 = vmatprep.subr.bf16.mxu0 %v4971
    %6808 = vmatpush1.bf16.msra.mxu0 %v4970
    %6809 = vmatprep.subr.bf16.mxu0 %v4967
    %6810 = vmatpush1.bf16.msra.mxu0 %v4966
    %6811 = vmatprep.subr.bf16.mxu0 %v4963
    %6812 = vmatpush1.bf16.msra.mxu0 %v4962
    %6813 = vmatprep.subr.bf16.mxu0 %v4959
    %6814 = vmatpush1.bf16.msra.mxu0 %v4958
    %6815 = vmatprep.subr.bf16.mxu0 %v5019
    %6816 = vmatpush2.bf16.msra.mxu0 %v5018
    %6817 = vmatprep.subr.bf16.mxu0 %v5015
    %6818 = vmatpush2.bf16.msra.mxu0 %v5014
    %6819 = vmatprep.subr.bf16.mxu0 %v5011
    %6820 = vmatpush2.bf16.msra.mxu0 %v5010
    %6821 = vmatprep.subr.bf16.mxu0 %v5007
    %6822 = vmatpush2.bf16.msra.mxu0 %v5006
    %6823 = vmatprep.subr.bf16.mxu0 %v5003
    %6824 = vmatpush2.bf16.msra.mxu0 %v5002
    %6825 = vmatprep.subr.bf16.mxu0 %v4999
    %6826 = vmatpush2.bf16.msra.mxu0 %v4998
    %6827 = vmatprep.subr.bf16.mxu0 %v4995
    %6828 = vmatpush2.bf16.msra.mxu0 %v4994
    %6829 = vmatprep.subr.bf16.mxu0 %v4991
    %6830 = vmatpush2.bf16.msra.mxu0 %v4990
    %6831 = vmatprep.mubr.bf16.mxu0 %v1227
    %6832 = vmatmul.mubr.bf16.gmra.mxu0 %v1225
    %v6833 = vpop.f32.mrf.mxu0
    %v6834 = vadd.f32 %v6793, %v6833
    %v6835 = vpop.f32.mrf.mxu0
    %v6836 = vadd.f32 %v6795, %v6835
    %v6837 = vpop.f32.mrf.mxu0
    %v6838 = vpop.f32.mrf.mxu0
    %6839 = vdwg.mxu0
    %6840 = vmatprep.subr.bf16.mxu0 %v5051
    %6841 = vmatpush1.bf16.msra.mxu0 %v5050
    %6842 = vmatprep.subr.bf16.mxu0 %v5047
    %6843 = vmatpush1.bf16.msra.mxu0 %v5046
    %6844 = vmatprep.subr.bf16.mxu0 %v5043
    %6845 = vmatpush1.bf16.msra.mxu0 %v5042
    %6846 = vmatprep.subr.bf16.mxu0 %v5039
    %6847 = vmatpush1.bf16.msra.mxu0 %v5038
    %6848 = vmatprep.subr.bf16.mxu0 %v5035
    %6849 = vmatpush1.bf16.msra.mxu0 %v5034
    %6850 = vmatprep.subr.bf16.mxu0 %v5031
    %6851 = vmatpush1.bf16.msra.mxu0 %v5030
    %6852 = vmatprep.subr.bf16.mxu0 %v5027
    %6853 = vmatpush1.bf16.msra.mxu0 %v5026
    %6854 = vmatprep.subr.bf16.mxu0 %v5023
    %6855 = vmatpush1.bf16.msra.mxu0 %v5022
    %6856 = vmatprep.subr.bf16.mxu0 %v5083
    %6857 = vmatpush2.bf16.msra.mxu0 %v5082
    %6858 = vmatprep.subr.bf16.mxu0 %v5079
    %6859 = vmatpush2.bf16.msra.mxu0 %v5078
    %6860 = vmatprep.subr.bf16.mxu0 %v5075
    %6861 = vmatpush2.bf16.msra.mxu0 %v5074
    %6862 = vmatprep.subr.bf16.mxu0 %v5071
    %6863 = vmatpush2.bf16.msra.mxu0 %v5070
    %6864 = vmatprep.subr.bf16.mxu0 %v5067
    %6865 = vmatpush2.bf16.msra.mxu0 %v5066
    %6866 = vmatprep.subr.bf16.mxu0 %v5063
    %6867 = vmatpush2.bf16.msra.mxu0 %v5062
    %6868 = vmatprep.subr.bf16.mxu0 %v5059
    %6869 = vmatpush2.bf16.msra.mxu0 %v5058
    %6870 = vmatprep.subr.bf16.mxu0 %v5055
    %6871 = vmatpush2.bf16.msra.mxu0 %v5054
    %6872 = vmatprep.mubr.bf16.mxu0 %v1224
    %6873 = vmatmul.mubr.bf16.gmra.mxu0 %v1210
    %v6874 = vpop.f32.mrf.mxu0
    %v6875 = vadd.f32 %v6834, %v6874
    %v6876 = vpop.f32.mrf.mxu0
    %v6877 = vadd.f32 %v6836, %v6876
    %v6878 = vpop.f32.mrf.mxu0
    %v6879 = vpop.f32.mrf.mxu0
    %6880 = vdwg.mxu0
    %6881 = vmatprep.subr.bf16.mxu0 %v5115
    %6882 = vmatpush1.bf16.msra.mxu0 %v5114
    %6883 = vmatprep.subr.bf16.mxu0 %v5111
    %6884 = vmatpush1.bf16.msra.mxu0 %v5110
    %6885 = vmatprep.subr.bf16.mxu0 %v5107
    %6886 = vmatpush1.bf16.msra.mxu0 %v5106
    %6887 = vmatprep.subr.bf16.mxu0 %v5103
    %6888 = vmatpush1.bf16.msra.mxu0 %v5102
    %6889 = vmatprep.subr.bf16.mxu0 %v5099
    %6890 = vmatpush1.bf16.msra.mxu0 %v5098
    %6891 = vmatprep.subr.bf16.mxu0 %v5095
    %6892 = vmatpush1.bf16.msra.mxu0 %v5094
    %6893 = vmatprep.subr.bf16.mxu0 %v5091
    %6894 = vmatpush1.bf16.msra.mxu0 %v5090
    %6895 = vmatprep.subr.bf16.mxu0 %v5087
    %6896 = vmatpush1.bf16.msra.mxu0 %v5086
    %6897 = vmatprep.subr.bf16.mxu0 %v5147
    %6898 = vmatpush2.bf16.msra.mxu0 %v5146
    %6899 = vmatprep.subr.bf16.mxu0 %v5143
    %6900 = vmatpush2.bf16.msra.mxu0 %v5142
    %6901 = vmatprep.subr.bf16.mxu0 %v5139
    %6902 = vmatpush2.bf16.msra.mxu0 %v5138
    %6903 = vmatprep.subr.bf16.mxu0 %v5135
    %6904 = vmatpush2.bf16.msra.mxu0 %v5134
    %6905 = vmatprep.subr.bf16.mxu0 %v5131
    %6906 = vmatpush2.bf16.msra.mxu0 %v5130
    %6907 = vmatprep.subr.bf16.mxu0 %v5127
    %6908 = vmatpush2.bf16.msra.mxu0 %v5126
    %6909 = vmatprep.subr.bf16.mxu0 %v5123
    %6910 = vmatpush2.bf16.msra.mxu0 %v5122
    %6911 = vmatprep.subr.bf16.mxu0 %v5119
    %6912 = vmatpush2.bf16.msra.mxu0 %v5118
    %6913 = vmatprep.mubr.bf16.mxu0 %v1228
    %6914 = vmatmul.mubr.bf16.gmra.mxu0 %v1226
    %v6915 = vpop.f32.mrf.mxu0
    %v6916 = vadd.f32 %v6875, %v6915
    %v6917 = vpop.f32.mrf.mxu0
    %v6918 = vadd.f32 %v6877, %v6917
    %v6919 = vpop.f32.mrf.mxu0
    %v6920 = vpop.f32.mrf.mxu0
    %6921 = vdwg.mxu0
    %6922 = vmatprep.subr.bf16.mxu0 %v5179
    %6923 = vmatpush1.bf16.msra.mxu0 %v5178
    %6924 = vmatprep.subr.bf16.mxu0 %v5175
    %6925 = vmatpush1.bf16.msra.mxu0 %v5174
    %6926 = vmatprep.subr.bf16.mxu0 %v5171
    %6927 = vmatpush1.bf16.msra.mxu0 %v5170
    %6928 = vmatprep.subr.bf16.mxu0 %v5167
    %6929 = vmatpush1.bf16.msra.mxu0 %v5166
    %6930 = vmatprep.subr.bf16.mxu0 %v5163
    %6931 = vmatpush1.bf16.msra.mxu0 %v5162
    %6932 = vmatprep.subr.bf16.mxu0 %v5159
    %6933 = vmatpush1.bf16.msra.mxu0 %v5158
    %6934 = vmatprep.subr.bf16.mxu0 %v5155
    %6935 = vmatpush1.bf16.msra.mxu0 %v5154
    %6936 = vmatprep.subr.bf16.mxu0 %v5151
    %6937 = vmatpush1.bf16.msra.mxu0 %v5150
    %6938 = vmatprep.subr.bf16.mxu0 %v5211
    %6939 = vmatpush2.bf16.msra.mxu0 %v5210
    %6940 = vmatprep.subr.bf16.mxu0 %v5207
    %6941 = vmatpush2.bf16.msra.mxu0 %v5206
    %6942 = vmatprep.subr.bf16.mxu0 %v5203
    %6943 = vmatpush2.bf16.msra.mxu0 %v5202
    %6944 = vmatprep.subr.bf16.mxu0 %v5199
    %6945 = vmatpush2.bf16.msra.mxu0 %v5198
    %6946 = vmatprep.subr.bf16.mxu0 %v5195
    %6947 = vmatpush2.bf16.msra.mxu0 %v5194
    %6948 = vmatprep.subr.bf16.mxu0 %v5191
    %6949 = vmatpush2.bf16.msra.mxu0 %v5190
    %6950 = vmatprep.subr.bf16.mxu0 %v5187
    %6951 = vmatpush2.bf16.msra.mxu0 %v5186
    %6952 = vmatprep.subr.bf16.mxu0 %v5183
    %6953 = vmatpush2.bf16.msra.mxu0 %v5182
    %6954 = vmatprep.mubr.bf16.mxu0 %v1266
    %6955 = vmatmul.mubr.bf16.gmra.mxu0 %v1252
    %v6956 = vpop.f32.mrf.mxu0
    %v6957 = vadd.f32 %v6916, %v6956
    %v6958 = vpop.f32.mrf.mxu0
    %v6959 = vadd.f32 %v6918, %v6958
    %v6960 = vpop.f32.mrf.mxu0
    %v6961 = vpop.f32.mrf.mxu0
    %6962 = vdwg.mxu0
    %6963 = vmatprep.subr.bf16.mxu0 %v5243
    %6964 = vmatpush1.bf16.msra.mxu0 %v5242
    %6965 = vmatprep.subr.bf16.mxu0 %v5239
    %6966 = vmatpush1.bf16.msra.mxu0 %v5238
    %6967 = vmatprep.subr.bf16.mxu0 %v5235
    %6968 = vmatpush1.bf16.msra.mxu0 %v5234
    %6969 = vmatprep.subr.bf16.mxu0 %v5231
    %6970 = vmatpush1.bf16.msra.mxu0 %v5230
    %6971 = vmatprep.subr.bf16.mxu0 %v5227
    %6972 = vmatpush1.bf16.msra.mxu0 %v5226
    %6973 = vmatprep.subr.bf16.mxu0 %v5223
    %6974 = vmatpush1.bf16.msra.mxu0 %v5222
    %6975 = vmatprep.subr.bf16.mxu0 %v5219
    %6976 = vmatpush1.bf16.msra.mxu0 %v5218
    %6977 = vmatprep.subr.bf16.mxu0 %v5215
    %6978 = vmatpush1.bf16.msra.mxu0 %v5214
    %6979 = vmatprep.subr.bf16.mxu0 %v5275
    %6980 = vmatpush2.bf16.msra.mxu0 %v5274
    %6981 = vmatprep.subr.bf16.mxu0 %v5271
    %6982 = vmatpush2.bf16.msra.mxu0 %v5270
    %6983 = vmatprep.subr.bf16.mxu0 %v5267
    %6984 = vmatpush2.bf16.msra.mxu0 %v5266
    %6985 = vmatprep.subr.bf16.mxu0 %v5263
    %6986 = vmatpush2.bf16.msra.mxu0 %v5262
    %6987 = vmatprep.subr.bf16.mxu0 %v5259
    %6988 = vmatpush2.bf16.msra.mxu0 %v5258
    %6989 = vmatprep.subr.bf16.mxu0 %v5255
    %6990 = vmatpush2.bf16.msra.mxu0 %v5254
    %6991 = vmatprep.subr.bf16.mxu0 %v5251
    %6992 = vmatpush2.bf16.msra.mxu0 %v5250
    %6993 = vmatprep.subr.bf16.mxu0 %v5247
    %6994 = vmatpush2.bf16.msra.mxu0 %v5246
    %6995 = vmatprep.mubr.bf16.mxu0 %v1276
    %6996 = vmatmul.mubr.bf16.gmra.mxu0 %v1274
    %v6997 = vpop.f32.mrf.mxu0
    %v6998 = vadd.f32 %v6957, %v6997
    %v6999 = vpop.f32.mrf.mxu0
    %v7000 = vadd.f32 %v6959, %v6999
    %v7001 = vpop.f32.mrf.mxu0
    %v7002 = vpop.f32.mrf.mxu0
    %7003 = vdwg.mxu0
    %7004 = vmatprep.subr.bf16.mxu0 %v5307
    %7005 = vmatpush1.bf16.msra.mxu0 %v5306
    %7006 = vmatprep.subr.bf16.mxu0 %v5303
    %7007 = vmatpush1.bf16.msra.mxu0 %v5302
    %7008 = vmatprep.subr.bf16.mxu0 %v5299
    %7009 = vmatpush1.bf16.msra.mxu0 %v5298
    %7010 = vmatprep.subr.bf16.mxu0 %v5295
    %7011 = vmatpush1.bf16.msra.mxu0 %v5294
    %7012 = vmatprep.subr.bf16.mxu0 %v5291
    %7013 = vmatpush1.bf16.msra.mxu0 %v5290
    %7014 = vmatprep.subr.bf16.mxu0 %v5287
    %7015 = vmatpush1.bf16.msra.mxu0 %v5286
    %7016 = vmatprep.subr.bf16.mxu0 %v5283
    %7017 = vmatpush1.bf16.msra.mxu0 %v5282
    %7018 = vmatprep.subr.bf16.mxu0 %v5279
    %7019 = vmatpush1.bf16.msra.mxu0 %v5278
    %7020 = vmatprep.subr.bf16.mxu0 %v5339
    %7021 = vmatpush2.bf16.msra.mxu0 %v5338
    %7022 = vmatprep.subr.bf16.mxu0 %v5335
    %7023 = vmatpush2.bf16.msra.mxu0 %v5334
    %7024 = vmatprep.subr.bf16.mxu0 %v5331
    %7025 = vmatpush2.bf16.msra.mxu0 %v5330
    %7026 = vmatprep.subr.bf16.mxu0 %v5327
    %7027 = vmatpush2.bf16.msra.mxu0 %v5326
    %7028 = vmatprep.subr.bf16.mxu0 %v5323
    %7029 = vmatpush2.bf16.msra.mxu0 %v5322
    %7030 = vmatprep.subr.bf16.mxu0 %v5319
    %7031 = vmatpush2.bf16.msra.mxu0 %v5318
    %7032 = vmatprep.subr.bf16.mxu0 %v5315
    %7033 = vmatpush2.bf16.msra.mxu0 %v5314
    %7034 = vmatprep.subr.bf16.mxu0 %v5311
    %7035 = vmatpush2.bf16.msra.mxu0 %v5310
    %7036 = vmatprep.mubr.bf16.mxu0 %v1273
    %7037 = vmatmul.mubr.bf16.gmra.mxu0 %v1259
    %v7038 = vpop.f32.mrf.mxu0
    %v7039 = vadd.f32 %v6998, %v7038
    %v7040 = vpop.f32.mrf.mxu0
    %v7041 = vadd.f32 %v7000, %v7040
    %v7042 = vpop.f32.mrf.mxu0
    %v7043 = vpop.f32.mrf.mxu0
    %7044 = vdwg.mxu0
    %7045 = vmatprep.subr.bf16.mxu0 %v5371
    %7046 = vmatpush1.bf16.msra.mxu0 %v5370
    %7047 = vmatprep.subr.bf16.mxu0 %v5367
    %7048 = vmatpush1.bf16.msra.mxu0 %v5366
    %7049 = vmatprep.subr.bf16.mxu0 %v5363
    %7050 = vmatpush1.bf16.msra.mxu0 %v5362
    %7051 = vmatprep.subr.bf16.mxu0 %v5359
    %7052 = vmatpush1.bf16.msra.mxu0 %v5358
    %7053 = vmatprep.subr.bf16.mxu0 %v5355
    %7054 = vmatpush1.bf16.msra.mxu0 %v5354
    %7055 = vmatprep.subr.bf16.mxu0 %v5351
    %7056 = vmatpush1.bf16.msra.mxu0 %v5350
    %7057 = vmatprep.subr.bf16.mxu0 %v5347
    %7058 = vmatpush1.bf16.msra.mxu0 %v5346
    %7059 = vmatprep.subr.bf16.mxu0 %v5343
    %7060 = vmatpush1.bf16.msra.mxu0 %v5342
    %7061 = vmatprep.subr.bf16.mxu0 %v5403
    %7062 = vmatpush2.bf16.msra.mxu0 %v5402
    %7063 = vmatprep.subr.bf16.mxu0 %v5399
    %7064 = vmatpush2.bf16.msra.mxu0 %v5398
    %7065 = vmatprep.subr.bf16.mxu0 %v5395
    %7066 = vmatpush2.bf16.msra.mxu0 %v5394
    %7067 = vmatprep.subr.bf16.mxu0 %v5391
    %7068 = vmatpush2.bf16.msra.mxu0 %v5390
    %7069 = vmatprep.subr.bf16.mxu0 %v5387
    %7070 = vmatpush2.bf16.msra.mxu0 %v5386
    %7071 = vmatprep.subr.bf16.mxu0 %v5383
    %7072 = vmatpush2.bf16.msra.mxu0 %v5382
    %7073 = vmatprep.subr.bf16.mxu0 %v5379
    %7074 = vmatpush2.bf16.msra.mxu0 %v5378
    %7075 = vmatprep.subr.bf16.mxu0 %v5375
    %7076 = vmatpush2.bf16.msra.mxu0 %v5374
    %7077 = vmatprep.mubr.bf16.mxu0 %v1277
    %7078 = vmatmul.mubr.bf16.gmra.mxu0 %v1275
    %v7079 = vpop.f32.mrf.mxu0
    %v7080 = vadd.f32 %v7039, %v7079
    %v7081 = vpop.f32.mrf.mxu0
    %v7082 = vadd.f32 %v7041, %v7081
    %v7083 = vpop.f32.mrf.mxu0
    %v7084 = vpop.f32.mrf.mxu0
    %7085 = vdwg.mxu0
    %7086 = vmatprep.subr.bf16.mxu0 %v4413
    %7087 = vmatpush1.bf16.msra.mxu0 %v4412
    %7088 = vmatprep.subr.bf16.mxu0 %v4409
    %7089 = vmatpush1.bf16.msra.mxu0 %v4408
    %7090 = vmatprep.subr.bf16.mxu0 %v4405
    %7091 = vmatpush1.bf16.msra.mxu0 %v4404
    %7092 = vmatprep.subr.bf16.mxu0 %v4401
    %7093 = vmatpush1.bf16.msra.mxu0 %v4400
    %7094 = vmatprep.subr.bf16.mxu0 %v4397
    %7095 = vmatpush1.bf16.msra.mxu0 %v4396
    %7096 = vmatprep.subr.bf16.mxu0 %v4393
    %7097 = vmatpush1.bf16.msra.mxu0 %v4392
    %7098 = vmatprep.subr.bf16.mxu0 %v4389
    %7099 = vmatpush1.bf16.msra.mxu0 %v4388
    %7100 = vmatprep.subr.bf16.mxu0 %v4385
    %7101 = vmatpush1.bf16.msra.mxu0 %v4384
    %7102 = vmatprep.subr.bf16.mxu0 %v4445
    %7103 = vmatpush2.bf16.msra.mxu0 %v4444
    %7104 = vmatprep.subr.bf16.mxu0 %v4441
    %7105 = vmatpush2.bf16.msra.mxu0 %v4440
    %7106 = vmatprep.subr.bf16.mxu0 %v4437
    %7107 = vmatpush2.bf16.msra.mxu0 %v4436
    %7108 = vmatprep.subr.bf16.mxu0 %v4433
    %7109 = vmatpush2.bf16.msra.mxu0 %v4432
    %7110 = vmatprep.subr.bf16.mxu0 %v4429
    %7111 = vmatpush2.bf16.msra.mxu0 %v4428
    %7112 = vmatprep.subr.bf16.mxu0 %v4425
    %7113 = vmatpush2.bf16.msra.mxu0 %v4424
    %7114 = vmatprep.subr.bf16.mxu0 %v4421
    %7115 = vmatpush2.bf16.msra.mxu0 %v4420
    %7116 = vmatprep.subr.bf16.mxu0 %v4417
    %7117 = vmatpush2.bf16.msra.mxu0 %v4416
    %7118 = vmatprep.mubr.bf16.mxu0 %v1119
    %7119 = vmatmul.mubr.bf16.gmra.mxu0 %v1105
    %v7120 = vpop.f32.mrf.mxu0
    %v7121 = vadd.f32 %v1069, %v7120
    %v7122 = vpop.f32.mrf.mxu0
    %v7123 = vadd.f32 %v1073, %v7122
    %v7124 = vpop.f32.mrf.mxu0
    %v7125 = vpop.f32.mrf.mxu0
    %7126 = vdwg.mxu0
    %7127 = vmatprep.subr.bf16.mxu0 %v4477
    %7128 = vmatpush1.bf16.msra.mxu0 %v4476
    %7129 = vmatprep.subr.bf16.mxu0 %v4473
    %7130 = vmatpush1.bf16.msra.mxu0 %v4472
    %7131 = vmatprep.subr.bf16.mxu0 %v4469
    %7132 = vmatpush1.bf16.msra.mxu0 %v4468
    %7133 = vmatprep.subr.bf16.mxu0 %v4465
    %7134 = vmatpush1.bf16.msra.mxu0 %v4464
    %7135 = vmatprep.subr.bf16.mxu0 %v4461
    %7136 = vmatpush1.bf16.msra.mxu0 %v4460
    %7137 = vmatprep.subr.bf16.mxu0 %v4457
    %7138 = vmatpush1.bf16.msra.mxu0 %v4456
    %7139 = vmatprep.subr.bf16.mxu0 %v4453
    %7140 = vmatpush1.bf16.msra.mxu0 %v4452
    %7141 = vmatprep.subr.bf16.mxu0 %v4449
    %7142 = vmatpush1.bf16.msra.mxu0 %v4448
    %7143 = vmatprep.subr.bf16.mxu0 %v4509
    %7144 = vmatpush2.bf16.msra.mxu0 %v4508
    %7145 = vmatprep.subr.bf16.mxu0 %v4505
    %7146 = vmatpush2.bf16.msra.mxu0 %v4504
    %7147 = vmatprep.subr.bf16.mxu0 %v4501
    %7148 = vmatpush2.bf16.msra.mxu0 %v4500
    %7149 = vmatprep.subr.bf16.mxu0 %v4497
    %7150 = vmatpush2.bf16.msra.mxu0 %v4496
    %7151 = vmatprep.subr.bf16.mxu0 %v4493
    %7152 = vmatpush2.bf16.msra.mxu0 %v4492
    %7153 = vmatprep.subr.bf16.mxu0 %v4489
    %7154 = vmatpush2.bf16.msra.mxu0 %v4488
    %7155 = vmatprep.subr.bf16.mxu0 %v4485
    %7156 = vmatpush2.bf16.msra.mxu0 %v4484
    %7157 = vmatprep.subr.bf16.mxu0 %v4481
    %7158 = vmatpush2.bf16.msra.mxu0 %v4480
    %7159 = vmatprep.mubr.bf16.mxu0 %v1129
    %7160 = vmatmul.mubr.bf16.gmra.mxu0 %v1127
    %v7161 = vpop.f32.mrf.mxu0
    %v7162 = vadd.f32 %v7121, %v7161
    %v7163 = vpop.f32.mrf.mxu0
    %v7164 = vadd.f32 %v7123, %v7163
    %v7165 = vpop.f32.mrf.mxu0
    %v7166 = vpop.f32.mrf.mxu0
    %7167 = vdwg.mxu0
    %7168 = vmatprep.subr.bf16.mxu0 %v4541
    %7169 = vmatpush1.bf16.msra.mxu0 %v4540
    %7170 = vmatprep.subr.bf16.mxu0 %v4537
    %7171 = vmatpush1.bf16.msra.mxu0 %v4536
    %7172 = vmatprep.subr.bf16.mxu0 %v4533
    %7173 = vmatpush1.bf16.msra.mxu0 %v4532
    %7174 = vmatprep.subr.bf16.mxu0 %v4529
    %7175 = vmatpush1.bf16.msra.mxu0 %v4528
    %7176 = vmatprep.subr.bf16.mxu0 %v4525
    %7177 = vmatpush1.bf16.msra.mxu0 %v4524
    %7178 = vmatprep.subr.bf16.mxu0 %v4521
    %7179 = vmatpush1.bf16.msra.mxu0 %v4520
    %7180 = vmatprep.subr.bf16.mxu0 %v4517
    %7181 = vmatpush1.bf16.msra.mxu0 %v4516
    %7182 = vmatprep.subr.bf16.mxu0 %v4513
    %7183 = vmatpush1.bf16.msra.mxu0 %v4512
    %7184 = vmatprep.subr.bf16.mxu0 %v4573
    %7185 = vmatpush2.bf16.msra.mxu0 %v4572
    %7186 = vmatprep.subr.bf16.mxu0 %v4569
    %7187 = vmatpush2.bf16.msra.mxu0 %v4568
    %7188 = vmatprep.subr.bf16.mxu0 %v4565
    %7189 = vmatpush2.bf16.msra.mxu0 %v4564
    %7190 = vmatprep.subr.bf16.mxu0 %v4561
    %7191 = vmatpush2.bf16.msra.mxu0 %v4560
    %7192 = vmatprep.subr.bf16.mxu0 %v4557
    %7193 = vmatpush2.bf16.msra.mxu0 %v4556
    %7194 = vmatprep.subr.bf16.mxu0 %v4553
    %7195 = vmatpush2.bf16.msra.mxu0 %v4552
    %7196 = vmatprep.subr.bf16.mxu0 %v4549
    %7197 = vmatpush2.bf16.msra.mxu0 %v4548
    %7198 = vmatprep.subr.bf16.mxu0 %v4545
    %7199 = vmatpush2.bf16.msra.mxu0 %v4544
    %7200 = vmatprep.mubr.bf16.mxu0 %v1126
    %7201 = vmatmul.mubr.bf16.gmra.mxu0 %v1112
    %v7202 = vpop.f32.mrf.mxu0
    %v7203 = vadd.f32 %v7162, %v7202
    %v7204 = vpop.f32.mrf.mxu0
    %v7205 = vadd.f32 %v7164, %v7204
    %v7206 = vpop.f32.mrf.mxu0
    %v7207 = vpop.f32.mrf.mxu0
    %7208 = vdwg.mxu0
    %7209 = vmatprep.subr.bf16.mxu0 %v4605
    %7210 = vmatpush1.bf16.msra.mxu0 %v4604
    %7211 = vmatprep.subr.bf16.mxu0 %v4601
    %7212 = vmatpush1.bf16.msra.mxu0 %v4600
    %7213 = vmatprep.subr.bf16.mxu0 %v4597
    %7214 = vmatpush1.bf16.msra.mxu0 %v4596
    %7215 = vmatprep.subr.bf16.mxu0 %v4593
    %7216 = vmatpush1.bf16.msra.mxu0 %v4592
    %7217 = vmatprep.subr.bf16.mxu0 %v4589
    %7218 = vmatpush1.bf16.msra.mxu0 %v4588
    %7219 = vmatprep.subr.bf16.mxu0 %v4585
    %7220 = vmatpush1.bf16.msra.mxu0 %v4584
    %7221 = vmatprep.subr.bf16.mxu0 %v4581
    %7222 = vmatpush1.bf16.msra.mxu0 %v4580
    %7223 = vmatprep.subr.bf16.mxu0 %v4577
    %7224 = vmatpush1.bf16.msra.mxu0 %v4576
    %7225 = vmatprep.subr.bf16.mxu0 %v4637
    %7226 = vmatpush2.bf16.msra.mxu0 %v4636
    %7227 = vmatprep.subr.bf16.mxu0 %v4633
    %7228 = vmatpush2.bf16.msra.mxu0 %v4632
    %7229 = vmatprep.subr.bf16.mxu0 %v4629
    %7230 = vmatpush2.bf16.msra.mxu0 %v4628
    %7231 = vmatprep.subr.bf16.mxu0 %v4625
    %7232 = vmatpush2.bf16.msra.mxu0 %v4624
    %7233 = vmatprep.subr.bf16.mxu0 %v4621
    %7234 = vmatpush2.bf16.msra.mxu0 %v4620
    %7235 = vmatprep.subr.bf16.mxu0 %v4617
    %7236 = vmatpush2.bf16.msra.mxu0 %v4616
    %7237 = vmatprep.subr.bf16.mxu0 %v4613
    %7238 = vmatpush2.bf16.msra.mxu0 %v4612
    %7239 = vmatprep.subr.bf16.mxu0 %v4609
    %7240 = vmatpush2.bf16.msra.mxu0 %v4608
    %7241 = vmatprep.mubr.bf16.mxu0 %v1130
    %7242 = vmatmul.mubr.bf16.gmra.mxu0 %v1128
    %v7243 = vpop.f32.mrf.mxu0
    %v7244 = vadd.f32 %v7203, %v7243
    %v7245 = vpop.f32.mrf.mxu0
    %v7246 = vadd.f32 %v7205, %v7245
    %v7247 = vpop.f32.mrf.mxu0
    %v7248 = vpop.f32.mrf.mxu0
    %7249 = vdwg.mxu0
    %7250 = vmatprep.subr.bf16.mxu0 %v4669
    %7251 = vmatpush1.bf16.msra.mxu0 %v4668
    %7252 = vmatprep.subr.bf16.mxu0 %v4665
    %7253 = vmatpush1.bf16.msra.mxu0 %v4664
    %7254 = vmatprep.subr.bf16.mxu0 %v4661
    %7255 = vmatpush1.bf16.msra.mxu0 %v4660
    %7256 = vmatprep.subr.bf16.mxu0 %v4657
    %7257 = vmatpush1.bf16.msra.mxu0 %v4656
    %7258 = vmatprep.subr.bf16.mxu0 %v4653
    %7259 = vmatpush1.bf16.msra.mxu0 %v4652
    %7260 = vmatprep.subr.bf16.mxu0 %v4649
    %7261 = vmatpush1.bf16.msra.mxu0 %v4648
    %7262 = vmatprep.subr.bf16.mxu0 %v4645
    %7263 = vmatpush1.bf16.msra.mxu0 %v4644
    %7264 = vmatprep.subr.bf16.mxu0 %v4641
    %7265 = vmatpush1.bf16.msra.mxu0 %v4640
    %7266 = vmatprep.subr.bf16.mxu0 %v4701
    %7267 = vmatpush2.bf16.msra.mxu0 %v4700
    %7268 = vmatprep.subr.bf16.mxu0 %v4697
    %7269 = vmatpush2.bf16.msra.mxu0 %v4696
    %7270 = vmatprep.subr.bf16.mxu0 %v4693
    %7271 = vmatpush2.bf16.msra.mxu0 %v4692
    %7272 = vmatprep.subr.bf16.mxu0 %v4689
    %7273 = vmatpush2.bf16.msra.mxu0 %v4688
    %7274 = vmatprep.subr.bf16.mxu0 %v4685
    %7275 = vmatpush2.bf16.msra.mxu0 %v4684
    %7276 = vmatprep.subr.bf16.mxu0 %v4681
    %7277 = vmatpush2.bf16.msra.mxu0 %v4680
    %7278 = vmatprep.subr.bf16.mxu0 %v4677
    %7279 = vmatpush2.bf16.msra.mxu0 %v4676
    %7280 = vmatprep.subr.bf16.mxu0 %v4673
    %7281 = vmatpush2.bf16.msra.mxu0 %v4672
    %7282 = vmatprep.mubr.bf16.mxu0 %v1168
    %7283 = vmatmul.mubr.bf16.gmra.mxu0 %v1154
    %v7284 = vpop.f32.mrf.mxu0
    %v7285 = vadd.f32 %v7244, %v7284
    %v7286 = vpop.f32.mrf.mxu0
    %v7287 = vadd.f32 %v7246, %v7286
    %v7288 = vpop.f32.mrf.mxu0
    %v7289 = vpop.f32.mrf.mxu0
    %7290 = vdwg.mxu0
    %7291 = vmatprep.subr.bf16.mxu0 %v4733
    %7292 = vmatpush1.bf16.msra.mxu0 %v4732
    %7293 = vmatprep.subr.bf16.mxu0 %v4729
    %7294 = vmatpush1.bf16.msra.mxu0 %v4728
    %7295 = vmatprep.subr.bf16.mxu0 %v4725
    %7296 = vmatpush1.bf16.msra.mxu0 %v4724
    %7297 = vmatprep.subr.bf16.mxu0 %v4721
    %7298 = vmatpush1.bf16.msra.mxu0 %v4720
    %7299 = vmatprep.subr.bf16.mxu0 %v4717
    %7300 = vmatpush1.bf16.msra.mxu0 %v4716
    %7301 = vmatprep.subr.bf16.mxu0 %v4713
    %7302 = vmatpush1.bf16.msra.mxu0 %v4712
    %7303 = vmatprep.subr.bf16.mxu0 %v4709
    %7304 = vmatpush1.bf16.msra.mxu0 %v4708
    %7305 = vmatprep.subr.bf16.mxu0 %v4705
    %7306 = vmatpush1.bf16.msra.mxu0 %v4704
    %7307 = vmatprep.subr.bf16.mxu0 %v4765
    %7308 = vmatpush2.bf16.msra.mxu0 %v4764
    %7309 = vmatprep.subr.bf16.mxu0 %v4761
    %7310 = vmatpush2.bf16.msra.mxu0 %v4760
    %7311 = vmatprep.subr.bf16.mxu0 %v4757
    %7312 = vmatpush2.bf16.msra.mxu0 %v4756
    %7313 = vmatprep.subr.bf16.mxu0 %v4753
    %7314 = vmatpush2.bf16.msra.mxu0 %v4752
    %7315 = vmatprep.subr.bf16.mxu0 %v4749
    %7316 = vmatpush2.bf16.msra.mxu0 %v4748
    %7317 = vmatprep.subr.bf16.mxu0 %v4745
    %7318 = vmatpush2.bf16.msra.mxu0 %v4744
    %7319 = vmatprep.subr.bf16.mxu0 %v4741
    %7320 = vmatpush2.bf16.msra.mxu0 %v4740
    %7321 = vmatprep.subr.bf16.mxu0 %v4737
    %7322 = vmatpush2.bf16.msra.mxu0 %v4736
    %7323 = vmatprep.mubr.bf16.mxu0 %v1178
    %7324 = vmatmul.mubr.bf16.gmra.mxu0 %v1176
    %v7325 = vpop.f32.mrf.mxu0
    %v7326 = vadd.f32 %v7285, %v7325
    %v7327 = vpop.f32.mrf.mxu0
    %v7328 = vadd.f32 %v7287, %v7327
    %v7329 = vpop.f32.mrf.mxu0
    %v7330 = vpop.f32.mrf.mxu0
    %7331 = vdwg.mxu0
    %7332 = vmatprep.subr.bf16.mxu0 %v4797
    %7333 = vmatpush1.bf16.msra.mxu0 %v4796
    %7334 = vmatprep.subr.bf16.mxu0 %v4793
    %7335 = vmatpush1.bf16.msra.mxu0 %v4792
    %7336 = vmatprep.subr.bf16.mxu0 %v4789
    %7337 = vmatpush1.bf16.msra.mxu0 %v4788
    %7338 = vmatprep.subr.bf16.mxu0 %v4785
    %7339 = vmatpush1.bf16.msra.mxu0 %v4784
    %7340 = vmatprep.subr.bf16.mxu0 %v4781
    %7341 = vmatpush1.bf16.msra.mxu0 %v4780
    %7342 = vmatprep.subr.bf16.mxu0 %v4777
    %7343 = vmatpush1.bf16.msra.mxu0 %v4776
    %7344 = vmatprep.subr.bf16.mxu0 %v4773
    %7345 = vmatpush1.bf16.msra.mxu0 %v4772
    %7346 = vmatprep.subr.bf16.mxu0 %v4769
    %7347 = vmatpush1.bf16.msra.mxu0 %v4768
    %7348 = vmatprep.subr.bf16.mxu0 %v4829
    %7349 = vmatpush2.bf16.msra.mxu0 %v4828
    %7350 = vmatprep.subr.bf16.mxu0 %v4825
    %7351 = vmatpush2.bf16.msra.mxu0 %v4824
    %7352 = vmatprep.subr.bf16.mxu0 %v4821
    %7353 = vmatpush2.bf16.msra.mxu0 %v4820
    %7354 = vmatprep.subr.bf16.mxu0 %v4817
    %7355 = vmatpush2.bf16.msra.mxu0 %v4816
    %7356 = vmatprep.subr.bf16.mxu0 %v4813
    %7357 = vmatpush2.bf16.msra.mxu0 %v4812
    %7358 = vmatprep.subr.bf16.mxu0 %v4809
    %7359 = vmatpush2.bf16.msra.mxu0 %v4808
    %7360 = vmatprep.subr.bf16.mxu0 %v4805
    %7361 = vmatpush2.bf16.msra.mxu0 %v4804
    %7362 = vmatprep.subr.bf16.mxu0 %v4801
    %7363 = vmatpush2.bf16.msra.mxu0 %v4800
    %7364 = vmatprep.mubr.bf16.mxu0 %v1175
    %7365 = vmatmul.mubr.bf16.gmra.mxu0 %v1161
    %v7366 = vpop.f32.mrf.mxu0
    %v7367 = vadd.f32 %v7326, %v7366
    %v7368 = vpop.f32.mrf.mxu0
    %v7369 = vadd.f32 %v7328, %v7368
    %v7370 = vpop.f32.mrf.mxu0
    %v7371 = vpop.f32.mrf.mxu0
    %7372 = vdwg.mxu0
    %7373 = vmatprep.subr.bf16.mxu0 %v4861
    %7374 = vmatpush1.bf16.msra.mxu0 %v4860
    %7375 = vmatprep.subr.bf16.mxu0 %v4857
    %7376 = vmatpush1.bf16.msra.mxu0 %v4856
    %7377 = vmatprep.subr.bf16.mxu0 %v4853
    %7378 = vmatpush1.bf16.msra.mxu0 %v4852
    %7379 = vmatprep.subr.bf16.mxu0 %v4849
    %7380 = vmatpush1.bf16.msra.mxu0 %v4848
    %7381 = vmatprep.subr.bf16.mxu0 %v4845
    %7382 = vmatpush1.bf16.msra.mxu0 %v4844
    %7383 = vmatprep.subr.bf16.mxu0 %v4841
    %7384 = vmatpush1.bf16.msra.mxu0 %v4840
    %7385 = vmatprep.subr.bf16.mxu0 %v4837
    %7386 = vmatpush1.bf16.msra.mxu0 %v4836
    %7387 = vmatprep.subr.bf16.mxu0 %v4833
    %7388 = vmatpush1.bf16.msra.mxu0 %v4832
    %7389 = vmatprep.subr.bf16.mxu0 %v4893
    %7390 = vmatpush2.bf16.msra.mxu0 %v4892
    %7391 = vmatprep.subr.bf16.mxu0 %v4889
    %7392 = vmatpush2.bf16.msra.mxu0 %v4888
    %7393 = vmatprep.subr.bf16.mxu0 %v4885
    %7394 = vmatpush2.bf16.msra.mxu0 %v4884
    %7395 = vmatprep.subr.bf16.mxu0 %v4881
    %7396 = vmatpush2.bf16.msra.mxu0 %v4880
    %7397 = vmatprep.subr.bf16.mxu0 %v4877
    %7398 = vmatpush2.bf16.msra.mxu0 %v4876
    %7399 = vmatprep.subr.bf16.mxu0 %v4873
    %7400 = vmatpush2.bf16.msra.mxu0 %v4872
    %7401 = vmatprep.subr.bf16.mxu0 %v4869
    %7402 = vmatpush2.bf16.msra.mxu0 %v4868
    %7403 = vmatprep.subr.bf16.mxu0 %v4865
    %7404 = vmatpush2.bf16.msra.mxu0 %v4864
    %7405 = vmatprep.mubr.bf16.mxu0 %v1179
    %7406 = vmatmul.mubr.bf16.gmra.mxu0 %v1177
    %v7407 = vpop.f32.mrf.mxu0
    %v7408 = vadd.f32 %v7367, %v7407
    %v7409 = vpop.f32.mrf.mxu0
    %v7410 = vadd.f32 %v7369, %v7409
    %v7411 = vpop.f32.mrf.mxu0
    %v7412 = vpop.f32.mrf.mxu0
    %7413 = vdwg.mxu0
    %7414 = vmatprep.subr.bf16.mxu0 %v4925
    %7415 = vmatpush1.bf16.msra.mxu0 %v4924
    %7416 = vmatprep.subr.bf16.mxu0 %v4921
    %7417 = vmatpush1.bf16.msra.mxu0 %v4920
    %7418 = vmatprep.subr.bf16.mxu0 %v4917
    %7419 = vmatpush1.bf16.msra.mxu0 %v4916
    %7420 = vmatprep.subr.bf16.mxu0 %v4913
    %7421 = vmatpush1.bf16.msra.mxu0 %v4912
    %7422 = vmatprep.subr.bf16.mxu0 %v4909
    %7423 = vmatpush1.bf16.msra.mxu0 %v4908
    %7424 = vmatprep.subr.bf16.mxu0 %v4905
    %7425 = vmatpush1.bf16.msra.mxu0 %v4904
    %7426 = vmatprep.subr.bf16.mxu0 %v4901
    %7427 = vmatpush1.bf16.msra.mxu0 %v4900
    %7428 = vmatprep.subr.bf16.mxu0 %v4897
    %7429 = vmatpush1.bf16.msra.mxu0 %v4896
    %7430 = vmatprep.subr.bf16.mxu0 %v4957
    %7431 = vmatpush2.bf16.msra.mxu0 %v4956
    %7432 = vmatprep.subr.bf16.mxu0 %v4953
    %7433 = vmatpush2.bf16.msra.mxu0 %v4952
    %7434 = vmatprep.subr.bf16.mxu0 %v4949
    %7435 = vmatpush2.bf16.msra.mxu0 %v4948
    %7436 = vmatprep.subr.bf16.mxu0 %v4945
    %7437 = vmatpush2.bf16.msra.mxu0 %v4944
    %7438 = vmatprep.subr.bf16.mxu0 %v4941
    %7439 = vmatpush2.bf16.msra.mxu0 %v4940
    %7440 = vmatprep.subr.bf16.mxu0 %v4937
    %7441 = vmatpush2.bf16.msra.mxu0 %v4936
    %7442 = vmatprep.subr.bf16.mxu0 %v4933
    %7443 = vmatpush2.bf16.msra.mxu0 %v4932
    %7444 = vmatprep.subr.bf16.mxu0 %v4929
    %7445 = vmatpush2.bf16.msra.mxu0 %v4928
    %7446 = vmatprep.mubr.bf16.mxu0 %v1217
    %7447 = vmatmul.mubr.bf16.gmra.mxu0 %v1203
    %v7448 = vpop.f32.mrf.mxu0
    %v7449 = vadd.f32 %v7408, %v7448
    %v7450 = vpop.f32.mrf.mxu0
    %v7451 = vadd.f32 %v7410, %v7450
    %v7452 = vpop.f32.mrf.mxu0
    %v7453 = vpop.f32.mrf.mxu0
    %7454 = vdwg.mxu0
    %7455 = vmatprep.subr.bf16.mxu0 %v4989
    %7456 = vmatpush1.bf16.msra.mxu0 %v4988
    %7457 = vmatprep.subr.bf16.mxu0 %v4985
    %7458 = vmatpush1.bf16.msra.mxu0 %v4984
    %7459 = vmatprep.subr.bf16.mxu0 %v4981
    %7460 = vmatpush1.bf16.msra.mxu0 %v4980
    %7461 = vmatprep.subr.bf16.mxu0 %v4977
    %7462 = vmatpush1.bf16.msra.mxu0 %v4976
    %7463 = vmatprep.subr.bf16.mxu0 %v4973
    %7464 = vmatpush1.bf16.msra.mxu0 %v4972
    %7465 = vmatprep.subr.bf16.mxu0 %v4969
    %7466 = vmatpush1.bf16.msra.mxu0 %v4968
    %7467 = vmatprep.subr.bf16.mxu0 %v4965
    %7468 = vmatpush1.bf16.msra.mxu0 %v4964
    %7469 = vmatprep.subr.bf16.mxu0 %v4961
    %7470 = vmatpush1.bf16.msra.mxu0 %v4960
    %7471 = vmatprep.subr.bf16.mxu0 %v5021
    %7472 = vmatpush2.bf16.msra.mxu0 %v5020
    %7473 = vmatprep.subr.bf16.mxu0 %v5017
    %7474 = vmatpush2.bf16.msra.mxu0 %v5016
    %7475 = vmatprep.subr.bf16.mxu0 %v5013
    %7476 = vmatpush2.bf16.msra.mxu0 %v5012
    %7477 = vmatprep.subr.bf16.mxu0 %v5009
    %7478 = vmatpush2.bf16.msra.mxu0 %v5008
    %7479 = vmatprep.subr.bf16.mxu0 %v5005
    %7480 = vmatpush2.bf16.msra.mxu0 %v5004
    %7481 = vmatprep.subr.bf16.mxu0 %v5001
    %7482 = vmatpush2.bf16.msra.mxu0 %v5000
    %7483 = vmatprep.subr.bf16.mxu0 %v4997
    %7484 = vmatpush2.bf16.msra.mxu0 %v4996
    %7485 = vmatprep.subr.bf16.mxu0 %v4993
    %7486 = vmatpush2.bf16.msra.mxu0 %v4992
    %7487 = vmatprep.mubr.bf16.mxu0 %v1227
    %7488 = vmatmul.mubr.bf16.gmra.mxu0 %v1225
    %v7489 = vpop.f32.mrf.mxu0
    %v7490 = vadd.f32 %v7449, %v7489
    %v7491 = vpop.f32.mrf.mxu0
    %v7492 = vadd.f32 %v7451, %v7491
    %v7493 = vpop.f32.mrf.mxu0
    %v7494 = vpop.f32.mrf.mxu0
    %7495 = vdwg.mxu0
    %7496 = vmatprep.subr.bf16.mxu0 %v5053
    %7497 = vmatpush1.bf16.msra.mxu0 %v5052
    %7498 = vmatprep.subr.bf16.mxu0 %v5049
    %7499 = vmatpush1.bf16.msra.mxu0 %v5048
    %7500 = vmatprep.subr.bf16.mxu0 %v5045
    %7501 = vmatpush1.bf16.msra.mxu0 %v5044
    %7502 = vmatprep.subr.bf16.mxu0 %v5041
    %7503 = vmatpush1.bf16.msra.mxu0 %v5040
    %7504 = vmatprep.subr.bf16.mxu0 %v5037
    %7505 = vmatpush1.bf16.msra.mxu0 %v5036
    %7506 = vmatprep.subr.bf16.mxu0 %v5033
    %7507 = vmatpush1.bf16.msra.mxu0 %v5032
    %7508 = vmatprep.subr.bf16.mxu0 %v5029
    %7509 = vmatpush1.bf16.msra.mxu0 %v5028
    %7510 = vmatprep.subr.bf16.mxu0 %v5025
    %7511 = vmatpush1.bf16.msra.mxu0 %v5024
    %7512 = vmatprep.subr.bf16.mxu0 %v5085
    %7513 = vmatpush2.bf16.msra.mxu0 %v5084
    %7514 = vmatprep.subr.bf16.mxu0 %v5081
    %7515 = vmatpush2.bf16.msra.mxu0 %v5080
    %7516 = vmatprep.subr.bf16.mxu0 %v5077
    %7517 = vmatpush2.bf16.msra.mxu0 %v5076
    %7518 = vmatprep.subr.bf16.mxu0 %v5073
    %7519 = vmatpush2.bf16.msra.mxu0 %v5072
    %7520 = vmatprep.subr.bf16.mxu0 %v5069
    %7521 = vmatpush2.bf16.msra.mxu0 %v5068
    %7522 = vmatprep.subr.bf16.mxu0 %v5065
    %7523 = vmatpush2.bf16.msra.mxu0 %v5064
    %7524 = vmatprep.subr.bf16.mxu0 %v5061
    %7525 = vmatpush2.bf16.msra.mxu0 %v5060
    %7526 = vmatprep.subr.bf16.mxu0 %v5057
    %7527 = vmatpush2.bf16.msra.mxu0 %v5056
    %7528 = vmatprep.mubr.bf16.mxu0 %v1224
    %7529 = vmatmul.mubr.bf16.gmra.mxu0 %v1210
    %v7530 = vpop.f32.mrf.mxu0
    %v7531 = vadd.f32 %v7490, %v7530
    %v7532 = vpop.f32.mrf.mxu0
    %v7533 = vadd.f32 %v7492, %v7532
    %v7534 = vpop.f32.mrf.mxu0
    %v7535 = vpop.f32.mrf.mxu0
    %7536 = vdwg.mxu0
    %7537 = vmatprep.subr.bf16.mxu0 %v5117
    %7538 = vmatpush1.bf16.msra.mxu0 %v5116
    %7539 = vmatprep.subr.bf16.mxu0 %v5113
    %7540 = vmatpush1.bf16.msra.mxu0 %v5112
    %7541 = vmatprep.subr.bf16.mxu0 %v5109
    %7542 = vmatpush1.bf16.msra.mxu0 %v5108
    %7543 = vmatprep.subr.bf16.mxu0 %v5105
    %7544 = vmatpush1.bf16.msra.mxu0 %v5104
    %7545 = vmatprep.subr.bf16.mxu0 %v5101
    %7546 = vmatpush1.bf16.msra.mxu0 %v5100
    %7547 = vmatprep.subr.bf16.mxu0 %v5097
    %7548 = vmatpush1.bf16.msra.mxu0 %v5096
    %7549 = vmatprep.subr.bf16.mxu0 %v5093
    %7550 = vmatpush1.bf16.msra.mxu0 %v5092
    %7551 = vmatprep.subr.bf16.mxu0 %v5089
    %7552 = vmatpush1.bf16.msra.mxu0 %v5088
    %7553 = vmatprep.subr.bf16.mxu0 %v5149
    %7554 = vmatpush2.bf16.msra.mxu0 %v5148
    %7555 = vmatprep.subr.bf16.mxu0 %v5145
    %7556 = vmatpush2.bf16.msra.mxu0 %v5144
    %7557 = vmatprep.subr.bf16.mxu0 %v5141
    %7558 = vmatpush2.bf16.msra.mxu0 %v5140
    %7559 = vmatprep.subr.bf16.mxu0 %v5137
    %7560 = vmatpush2.bf16.msra.mxu0 %v5136
    %7561 = vmatprep.subr.bf16.mxu0 %v5133
    %7562 = vmatpush2.bf16.msra.mxu0 %v5132
    %7563 = vmatprep.subr.bf16.mxu0 %v5129
    %7564 = vmatpush2.bf16.msra.mxu0 %v5128
    %7565 = vmatprep.subr.bf16.mxu0 %v5125
    %7566 = vmatpush2.bf16.msra.mxu0 %v5124
    %7567 = vmatprep.subr.bf16.mxu0 %v5121
    %7568 = vmatpush2.bf16.msra.mxu0 %v5120
    %7569 = vmatprep.mubr.bf16.mxu0 %v1228
    %7570 = vmatmul.mubr.bf16.gmra.mxu0 %v1226
    %v7571 = vpop.f32.mrf.mxu0
    %v7572 = vadd.f32 %v7531, %v7571
    %v7573 = vpop.f32.mrf.mxu0
    %v7574 = vadd.f32 %v7533, %v7573
    %v7575 = vpop.f32.mrf.mxu0
    %v7576 = vpop.f32.mrf.mxu0
    %7577 = vdwg.mxu0
    %7578 = vmatprep.subr.bf16.mxu0 %v5181
    %7579 = vmatpush1.bf16.msra.mxu0 %v5180
    %7580 = vmatprep.subr.bf16.mxu0 %v5177
    %7581 = vmatpush1.bf16.msra.mxu0 %v5176
    %7582 = vmatprep.subr.bf16.mxu0 %v5173
    %7583 = vmatpush1.bf16.msra.mxu0 %v5172
    %7584 = vmatprep.subr.bf16.mxu0 %v5169
    %7585 = vmatpush1.bf16.msra.mxu0 %v5168
    %7586 = vmatprep.subr.bf16.mxu0 %v5165
    %7587 = vmatpush1.bf16.msra.mxu0 %v5164
    %7588 = vmatprep.subr.bf16.mxu0 %v5161
    %7589 = vmatpush1.bf16.msra.mxu0 %v5160
    %7590 = vmatprep.subr.bf16.mxu0 %v5157
    %7591 = vmatpush1.bf16.msra.mxu0 %v5156
    %7592 = vmatprep.subr.bf16.mxu0 %v5153
    %7593 = vmatpush1.bf16.msra.mxu0 %v5152
    %7594 = vmatprep.subr.bf16.mxu0 %v5213
    %7595 = vmatpush2.bf16.msra.mxu0 %v5212
    %7596 = vmatprep.subr.bf16.mxu0 %v5209
    %7597 = vmatpush2.bf16.msra.mxu0 %v5208
    %7598 = vmatprep.subr.bf16.mxu0 %v5205
    %7599 = vmatpush2.bf16.msra.mxu0 %v5204
    %7600 = vmatprep.subr.bf16.mxu0 %v5201
    %7601 = vmatpush2.bf16.msra.mxu0 %v5200
    %7602 = vmatprep.subr.bf16.mxu0 %v5197
    %7603 = vmatpush2.bf16.msra.mxu0 %v5196
    %7604 = vmatprep.subr.bf16.mxu0 %v5193
    %7605 = vmatpush2.bf16.msra.mxu0 %v5192
    %7606 = vmatprep.subr.bf16.mxu0 %v5189
    %7607 = vmatpush2.bf16.msra.mxu0 %v5188
    %7608 = vmatprep.subr.bf16.mxu0 %v5185
    %7609 = vmatpush2.bf16.msra.mxu0 %v5184
    %7610 = vmatprep.mubr.bf16.mxu0 %v1266
    %7611 = vmatmul.mubr.bf16.gmra.mxu0 %v1252
    %v7612 = vpop.f32.mrf.mxu0
    %v7613 = vadd.f32 %v7572, %v7612
    %v7614 = vpop.f32.mrf.mxu0
    %v7615 = vadd.f32 %v7574, %v7614
    %v7616 = vpop.f32.mrf.mxu0
    %v7617 = vpop.f32.mrf.mxu0
    %7618 = vdwg.mxu0
    %7619 = vmatprep.subr.bf16.mxu0 %v5245
    %7620 = vmatpush1.bf16.msra.mxu0 %v5244
    %7621 = vmatprep.subr.bf16.mxu0 %v5241
    %7622 = vmatpush1.bf16.msra.mxu0 %v5240
    %7623 = vmatprep.subr.bf16.mxu0 %v5237
    %7624 = vmatpush1.bf16.msra.mxu0 %v5236
    %7625 = vmatprep.subr.bf16.mxu0 %v5233
    %7626 = vmatpush1.bf16.msra.mxu0 %v5232
    %7627 = vmatprep.subr.bf16.mxu0 %v5229
    %7628 = vmatpush1.bf16.msra.mxu0 %v5228
    %7629 = vmatprep.subr.bf16.mxu0 %v5225
    %7630 = vmatpush1.bf16.msra.mxu0 %v5224
    %7631 = vmatprep.subr.bf16.mxu0 %v5221
    %7632 = vmatpush1.bf16.msra.mxu0 %v5220
    %7633 = vmatprep.subr.bf16.mxu0 %v5217
    %7634 = vmatpush1.bf16.msra.mxu0 %v5216
    %7635 = vmatprep.subr.bf16.mxu0 %v5277
    %7636 = vmatpush2.bf16.msra.mxu0 %v5276
    %7637 = vmatprep.subr.bf16.mxu0 %v5273
    %7638 = vmatpush2.bf16.msra.mxu0 %v5272
    %7639 = vmatprep.subr.bf16.mxu0 %v5269
    %7640 = vmatpush2.bf16.msra.mxu0 %v5268
    %7641 = vmatprep.subr.bf16.mxu0 %v5265
    %7642 = vmatpush2.bf16.msra.mxu0 %v5264
    %7643 = vmatprep.subr.bf16.mxu0 %v5261
    %7644 = vmatpush2.bf16.msra.mxu0 %v5260
    %7645 = vmatprep.subr.bf16.mxu0 %v5257
    %7646 = vmatpush2.bf16.msra.mxu0 %v5256
    %7647 = vmatprep.subr.bf16.mxu0 %v5253
    %7648 = vmatpush2.bf16.msra.mxu0 %v5252
    %7649 = vmatprep.subr.bf16.mxu0 %v5249
    %7650 = vmatpush2.bf16.msra.mxu0 %v5248
    %7651 = vmatprep.mubr.bf16.mxu0 %v1276
    %7652 = vmatmul.mubr.bf16.gmra.mxu0 %v1274
    %v7653 = vpop.f32.mrf.mxu0
    %v7654 = vadd.f32 %v7613, %v7653
    %v7655 = vpop.f32.mrf.mxu0
    %v7656 = vadd.f32 %v7615, %v7655
    %v7657 = vpop.f32.mrf.mxu0
    %v7658 = vpop.f32.mrf.mxu0
    %7659 = vdwg.mxu0
    %7660 = vmatprep.subr.bf16.mxu0 %v5309
    %7661 = vmatpush1.bf16.msra.mxu0 %v5308
    %7662 = vmatprep.subr.bf16.mxu0 %v5305
    %7663 = vmatpush1.bf16.msra.mxu0 %v5304
    %7664 = vmatprep.subr.bf16.mxu0 %v5301
    %7665 = vmatpush1.bf16.msra.mxu0 %v5300
    %7666 = vmatprep.subr.bf16.mxu0 %v5297
    %7667 = vmatpush1.bf16.msra.mxu0 %v5296
    %7668 = vmatprep.subr.bf16.mxu0 %v5293
    %7669 = vmatpush1.bf16.msra.mxu0 %v5292
    %7670 = vmatprep.subr.bf16.mxu0 %v5289
    %7671 = vmatpush1.bf16.msra.mxu0 %v5288
    %7672 = vmatprep.subr.bf16.mxu0 %v5285
    %7673 = vmatpush1.bf16.msra.mxu0 %v5284
    %7674 = vmatprep.subr.bf16.mxu0 %v5281
    %7675 = vmatpush1.bf16.msra.mxu0 %v5280
    %7676 = vmatprep.subr.bf16.mxu0 %v5341
    %7677 = vmatpush2.bf16.msra.mxu0 %v5340
    %7678 = vmatprep.subr.bf16.mxu0 %v5337
    %7679 = vmatpush2.bf16.msra.mxu0 %v5336
    %7680 = vmatprep.subr.bf16.mxu0 %v5333
    %7681 = vmatpush2.bf16.msra.mxu0 %v5332
    %7682 = vmatprep.subr.bf16.mxu0 %v5329
    %7683 = vmatpush2.bf16.msra.mxu0 %v5328
    %7684 = vmatprep.subr.bf16.mxu0 %v5325
    %7685 = vmatpush2.bf16.msra.mxu0 %v5324
    %7686 = vmatprep.subr.bf16.mxu0 %v5321
    %7687 = vmatpush2.bf16.msra.mxu0 %v5320
    %7688 = vmatprep.subr.bf16.mxu0 %v5317
    %7689 = vmatpush2.bf16.msra.mxu0 %v5316
    %7690 = vmatprep.subr.bf16.mxu0 %v5313
    %7691 = vmatpush2.bf16.msra.mxu0 %v5312
    %7692 = vmatprep.mubr.bf16.mxu0 %v1273
    %7693 = vmatmul.mubr.bf16.gmra.mxu0 %v1259
    %v7694 = vpop.f32.mrf.mxu0
    %v7695 = vadd.f32 %v7654, %v7694
    %v7696 = vpop.f32.mrf.mxu0
    %v7697 = vadd.f32 %v7656, %v7696
    %v7698 = vpop.f32.mrf.mxu0
    %v7699 = vpop.f32.mrf.mxu0
    %7700 = vdwg.mxu0
    %7701 = vmatprep.subr.bf16.mxu0 %v5373
    %7702 = vmatpush1.bf16.msra.mxu0 %v5372
    %7703 = vmatprep.subr.bf16.mxu0 %v5369
    %7704 = vmatpush1.bf16.msra.mxu0 %v5368
    %7705 = vmatprep.subr.bf16.mxu0 %v5365
    %7706 = vmatpush1.bf16.msra.mxu0 %v5364
    %7707 = vmatprep.subr.bf16.mxu0 %v5361
    %7708 = vmatpush1.bf16.msra.mxu0 %v5360
    %7709 = vmatprep.subr.bf16.mxu0 %v5357
    %7710 = vmatpush1.bf16.msra.mxu0 %v5356
    %7711 = vmatprep.subr.bf16.mxu0 %v5353
    %7712 = vmatpush1.bf16.msra.mxu0 %v5352
    %7713 = vmatprep.subr.bf16.mxu0 %v5349
    %7714 = vmatpush1.bf16.msra.mxu0 %v5348
    %7715 = vmatprep.subr.bf16.mxu0 %v5345
    %7716 = vmatpush1.bf16.msra.mxu0 %v5344
    %7717 = vmatprep.subr.bf16.mxu0 %v5405
    %7718 = vmatpush2.bf16.msra.mxu0 %v5404
    %7719 = vmatprep.subr.bf16.mxu0 %v5401
    %7720 = vmatpush2.bf16.msra.mxu0 %v5400
    %7721 = vmatprep.subr.bf16.mxu0 %v5397
    %7722 = vmatpush2.bf16.msra.mxu0 %v5396
    %7723 = vmatprep.subr.bf16.mxu0 %v5393
    %7724 = vmatpush2.bf16.msra.mxu0 %v5392
    %7725 = vmatprep.subr.bf16.mxu0 %v5389
    %7726 = vmatpush2.bf16.msra.mxu0 %v5388
    %7727 = vmatprep.subr.bf16.mxu0 %v5385
    %7728 = vmatpush2.bf16.msra.mxu0 %v5384
    %7729 = vmatprep.subr.bf16.mxu0 %v5381
    %7730 = vmatpush2.bf16.msra.mxu0 %v5380
    %7731 = vmatprep.subr.bf16.mxu0 %v5377
    %7732 = vmatpush2.bf16.msra.mxu0 %v5376
    %7733 = vmatprep.mubr.bf16.mxu0 %v1277
    %7734 = vmatmul.mubr.bf16.gmra.mxu0 %v1275
    %v7735 = vpop.f32.mrf.mxu0
    %v7736 = vadd.f32 %v7695, %v7735
    %v7737 = vpop.f32.mrf.mxu0
    %v7738 = vadd.f32 %v7697, %v7737
    %v7739 = vpop.f32.mrf.mxu0
    %v7740 = vpop.f32.mrf.mxu0
    %7741 = vdwg.mxu0
    %v7742 = vmax.f32 %v7080, 0.0
    %v7743 = vmax.f32 %v7082, 0.0
    %v7744 = vmax.f32 %v7736, 0.0
    %v7745 = vmax.f32 %v7738, 0.0
    %v7746 = vpack.c.bf16 %v7742, %v7742
    %v7747 = vpack.c.bf16 %v7743, %v7743
    %v7748 = vpack.c.bf16 %v7744, %v7744
    %v7749 = vpack.c.bf16 %v7745, %v7745
    %v7750 = vld [vmem:[%s3] sm:$0xff]
    %v7751 = vld [vmem:[%s3 + $0x8] sm:$0xff]
    %v7752 = vld [vmem:[%s3 + $0x10] sm:$0xff]
    %v7753 = vld [vmem:[%s3 + $0x18] sm:$0xff]
    %v7754 = vld [vmem:[%s3 + $0x20] sm:$0xff]
    %v7755 = vld [vmem:[%s3 + $0x28] sm:$0xff]
    %v7756 = vld [vmem:[%s3 + $0x30] sm:$0xff]
    %v7757 = vld [vmem:[%s3 + $0x38] sm:$0xff]
    %v7758 = vld [vmem:[%s3 + $0x40] sm:$0xff]
    %v7759 = vld [vmem:[%s3 + $0x48] sm:$0xff]
    %v7760 = vld [vmem:[%s3 + $0x50] sm:$0xff]
    %v7761 = vld [vmem:[%s3 + $0x58] sm:$0xff]
    %v7762 = vld [vmem:[%s3 + $0x60] sm:$0xff]
    %v7763 = vld [vmem:[%s3 + $0x68] sm:$0xff]
    %v7764 = vld [vmem:[%s3 + $0x70] sm:$0xff]
    %v7765 = vld [vmem:[%s3 + $0x78] sm:$0xff]
    %v7766 = vld [vmem:[%s3 + $0x80] sm:$0xff]
    %v7767 = vld [vmem:[%s3 + $0x88] sm:$0xff]
    %v7768 = vld [vmem:[%s3 + $0x90] sm:$0xff]
    %v7769 = vld [vmem:[%s3 + $0x98] sm:$0xff]
    %v7770 = vld [vmem:[%s3 + $0xa0] sm:$0xff]
    %v7771 = vld [vmem:[%s3 + $0xa8] sm:$0xff]
    %v7772 = vld [vmem:[%s3 + $0xb0] sm:$0xff]
    %v7773 = vld [vmem:[%s3 + $0xb8] sm:$0xff]
    %v7774 = vld [vmem:[%s3 + $0xc0] sm:$0xff]
    %v7775 = vld [vmem:[%s3 + $0xc8] sm:$0xff]
    %v7776 = vld [vmem:[%s3 + $0xd0] sm:$0xff]
    %v7777 = vld [vmem:[%s3 + $0xd8] sm:$0xff]
    %v7778 = vld [vmem:[%s3 + $0xe0] sm:$0xff]
    %v7779 = vld [vmem:[%s3 + $0xe8] sm:$0xff]
    %v7780 = vld [vmem:[%s3 + $0xf0] sm:$0xff]
    %v7781 = vld [vmem:[%s3 + $0xf8] sm:$0xff]
    %v7782 = vld [vmem:[%s3 + $0x100] sm:$0xff]
    %v7783 = vld [vmem:[%s3 + $0x108] sm:$0xff]
    %v7784 = vld [vmem:[%s3 + $0x110] sm:$0xff]
    %v7785 = vld [vmem:[%s3 + $0x118] sm:$0xff]
    %v7786 = vld [vmem:[%s3 + $0x120] sm:$0xff]
    %v7787 = vld [vmem:[%s3 + $0x128] sm:$0xff]
    %v7788 = vld [vmem:[%s3 + $0x130] sm:$0xff]
    %v7789 = vld [vmem:[%s3 + $0x138] sm:$0xff]
    %v7790 = vld [vmem:[%s3 + $0x140] sm:$0xff]
    %v7791 = vld [vmem:[%s3 + $0x148] sm:$0xff]
    %v7792 = vld [vmem:[%s3 + $0x150] sm:$0xff]
    %v7793 = vld [vmem:[%s3 + $0x158] sm:$0xff]
    %v7794 = vld [vmem:[%s3 + $0x160] sm:$0xff]
    %v7795 = vld [vmem:[%s3 + $0x168] sm:$0xff]
    %v7796 = vld [vmem:[%s3 + $0x170] sm:$0xff]
    %v7797 = vld [vmem:[%s3 + $0x178] sm:$0xff]
    %v7798 = vld [vmem:[%s3 + $0x180] sm:$0xff]
    %v7799 = vld [vmem:[%s3 + $0x188] sm:$0xff]
    %v7800 = vld [vmem:[%s3 + $0x190] sm:$0xff]
    %v7801 = vld [vmem:[%s3 + $0x198] sm:$0xff]
    %v7802 = vld [vmem:[%s3 + $0x1a0] sm:$0xff]
    %v7803 = vld [vmem:[%s3 + $0x1a8] sm:$0xff]
    %v7804 = vld [vmem:[%s3 + $0x1b0] sm:$0xff]
    %v7805 = vld [vmem:[%s3 + $0x1b8] sm:$0xff]
    %v7806 = vld [vmem:[%s3 + $0x1c0] sm:$0xff]
    %v7807 = vld [vmem:[%s3 + $0x1c8] sm:$0xff]
    %v7808 = vld [vmem:[%s3 + $0x1d0] sm:$0xff]
    %v7809 = vld [vmem:[%s3 + $0x1d8] sm:$0xff]
    %v7810 = vld [vmem:[%s3 + $0x1e0] sm:$0xff]
    %v7811 = vld [vmem:[%s3 + $0x1e8] sm:$0xff]
    %v7812 = vld [vmem:[%s3 + $0x1f0] sm:$0xff]
    %v7813 = vld [vmem:[%s3 + $0x1f8] sm:$0xff]
    %v7814 = vld [vmem:[%s4] sm:$0x3]
    %v7816 = vlaneseq
    %v7817 = vshrl.u32 %v7816, 7
    %v7818 = vsub.s32 0, %v7817
    %v7819 = vrot.slane %v7814, %v7818
    %v7820 = vlaneseq
    %v7821 = vshrl.u32 %v7820, 7
    %v7822 = vsub.s32 1, %v7821
    %v7823 = vrot.slane %v7814, %v7822
    %v7890 = vunpack.c.l.b16 %v7750
    %v7891 = vunpack.c.h.b16 %v7750
    %v7892 = vunpack.c.l.b16 %v7751
    %v7893 = vunpack.c.h.b16 %v7751
    %v7894 = vunpack.c.l.b16 %v7752
    %v7895 = vunpack.c.h.b16 %v7752
    %v7896 = vunpack.c.l.b16 %v7753
    %v7897 = vunpack.c.h.b16 %v7753
    %v7898 = vunpack.c.l.b16 %v7754
    %v7899 = vunpack.c.h.b16 %v7754
    %v7900 = vunpack.c.l.b16 %v7755
    %v7901 = vunpack.c.h.b16 %v7755
    %v7902 = vunpack.c.l.b16 %v7756
    %v7903 = vunpack.c.h.b16 %v7756
    %v7904 = vunpack.c.l.b16 %v7757
    %v7905 = vunpack.c.h.b16 %v7757
    %v7906 = vunpack.c.l.b16 %v7758
    %v7907 = vunpack.c.h.b16 %v7758
    %v7908 = vunpack.c.l.b16 %v7759
    %v7909 = vunpack.c.h.b16 %v7759
    %v7910 = vunpack.c.l.b16 %v7760
    %v7911 = vunpack.c.h.b16 %v7760
    %v7912 = vunpack.c.l.b16 %v7761
    %v7913 = vunpack.c.h.b16 %v7761
    %v7914 = vunpack.c.l.b16 %v7762
    %v7915 = vunpack.c.h.b16 %v7762
    %v7916 = vunpack.c.l.b16 %v7763
    %v7917 = vunpack.c.h.b16 %v7763
    %v7918 = vunpack.c.l.b16 %v7764
    %v7919 = vunpack.c.h.b16 %v7764
    %v7920 = vunpack.c.l.b16 %v7765
    %v7921 = vunpack.c.h.b16 %v7765
    %v7922 = vunpack.c.l.b16 %v7766
    %v7923 = vunpack.c.h.b16 %v7766
    %v7924 = vunpack.c.l.b16 %v7767
    %v7925 = vunpack.c.h.b16 %v7767
    %v7926 = vunpack.c.l.b16 %v7768
    %v7927 = vunpack.c.h.b16 %v7768
    %v7928 = vunpack.c.l.b16 %v7769
    %v7929 = vunpack.c.h.b16 %v7769
    %v7930 = vunpack.c.l.b16 %v7770
    %v7931 = vunpack.c.h.b16 %v7770
    %v7932 = vunpack.c.l.b16 %v7771
    %v7933 = vunpack.c.h.b16 %v7771
    %v7934 = vunpack.c.l.b16 %v7772
    %v7935 = vunpack.c.h.b16 %v7772
    %v7936 = vunpack.c.l.b16 %v7773
    %v7937 = vunpack.c.h.b16 %v7773
    %v7938 = vunpack.c.l.b16 %v7774
    %v7939 = vunpack.c.h.b16 %v7774
    %v7940 = vunpack.c.l.b16 %v7775
    %v7941 = vunpack.c.h.b16 %v7775
    %v7942 = vunpack.c.l.b16 %v7776
    %v7943 = vunpack.c.h.b16 %v7776
    %v7944 = vunpack.c.l.b16 %v7777
    %v7945 = vunpack.c.h.b16 %v7777
    %v7946 = vunpack.c.l.b16 %v7778
    %v7947 = vunpack.c.h.b16 %v7778
    %v7948 = vunpack.c.l.b16 %v7779
    %v7949 = vunpack.c.h.b16 %v7779
    %v7950 = vunpack.c.l.b16 %v7780
    %v7951 = vunpack.c.h.b16 %v7780
    %v7952 = vunpack.c.l.b16 %v7781
    %v7953 = vunpack.c.h.b16 %v7781
    %v7954 = vunpack.c.l.b16 %v7782
    %v7955 = vunpack.c.h.b16 %v7782
    %v7956 = vunpack.c.l.b16 %v7783
    %v7957 = vunpack.c.h.b16 %v7783
    %v7958 = vunpack.c.l.b16 %v7784
    %v7959 = vunpack.c.h.b16 %v7784
    %v7960 = vunpack.c.l.b16 %v7785
    %v7961 = vunpack.c.h.b16 %v7785
    %v7962 = vunpack.c.l.b16 %v7786
    %v7963 = vunpack.c.h.b16 %v7786
    %v7964 = vunpack.c.l.b16 %v7787
    %v7965 = vunpack.c.h.b16 %v7787
    %v7966 = vunpack.c.l.b16 %v7788
    %v7967 = vunpack.c.h.b16 %v7788
    %v7968 = vunpack.c.l.b16 %v7789
    %v7969 = vunpack.c.h.b16 %v7789
    %v7970 = vunpack.c.l.b16 %v7790
    %v7971 = vunpack.c.h.b16 %v7790
    %v7972 = vunpack.c.l.b16 %v7791
    %v7973 = vunpack.c.h.b16 %v7791
    %v7974 = vunpack.c.l.b16 %v7792
    %v7975 = vunpack.c.h.b16 %v7792
    %v7976 = vunpack.c.l.b16 %v7793
    %v7977 = vunpack.c.h.b16 %v7793
    %v7978 = vunpack.c.l.b16 %v7794
    %v7979 = vunpack.c.h.b16 %v7794
    %v7980 = vunpack.c.l.b16 %v7795
    %v7981 = vunpack.c.h.b16 %v7795
    %v7982 = vunpack.c.l.b16 %v7796
    %v7983 = vunpack.c.h.b16 %v7796
    %v7984 = vunpack.c.l.b16 %v7797
    %v7985 = vunpack.c.h.b16 %v7797
    %v7986 = vunpack.c.l.b16 %v7798
    %v7987 = vunpack.c.h.b16 %v7798
    %v7988 = vunpack.c.l.b16 %v7799
    %v7989 = vunpack.c.h.b16 %v7799
    %v7990 = vunpack.c.l.b16 %v7800
    %v7991 = vunpack.c.h.b16 %v7800
    %v7992 = vunpack.c.l.b16 %v7801
    %v7993 = vunpack.c.h.b16 %v7801
    %v7994 = vunpack.c.l.b16 %v7802
    %v7995 = vunpack.c.h.b16 %v7802
    %v7996 = vunpack.c.l.b16 %v7803
    %v7997 = vunpack.c.h.b16 %v7803
    %v7998 = vunpack.c.l.b16 %v7804
    %v7999 = vunpack.c.h.b16 %v7804
    %v8000 = vunpack.c.l.b16 %v7805
    %v8001 = vunpack.c.h.b16 %v7805
    %v8002 = vunpack.c.l.b16 %v7806
    %v8003 = vunpack.c.h.b16 %v7806
    %v8004 = vunpack.c.l.b16 %v7807
    %v8005 = vunpack.c.h.b16 %v7807
    %v8006 = vunpack.c.l.b16 %v7808
    %v8007 = vunpack.c.h.b16 %v7808
    %v8008 = vunpack.c.l.b16 %v7809
    %v8009 = vunpack.c.h.b16 %v7809
    %v8010 = vunpack.c.l.b16 %v7810
    %v8011 = vunpack.c.h.b16 %v7810
    %v8012 = vunpack.c.l.b16 %v7811
    %v8013 = vunpack.c.h.b16 %v7811
    %v8014 = vunpack.c.l.b16 %v7812
    %v8015 = vunpack.c.h.b16 %v7812
    %v8016 = vunpack.c.l.b16 %v7813
    %v8017 = vunpack.c.h.b16 %v7813
    %v8018 = vpack.c.b16 %v7892, %v7890
    %v8019 = vpack.c.b16 %v7893, %v7891
    %v8020 = vpack.c.b16 %v7896, %v7894
    %v8021 = vpack.c.b16 %v7897, %v7895
    %v8022 = vpack.c.b16 %v7900, %v7898
    %v8023 = vpack.c.b16 %v7901, %v7899
    %v8024 = vpack.c.b16 %v7904, %v7902
    %v8025 = vpack.c.b16 %v7905, %v7903
    %v8026 = vpack.c.b16 %v7908, %v7906
    %v8027 = vpack.c.b16 %v7909, %v7907
    %v8028 = vpack.c.b16 %v7912, %v7910
    %v8029 = vpack.c.b16 %v7913, %v7911
    %v8030 = vpack.c.b16 %v7916, %v7914
    %v8031 = vpack.c.b16 %v7917, %v7915
    %v8032 = vpack.c.b16 %v7920, %v7918
    %v8033 = vpack.c.b16 %v7921, %v7919
    %v8034 = vpack.c.b16 %v7924, %v7922
    %v8035 = vpack.c.b16 %v7925, %v7923
    %v8036 = vpack.c.b16 %v7928, %v7926
    %v8037 = vpack.c.b16 %v7929, %v7927
    %v8038 = vpack.c.b16 %v7932, %v7930
    %v8039 = vpack.c.b16 %v7933, %v7931
    %v8040 = vpack.c.b16 %v7936, %v7934
    %v8041 = vpack.c.b16 %v7937, %v7935
    %v8042 = vpack.c.b16 %v7940, %v7938
    %v8043 = vpack.c.b16 %v7941, %v7939
    %v8044 = vpack.c.b16 %v7944, %v7942
    %v8045 = vpack.c.b16 %v7945, %v7943
    %v8046 = vpack.c.b16 %v7948, %v7946
    %v8047 = vpack.c.b16 %v7949, %v7947
    %v8048 = vpack.c.b16 %v7952, %v7950
    %v8049 = vpack.c.b16 %v7953, %v7951
    %v8050 = vpack.c.b16 %v7956, %v7954
    %v8051 = vpack.c.b16 %v7957, %v7955
    %v8052 = vpack.c.b16 %v7960, %v7958
    %v8053 = vpack.c.b16 %v7961, %v7959
    %v8054 = vpack.c.b16 %v7964, %v7962
    %v8055 = vpack.c.b16 %v7965, %v7963
    %v8056 = vpack.c.b16 %v7968, %v7966
    %v8057 = vpack.c.b16 %v7969, %v7967
    %v8058 = vpack.c.b16 %v7972, %v7970
    %v8059 = vpack.c.b16 %v7973, %v7971
    %v8060 = vpack.c.b16 %v7976, %v7974
    %v8061 = vpack.c.b16 %v7977, %v7975
    %v8062 = vpack.c.b16 %v7980, %v7978
    %v8063 = vpack.c.b16 %v7981, %v7979
    %v8064 = vpack.c.b16 %v7984, %v7982
    %v8065 = vpack.c.b16 %v7985, %v7983
    %v8066 = vpack.c.b16 %v7988, %v7986
    %v8067 = vpack.c.b16 %v7989, %v7987
    %v8068 = vpack.c.b16 %v7992, %v7990
    %v8069 = vpack.c.b16 %v7993, %v7991
    %v8070 = vpack.c.b16 %v7996, %v7994
    %v8071 = vpack.c.b16 %v7997, %v7995
    %v8072 = vpack.c.b16 %v8000, %v7998
    %v8073 = vpack.c.b16 %v8001, %v7999
    %v8074 = vpack.c.b16 %v8004, %v8002
    %v8075 = vpack.c.b16 %v8005, %v8003
    %v8076 = vpack.c.b16 %v8008, %v8006
    %v8077 = vpack.c.b16 %v8009, %v8007
    %v8078 = vpack.c.b16 %v8012, %v8010
    %v8079 = vpack.c.b16 %v8013, %v8011
    %v8080 = vpack.c.b16 %v8016, %v8014
    %v8081 = vpack.c.b16 %v8017, %v8015
    %8146 = vmatprep.subr.bf16.mxu0 %v8033
    %8147 = vmatpush1.bf16.msra.mxu0 %v8032
    %8148 = vmatprep.subr.bf16.mxu0 %v8031
    %8149 = vmatpush1.bf16.msra.mxu0 %v8030
    %8150 = vmatprep.subr.bf16.mxu0 %v8029
    %8151 = vmatpush1.bf16.msra.mxu0 %v8028
    %8152 = vmatprep.subr.bf16.mxu0 %v8027
    %8153 = vmatpush1.bf16.msra.mxu0 %v8026
    %8154 = vmatprep.subr.bf16.mxu0 %v8025
    %8155 = vmatpush1.bf16.msra.mxu0 %v8024
    %8156 = vmatprep.subr.bf16.mxu0 %v8023
    %8157 = vmatpush1.bf16.msra.mxu0 %v8022
    %8158 = vmatprep.subr.bf16.mxu0 %v8021
    %8159 = vmatpush1.bf16.msra.mxu0 %v8020
    %8160 = vmatprep.subr.bf16.mxu0 %v8019
    %8161 = vmatpush1.bf16.msra.mxu0 %v8018
    %8162 = vmatprep.subr.bf16.mxu0 %v8049
    %8163 = vmatpush2.bf16.msra.mxu0 %v8048
    %8164 = vmatprep.subr.bf16.mxu0 %v8047
    %8165 = vmatpush2.bf16.msra.mxu0 %v8046
    %8166 = vmatprep.subr.bf16.mxu0 %v8045
    %8167 = vmatpush2.bf16.msra.mxu0 %v8044
    %8168 = vmatprep.subr.bf16.mxu0 %v8043
    %8169 = vmatpush2.bf16.msra.mxu0 %v8042
    %8170 = vmatprep.subr.bf16.mxu0 %v8041
    %8171 = vmatpush2.bf16.msra.mxu0 %v8040
    %8172 = vmatprep.subr.bf16.mxu0 %v8039
    %8173 = vmatpush2.bf16.msra.mxu0 %v8038
    %8174 = vmatprep.subr.bf16.mxu0 %v8037
    %8175 = vmatpush2.bf16.msra.mxu0 %v8036
    %8176 = vmatprep.subr.bf16.mxu0 %v8035
    %8177 = vmatpush2.bf16.msra.mxu0 %v8034
    %8178 = vmatprep.mubr.bf16.mxu0 %v7747
    %8179 = vmatmul.mubr.bf16.gmra.mxu0 %v7746
    %v8180 = vpop.f32.mrf.mxu0
    %v8181 = vadd.f32 %v7819, %v8180
    %v8182 = vpop.f32.mrf.mxu0
    %v8183 = vadd.f32 %v7823, %v8182
    %v8184 = vpop.f32.mrf.mxu0
    %v8185 = vpop.f32.mrf.mxu0
    %8186 = vdwg.mxu0
    %8187 = vmatprep.subr.bf16.mxu0 %v8065
    %8188 = vmatpush1.bf16.msra.mxu0 %v8064
    %8189 = vmatprep.subr.bf16.mxu0 %v8063
    %8190 = vmatpush1.bf16.msra.mxu0 %v8062
    %8191 = vmatprep.subr.bf16.mxu0 %v8061
    %8192 = vmatpush1.bf16.msra.mxu0 %v8060
    %8193 = vmatprep.subr.bf16.mxu0 %v8059
    %8194 = vmatpush1.bf16.msra.mxu0 %v8058
    %8195 = vmatprep.subr.bf16.mxu0 %v8057
    %8196 = vmatpush1.bf16.msra.mxu0 %v8056
    %8197 = vmatprep.subr.bf16.mxu0 %v8055
    %8198 = vmatpush1.bf16.msra.mxu0 %v8054
    %8199 = vmatprep.subr.bf16.mxu0 %v8053
    %8200 = vmatpush1.bf16.msra.mxu0 %v8052
    %8201 = vmatprep.subr.bf16.mxu0 %v8051
    %8202 = vmatpush1.bf16.msra.mxu0 %v8050
    %8203 = vmatprep.subr.bf16.mxu0 %v8081
    %8204 = vmatpush2.bf16.msra.mxu0 %v8080
    %8205 = vmatprep.subr.bf16.mxu0 %v8079
    %8206 = vmatpush2.bf16.msra.mxu0 %v8078
    %8207 = vmatprep.subr.bf16.mxu0 %v8077
    %8208 = vmatpush2.bf16.msra.mxu0 %v8076
    %8209 = vmatprep.subr.bf16.mxu0 %v8075
    %8210 = vmatpush2.bf16.msra.mxu0 %v8074
    %8211 = vmatprep.subr.bf16.mxu0 %v8073
    %8212 = vmatpush2.bf16.msra.mxu0 %v8072
    %8213 = vmatprep.subr.bf16.mxu0 %v8071
    %8214 = vmatpush2.bf16.msra.mxu0 %v8070
    %8215 = vmatprep.subr.bf16.mxu0 %v8069
    %8216 = vmatpush2.bf16.msra.mxu0 %v8068
    %8217 = vmatprep.subr.bf16.mxu0 %v8067
    %8218 = vmatpush2.bf16.msra.mxu0 %v8066
    %8219 = vmatprep.mubr.bf16.mxu0 %v7749
    %8220 = vmatmul.mubr.bf16.gmra.mxu0 %v7748
    %v8221 = vpop.f32.mrf.mxu0
    %v8222 = vadd.f32 %v8181, %v8221
    %v8223 = vpop.f32.mrf.mxu0
    %v8224 = vadd.f32 %v8183, %v8223
    %v8225 = vpop.f32.mrf.mxu0
    %v8226 = vpop.f32.mrf.mxu0
    %8227 = vdwg.mxu0
    %v8228 = vmax.f32 %v8222, 0.0
    %v8229 = vmax.f32 %v8224, 0.0
    %v8230 = vpack.c.bf16 %v8228, %v8228
    %v8231 = vpack.c.bf16 %v8229, %v8229
    %v8232 = vld [vmem:[%s5] sm:$0xf]
    %v8233 = vld [vmem:[%s5 + $0x4] sm:$0xf]
    %v8234 = vld [vmem:[%s5 + $0x8] sm:$0xf]
    %v8235 = vld [vmem:[%s5 + $0xc] sm:$0xf]
    %v8236 = vld [vmem:[%s5 + $0x10] sm:$0xf]
    %v8237 = vld [vmem:[%s5 + $0x14] sm:$0xf]
    %v8238 = vld [vmem:[%s5 + $0x18] sm:$0xf]
    %v8239 = vld [vmem:[%s5 + $0x1c] sm:$0xf]
    %v8240 = vld [vmem:[%s5 + $0x20] sm:$0xf]
    %v8241 = vld [vmem:[%s5 + $0x24] sm:$0xf]
    %v8242 = vld [vmem:[%s5 + $0x28] sm:$0xf]
    %v8243 = vld [vmem:[%s5 + $0x2c] sm:$0xf]
    %v8244 = vld [vmem:[%s5 + $0x30] sm:$0xf]
    %v8245 = vld [vmem:[%s5 + $0x34] sm:$0xf]
    %v8246 = vld [vmem:[%s5 + $0x38] sm:$0xf]
    %v8247 = vld [vmem:[%s5 + $0x3c] sm:$0xf]
    %v8248 = vld [vmem:[%s5 + $0x40] sm:$0xf]
    %v8249 = vld [vmem:[%s5 + $0x44] sm:$0xf]
    %v8250 = vld [vmem:[%s5 + $0x48] sm:$0xf]
    %v8251 = vld [vmem:[%s5 + $0x4c] sm:$0xf]
    %v8252 = vld [vmem:[%s5 + $0x50] sm:$0xf]
    %v8253 = vld [vmem:[%s5 + $0x54] sm:$0xf]
    %v8254 = vld [vmem:[%s5 + $0x58] sm:$0xf]
    %v8255 = vld [vmem:[%s5 + $0x5c] sm:$0xf]
    %v8256 = vld [vmem:[%s5 + $0x60] sm:$0xf]
    %v8257 = vld [vmem:[%s5 + $0x64] sm:$0xf]
    %v8258 = vld [vmem:[%s5 + $0x68] sm:$0xf]
    %v8259 = vld [vmem:[%s5 + $0x6c] sm:$0xf]
    %v8260 = vld [vmem:[%s5 + $0x70] sm:$0xf]
    %v8261 = vld [vmem:[%s5 + $0x74] sm:$0xf]
    %v8262 = vld [vmem:[%s5 + $0x78] sm:$0xf]
    %v8263 = vld [vmem:[%s5 + $0x7c] sm:$0xf]
    %v8264 = vld [vmem:[%s6] sm:$0x1]
    %v8266 = vlaneseq
    %v8267 = vshrl.u32 %v8266, 7
    %v8268 = vsub.s32 0, %v8267
    %v8269 = vrot.slane %v8264, %v8268
    %v8303 = vunpack.c.l.b16 %v8232
    %v8304 = vunpack.c.l.b16 %v8233
    %v8305 = vunpack.c.l.b16 %v8234
    %v8306 = vunpack.c.l.b16 %v8235
    %v8307 = vunpack.c.l.b16 %v8236
    %v8308 = vunpack.c.l.b16 %v8237
    %v8309 = vunpack.c.l.b16 %v8238
    %v8310 = vunpack.c.l.b16 %v8239
    %v8311 = vunpack.c.l.b16 %v8240
    %v8312 = vunpack.c.l.b16 %v8241
    %v8313 = vunpack.c.l.b16 %v8242
    %v8314 = vunpack.c.l.b16 %v8243
    %v8315 = vunpack.c.l.b16 %v8244
    %v8316 = vunpack.c.l.b16 %v8245
    %v8317 = vunpack.c.l.b16 %v8246
    %v8318 = vunpack.c.l.b16 %v8247
    %v8319 = vunpack.c.l.b16 %v8248
    %v8320 = vunpack.c.l.b16 %v8249
    %v8321 = vunpack.c.l.b16 %v8250
    %v8322 = vunpack.c.l.b16 %v8251
    %v8323 = vunpack.c.l.b16 %v8252
    %v8324 = vunpack.c.l.b16 %v8253
    %v8325 = vunpack.c.l.b16 %v8254
    %v8326 = vunpack.c.l.b16 %v8255
    %v8327 = vunpack.c.l.b16 %v8256
    %v8328 = vunpack.c.l.b16 %v8257
    %v8329 = vunpack.c.l.b16 %v8258
    %v8330 = vunpack.c.l.b16 %v8259
    %v8331 = vunpack.c.l.b16 %v8260
    %v8332 = vunpack.c.l.b16 %v8261
    %v8333 = vunpack.c.l.b16 %v8262
    %v8334 = vunpack.c.l.b16 %v8263
    %v8335 = vpack.c.b16 %v8304, %v8303
    %v8336 = vpack.c.b16 %v8306, %v8305
    %v8337 = vpack.c.b16 %v8308, %v8307
    %v8338 = vpack.c.b16 %v8310, %v8309
    %v8339 = vpack.c.b16 %v8312, %v8311
    %v8340 = vpack.c.b16 %v8314, %v8313
    %v8341 = vpack.c.b16 %v8316, %v8315
    %v8342 = vpack.c.b16 %v8318, %v8317
    %v8343 = vpack.c.b16 %v8320, %v8319
    %v8344 = vpack.c.b16 %v8322, %v8321
    %v8345 = vpack.c.b16 %v8324, %v8323
    %v8346 = vpack.c.b16 %v8326, %v8325
    %v8347 = vpack.c.b16 %v8328, %v8327
    %v8348 = vpack.c.b16 %v8330, %v8329
    %v8349 = vpack.c.b16 %v8332, %v8331
    %v8350 = vpack.c.b16 %v8334, %v8333
    %8367 = vmatprep.subr.bf16.mxu0 0
    %8368 = vmatpush1.bf16.msra.mxu0 %v8342
    %8369 = vmatprep.subr.bf16.mxu0 0
    %8370 = vmatpush1.bf16.msra.mxu0 %v8341
    %8371 = vmatprep.subr.bf16.mxu0 0
    %8372 = vmatpush1.bf16.msra.mxu0 %v8340
    %8373 = vmatprep.subr.bf16.mxu0 0
    %8374 = vmatpush1.bf16.msra.mxu0 %v8339
    %8375 = vmatprep.subr.bf16.mxu0 0
    %8376 = vmatpush1.bf16.msra.mxu0 %v8338
    %8377 = vmatprep.subr.bf16.mxu0 0
    %8378 = vmatpush1.bf16.msra.mxu0 %v8337
    %8379 = vmatprep.subr.bf16.mxu0 0
    %8380 = vmatpush1.bf16.msra.mxu0 %v8336
    %8381 = vmatprep.subr.bf16.mxu0 0
    %8382 = vmatpush1.bf16.msra.mxu0 %v8335
    %8383 = vmatprep.subr.bf16.mxu0 0
    %8384 = vmatpush2.bf16.msra.mxu0 %v8350
    %8385 = vmatprep.subr.bf16.mxu0 0
    %8386 = vmatpush2.bf16.msra.mxu0 %v8349
    %8387 = vmatprep.subr.bf16.mxu0 0
    %8388 = vmatpush2.bf16.msra.mxu0 %v8348
    %8389 = vmatprep.subr.bf16.mxu0 0
    %8390 = vmatpush2.bf16.msra.mxu0 %v8347
    %8391 = vmatprep.subr.bf16.mxu0 0
    %8392 = vmatpush2.bf16.msra.mxu0 %v8346
    %8393 = vmatprep.subr.bf16.mxu0 0
    %8394 = vmatpush2.bf16.msra.mxu0 %v8345
    %8395 = vmatprep.subr.bf16.mxu0 0
    %8396 = vmatpush2.bf16.msra.mxu0 %v8344
    %8397 = vmatprep.subr.bf16.mxu0 0
    %8398 = vmatpush2.bf16.msra.mxu0 %v8343
    %8399 = vmatprep.mubr.bf16.mxu0 %v8231
    %8400 = vmatmul.mubr.bf16.gmra.mxu0 %v8230
    %v8401 = vpop.f32.mrf.mxu0
    %v8402 = vadd.f32 %v8269, %v8401
    %v8403 = vpop.f32.mrf.mxu0
    %v8404 = vpop.f32.mrf.mxu0
    %v8405 = vpop.f32.mrf.mxu0
    %8406 = vdwg.mxu0
    %8407 = vst [vmem:[#allocation2] sm:$0x3] %v8402
    // Predicated region
    $region30: #{cnn_forward.5} parent=1 // pred_check
      _
    $region31: #{cnn_forward.5} parent=1 // pred_check_branch
      %8409 = sbr.rel (0) target = $region33
    $region32: #{cnn_forward.5} parent=1 // pred_region
      %s8411 = ssub.s32 32, 32
      %8412 = vsyncadd [#allocation3], %s8411
      %s8414 = sshll.u32 [#allocation2], 4
      %s8415 = int_to_ptr.vmem [resolvable:$true] %s8414
      %8417 = dma.vmem_to_hbm [thread:$0]  %s8415, 32, %s7, [#allocation3]
    $region33: #{cnn_forward.5} parent=1 // pred_fallthru
      _
    // Predicated region
    $region34: #{cnn_forward.5} parent=1 // pred_check
      _
    $region35: #{cnn_forward.5} parent=1 // pred_check_branch
      %8419 = sbr.rel (0) target = $region37
    $region36: #{cnn_forward.5} parent=1 // pred_region
      %8420 = dma.done [#allocation3], 32
    $region37: #{cnn_forward.5} parent=1 // pred_fallthru
      _
    %8421 = vsyncpa [#allocation3], 1

</llo_original>
